<compile_context>
chip_gen: v7x
topology: tpu7x:2x2x1
jax: 0.10.0
libtpu: 0.0.40
codegen_flags: <defaults>
</compile_context>

<pallas_src>
import math

import jax
import jax.numpy as jnp
from jax.experimental import pallas as pl
from jax.experimental.pallas import tpu as pltpu


# ----------------------------------------------------------------------------
# Parameter packing: everything into one (R, 128) f32 buffer, 8-row aligned.
# ----------------------------------------------------------------------------
_LANE_WIDTH = 128
_ROW_ALIGN = 8


class _Packer:
    def __init__(self):
        self._chunks = []
        self._rows = 0

    def add(self, arr):
        arr = jnp.asarray(arr, jnp.float32)
        if arr.ndim == 1:
            arr = arr.reshape(1, -1)
        r, c = arr.shape
        assert c <= _LANE_WIDTH, f"feature dim {c} > lane width {_LANE_WIDTH}"
        r_pad = (-r) % _ROW_ALIGN
        chunk = jnp.zeros((r + r_pad, _LANE_WIDTH), jnp.float32)
        chunk = chunk.at[:r, :c].set(arr)
        entry = (self._rows, r, c)          # static (offset, rows, cols)
        self._chunks.append(chunk)
        self._rows += r + r_pad
        return entry

    def finalize(self):
        return jnp.concatenate(self._chunks, axis=0)


def prepare_params(params, temperature):
    """Packs all parameters into a single buffer and folds 1/temperature into
    the final actor layer.  Returns (packed (R,128) f32 array, static layout)."""
    pk = _Packer()

    def pack_linear(lin, scale=1.0):
        return {"W": pk.add(lin["W"] * scale), "b": pk.add(lin["b"] * scale)}

    def pack_mab(p):
        out = {"q": pack_linear(p["q"]), "k": pack_linear(p["k"]),
               "v": pack_linear(p["v"]), "o": pack_linear(p["o"])}
        if "ln0" in p:
            out["ln0"] = {"g": pk.add(p["ln0"]["g"]), "b": pk.add(p["ln0"]["b"])}
            out["ln1"] = {"g": pk.add(p["ln1"]["g"]), "b": pk.add(p["ln1"]["b"])}
        return out

    layout = {"isabs": [], "pma": None, "actor": []}
    for isab in params["isabs"]:
        layout["isabs"].append({"I": pk.add(isab["I"]),
                                "mab0": pack_mab(isab["mab0"]),
                                "mab1": pack_mab(isab["mab1"])})
    layout["pma"] = {"S": pk.add(params["pma"]["S"]),
                     "mab": pack_mab(params["pma"]["mab"])}

    inv_t = 1.0 / float(temperature)
    n_actor = len(params["actor"])
    for i, lin in enumerate(params["actor"]):
        scale = inv_t if i == n_actor - 1 else 1.0
        layout["actor"].append(pack_linear(lin, scale))

    return pk.finalize(), layout


# ----------------------------------------------------------------------------
# Fused kernel: ISAB stack + PMA + actor MLP + masking + log-softmax.
# One batch row per grid step -> all projections are plain 2-D MXU matmuls.
# ----------------------------------------------------------------------------
def _make_kernel(layout, num_heads, num_actions, logit_constraint):
    A = num_actions

    def kernel(belief_ref, avail_ref, params_ref, out_ref):
        def load(entry):
            off, r, c = entry                       # all Python ints (static)
            return params_ref[pl.ds(off, r), pl.ds(0, c)]

        def linear(x, lin):
            w = load(lin["W"])                      # (din, dout)
            b = load(lin["b"])                      # (1, dout)
            return jnp.dot(x, w, preferred_element_type=jnp.float32) + b

        def layer_norm(x, ln):
            g = load(ln["g"])
            b = load(ln["b"])
            mu = jnp.mean(x, axis=-1, keepdims=True)
            var = jnp.mean(jnp.square(x - mu), axis=-1, keepdims=True)
            return (x - mu) * jax.lax.rsqrt(var + 1e-5) * g + b

        def mab(qx, kx, p):
            # Multihead Attention Block (Set Transformer):
            #   O = LN0(Q + MH(Q, K, V));  O = LN1(O + relu(fc_o(O)))
            q = linear(qx, p["q"])                  # (nq, dv)
            k = linear(kx, p["k"])                  # (nk, dv)
            v = linear(kx, p["v"])                  # (nk, dv)
            dv = q.shape[-1]
            dh = dv // num_heads
            inv_scale = 1.0 / math.sqrt(float(dv))  # canonical: sqrt(dim_V)
            heads = []
            for h in range(num_heads):              # static per-head loop
                lo, hi = h * dh, (h + 1) * dh
                qh, kh, vh = q[:, lo:hi], k[:, lo:hi], v[:, lo:hi]
                s = jax.lax.dot_general(            # qh @ kh^T
                    qh, kh, (((1,), (1,)), ((), ())),
                    preferred_element_type=jnp.float32) * inv_scale
                s = s - jnp.max(s, axis=-1, keepdims=True)
                e = jnp.exp(s)
                attn = e / jnp.sum(e, axis=-1, keepdims=True)
                heads.append(jnp.dot(attn, vh,
                                     preferred_element_type=jnp.float32))
            o = q + jnp.concatenate(heads, axis=-1)
            if "ln0" in p:
                o = layer_norm(o, p["ln0"])
            o = o + jnp.maximum(linear(o, p["o"]), 0.0)
            if "ln1" in p:
                o = layer_norm(o, p["ln1"])
            return o

        # ---- embed_net: ISAB stack then PMA (current batch row) ----
        x = belief_ref[0]                           # (N, D)
        for isab in layout["isabs"]:
            ind = load(isab["I"])                   # (num_inds, dout)
            h = mab(ind, x, isab["mab0"])           # (num_inds, dout)
            x = mab(x, h, isab["mab1"])             # (N, dout)
        seed = load(layout["pma"]["S"])             # (1, dout)
        z = mab(seed, x, layout["pma"]["mab"])      # (1, dout)  == Flatten

        # ---- actor MLP (1/temperature already folded into last layer) ----
        n_actor = len(layout["actor"])
        for i, lin in enumerate(layout["actor"]):
            z = linear(z, lin)
            if i < n_actor - 1:
                z = jnp.maximum(z, 0.0)
        logits = z                                  # (1, A)

        if logit_constraint:
            avail = avail_ref[0]                    # (1, A)
            logits = jnp.where(avail > 0.5, logits, jnp.float32(-1.0e12))

        # Categorical(logits=logits): normalized log-probabilities (f32).
        mx = jnp.max(logits, axis=-1, keepdims=True)
        lse = mx + jnp.log(jnp.sum(jnp.exp(logits - mx), axis=-1, keepdims=True))
        out_ref[0] = jnp.concatenate([logits, logits - lse], axis=-1)   # (1, 2A)

    return kernel


def belief_set_actor_forward(belief, availability, packed_params, layout, *,
                             num_heads, num_actions, logit_constraint=True):
    """Fused Pallas forward.  Returns (masked logits, Categorical log_probs)."""
    B, N, D = belief.shape
    A = num_actions
    avail3 = availability.astype(jnp.float32).reshape(B, 1, A)

    kernel = _make_kernel(layout, num_heads, A, logit_constraint)

    out = pl.pallas_call(
        kernel,
        out_shape=jax.ShapeDtypeStruct((B, 1, 2 * A), jnp.float32),
        grid=(B,),
        in_specs=[
            pl.BlockSpec((1, N, D), lambda b: (b, 0, 0)),          # belief row
            pl.BlockSpec((1, 1, A), lambda b: (b, 0, 0)),          # availability
            pl.BlockSpec(packed_params.shape, lambda b: (0, 0)),   # params (resident)
        ],
        out_specs=pl.BlockSpec((1, 1, 2 * A), lambda b: (b, 0, 0)),
        compiler_params=pltpu.CompilerParams(
            dimension_semantics=("parallel",),       # megacore batch split (v7x)
            vmem_limit_bytes=32 * 1024 * 1024,       # safe on v7x's 64 MiB VMEM
        ),
    )(belief.astype(jnp.float32), avail3, packed_params)

    out = out.reshape(B, 2 * A)
    return out[:, :A], out[:, A:]


# ----------------------------------------------------------------------------
# Deterministic parameter init + pure-JAX reference (for correctness check).
# ----------------------------------------------------------------------------
def _init_linear(key, din, dout):
    key, kw, kb = jax.random.split(key, 3)
    w = jax.random.normal(kw, (din, dout), jnp.float32) / jnp.sqrt(jnp.float32(din))
    b = jax.random.normal(kb, (1, dout), jnp.float32) * 0.01
    return {"W": w, "b": b}, key


def _init_mab(key, dq, dk, dv, use_ln):
    p = {}
    p["q"], key = _init_linear(key, dq, dv)
    p["k"], key = _init_linear(key, dk, dv)
    p["v"], key = _init_linear(key, dk, dv)
    p["o"], key = _init_linear(key, dv, dv)
    if use_ln:
        key, k0, k1, k2, k3 = jax.random.split(key, 5)
        p["ln0"] = {"g": 1.0 + 0.1 * jax.random.normal(k0, (1, dv), jnp.float32),
                    "b": 0.1 * jax.random.normal(k1, (1, dv), jnp.float32)}
        p["ln1"] = {"g": 1.0 + 0.1 * jax.random.normal(k2, (1, dv), jnp.float32),
                    "b": 0.1 * jax.random.normal(k3, (1, dv), jnp.float32)}
    return p, key


def _init_isab(key, din, dout, num_inds, use_ln):
    key, ki = jax.random.split(key)
    I = jax.random.normal(ki, (num_inds, dout), jnp.float32) / jnp.sqrt(jnp.float32(dout))
    mab0, key = _init_mab(key, dout, din, dout, use_ln)
    mab1, key = _init_mab(key, din, dout, dout, use_ln)
    return {"I": I, "mab0": mab0, "mab1": mab1}, key


def _init_pma(key, d, use_ln):
    key, ks = jax.random.split(key)
    S = jax.random.normal(ks, (1, d), jnp.float32) / jnp.sqrt(jnp.float32(d))
    mab, key = _init_mab(key, d, d, d, use_ln)
    return {"S": S, "mab": mab}, key


def init_belief_set_actor(key, belief_dim, belief_embed_dims, num_inds,
                          use_ln, actor_layers, num_actions):
    isabs = []
    din = belief_dim
    for dout in belief_embed_dims:
        isab, key = _init_isab(key, din, dout, num_inds, use_ln)
        isabs.append(isab)
        din = dout
    pma, key = _init_pma(key, din, use_ln)
    actor = []
    dims = [din] + list(actor_layers) + [num_actions]
    for i in range(len(dims) - 1):
        lin, key = _init_linear(key, dims[i], dims[i + 1])
        actor.append(lin)
    return {"isabs": isabs, "pma": pma, "actor": actor}, key


def _ref_layer_norm(x, ln):
    mu = jnp.mean(x, axis=-1, keepdims=True)
    var = jnp.mean(jnp.square(x - mu), axis=-1, keepdims=True)
    return (x - mu) / jnp.sqrt(var + 1e-5) * ln["g"] + ln["b"]


def _ref_mab(qx, kx, p, num_heads):
    q = qx @ p["q"]["W"] + p["q"]["b"]
    k = kx @ p["k"]["W"] + p["k"]["b"]
    v = kx @ p["v"]["W"] + p["v"]["b"]
    B, nq, dv = q.shape
    dh = dv // num_heads
    qh = q.reshape(B, nq, num_heads, dh)
    kh = k.reshape(B, -1, num_heads, dh)
    vh = v.reshape(B, -1, num_heads, dh)
    s = jnp.einsum("bqhd,bkhd->bhqk", qh, kh) / math.sqrt(float(dv))
    attn = jax.nn.softmax(s, axis=-1)
    o = q + jnp.einsum("bhqk,bkhd->bqhd", attn, vh).reshape(B, nq, dv)
    if "ln0" in p:
        o = _ref_layer_norm(o, p["ln0"])
    o = o + jax.nn.relu(o @ p["o"]["W"] + p["o"]["b"])
    if "ln1" in p:
        o = _ref_layer_norm(o, p["ln1"])
    return o


def ref_forward(belief, availability, params, num_heads, temperature,
                logit_constraint):
    x = belief
    B = x.shape[0]
    for isab in params["isabs"]:
        ind = jnp.broadcast_to(isab["I"][None], (B,) + isab["I"].shape)
        h = _ref_mab(ind, x, isab["mab0"], num_heads)
        x = _ref_mab(x, h, isab["mab1"], num_heads)
    seed = jnp.broadcast_to(params["pma"]["S"][None],
                            (B,) + params["pma"]["S"].shape)
    emb = _ref_mab(seed, x, params["pma"]["mab"], num_heads)
    z = emb.reshape(B, -1)                              # Flatten (num_seeds = 1)
    n_actor = len(params["actor"])
    for i, lin in enumerate(params["actor"]):
        z = z @ lin["W"] + lin["b"]
        if i < n_actor - 1:
            z = jax.nn.relu(z)
    logits = z / temperature
    if logit_constraint:
        logits = jnp.where(availability > 0.5, logits, -1.0e12)
    log_probs = logits - jax.nn.logsumexp(logits, axis=-1, keepdims=True)
    return logits, log_probs


if __name__ == "__main__":
    key = jax.random.PRNGKey(0)

    # Small shapes consistent with the module's forward.
    B, N, D = 2, 8, 16                 # batch, set size, belief_dim
    belief_embed_dims = (32, 32)       # config.belief_embed_dims
    num_heads = 4                      # config.num_heads
    num_inds = 8                       # config.num_inds
    use_ln = True                      # config.use_ln
    actor_layers = (32,)               # config.actor_layers
    num_actions = 8
    temperature = 0.5
    logit_constraint = True

    key, kb, ka = jax.random.split(key, 3)
    belief = jax.random.normal(kb, (B, N, D), jnp.float32)
    availability = (jax.random.uniform(ka, (B, num_actions)) > 0.3)
    availability = availability.astype(jnp.float32)
    availability = availability.at[:, 0].set(1.0)   # at least one action per row

    params, key = init_belief_set_actor(key, D, belief_embed_dims, num_inds,
                                        use_ln, actor_layers, num_actions)

    # One-time parameter preparation: single packed buffer + temperature fold.
    packed_params, layout = prepare_params(params, temperature)

    logits, log_probs = belief_set_actor_forward(
        belief, availability, packed_params, layout,
        num_heads=num_heads, num_actions=num_actions,
        logit_constraint=logit_constraint)
    jax.block_until_ready((logits, log_probs))

    ref_logits, ref_log_probs = ref_forward(
        belief, availability, params, num_heads, temperature, logit_constraint)

    assert jnp.allclose(logits, ref_logits, atol=1e-3, rtol=1e-3), "logits mismatch"
    assert jnp.allclose(log_probs, ref_log_probs, atol=1e-3, rtol=1e-3), "log_probs mismatch"

    # TODO(synk): Categorical sampling/entropy are distribution-object methods,
    # not part of the forward compute; the kernel returns (logits, log_probs).
    print("KERNEL_OK")
</pallas_src>

<mosaic_0001>
module attributes {stable_mosaic.version = 11 : i64} {
  func.func @kernel(%arg0: i32, %arg1: memref<1x8x16xf32, #tpu.memory_space<vmem>>, %arg2: memref<1x1x8xf32, #tpu.memory_space<vmem>>, %arg3: memref<1016x128xf32, #tpu.memory_space<vmem>>, %arg4: memref<1x1x16xf32, #tpu.memory_space<vmem>>) attributes {dimension_semantics = [#tpu.dimension_semantics<parallel>], iteration_bounds = array<i64: 2>, scalar_prefetch = 0 : i64, scratch_operands = 0 : i64, tpu.core_type = #tpu.core_type<tc>, window_params = [{transform_indices = @transform_0, window_bounds = array<i64: 1, 8, 16>}, {transform_indices = @transform_1, window_bounds = array<i64: 1, 1, 8>}, {pipeline_mode = #tpu.pipeline_mode<synchronous>, transform_indices = @transform_2, window_bounds = array<i64: 1016, 128>}, {transform_indices = @transform_3, window_bounds = array<i64: 1, 1, 16>}]} {
    %c0 = arith.constant 0 : index
    %c0_0 = arith.constant 0 : index
    %c0_1 = arith.constant 0 : index
    %0 = vector.load %arg1[%c0, %c0_0, %c0_1] : memref<1x8x16xf32, #tpu.memory_space<vmem>>, vector<1x8x16xf32>
    %1 = vector.shape_cast %0 : vector<1x8x16xf32> to vector<8x16xf32>
    %c0_2 = arith.constant 0 : index
    %c0_3 = arith.constant 0 : index
    %2 = vector.load %arg3[%c0_2, %c0_3] : memref<1016x128xf32, #tpu.memory_space<vmem>>, vector<8x32xf32>
    %c8 = arith.constant 8 : index
    %c0_4 = arith.constant 0 : index
    %3 = vector.load %arg3[%c8, %c0_4] : memref<1016x128xf32, #tpu.memory_space<vmem>>, vector<32x32xf32>
    %c40 = arith.constant 40 : index
    %c0_5 = arith.constant 0 : index
    %4 = vector.load %arg3[%c40, %c0_5] : memref<1016x128xf32, #tpu.memory_space<vmem>>, vector<1x32xf32>
    %cst = arith.constant dense<0.000000e+00> : vector<8x32xf32>
    %5 = tpu.matmul %2, %3, %cst {dimension_numbers = #tpu.dot_dimension_numbers<[1], [0], [0], [1], [0, 0, 1, 1], [], []>} : vector<8x32xf32>, vector<32x32xf32>, vector<8x32xf32> -> vector<8x32xf32>
    %6 = vector.broadcast %4 : vector<1x32xf32> to vector<8x32xf32>
    %7 = arith.addf %5, %6 : vector<8x32xf32>
    %c48 = arith.constant 48 : index
    %c0_6 = arith.constant 0 : index
    %8 = vector.load %arg3[%c48, %c0_6] : memref<1016x128xf32, #tpu.memory_space<vmem>>, vector<16x32xf32>
    %c64 = arith.constant 64 : index
    %c0_7 = arith.constant 0 : index
    %9 = vector.load %arg3[%c64, %c0_7] : memref<1016x128xf32, #tpu.memory_space<vmem>>, vector<1x32xf32>
    %cst_8 = arith.constant dense<0.000000e+00> : vector<8x32xf32>
    %10 = tpu.matmul %1, %8, %cst_8 {dimension_numbers = #tpu.dot_dimension_numbers<[1], [0], [0], [1], [0, 0, 1, 1], [], []>} : vector<8x16xf32>, vector<16x32xf32>, vector<8x32xf32> -> vector<8x32xf32>
    %11 = vector.broadcast %9 : vector<1x32xf32> to vector<8x32xf32>
    %12 = arith.addf %10, %11 : vector<8x32xf32>
    %c72 = arith.constant 72 : index
    %c0_9 = arith.constant 0 : index
    %13 = vector.load %arg3[%c72, %c0_9] : memref<1016x128xf32, #tpu.memory_space<vmem>>, vector<16x32xf32>
    %c88 = arith.constant 88 : index
    %c0_10 = arith.constant 0 : index
    %14 = vector.load %arg3[%c88, %c0_10] : memref<1016x128xf32, #tpu.memory_space<vmem>>, vector<1x32xf32>
    %cst_11 = arith.constant dense<0.000000e+00> : vector<8x32xf32>
    %15 = tpu.matmul %1, %13, %cst_11 {dimension_numbers = #tpu.dot_dimension_numbers<[1], [0], [0], [1], [0, 0, 1, 1], [], []>} : vector<8x16xf32>, vector<16x32xf32>, vector<8x32xf32> -> vector<8x32xf32>
    %16 = vector.broadcast %14 : vector<1x32xf32> to vector<8x32xf32>
    %17 = arith.addf %15, %16 : vector<8x32xf32>
    %18 = vector.extract_strided_slice %7 {offsets = [0, 0], sizes = [8, 8], strides = [1, 1]} : vector<8x32xf32> to vector<8x8xf32>
    %19 = vector.extract_strided_slice %12 {offsets = [0, 0], sizes = [8, 8], strides = [1, 1]} : vector<8x32xf32> to vector<8x8xf32>
    %20 = vector.extract_strided_slice %17 {offsets = [0, 0], sizes = [8, 8], strides = [1, 1]} : vector<8x32xf32> to vector<8x8xf32>
    %cst_12 = arith.constant dense<0.000000e+00> : vector<8x8xf32>
    %21 = tpu.matmul %18, %19, %cst_12 {dimension_numbers = #tpu.dot_dimension_numbers<[1], [1], [0], [0], [0, 0, 1, 0], [], []>} : vector<8x8xf32>, vector<8x8xf32>, vector<8x8xf32> -> vector<8x8xf32>
    %cst_13 = arith.constant 0.176776692 : f32
    %22 = vector.broadcast %cst_13 : f32 to vector<8x8xf32>
    %23 = arith.mulf %21, %22 : vector<8x8xf32>
    %cst_14 = arith.constant dense<0xFF800000> : vector<8xf32>
    %24 = vector.multi_reduction <maximumf>, %23, %cst_14 [1] : vector<8x8xf32> to vector<8xf32>
    %25 = vector.shape_cast %24 : vector<8xf32> to vector<8x1xf32>
    %26 = vector.broadcast %25 : vector<8x1xf32> to vector<8x8xf32>
    %27 = arith.subf %23, %26 : vector<8x8xf32>
    %28 = math.exp %27 : vector<8x8xf32>
    %cst_15 = arith.constant dense<0.000000e+00> : vector<8xf32>
    %29 = vector.multi_reduction <add>, %28, %cst_15 [1] : vector<8x8xf32> to vector<8xf32>
    %30 = vector.shape_cast %29 : vector<8xf32> to vector<8x1xf32>
    %31 = vector.broadcast %30 : vector<8x1xf32> to vector<8x8xf32>
    %32 = arith.divf %28, %31 : vector<8x8xf32>
    %cst_16 = arith.constant dense<0.000000e+00> : vector<8x8xf32>
    %33 = tpu.matmul %32, %20, %cst_16 {dimension_numbers = #tpu.dot_dimension_numbers<[1], [0], [0], [1], [0, 0, 1, 1], [], []>} : vector<8x8xf32>, vector<8x8xf32>, vector<8x8xf32> -> vector<8x8xf32>
    %34 = vector.extract_strided_slice %7 {offsets = [0, 8], sizes = [8, 8], strides = [1, 1]} : vector<8x32xf32> to vector<8x8xf32>
    %35 = vector.extract_strided_slice %12 {offsets = [0, 8], sizes = [8, 8], strides = [1, 1]} : vector<8x32xf32> to vector<8x8xf32>
    %36 = vector.extract_strided_slice %17 {offsets = [0, 8], sizes = [8, 8], strides = [1, 1]} : vector<8x32xf32> to vector<8x8xf32>
    %cst_17 = arith.constant dense<0.000000e+00> : vector<8x8xf32>
    %37 = tpu.matmul %34, %35, %cst_17 {dimension_numbers = #tpu.dot_dimension_numbers<[1], [1], [0], [0], [0, 0, 1, 0], [], []>} : vector<8x8xf32>, vector<8x8xf32>, vector<8x8xf32> -> vector<8x8xf32>
    %cst_18 = arith.constant 0.176776692 : f32
    %38 = vector.broadcast %cst_18 : f32 to vector<8x8xf32>
    %39 = arith.mulf %37, %38 : vector<8x8xf32>
    %cst_19 = arith.constant dense<0xFF800000> : vector<8xf32>
    %40 = vector.multi_reduction <maximumf>, %39, %cst_19 [1] : vector<8x8xf32> to vector<8xf32>
    %41 = vector.shape_cast %40 : vector<8xf32> to vector<8x1xf32>
    %42 = vector.broadcast %41 : vector<8x1xf32> to vector<8x8xf32>
    %43 = arith.subf %39, %42 : vector<8x8xf32>
    %44 = math.exp %43 : vector<8x8xf32>
    %cst_20 = arith.constant dense<0.000000e+00> : vector<8xf32>
    %45 = vector.multi_reduction <add>, %44, %cst_20 [1] : vector<8x8xf32> to vector<8xf32>
    %46 = vector.shape_cast %45 : vector<8xf32> to vector<8x1xf32>
    %47 = vector.broadcast %46 : vector<8x1xf32> to vector<8x8xf32>
    %48 = arith.divf %44, %47 : vector<8x8xf32>
    %cst_21 = arith.constant dense<0.000000e+00> : vector<8x8xf32>
    %49 = tpu.matmul %48, %36, %cst_21 {dimension_numbers = #tpu.dot_dimension_numbers<[1], [0], [0], [1], [0, 0, 1, 1], [], []>} : vector<8x8xf32>, vector<8x8xf32>, vector<8x8xf32> -> vector<8x8xf32>
    %50 = vector.extract_strided_slice %7 {offsets = [0, 16], sizes = [8, 8], strides = [1, 1]} : vector<8x32xf32> to vector<8x8xf32>
    %51 = vector.extract_strided_slice %12 {offsets = [0, 16], sizes = [8, 8], strides = [1, 1]} : vector<8x32xf32> to vector<8x8xf32>
    %52 = vector.extract_strided_slice %17 {offsets = [0, 16], sizes = [8, 8], strides = [1, 1]} : vector<8x32xf32> to vector<8x8xf32>
    %cst_22 = arith.constant dense<0.000000e+00> : vector<8x8xf32>
    %53 = tpu.matmul %50, %51, %cst_22 {dimension_numbers = #tpu.dot_dimension_numbers<[1], [1], [0], [0], [0, 0, 1, 0], [], []>} : vector<8x8xf32>, vector<8x8xf32>, vector<8x8xf32> -> vector<8x8xf32>
    %cst_23 = arith.constant 0.176776692 : f32
    %54 = vector.broadcast %cst_23 : f32 to vector<8x8xf32>
    %55 = arith.mulf %53, %54 : vector<8x8xf32>
    %cst_24 = arith.constant dense<0xFF800000> : vector<8xf32>
    %56 = vector.multi_reduction <maximumf>, %55, %cst_24 [1] : vector<8x8xf32> to vector<8xf32>
    %57 = vector.shape_cast %56 : vector<8xf32> to vector<8x1xf32>
    %58 = vector.broadcast %57 : vector<8x1xf32> to vector<8x8xf32>
    %59 = arith.subf %55, %58 : vector<8x8xf32>
    %60 = math.exp %59 : vector<8x8xf32>
    %cst_25 = arith.constant dense<0.000000e+00> : vector<8xf32>
    %61 = vector.multi_reduction <add>, %60, %cst_25 [1] : vector<8x8xf32> to vector<8xf32>
    %62 = vector.shape_cast %61 : vector<8xf32> to vector<8x1xf32>
    %63 = vector.broadcast %62 : vector<8x1xf32> to vector<8x8xf32>
    %64 = arith.divf %60, %63 : vector<8x8xf32>
    %cst_26 = arith.constant dense<0.000000e+00> : vector<8x8xf32>
    %65 = tpu.matmul %64, %52, %cst_26 {dimension_numbers = #tpu.dot_dimension_numbers<[1], [0], [0], [1], [0, 0, 1, 1], [], []>} : vector<8x8xf32>, vector<8x8xf32>, vector<8x8xf32> -> vector<8x8xf32>
    %66 = vector.extract_strided_slice %7 {offsets = [0, 24], sizes = [8, 8], strides = [1, 1]} : vector<8x32xf32> to vector<8x8xf32>
    %67 = vector.extract_strided_slice %12 {offsets = [0, 24], sizes = [8, 8], strides = [1, 1]} : vector<8x32xf32> to vector<8x8xf32>
    %68 = vector.extract_strided_slice %17 {offsets = [0, 24], sizes = [8, 8], strides = [1, 1]} : vector<8x32xf32> to vector<8x8xf32>
    %cst_27 = arith.constant dense<0.000000e+00> : vector<8x8xf32>
    %69 = tpu.matmul %66, %67, %cst_27 {dimension_numbers = #tpu.dot_dimension_numbers<[1], [1], [0], [0], [0, 0, 1, 0], [], []>} : vector<8x8xf32>, vector<8x8xf32>, vector<8x8xf32> -> vector<8x8xf32>
    %cst_28 = arith.constant 0.176776692 : f32
    %70 = vector.broadcast %cst_28 : f32 to vector<8x8xf32>
    %71 = arith.mulf %69, %70 : vector<8x8xf32>
    %cst_29 = arith.constant dense<0xFF800000> : vector<8xf32>
    %72 = vector.multi_reduction <maximumf>, %71, %cst_29 [1] : vector<8x8xf32> to vector<8xf32>
    %73 = vector.shape_cast %72 : vector<8xf32> to vector<8x1xf32>
    %74 = vector.broadcast %73 : vector<8x1xf32> to vector<8x8xf32>
    %75 = arith.subf %71, %74 : vector<8x8xf32>
    %76 = math.exp %75 : vector<8x8xf32>
    %cst_30 = arith.constant dense<0.000000e+00> : vector<8xf32>
    %77 = vector.multi_reduction <add>, %76, %cst_30 [1] : vector<8x8xf32> to vector<8xf32>
    %78 = vector.shape_cast %77 : vector<8xf32> to vector<8x1xf32>
    %79 = vector.broadcast %78 : vector<8x1xf32> to vector<8x8xf32>
    %80 = arith.divf %76, %79 : vector<8x8xf32>
    %cst_31 = arith.constant dense<0.000000e+00> : vector<8x8xf32>
    %81 = tpu.matmul %80, %68, %cst_31 {dimension_numbers = #tpu.dot_dimension_numbers<[1], [0], [0], [1], [0, 0, 1, 1], [], []>} : vector<8x8xf32>, vector<8x8xf32>, vector<8x8xf32> -> vector<8x8xf32>
    %82 = tpu.concatenate %33, %49, %65, %81 in 1 : vector<8x8xf32>, vector<8x8xf32>, vector<8x8xf32>, vector<8x8xf32> -> vector<8x32xf32>
    %83 = arith.addf %7, %82 : vector<8x32xf32>
    %c136 = arith.constant 136 : index
    %c0_32 = arith.constant 0 : index
    %84 = vector.load %arg3[%c136, %c0_32] : memref<1016x128xf32, #tpu.memory_space<vmem>>, vector<1x32xf32>
    %c144 = arith.constant 144 : index
    %c0_33 = arith.constant 0 : index
    %85 = vector.load %arg3[%c144, %c0_33] : memref<1016x128xf32, #tpu.memory_space<vmem>>, vector<1x32xf32>
    %cst_34 = arith.constant dense<0.000000e+00> : vector<8xf32>
    %86 = vector.multi_reduction <add>, %83, %cst_34 [1] : vector<8x32xf32> to vector<8xf32>
    %87 = vector.shape_cast %86 : vector<8xf32> to vector<8x1xf32>
    %cst_35 = arith.constant 3.200000e+01 : f32
    %88 = vector.broadcast %cst_35 : f32 to vector<8x1xf32>
    %89 = arith.divf %87, %88 : vector<8x1xf32>
    %90 = vector.broadcast %89 : vector<8x1xf32> to vector<8x32xf32>
    %91 = arith.subf %83, %90 : vector<8x32xf32>
    %92 = arith.mulf %91, %91 : vector<8x32xf32>
    %cst_36 = arith.constant dense<0.000000e+00> : vector<8xf32>
    %93 = vector.multi_reduction <add>, %92, %cst_36 [1] : vector<8x32xf32> to vector<8xf32>
    %94 = vector.shape_cast %93 : vector<8xf32> to vector<8x1xf32>
    %cst_37 = arith.constant 3.200000e+01 : f32
    %95 = vector.broadcast %cst_37 : f32 to vector<8x1xf32>
    %96 = arith.divf %94, %95 : vector<8x1xf32>
    %97 = vector.broadcast %89 : vector<8x1xf32> to vector<8x32xf32>
    %98 = arith.subf %83, %97 : vector<8x32xf32>
    %cst_38 = arith.constant 9.99999974E-6 : f32
    %99 = vector.broadcast %cst_38 : f32 to vector<8x1xf32>
    %100 = arith.addf %96, %99 : vector<8x1xf32>
    %101 = math.rsqrt %100 : vector<8x1xf32>
    %102 = vector.broadcast %101 : vector<8x1xf32> to vector<8x32xf32>
    %103 = arith.mulf %98, %102 : vector<8x32xf32>
    %104 = vector.broadcast %84 : vector<1x32xf32> to vector<8x32xf32>
    %105 = arith.mulf %103, %104 : vector<8x32xf32>
    %106 = vector.broadcast %85 : vector<1x32xf32> to vector<8x32xf32>
    %107 = arith.addf %105, %106 : vector<8x32xf32>
    %c96 = arith.constant 96 : index
    %c0_39 = arith.constant 0 : index
    %108 = vector.load %arg3[%c96, %c0_39] : memref<1016x128xf32, #tpu.memory_space<vmem>>, vector<32x32xf32>
    %c128 = arith.constant 128 : index
    %c0_40 = arith.constant 0 : index
    %109 = vector.load %arg3[%c128, %c0_40] : memref<1016x128xf32, #tpu.memory_space<vmem>>, vector<1x32xf32>
    %cst_41 = arith.constant dense<0.000000e+00> : vector<8x32xf32>
    %110 = tpu.matmul %107, %108, %cst_41 {dimension_numbers = #tpu.dot_dimension_numbers<[1], [0], [0], [1], [0, 0, 1, 1], [], []>} : vector<8x32xf32>, vector<32x32xf32>, vector<8x32xf32> -> vector<8x32xf32>
    %111 = vector.broadcast %109 : vector<1x32xf32> to vector<8x32xf32>
    %112 = arith.addf %110, %111 : vector<8x32xf32>
    %cst_42 = arith.constant 0.000000e+00 : f32
    %113 = vector.broadcast %cst_42 : f32 to vector<8x32xf32>
    %114 = arith.maximumf %112, %113 : vector<8x32xf32>
    %115 = arith.addf %107, %114 : vector<8x32xf32>
    %c152 = arith.constant 152 : index
    %c0_43 = arith.constant 0 : index
    %116 = vector.load %arg3[%c152, %c0_43] : memref<1016x128xf32, #tpu.memory_space<vmem>>, vector<1x32xf32>
    %c160 = arith.constant 160 : index
    %c0_44 = arith.constant 0 : index
    %117 = vector.load %arg3[%c160, %c0_44] : memref<1016x128xf32, #tpu.memory_space<vmem>>, vector<1x32xf32>
    %cst_45 = arith.constant dense<0.000000e+00> : vector<8xf32>
    %118 = vector.multi_reduction <add>, %115, %cst_45 [1] : vector<8x32xf32> to vector<8xf32>
    %119 = vector.shape_cast %118 : vector<8xf32> to vector<8x1xf32>
    %cst_46 = arith.constant 3.200000e+01 : f32
    %120 = vector.broadcast %cst_46 : f32 to vector<8x1xf32>
    %121 = arith.divf %119, %120 : vector<8x1xf32>
    %122 = vector.broadcast %121 : vector<8x1xf32> to vector<8x32xf32>
    %123 = arith.subf %115, %122 : vector<8x32xf32>
    %124 = arith.mulf %123, %123 : vector<8x32xf32>
    %cst_47 = arith.constant dense<0.000000e+00> : vector<8xf32>
    %125 = vector.multi_reduction <add>, %124, %cst_47 [1] : vector<8x32xf32> to vector<8xf32>
    %126 = vector.shape_cast %125 : vector<8xf32> to vector<8x1xf32>
    %cst_48 = arith.constant 3.200000e+01 : f32
    %127 = vector.broadcast %cst_48 : f32 to vector<8x1xf32>
    %128 = arith.divf %126, %127 : vector<8x1xf32>
    %129 = vector.broadcast %121 : vector<8x1xf32> to vector<8x32xf32>
    %130 = arith.subf %115, %129 : vector<8x32xf32>
    %cst_49 = arith.constant 9.99999974E-6 : f32
    %131 = vector.broadcast %cst_49 : f32 to vector<8x1xf32>
    %132 = arith.addf %128, %131 : vector<8x1xf32>
    %133 = math.rsqrt %132 : vector<8x1xf32>
    %134 = vector.broadcast %133 : vector<8x1xf32> to vector<8x32xf32>
    %135 = arith.mulf %130, %134 : vector<8x32xf32>
    %136 = vector.broadcast %116 : vector<1x32xf32> to vector<8x32xf32>
    %137 = arith.mulf %135, %136 : vector<8x32xf32>
    %138 = vector.broadcast %117 : vector<1x32xf32> to vector<8x32xf32>
    %139 = arith.addf %137, %138 : vector<8x32xf32>
    %c168 = arith.constant 168 : index
    %c0_50 = arith.constant 0 : index
    %140 = vector.load %arg3[%c168, %c0_50] : memref<1016x128xf32, #tpu.memory_space<vmem>>, vector<16x32xf32>
    %c184 = arith.constant 184 : index
    %c0_51 = arith.constant 0 : index
    %141 = vector.load %arg3[%c184, %c0_51] : memref<1016x128xf32, #tpu.memory_space<vmem>>, vector<1x32xf32>
    %cst_52 = arith.constant dense<0.000000e+00> : vector<8x32xf32>
    %142 = tpu.matmul %1, %140, %cst_52 {dimension_numbers = #tpu.dot_dimension_numbers<[1], [0], [0], [1], [0, 0, 1, 1], [], []>} : vector<8x16xf32>, vector<16x32xf32>, vector<8x32xf32> -> vector<8x32xf32>
    %143 = vector.broadcast %141 : vector<1x32xf32> to vector<8x32xf32>
    %144 = arith.addf %142, %143 : vector<8x32xf32>
    %c192 = arith.constant 192 : index
    %c0_53 = arith.constant 0 : index
    %145 = vector.load %arg3[%c192, %c0_53] : memref<1016x128xf32, #tpu.memory_space<vmem>>, vector<32x32xf32>
    %c224 = arith.constant 224 : index
    %c0_54 = arith.constant 0 : index
    %146 = vector.load %arg3[%c224, %c0_54] : memref<1016x128xf32, #tpu.memory_space<vmem>>, vector<1x32xf32>
    %cst_55 = arith.constant dense<0.000000e+00> : vector<8x32xf32>
    %147 = tpu.matmul %139, %145, %cst_55 {dimension_numbers = #tpu.dot_dimension_numbers<[1], [0], [0], [1], [0, 0, 1, 1], [], []>} : vector<8x32xf32>, vector<32x32xf32>, vector<8x32xf32> -> vector<8x32xf32>
    %148 = vector.broadcast %146 : vector<1x32xf32> to vector<8x32xf32>
    %149 = arith.addf %147, %148 : vector<8x32xf32>
    %c232 = arith.constant 232 : index
    %c0_56 = arith.constant 0 : index
    %150 = vector.load %arg3[%c232, %c0_56] : memref<1016x128xf32, #tpu.memory_space<vmem>>, vector<32x32xf32>
    %c264 = arith.constant 264 : index
    %c0_57 = arith.constant 0 : index
    %151 = vector.load %arg3[%c264, %c0_57] : memref<1016x128xf32, #tpu.memory_space<vmem>>, vector<1x32xf32>
    %cst_58 = arith.constant dense<0.000000e+00> : vector<8x32xf32>
    %152 = tpu.matmul %139, %150, %cst_58 {dimension_numbers = #tpu.dot_dimension_numbers<[1], [0], [0], [1], [0, 0, 1, 1], [], []>} : vector<8x32xf32>, vector<32x32xf32>, vector<8x32xf32> -> vector<8x32xf32>
    %153 = vector.broadcast %151 : vector<1x32xf32> to vector<8x32xf32>
    %154 = arith.addf %152, %153 : vector<8x32xf32>
    %155 = vector.extract_strided_slice %144 {offsets = [0, 0], sizes = [8, 8], strides = [1, 1]} : vector<8x32xf32> to vector<8x8xf32>
    %156 = vector.extract_strided_slice %149 {offsets = [0, 0], sizes = [8, 8], strides = [1, 1]} : vector<8x32xf32> to vector<8x8xf32>
    %157 = vector.extract_strided_slice %154 {offsets = [0, 0], sizes = [8, 8], strides = [1, 1]} : vector<8x32xf32> to vector<8x8xf32>
    %cst_59 = arith.constant dense<0.000000e+00> : vector<8x8xf32>
    %158 = tpu.matmul %155, %156, %cst_59 {dimension_numbers = #tpu.dot_dimension_numbers<[1], [1], [0], [0], [0, 0, 1, 0], [], []>} : vector<8x8xf32>, vector<8x8xf32>, vector<8x8xf32> -> vector<8x8xf32>
    %cst_60 = arith.constant 0.176776692 : f32
    %159 = vector.broadcast %cst_60 : f32 to vector<8x8xf32>
    %160 = arith.mulf %158, %159 : vector<8x8xf32>
    %cst_61 = arith.constant dense<0xFF800000> : vector<8xf32>
    %161 = vector.multi_reduction <maximumf>, %160, %cst_61 [1] : vector<8x8xf32> to vector<8xf32>
    %162 = vector.shape_cast %161 : vector<8xf32> to vector<8x1xf32>
    %163 = vector.broadcast %162 : vector<8x1xf32> to vector<8x8xf32>
    %164 = arith.subf %160, %163 : vector<8x8xf32>
    %165 = math.exp %164 : vector<8x8xf32>
    %cst_62 = arith.constant dense<0.000000e+00> : vector<8xf32>
    %166 = vector.multi_reduction <add>, %165, %cst_62 [1] : vector<8x8xf32> to vector<8xf32>
    %167 = vector.shape_cast %166 : vector<8xf32> to vector<8x1xf32>
    %168 = vector.broadcast %167 : vector<8x1xf32> to vector<8x8xf32>
    %169 = arith.divf %165, %168 : vector<8x8xf32>
    %cst_63 = arith.constant dense<0.000000e+00> : vector<8x8xf32>
    %170 = tpu.matmul %169, %157, %cst_63 {dimension_numbers = #tpu.dot_dimension_numbers<[1], [0], [0], [1], [0, 0, 1, 1], [], []>} : vector<8x8xf32>, vector<8x8xf32>, vector<8x8xf32> -> vector<8x8xf32>
    %171 = vector.extract_strided_slice %144 {offsets = [0, 8], sizes = [8, 8], strides = [1, 1]} : vector<8x32xf32> to vector<8x8xf32>
    %172 = vector.extract_strided_slice %149 {offsets = [0, 8], sizes = [8, 8], strides = [1, 1]} : vector<8x32xf32> to vector<8x8xf32>
    %173 = vector.extract_strided_slice %154 {offsets = [0, 8], sizes = [8, 8], strides = [1, 1]} : vector<8x32xf32> to vector<8x8xf32>
    %cst_64 = arith.constant dense<0.000000e+00> : vector<8x8xf32>
    %174 = tpu.matmul %171, %172, %cst_64 {dimension_numbers = #tpu.dot_dimension_numbers<[1], [1], [0], [0], [0, 0, 1, 0], [], []>} : vector<8x8xf32>, vector<8x8xf32>, vector<8x8xf32> -> vector<8x8xf32>
    %cst_65 = arith.constant 0.176776692 : f32
    %175 = vector.broadcast %cst_65 : f32 to vector<8x8xf32>
    %176 = arith.mulf %174, %175 : vector<8x8xf32>
    %cst_66 = arith.constant dense<0xFF800000> : vector<8xf32>
    %177 = vector.multi_reduction <maximumf>, %176, %cst_66 [1] : vector<8x8xf32> to vector<8xf32>
    %178 = vector.shape_cast %177 : vector<8xf32> to vector<8x1xf32>
    %179 = vector.broadcast %178 : vector<8x1xf32> to vector<8x8xf32>
    %180 = arith.subf %176, %179 : vector<8x8xf32>
    %181 = math.exp %180 : vector<8x8xf32>
    %cst_67 = arith.constant dense<0.000000e+00> : vector<8xf32>
    %182 = vector.multi_reduction <add>, %181, %cst_67 [1] : vector<8x8xf32> to vector<8xf32>
    %183 = vector.shape_cast %182 : vector<8xf32> to vector<8x1xf32>
    %184 = vector.broadcast %183 : vector<8x1xf32> to vector<8x8xf32>
    %185 = arith.divf %181, %184 : vector<8x8xf32>
    %cst_68 = arith.constant dense<0.000000e+00> : vector<8x8xf32>
    %186 = tpu.matmul %185, %173, %cst_68 {dimension_numbers = #tpu.dot_dimension_numbers<[1], [0], [0], [1], [0, 0, 1, 1], [], []>} : vector<8x8xf32>, vector<8x8xf32>, vector<8x8xf32> -> vector<8x8xf32>
    %187 = vector.extract_strided_slice %144 {offsets = [0, 16], sizes = [8, 8], strides = [1, 1]} : vector<8x32xf32> to vector<8x8xf32>
    %188 = vector.extract_strided_slice %149 {offsets = [0, 16], sizes = [8, 8], strides = [1, 1]} : vector<8x32xf32> to vector<8x8xf32>
    %189 = vector.extract_strided_slice %154 {offsets = [0, 16], sizes = [8, 8], strides = [1, 1]} : vector<8x32xf32> to vector<8x8xf32>
    %cst_69 = arith.constant dense<0.000000e+00> : vector<8x8xf32>
    %190 = tpu.matmul %187, %188, %cst_69 {dimension_numbers = #tpu.dot_dimension_numbers<[1], [1], [0], [0], [0, 0, 1, 0], [], []>} : vector<8x8xf32>, vector<8x8xf32>, vector<8x8xf32> -> vector<8x8xf32>
    %cst_70 = arith.constant 0.176776692 : f32
    %191 = vector.broadcast %cst_70 : f32 to vector<8x8xf32>
    %192 = arith.mulf %190, %191 : vector<8x8xf32>
    %cst_71 = arith.constant dense<0xFF800000> : vector<8xf32>
    %193 = vector.multi_reduction <maximumf>, %192, %cst_71 [1] : vector<8x8xf32> to vector<8xf32>
    %194 = vector.shape_cast %193 : vector<8xf32> to vector<8x1xf32>
    %195 = vector.broadcast %194 : vector<8x1xf32> to vector<8x8xf32>
    %196 = arith.subf %192, %195 : vector<8x8xf32>
    %197 = math.exp %196 : vector<8x8xf32>
    %cst_72 = arith.constant dense<0.000000e+00> : vector<8xf32>
    %198 = vector.multi_reduction <add>, %197, %cst_72 [1] : vector<8x8xf32> to vector<8xf32>
    %199 = vector.shape_cast %198 : vector<8xf32> to vector<8x1xf32>
    %200 = vector.broadcast %199 : vector<8x1xf32> to vector<8x8xf32>
    %201 = arith.divf %197, %200 : vector<8x8xf32>
    %cst_73 = arith.constant dense<0.000000e+00> : vector<8x8xf32>
    %202 = tpu.matmul %201, %189, %cst_73 {dimension_numbers = #tpu.dot_dimension_numbers<[1], [0], [0], [1], [0, 0, 1, 1], [], []>} : vector<8x8xf32>, vector<8x8xf32>, vector<8x8xf32> -> vector<8x8xf32>
    %203 = vector.extract_strided_slice %144 {offsets = [0, 24], sizes = [8, 8], strides = [1, 1]} : vector<8x32xf32> to vector<8x8xf32>
    %204 = vector.extract_strided_slice %149 {offsets = [0, 24], sizes = [8, 8], strides = [1, 1]} : vector<8x32xf32> to vector<8x8xf32>
    %205 = vector.extract_strided_slice %154 {offsets = [0, 24], sizes = [8, 8], strides = [1, 1]} : vector<8x32xf32> to vector<8x8xf32>
    %cst_74 = arith.constant dense<0.000000e+00> : vector<8x8xf32>
    %206 = tpu.matmul %203, %204, %cst_74 {dimension_numbers = #tpu.dot_dimension_numbers<[1], [1], [0], [0], [0, 0, 1, 0], [], []>} : vector<8x8xf32>, vector<8x8xf32>, vector<8x8xf32> -> vector<8x8xf32>
    %cst_75 = arith.constant 0.176776692 : f32
    %207 = vector.broadcast %cst_75 : f32 to vector<8x8xf32>
    %208 = arith.mulf %206, %207 : vector<8x8xf32>
    %cst_76 = arith.constant dense<0xFF800000> : vector<8xf32>
    %209 = vector.multi_reduction <maximumf>, %208, %cst_76 [1] : vector<8x8xf32> to vector<8xf32>
    %210 = vector.shape_cast %209 : vector<8xf32> to vector<8x1xf32>
    %211 = vector.broadcast %210 : vector<8x1xf32> to vector<8x8xf32>
    %212 = arith.subf %208, %211 : vector<8x8xf32>
    %213 = math.exp %212 : vector<8x8xf32>
    %cst_77 = arith.constant dense<0.000000e+00> : vector<8xf32>
    %214 = vector.multi_reduction <add>, %213, %cst_77 [1] : vector<8x8xf32> to vector<8xf32>
    %215 = vector.shape_cast %214 : vector<8xf32> to vector<8x1xf32>
    %216 = vector.broadcast %215 : vector<8x1xf32> to vector<8x8xf32>
    %217 = arith.divf %213, %216 : vector<8x8xf32>
    %cst_78 = arith.constant dense<0.000000e+00> : vector<8x8xf32>
    %218 = tpu.matmul %217, %205, %cst_78 {dimension_numbers = #tpu.dot_dimension_numbers<[1], [0], [0], [1], [0, 0, 1, 1], [], []>} : vector<8x8xf32>, vector<8x8xf32>, vector<8x8xf32> -> vector<8x8xf32>
    %219 = tpu.concatenate %170, %186, %202, %218 in 1 : vector<8x8xf32>, vector<8x8xf32>, vector<8x8xf32>, vector<8x8xf32> -> vector<8x32xf32>
    %220 = arith.addf %144, %219 : vector<8x32xf32>
    %c312 = arith.constant 312 : index
    %c0_79 = arith.constant 0 : index
    %221 = vector.load %arg3[%c312, %c0_79] : memref<1016x128xf32, #tpu.memory_space<vmem>>, vector<1x32xf32>
    %c320 = arith.constant 320 : index
    %c0_80 = arith.constant 0 : index
    %222 = vector.load %arg3[%c320, %c0_80] : memref<1016x128xf32, #tpu.memory_space<vmem>>, vector<1x32xf32>
    %cst_81 = arith.constant dense<0.000000e+00> : vector<8xf32>
    %223 = vector.multi_reduction <add>, %220, %cst_81 [1] : vector<8x32xf32> to vector<8xf32>
    %224 = vector.shape_cast %223 : vector<8xf32> to vector<8x1xf32>
    %cst_82 = arith.constant 3.200000e+01 : f32
    %225 = vector.broadcast %cst_82 : f32 to vector<8x1xf32>
    %226 = arith.divf %224, %225 : vector<8x1xf32>
    %227 = vector.broadcast %226 : vector<8x1xf32> to vector<8x32xf32>
    %228 = arith.subf %220, %227 : vector<8x32xf32>
    %229 = arith.mulf %228, %228 : vector<8x32xf32>
    %cst_83 = arith.constant dense<0.000000e+00> : vector<8xf32>
    %230 = vector.multi_reduction <add>, %229, %cst_83 [1] : vector<8x32xf32> to vector<8xf32>
    %231 = vector.shape_cast %230 : vector<8xf32> to vector<8x1xf32>
    %cst_84 = arith.constant 3.200000e+01 : f32
    %232 = vector.broadcast %cst_84 : f32 to vector<8x1xf32>
    %233 = arith.divf %231, %232 : vector<8x1xf32>
    %234 = vector.broadcast %226 : vector<8x1xf32> to vector<8x32xf32>
    %235 = arith.subf %220, %234 : vector<8x32xf32>
    %cst_85 = arith.constant 9.99999974E-6 : f32
    %236 = vector.broadcast %cst_85 : f32 to vector<8x1xf32>
    %237 = arith.addf %233, %236 : vector<8x1xf32>
    %238 = math.rsqrt %237 : vector<8x1xf32>
    %239 = vector.broadcast %238 : vector<8x1xf32> to vector<8x32xf32>
    %240 = arith.mulf %235, %239 : vector<8x32xf32>
    %241 = vector.broadcast %221 : vector<1x32xf32> to vector<8x32xf32>
    %242 = arith.mulf %240, %241 : vector<8x32xf32>
    %243 = vector.broadcast %222 : vector<1x32xf32> to vector<8x32xf32>
    %244 = arith.addf %242, %243 : vector<8x32xf32>
    %c272 = arith.constant 272 : index
    %c0_86 = arith.constant 0 : index
    %245 = vector.load %arg3[%c272, %c0_86] : memref<1016x128xf32, #tpu.memory_space<vmem>>, vector<32x32xf32>
    %c304 = arith.constant 304 : index
    %c0_87 = arith.constant 0 : index
    %246 = vector.load %arg3[%c304, %c0_87] : memref<1016x128xf32, #tpu.memory_space<vmem>>, vector<1x32xf32>
    %cst_88 = arith.constant dense<0.000000e+00> : vector<8x32xf32>
    %247 = tpu.matmul %244, %245, %cst_88 {dimension_numbers = #tpu.dot_dimension_numbers<[1], [0], [0], [1], [0, 0, 1, 1], [], []>} : vector<8x32xf32>, vector<32x32xf32>, vector<8x32xf32> -> vector<8x32xf32>
    %248 = vector.broadcast %246 : vector<1x32xf32> to vector<8x32xf32>
    %249 = arith.addf %247, %248 : vector<8x32xf32>
    %cst_89 = arith.constant 0.000000e+00 : f32
    %250 = vector.broadcast %cst_89 : f32 to vector<8x32xf32>
    %251 = arith.maximumf %249, %250 : vector<8x32xf32>
    %252 = arith.addf %244, %251 : vector<8x32xf32>
    %c328 = arith.constant 328 : index
    %c0_90 = arith.constant 0 : index
    %253 = vector.load %arg3[%c328, %c0_90] : memref<1016x128xf32, #tpu.memory_space<vmem>>, vector<1x32xf32>
    %c336 = arith.constant 336 : index
    %c0_91 = arith.constant 0 : index
    %254 = vector.load %arg3[%c336, %c0_91] : memref<1016x128xf32, #tpu.memory_space<vmem>>, vector<1x32xf32>
    %cst_92 = arith.constant dense<0.000000e+00> : vector<8xf32>
    %255 = vector.multi_reduction <add>, %252, %cst_92 [1] : vector<8x32xf32> to vector<8xf32>
    %256 = vector.shape_cast %255 : vector<8xf32> to vector<8x1xf32>
    %cst_93 = arith.constant 3.200000e+01 : f32
    %257 = vector.broadcast %cst_93 : f32 to vector<8x1xf32>
    %258 = arith.divf %256, %257 : vector<8x1xf32>
    %259 = vector.broadcast %258 : vector<8x1xf32> to vector<8x32xf32>
    %260 = arith.subf %252, %259 : vector<8x32xf32>
    %261 = arith.mulf %260, %260 : vector<8x32xf32>
    %cst_94 = arith.constant dense<0.000000e+00> : vector<8xf32>
    %262 = vector.multi_reduction <add>, %261, %cst_94 [1] : vector<8x32xf32> to vector<8xf32>
    %263 = vector.shape_cast %262 : vector<8xf32> to vector<8x1xf32>
    %cst_95 = arith.constant 3.200000e+01 : f32
    %264 = vector.broadcast %cst_95 : f32 to vector<8x1xf32>
    %265 = arith.divf %263, %264 : vector<8x1xf32>
    %266 = vector.broadcast %258 : vector<8x1xf32> to vector<8x32xf32>
    %267 = arith.subf %252, %266 : vector<8x32xf32>
    %cst_96 = arith.constant 9.99999974E-6 : f32
    %268 = vector.broadcast %cst_96 : f32 to vector<8x1xf32>
    %269 = arith.addf %265, %268 : vector<8x1xf32>
    %270 = math.rsqrt %269 : vector<8x1xf32>
    %271 = vector.broadcast %270 : vector<8x1xf32> to vector<8x32xf32>
    %272 = arith.mulf %267, %271 : vector<8x32xf32>
    %273 = vector.broadcast %253 : vector<1x32xf32> to vector<8x32xf32>
    %274 = arith.mulf %272, %273 : vector<8x32xf32>
    %275 = vector.broadcast %254 : vector<1x32xf32> to vector<8x32xf32>
    %276 = arith.addf %274, %275 : vector<8x32xf32>
    %c344 = arith.constant 344 : index
    %c0_97 = arith.constant 0 : index
    %277 = vector.load %arg3[%c344, %c0_97] : memref<1016x128xf32, #tpu.memory_space<vmem>>, vector<8x32xf32>
    %c352 = arith.constant 352 : index
    %c0_98 = arith.constant 0 : index
    %278 = vector.load %arg3[%c352, %c0_98] : memref<1016x128xf32, #tpu.memory_space<vmem>>, vector<32x32xf32>
    %c384 = arith.constant 384 : index
    %c0_99 = arith.constant 0 : index
    %279 = vector.load %arg3[%c384, %c0_99] : memref<1016x128xf32, #tpu.memory_space<vmem>>, vector<1x32xf32>
    %cst_100 = arith.constant dense<0.000000e+00> : vector<8x32xf32>
    %280 = tpu.matmul %277, %278, %cst_100 {dimension_numbers = #tpu.dot_dimension_numbers<[1], [0], [0], [1], [0, 0, 1, 1], [], []>} : vector<8x32xf32>, vector<32x32xf32>, vector<8x32xf32> -> vector<8x32xf32>
    %281 = vector.broadcast %279 : vector<1x32xf32> to vector<8x32xf32>
    %282 = arith.addf %280, %281 : vector<8x32xf32>
    %c392 = arith.constant 392 : index
    %c0_101 = arith.constant 0 : index
    %283 = vector.load %arg3[%c392, %c0_101] : memref<1016x128xf32, #tpu.memory_space<vmem>>, vector<32x32xf32>
    %c424 = arith.constant 424 : index
    %c0_102 = arith.constant 0 : index
    %284 = vector.load %arg3[%c424, %c0_102] : memref<1016x128xf32, #tpu.memory_space<vmem>>, vector<1x32xf32>
    %cst_103 = arith.constant dense<0.000000e+00> : vector<8x32xf32>
    %285 = tpu.matmul %276, %283, %cst_103 {dimension_numbers = #tpu.dot_dimension_numbers<[1], [0], [0], [1], [0, 0, 1, 1], [], []>} : vector<8x32xf32>, vector<32x32xf32>, vector<8x32xf32> -> vector<8x32xf32>
    %286 = vector.broadcast %284 : vector<1x32xf32> to vector<8x32xf32>
    %287 = arith.addf %285, %286 : vector<8x32xf32>
    %c432 = arith.constant 432 : index
    %c0_104 = arith.constant 0 : index
    %288 = vector.load %arg3[%c432, %c0_104] : memref<1016x128xf32, #tpu.memory_space<vmem>>, vector<32x32xf32>
    %c464 = arith.constant 464 : index
    %c0_105 = arith.constant 0 : index
    %289 = vector.load %arg3[%c464, %c0_105] : memref<1016x128xf32, #tpu.memory_space<vmem>>, vector<1x32xf32>
    %cst_106 = arith.constant dense<0.000000e+00> : vector<8x32xf32>
    %290 = tpu.matmul %276, %288, %cst_106 {dimension_numbers = #tpu.dot_dimension_numbers<[1], [0], [0], [1], [0, 0, 1, 1], [], []>} : vector<8x32xf32>, vector<32x32xf32>, vector<8x32xf32> -> vector<8x32xf32>
    %291 = vector.broadcast %289 : vector<1x32xf32> to vector<8x32xf32>
    %292 = arith.addf %290, %291 : vector<8x32xf32>
    %293 = vector.extract_strided_slice %282 {offsets = [0, 0], sizes = [8, 8], strides = [1, 1]} : vector<8x32xf32> to vector<8x8xf32>
    %294 = vector.extract_strided_slice %287 {offsets = [0, 0], sizes = [8, 8], strides = [1, 1]} : vector<8x32xf32> to vector<8x8xf32>
    %295 = vector.extract_strided_slice %292 {offsets = [0, 0], sizes = [8, 8], strides = [1, 1]} : vector<8x32xf32> to vector<8x8xf32>
    %cst_107 = arith.constant dense<0.000000e+00> : vector<8x8xf32>
    %296 = tpu.matmul %293, %294, %cst_107 {dimension_numbers = #tpu.dot_dimension_numbers<[1], [1], [0], [0], [0, 0, 1, 0], [], []>} : vector<8x8xf32>, vector<8x8xf32>, vector<8x8xf32> -> vector<8x8xf32>
    %cst_108 = arith.constant 0.176776692 : f32
    %297 = vector.broadcast %cst_108 : f32 to vector<8x8xf32>
    %298 = arith.mulf %296, %297 : vector<8x8xf32>
    %cst_109 = arith.constant dense<0xFF800000> : vector<8xf32>
    %299 = vector.multi_reduction <maximumf>, %298, %cst_109 [1] : vector<8x8xf32> to vector<8xf32>
    %300 = vector.shape_cast %299 : vector<8xf32> to vector<8x1xf32>
    %301 = vector.broadcast %300 : vector<8x1xf32> to vector<8x8xf32>
    %302 = arith.subf %298, %301 : vector<8x8xf32>
    %303 = math.exp %302 : vector<8x8xf32>
    %cst_110 = arith.constant dense<0.000000e+00> : vector<8xf32>
    %304 = vector.multi_reduction <add>, %303, %cst_110 [1] : vector<8x8xf32> to vector<8xf32>
    %305 = vector.shape_cast %304 : vector<8xf32> to vector<8x1xf32>
    %306 = vector.broadcast %305 : vector<8x1xf32> to vector<8x8xf32>
    %307 = arith.divf %303, %306 : vector<8x8xf32>
    %cst_111 = arith.constant dense<0.000000e+00> : vector<8x8xf32>
    %308 = tpu.matmul %307, %295, %cst_111 {dimension_numbers = #tpu.dot_dimension_numbers<[1], [0], [0], [1], [0, 0, 1, 1], [], []>} : vector<8x8xf32>, vector<8x8xf32>, vector<8x8xf32> -> vector<8x8xf32>
    %309 = vector.extract_strided_slice %282 {offsets = [0, 8], sizes = [8, 8], strides = [1, 1]} : vector<8x32xf32> to vector<8x8xf32>
    %310 = vector.extract_strided_slice %287 {offsets = [0, 8], sizes = [8, 8], strides = [1, 1]} : vector<8x32xf32> to vector<8x8xf32>
    %311 = vector.extract_strided_slice %292 {offsets = [0, 8], sizes = [8, 8], strides = [1, 1]} : vector<8x32xf32> to vector<8x8xf32>
    %cst_112 = arith.constant dense<0.000000e+00> : vector<8x8xf32>
    %312 = tpu.matmul %309, %310, %cst_112 {dimension_numbers = #tpu.dot_dimension_numbers<[1], [1], [0], [0], [0, 0, 1, 0], [], []>} : vector<8x8xf32>, vector<8x8xf32>, vector<8x8xf32> -> vector<8x8xf32>
    %cst_113 = arith.constant 0.176776692 : f32
    %313 = vector.broadcast %cst_113 : f32 to vector<8x8xf32>
    %314 = arith.mulf %312, %313 : vector<8x8xf32>
    %cst_114 = arith.constant dense<0xFF800000> : vector<8xf32>
    %315 = vector.multi_reduction <maximumf>, %314, %cst_114 [1] : vector<8x8xf32> to vector<8xf32>
    %316 = vector.shape_cast %315 : vector<8xf32> to vector<8x1xf32>
    %317 = vector.broadcast %316 : vector<8x1xf32> to vector<8x8xf32>
    %318 = arith.subf %314, %317 : vector<8x8xf32>
    %319 = math.exp %318 : vector<8x8xf32>
    %cst_115 = arith.constant dense<0.000000e+00> : vector<8xf32>
    %320 = vector.multi_reduction <add>, %319, %cst_115 [1] : vector<8x8xf32> to vector<8xf32>
    %321 = vector.shape_cast %320 : vector<8xf32> to vector<8x1xf32>
    %322 = vector.broadcast %321 : vector<8x1xf32> to vector<8x8xf32>
    %323 = arith.divf %319, %322 : vector<8x8xf32>
    %cst_116 = arith.constant dense<0.000000e+00> : vector<8x8xf32>
    %324 = tpu.matmul %323, %311, %cst_116 {dimension_numbers = #tpu.dot_dimension_numbers<[1], [0], [0], [1], [0, 0, 1, 1], [], []>} : vector<8x8xf32>, vector<8x8xf32>, vector<8x8xf32> -> vector<8x8xf32>
    %325 = vector.extract_strided_slice %282 {offsets = [0, 16], sizes = [8, 8], strides = [1, 1]} : vector<8x32xf32> to vector<8x8xf32>
    %326 = vector.extract_strided_slice %287 {offsets = [0, 16], sizes = [8, 8], strides = [1, 1]} : vector<8x32xf32> to vector<8x8xf32>
    %327 = vector.extract_strided_slice %292 {offsets = [0, 16], sizes = [8, 8], strides = [1, 1]} : vector<8x32xf32> to vector<8x8xf32>
    %cst_117 = arith.constant dense<0.000000e+00> : vector<8x8xf32>
    %328 = tpu.matmul %325, %326, %cst_117 {dimension_numbers = #tpu.dot_dimension_numbers<[1], [1], [0], [0], [0, 0, 1, 0], [], []>} : vector<8x8xf32>, vector<8x8xf32>, vector<8x8xf32> -> vector<8x8xf32>
    %cst_118 = arith.constant 0.176776692 : f32
    %329 = vector.broadcast %cst_118 : f32 to vector<8x8xf32>
    %330 = arith.mulf %328, %329 : vector<8x8xf32>
    %cst_119 = arith.constant dense<0xFF800000> : vector<8xf32>
    %331 = vector.multi_reduction <maximumf>, %330, %cst_119 [1] : vector<8x8xf32> to vector<8xf32>
    %332 = vector.shape_cast %331 : vector<8xf32> to vector<8x1xf32>
    %333 = vector.broadcast %332 : vector<8x1xf32> to vector<8x8xf32>
    %334 = arith.subf %330, %333 : vector<8x8xf32>
    %335 = math.exp %334 : vector<8x8xf32>
    %cst_120 = arith.constant dense<0.000000e+00> : vector<8xf32>
    %336 = vector.multi_reduction <add>, %335, %cst_120 [1] : vector<8x8xf32> to vector<8xf32>
    %337 = vector.shape_cast %336 : vector<8xf32> to vector<8x1xf32>
    %338 = vector.broadcast %337 : vector<8x1xf32> to vector<8x8xf32>
    %339 = arith.divf %335, %338 : vector<8x8xf32>
    %cst_121 = arith.constant dense<0.000000e+00> : vector<8x8xf32>
    %340 = tpu.matmul %339, %327, %cst_121 {dimension_numbers = #tpu.dot_dimension_numbers<[1], [0], [0], [1], [0, 0, 1, 1], [], []>} : vector<8x8xf32>, vector<8x8xf32>, vector<8x8xf32> -> vector<8x8xf32>
    %341 = vector.extract_strided_slice %282 {offsets = [0, 24], sizes = [8, 8], strides = [1, 1]} : vector<8x32xf32> to vector<8x8xf32>
    %342 = vector.extract_strided_slice %287 {offsets = [0, 24], sizes = [8, 8], strides = [1, 1]} : vector<8x32xf32> to vector<8x8xf32>
    %343 = vector.extract_strided_slice %292 {offsets = [0, 24], sizes = [8, 8], strides = [1, 1]} : vector<8x32xf32> to vector<8x8xf32>
    %cst_122 = arith.constant dense<0.000000e+00> : vector<8x8xf32>
    %344 = tpu.matmul %341, %342, %cst_122 {dimension_numbers = #tpu.dot_dimension_numbers<[1], [1], [0], [0], [0, 0, 1, 0], [], []>} : vector<8x8xf32>, vector<8x8xf32>, vector<8x8xf32> -> vector<8x8xf32>
    %cst_123 = arith.constant 0.176776692 : f32
    %345 = vector.broadcast %cst_123 : f32 to vector<8x8xf32>
    %346 = arith.mulf %344, %345 : vector<8x8xf32>
    %cst_124 = arith.constant dense<0xFF800000> : vector<8xf32>
    %347 = vector.multi_reduction <maximumf>, %346, %cst_124 [1] : vector<8x8xf32> to vector<8xf32>
    %348 = vector.shape_cast %347 : vector<8xf32> to vector<8x1xf32>
    %349 = vector.broadcast %348 : vector<8x1xf32> to vector<8x8xf32>
    %350 = arith.subf %346, %349 : vector<8x8xf32>
    %351 = math.exp %350 : vector<8x8xf32>
    %cst_125 = arith.constant dense<0.000000e+00> : vector<8xf32>
    %352 = vector.multi_reduction <add>, %351, %cst_125 [1] : vector<8x8xf32> to vector<8xf32>
    %353 = vector.shape_cast %352 : vector<8xf32> to vector<8x1xf32>
    %354 = vector.broadcast %353 : vector<8x1xf32> to vector<8x8xf32>
    %355 = arith.divf %351, %354 : vector<8x8xf32>
    %cst_126 = arith.constant dense<0.000000e+00> : vector<8x8xf32>
    %356 = tpu.matmul %355, %343, %cst_126 {dimension_numbers = #tpu.dot_dimension_numbers<[1], [0], [0], [1], [0, 0, 1, 1], [], []>} : vector<8x8xf32>, vector<8x8xf32>, vector<8x8xf32> -> vector<8x8xf32>
    %357 = tpu.concatenate %308, %324, %340, %356 in 1 : vector<8x8xf32>, vector<8x8xf32>, vector<8x8xf32>, vector<8x8xf32> -> vector<8x32xf32>
    %358 = arith.addf %282, %357 : vector<8x32xf32>
    %c512 = arith.constant 512 : index
    %c0_127 = arith.constant 0 : index
    %359 = vector.load %arg3[%c512, %c0_127] : memref<1016x128xf32, #tpu.memory_space<vmem>>, vector<1x32xf32>
    %c520 = arith.constant 520 : index
    %c0_128 = arith.constant 0 : index
    %360 = vector.load %arg3[%c520, %c0_128] : memref<1016x128xf32, #tpu.memory_space<vmem>>, vector<1x32xf32>
    %cst_129 = arith.constant dense<0.000000e+00> : vector<8xf32>
    %361 = vector.multi_reduction <add>, %358, %cst_129 [1] : vector<8x32xf32> to vector<8xf32>
    %362 = vector.shape_cast %361 : vector<8xf32> to vector<8x1xf32>
    %cst_130 = arith.constant 3.200000e+01 : f32
    %363 = vector.broadcast %cst_130 : f32 to vector<8x1xf32>
    %364 = arith.divf %362, %363 : vector<8x1xf32>
    %365 = vector.broadcast %364 : vector<8x1xf32> to vector<8x32xf32>
    %366 = arith.subf %358, %365 : vector<8x32xf32>
    %367 = arith.mulf %366, %366 : vector<8x32xf32>
    %cst_131 = arith.constant dense<0.000000e+00> : vector<8xf32>
    %368 = vector.multi_reduction <add>, %367, %cst_131 [1] : vector<8x32xf32> to vector<8xf32>
    %369 = vector.shape_cast %368 : vector<8xf32> to vector<8x1xf32>
    %cst_132 = arith.constant 3.200000e+01 : f32
    %370 = vector.broadcast %cst_132 : f32 to vector<8x1xf32>
    %371 = arith.divf %369, %370 : vector<8x1xf32>
    %372 = vector.broadcast %364 : vector<8x1xf32> to vector<8x32xf32>
    %373 = arith.subf %358, %372 : vector<8x32xf32>
    %cst_133 = arith.constant 9.99999974E-6 : f32
    %374 = vector.broadcast %cst_133 : f32 to vector<8x1xf32>
    %375 = arith.addf %371, %374 : vector<8x1xf32>
    %376 = math.rsqrt %375 : vector<8x1xf32>
    %377 = vector.broadcast %376 : vector<8x1xf32> to vector<8x32xf32>
    %378 = arith.mulf %373, %377 : vector<8x32xf32>
    %379 = vector.broadcast %359 : vector<1x32xf32> to vector<8x32xf32>
    %380 = arith.mulf %378, %379 : vector<8x32xf32>
    %381 = vector.broadcast %360 : vector<1x32xf32> to vector<8x32xf32>
    %382 = arith.addf %380, %381 : vector<8x32xf32>
    %c472 = arith.constant 472 : index
    %c0_134 = arith.constant 0 : index
    %383 = vector.load %arg3[%c472, %c0_134] : memref<1016x128xf32, #tpu.memory_space<vmem>>, vector<32x32xf32>
    %c504 = arith.constant 504 : index
    %c0_135 = arith.constant 0 : index
    %384 = vector.load %arg3[%c504, %c0_135] : memref<1016x128xf32, #tpu.memory_space<vmem>>, vector<1x32xf32>
    %cst_136 = arith.constant dense<0.000000e+00> : vector<8x32xf32>
    %385 = tpu.matmul %382, %383, %cst_136 {dimension_numbers = #tpu.dot_dimension_numbers<[1], [0], [0], [1], [0, 0, 1, 1], [], []>} : vector<8x32xf32>, vector<32x32xf32>, vector<8x32xf32> -> vector<8x32xf32>
    %386 = vector.broadcast %384 : vector<1x32xf32> to vector<8x32xf32>
    %387 = arith.addf %385, %386 : vector<8x32xf32>
    %cst_137 = arith.constant 0.000000e+00 : f32
    %388 = vector.broadcast %cst_137 : f32 to vector<8x32xf32>
    %389 = arith.maximumf %387, %388 : vector<8x32xf32>
    %390 = arith.addf %382, %389 : vector<8x32xf32>
    %c528 = arith.constant 528 : index
    %c0_138 = arith.constant 0 : index
    %391 = vector.load %arg3[%c528, %c0_138] : memref<1016x128xf32, #tpu.memory_space<vmem>>, vector<1x32xf32>
    %c536 = arith.constant 536 : index
    %c0_139 = arith.constant 0 : index
    %392 = vector.load %arg3[%c536, %c0_139] : memref<1016x128xf32, #tpu.memory_space<vmem>>, vector<1x32xf32>
    %cst_140 = arith.constant dense<0.000000e+00> : vector<8xf32>
    %393 = vector.multi_reduction <add>, %390, %cst_140 [1] : vector<8x32xf32> to vector<8xf32>
    %394 = vector.shape_cast %393 : vector<8xf32> to vector<8x1xf32>
    %cst_141 = arith.constant 3.200000e+01 : f32
    %395 = vector.broadcast %cst_141 : f32 to vector<8x1xf32>
    %396 = arith.divf %394, %395 : vector<8x1xf32>
    %397 = vector.broadcast %396 : vector<8x1xf32> to vector<8x32xf32>
    %398 = arith.subf %390, %397 : vector<8x32xf32>
    %399 = arith.mulf %398, %398 : vector<8x32xf32>
    %cst_142 = arith.constant dense<0.000000e+00> : vector<8xf32>
    %400 = vector.multi_reduction <add>, %399, %cst_142 [1] : vector<8x32xf32> to vector<8xf32>
    %401 = vector.shape_cast %400 : vector<8xf32> to vector<8x1xf32>
    %cst_143 = arith.constant 3.200000e+01 : f32
    %402 = vector.broadcast %cst_143 : f32 to vector<8x1xf32>
    %403 = arith.divf %401, %402 : vector<8x1xf32>
    %404 = vector.broadcast %396 : vector<8x1xf32> to vector<8x32xf32>
    %405 = arith.subf %390, %404 : vector<8x32xf32>
    %cst_144 = arith.constant 9.99999974E-6 : f32
    %406 = vector.broadcast %cst_144 : f32 to vector<8x1xf32>
    %407 = arith.addf %403, %406 : vector<8x1xf32>
    %408 = math.rsqrt %407 : vector<8x1xf32>
    %409 = vector.broadcast %408 : vector<8x1xf32> to vector<8x32xf32>
    %410 = arith.mulf %405, %409 : vector<8x32xf32>
    %411 = vector.broadcast %391 : vector<1x32xf32> to vector<8x32xf32>
    %412 = arith.mulf %410, %411 : vector<8x32xf32>
    %413 = vector.broadcast %392 : vector<1x32xf32> to vector<8x32xf32>
    %414 = arith.addf %412, %413 : vector<8x32xf32>
    %c544 = arith.constant 544 : index
    %c0_145 = arith.constant 0 : index
    %415 = vector.load %arg3[%c544, %c0_145] : memref<1016x128xf32, #tpu.memory_space<vmem>>, vector<32x32xf32>
    %c576 = arith.constant 576 : index
    %c0_146 = arith.constant 0 : index
    %416 = vector.load %arg3[%c576, %c0_146] : memref<1016x128xf32, #tpu.memory_space<vmem>>, vector<1x32xf32>
    %cst_147 = arith.constant dense<0.000000e+00> : vector<8x32xf32>
    %417 = tpu.matmul %276, %415, %cst_147 {dimension_numbers = #tpu.dot_dimension_numbers<[1], [0], [0], [1], [0, 0, 1, 1], [], []>} : vector<8x32xf32>, vector<32x32xf32>, vector<8x32xf32> -> vector<8x32xf32>
    %418 = vector.broadcast %416 : vector<1x32xf32> to vector<8x32xf32>
    %419 = arith.addf %417, %418 : vector<8x32xf32>
    %c584 = arith.constant 584 : index
    %c0_148 = arith.constant 0 : index
    %420 = vector.load %arg3[%c584, %c0_148] : memref<1016x128xf32, #tpu.memory_space<vmem>>, vector<32x32xf32>
    %c616 = arith.constant 616 : index
    %c0_149 = arith.constant 0 : index
    %421 = vector.load %arg3[%c616, %c0_149] : memref<1016x128xf32, #tpu.memory_space<vmem>>, vector<1x32xf32>
    %cst_150 = arith.constant dense<0.000000e+00> : vector<8x32xf32>
    %422 = tpu.matmul %414, %420, %cst_150 {dimension_numbers = #tpu.dot_dimension_numbers<[1], [0], [0], [1], [0, 0, 1, 1], [], []>} : vector<8x32xf32>, vector<32x32xf32>, vector<8x32xf32> -> vector<8x32xf32>
    %423 = vector.broadcast %421 : vector<1x32xf32> to vector<8x32xf32>
    %424 = arith.addf %422, %423 : vector<8x32xf32>
    %c624 = arith.constant 624 : index
    %c0_151 = arith.constant 0 : index
    %425 = vector.load %arg3[%c624, %c0_151] : memref<1016x128xf32, #tpu.memory_space<vmem>>, vector<32x32xf32>
    %c656 = arith.constant 656 : index
    %c0_152 = arith.constant 0 : index
    %426 = vector.load %arg3[%c656, %c0_152] : memref<1016x128xf32, #tpu.memory_space<vmem>>, vector<1x32xf32>
    %cst_153 = arith.constant dense<0.000000e+00> : vector<8x32xf32>
    %427 = tpu.matmul %414, %425, %cst_153 {dimension_numbers = #tpu.dot_dimension_numbers<[1], [0], [0], [1], [0, 0, 1, 1], [], []>} : vector<8x32xf32>, vector<32x32xf32>, vector<8x32xf32> -> vector<8x32xf32>
    %428 = vector.broadcast %426 : vector<1x32xf32> to vector<8x32xf32>
    %429 = arith.addf %427, %428 : vector<8x32xf32>
    %430 = vector.extract_strided_slice %419 {offsets = [0, 0], sizes = [8, 8], strides = [1, 1]} : vector<8x32xf32> to vector<8x8xf32>
    %431 = vector.extract_strided_slice %424 {offsets = [0, 0], sizes = [8, 8], strides = [1, 1]} : vector<8x32xf32> to vector<8x8xf32>
    %432 = vector.extract_strided_slice %429 {offsets = [0, 0], sizes = [8, 8], strides = [1, 1]} : vector<8x32xf32> to vector<8x8xf32>
    %cst_154 = arith.constant dense<0.000000e+00> : vector<8x8xf32>
    %433 = tpu.matmul %430, %431, %cst_154 {dimension_numbers = #tpu.dot_dimension_numbers<[1], [1], [0], [0], [0, 0, 1, 0], [], []>} : vector<8x8xf32>, vector<8x8xf32>, vector<8x8xf32> -> vector<8x8xf32>
    %cst_155 = arith.constant 0.176776692 : f32
    %434 = vector.broadcast %cst_155 : f32 to vector<8x8xf32>
    %435 = arith.mulf %433, %434 : vector<8x8xf32>
    %cst_156 = arith.constant dense<0xFF800000> : vector<8xf32>
    %436 = vector.multi_reduction <maximumf>, %435, %cst_156 [1] : vector<8x8xf32> to vector<8xf32>
    %437 = vector.shape_cast %436 : vector<8xf32> to vector<8x1xf32>
    %438 = vector.broadcast %437 : vector<8x1xf32> to vector<8x8xf32>
    %439 = arith.subf %435, %438 : vector<8x8xf32>
    %440 = math.exp %439 : vector<8x8xf32>
    %cst_157 = arith.constant dense<0.000000e+00> : vector<8xf32>
    %441 = vector.multi_reduction <add>, %440, %cst_157 [1] : vector<8x8xf32> to vector<8xf32>
    %442 = vector.shape_cast %441 : vector<8xf32> to vector<8x1xf32>
    %443 = vector.broadcast %442 : vector<8x1xf32> to vector<8x8xf32>
    %444 = arith.divf %440, %443 : vector<8x8xf32>
    %cst_158 = arith.constant dense<0.000000e+00> : vector<8x8xf32>
    %445 = tpu.matmul %444, %432, %cst_158 {dimension_numbers = #tpu.dot_dimension_numbers<[1], [0], [0], [1], [0, 0, 1, 1], [], []>} : vector<8x8xf32>, vector<8x8xf32>, vector<8x8xf32> -> vector<8x8xf32>
    %446 = vector.extract_strided_slice %419 {offsets = [0, 8], sizes = [8, 8], strides = [1, 1]} : vector<8x32xf32> to vector<8x8xf32>
    %447 = vector.extract_strided_slice %424 {offsets = [0, 8], sizes = [8, 8], strides = [1, 1]} : vector<8x32xf32> to vector<8x8xf32>
    %448 = vector.extract_strided_slice %429 {offsets = [0, 8], sizes = [8, 8], strides = [1, 1]} : vector<8x32xf32> to vector<8x8xf32>
    %cst_159 = arith.constant dense<0.000000e+00> : vector<8x8xf32>
    %449 = tpu.matmul %446, %447, %cst_159 {dimension_numbers = #tpu.dot_dimension_numbers<[1], [1], [0], [0], [0, 0, 1, 0], [], []>} : vector<8x8xf32>, vector<8x8xf32>, vector<8x8xf32> -> vector<8x8xf32>
    %cst_160 = arith.constant 0.176776692 : f32
    %450 = vector.broadcast %cst_160 : f32 to vector<8x8xf32>
    %451 = arith.mulf %449, %450 : vector<8x8xf32>
    %cst_161 = arith.constant dense<0xFF800000> : vector<8xf32>
    %452 = vector.multi_reduction <maximumf>, %451, %cst_161 [1] : vector<8x8xf32> to vector<8xf32>
    %453 = vector.shape_cast %452 : vector<8xf32> to vector<8x1xf32>
    %454 = vector.broadcast %453 : vector<8x1xf32> to vector<8x8xf32>
    %455 = arith.subf %451, %454 : vector<8x8xf32>
    %456 = math.exp %455 : vector<8x8xf32>
    %cst_162 = arith.constant dense<0.000000e+00> : vector<8xf32>
    %457 = vector.multi_reduction <add>, %456, %cst_162 [1] : vector<8x8xf32> to vector<8xf32>
    %458 = vector.shape_cast %457 : vector<8xf32> to vector<8x1xf32>
    %459 = vector.broadcast %458 : vector<8x1xf32> to vector<8x8xf32>
    %460 = arith.divf %456, %459 : vector<8x8xf32>
    %cst_163 = arith.constant dense<0.000000e+00> : vector<8x8xf32>
    %461 = tpu.matmul %460, %448, %cst_163 {dimension_numbers = #tpu.dot_dimension_numbers<[1], [0], [0], [1], [0, 0, 1, 1], [], []>} : vector<8x8xf32>, vector<8x8xf32>, vector<8x8xf32> -> vector<8x8xf32>
    %462 = vector.extract_strided_slice %419 {offsets = [0, 16], sizes = [8, 8], strides = [1, 1]} : vector<8x32xf32> to vector<8x8xf32>
    %463 = vector.extract_strided_slice %424 {offsets = [0, 16], sizes = [8, 8], strides = [1, 1]} : vector<8x32xf32> to vector<8x8xf32>
    %464 = vector.extract_strided_slice %429 {offsets = [0, 16], sizes = [8, 8], strides = [1, 1]} : vector<8x32xf32> to vector<8x8xf32>
    %cst_164 = arith.constant dense<0.000000e+00> : vector<8x8xf32>
    %465 = tpu.matmul %462, %463, %cst_164 {dimension_numbers = #tpu.dot_dimension_numbers<[1], [1], [0], [0], [0, 0, 1, 0], [], []>} : vector<8x8xf32>, vector<8x8xf32>, vector<8x8xf32> -> vector<8x8xf32>
    %cst_165 = arith.constant 0.176776692 : f32
    %466 = vector.broadcast %cst_165 : f32 to vector<8x8xf32>
    %467 = arith.mulf %465, %466 : vector<8x8xf32>
    %cst_166 = arith.constant dense<0xFF800000> : vector<8xf32>
    %468 = vector.multi_reduction <maximumf>, %467, %cst_166 [1] : vector<8x8xf32> to vector<8xf32>
    %469 = vector.shape_cast %468 : vector<8xf32> to vector<8x1xf32>
    %470 = vector.broadcast %469 : vector<8x1xf32> to vector<8x8xf32>
    %471 = arith.subf %467, %470 : vector<8x8xf32>
    %472 = math.exp %471 : vector<8x8xf32>
    %cst_167 = arith.constant dense<0.000000e+00> : vector<8xf32>
    %473 = vector.multi_reduction <add>, %472, %cst_167 [1] : vector<8x8xf32> to vector<8xf32>
    %474 = vector.shape_cast %473 : vector<8xf32> to vector<8x1xf32>
    %475 = vector.broadcast %474 : vector<8x1xf32> to vector<8x8xf32>
    %476 = arith.divf %472, %475 : vector<8x8xf32>
    %cst_168 = arith.constant dense<0.000000e+00> : vector<8x8xf32>
    %477 = tpu.matmul %476, %464, %cst_168 {dimension_numbers = #tpu.dot_dimension_numbers<[1], [0], [0], [1], [0, 0, 1, 1], [], []>} : vector<8x8xf32>, vector<8x8xf32>, vector<8x8xf32> -> vector<8x8xf32>
    %478 = vector.extract_strided_slice %419 {offsets = [0, 24], sizes = [8, 8], strides = [1, 1]} : vector<8x32xf32> to vector<8x8xf32>
    %479 = vector.extract_strided_slice %424 {offsets = [0, 24], sizes = [8, 8], strides = [1, 1]} : vector<8x32xf32> to vector<8x8xf32>
    %480 = vector.extract_strided_slice %429 {offsets = [0, 24], sizes = [8, 8], strides = [1, 1]} : vector<8x32xf32> to vector<8x8xf32>
    %cst_169 = arith.constant dense<0.000000e+00> : vector<8x8xf32>
    %481 = tpu.matmul %478, %479, %cst_169 {dimension_numbers = #tpu.dot_dimension_numbers<[1], [1], [0], [0], [0, 0, 1, 0], [], []>} : vector<8x8xf32>, vector<8x8xf32>, vector<8x8xf32> -> vector<8x8xf32>
    %cst_170 = arith.constant 0.176776692 : f32
    %482 = vector.broadcast %cst_170 : f32 to vector<8x8xf32>
    %483 = arith.mulf %481, %482 : vector<8x8xf32>
    %cst_171 = arith.constant dense<0xFF800000> : vector<8xf32>
    %484 = vector.multi_reduction <maximumf>, %483, %cst_171 [1] : vector<8x8xf32> to vector<8xf32>
    %485 = vector.shape_cast %484 : vector<8xf32> to vector<8x1xf32>
    %486 = vector.broadcast %485 : vector<8x1xf32> to vector<8x8xf32>
    %487 = arith.subf %483, %486 : vector<8x8xf32>
    %488 = math.exp %487 : vector<8x8xf32>
    %cst_172 = arith.constant dense<0.000000e+00> : vector<8xf32>
    %489 = vector.multi_reduction <add>, %488, %cst_172 [1] : vector<8x8xf32> to vector<8xf32>
    %490 = vector.shape_cast %489 : vector<8xf32> to vector<8x1xf32>
    %491 = vector.broadcast %490 : vector<8x1xf32> to vector<8x8xf32>
    %492 = arith.divf %488, %491 : vector<8x8xf32>
    %cst_173 = arith.constant dense<0.000000e+00> : vector<8x8xf32>
    %493 = tpu.matmul %492, %480, %cst_173 {dimension_numbers = #tpu.dot_dimension_numbers<[1], [0], [0], [1], [0, 0, 1, 1], [], []>} : vector<8x8xf32>, vector<8x8xf32>, vector<8x8xf32> -> vector<8x8xf32>
    %494 = tpu.concatenate %445, %461, %477, %493 in 1 : vector<8x8xf32>, vector<8x8xf32>, vector<8x8xf32>, vector<8x8xf32> -> vector<8x32xf32>
    %495 = arith.addf %419, %494 : vector<8x32xf32>
    %c704 = arith.constant 704 : index
    %c0_174 = arith.constant 0 : index
    %496 = vector.load %arg3[%c704, %c0_174] : memref<1016x128xf32, #tpu.memory_space<vmem>>, vector<1x32xf32>
    %c712 = arith.constant 712 : index
    %c0_175 = arith.constant 0 : index
    %497 = vector.load %arg3[%c712, %c0_175] : memref<1016x128xf32, #tpu.memory_space<vmem>>, vector<1x32xf32>
    %cst_176 = arith.constant dense<0.000000e+00> : vector<8xf32>
    %498 = vector.multi_reduction <add>, %495, %cst_176 [1] : vector<8x32xf32> to vector<8xf32>
    %499 = vector.shape_cast %498 : vector<8xf32> to vector<8x1xf32>
    %cst_177 = arith.constant 3.200000e+01 : f32
    %500 = vector.broadcast %cst_177 : f32 to vector<8x1xf32>
    %501 = arith.divf %499, %500 : vector<8x1xf32>
    %502 = vector.broadcast %501 : vector<8x1xf32> to vector<8x32xf32>
    %503 = arith.subf %495, %502 : vector<8x32xf32>
    %504 = arith.mulf %503, %503 : vector<8x32xf32>
    %cst_178 = arith.constant dense<0.000000e+00> : vector<8xf32>
    %505 = vector.multi_reduction <add>, %504, %cst_178 [1] : vector<8x32xf32> to vector<8xf32>
    %506 = vector.shape_cast %505 : vector<8xf32> to vector<8x1xf32>
    %cst_179 = arith.constant 3.200000e+01 : f32
    %507 = vector.broadcast %cst_179 : f32 to vector<8x1xf32>
    %508 = arith.divf %506, %507 : vector<8x1xf32>
    %509 = vector.broadcast %501 : vector<8x1xf32> to vector<8x32xf32>
    %510 = arith.subf %495, %509 : vector<8x32xf32>
    %cst_180 = arith.constant 9.99999974E-6 : f32
    %511 = vector.broadcast %cst_180 : f32 to vector<8x1xf32>
    %512 = arith.addf %508, %511 : vector<8x1xf32>
    %513 = math.rsqrt %512 : vector<8x1xf32>
    %514 = vector.broadcast %513 : vector<8x1xf32> to vector<8x32xf32>
    %515 = arith.mulf %510, %514 : vector<8x32xf32>
    %516 = vector.broadcast %496 : vector<1x32xf32> to vector<8x32xf32>
    %517 = arith.mulf %515, %516 : vector<8x32xf32>
    %518 = vector.broadcast %497 : vector<1x32xf32> to vector<8x32xf32>
    %519 = arith.addf %517, %518 : vector<8x32xf32>
    %c664 = arith.constant 664 : index
    %c0_181 = arith.constant 0 : index
    %520 = vector.load %arg3[%c664, %c0_181] : memref<1016x128xf32, #tpu.memory_space<vmem>>, vector<32x32xf32>
    %c696 = arith.constant 696 : index
    %c0_182 = arith.constant 0 : index
    %521 = vector.load %arg3[%c696, %c0_182] : memref<1016x128xf32, #tpu.memory_space<vmem>>, vector<1x32xf32>
    %cst_183 = arith.constant dense<0.000000e+00> : vector<8x32xf32>
    %522 = tpu.matmul %519, %520, %cst_183 {dimension_numbers = #tpu.dot_dimension_numbers<[1], [0], [0], [1], [0, 0, 1, 1], [], []>} : vector<8x32xf32>, vector<32x32xf32>, vector<8x32xf32> -> vector<8x32xf32>
    %523 = vector.broadcast %521 : vector<1x32xf32> to vector<8x32xf32>
    %524 = arith.addf %522, %523 : vector<8x32xf32>
    %cst_184 = arith.constant 0.000000e+00 : f32
    %525 = vector.broadcast %cst_184 : f32 to vector<8x32xf32>
    %526 = arith.maximumf %524, %525 : vector<8x32xf32>
    %527 = arith.addf %519, %526 : vector<8x32xf32>
    %c720 = arith.constant 720 : index
    %c0_185 = arith.constant 0 : index
    %528 = vector.load %arg3[%c720, %c0_185] : memref<1016x128xf32, #tpu.memory_space<vmem>>, vector<1x32xf32>
    %c728 = arith.constant 728 : index
    %c0_186 = arith.constant 0 : index
    %529 = vector.load %arg3[%c728, %c0_186] : memref<1016x128xf32, #tpu.memory_space<vmem>>, vector<1x32xf32>
    %cst_187 = arith.constant dense<0.000000e+00> : vector<8xf32>
    %530 = vector.multi_reduction <add>, %527, %cst_187 [1] : vector<8x32xf32> to vector<8xf32>
    %531 = vector.shape_cast %530 : vector<8xf32> to vector<8x1xf32>
    %cst_188 = arith.constant 3.200000e+01 : f32
    %532 = vector.broadcast %cst_188 : f32 to vector<8x1xf32>
    %533 = arith.divf %531, %532 : vector<8x1xf32>
    %534 = vector.broadcast %533 : vector<8x1xf32> to vector<8x32xf32>
    %535 = arith.subf %527, %534 : vector<8x32xf32>
    %536 = arith.mulf %535, %535 : vector<8x32xf32>
    %cst_189 = arith.constant dense<0.000000e+00> : vector<8xf32>
    %537 = vector.multi_reduction <add>, %536, %cst_189 [1] : vector<8x32xf32> to vector<8xf32>
    %538 = vector.shape_cast %537 : vector<8xf32> to vector<8x1xf32>
    %cst_190 = arith.constant 3.200000e+01 : f32
    %539 = vector.broadcast %cst_190 : f32 to vector<8x1xf32>
    %540 = arith.divf %538, %539 : vector<8x1xf32>
    %541 = vector.broadcast %533 : vector<8x1xf32> to vector<8x32xf32>
    %542 = arith.subf %527, %541 : vector<8x32xf32>
    %cst_191 = arith.constant 9.99999974E-6 : f32
    %543 = vector.broadcast %cst_191 : f32 to vector<8x1xf32>
    %544 = arith.addf %540, %543 : vector<8x1xf32>
    %545 = math.rsqrt %544 : vector<8x1xf32>
    %546 = vector.broadcast %545 : vector<8x1xf32> to vector<8x32xf32>
    %547 = arith.mulf %542, %546 : vector<8x32xf32>
    %548 = vector.broadcast %528 : vector<1x32xf32> to vector<8x32xf32>
    %549 = arith.mulf %547, %548 : vector<8x32xf32>
    %550 = vector.broadcast %529 : vector<1x32xf32> to vector<8x32xf32>
    %551 = arith.addf %549, %550 : vector<8x32xf32>
    %c736 = arith.constant 736 : index
    %c0_192 = arith.constant 0 : index
    %552 = vector.load %arg3[%c736, %c0_192] : memref<1016x128xf32, #tpu.memory_space<vmem>>, vector<1x32xf32>
    %c744 = arith.constant 744 : index
    %c0_193 = arith.constant 0 : index
    %553 = vector.load %arg3[%c744, %c0_193] : memref<1016x128xf32, #tpu.memory_space<vmem>>, vector<32x32xf32>
    %c776 = arith.constant 776 : index
    %c0_194 = arith.constant 0 : index
    %554 = vector.load %arg3[%c776, %c0_194] : memref<1016x128xf32, #tpu.memory_space<vmem>>, vector<1x32xf32>
    %cst_195 = arith.constant dense<0.000000e+00> : vector<1x32xf32>
    %555 = tpu.matmul %552, %553, %cst_195 {dimension_numbers = #tpu.dot_dimension_numbers<[1], [0], [0], [1], [0, 0, 1, 1], [], []>} : vector<1x32xf32>, vector<32x32xf32>, vector<1x32xf32> -> vector<1x32xf32>
    %556 = arith.addf %555, %554 : vector<1x32xf32>
    %c784 = arith.constant 784 : index
    %c0_196 = arith.constant 0 : index
    %557 = vector.load %arg3[%c784, %c0_196] : memref<1016x128xf32, #tpu.memory_space<vmem>>, vector<32x32xf32>
    %c816 = arith.constant 816 : index
    %c0_197 = arith.constant 0 : index
    %558 = vector.load %arg3[%c816, %c0_197] : memref<1016x128xf32, #tpu.memory_space<vmem>>, vector<1x32xf32>
    %cst_198 = arith.constant dense<0.000000e+00> : vector<8x32xf32>
    %559 = tpu.matmul %551, %557, %cst_198 {dimension_numbers = #tpu.dot_dimension_numbers<[1], [0], [0], [1], [0, 0, 1, 1], [], []>} : vector<8x32xf32>, vector<32x32xf32>, vector<8x32xf32> -> vector<8x32xf32>
    %560 = vector.broadcast %558 : vector<1x32xf32> to vector<8x32xf32>
    %561 = arith.addf %559, %560 : vector<8x32xf32>
    %c824 = arith.constant 824 : index
    %c0_199 = arith.constant 0 : index
    %562 = vector.load %arg3[%c824, %c0_199] : memref<1016x128xf32, #tpu.memory_space<vmem>>, vector<32x32xf32>
    %c856 = arith.constant 856 : index
    %c0_200 = arith.constant 0 : index
    %563 = vector.load %arg3[%c856, %c0_200] : memref<1016x128xf32, #tpu.memory_space<vmem>>, vector<1x32xf32>
    %cst_201 = arith.constant dense<0.000000e+00> : vector<8x32xf32>
    %564 = tpu.matmul %551, %562, %cst_201 {dimension_numbers = #tpu.dot_dimension_numbers<[1], [0], [0], [1], [0, 0, 1, 1], [], []>} : vector<8x32xf32>, vector<32x32xf32>, vector<8x32xf32> -> vector<8x32xf32>
    %565 = vector.broadcast %563 : vector<1x32xf32> to vector<8x32xf32>
    %566 = arith.addf %564, %565 : vector<8x32xf32>
    %567 = vector.extract_strided_slice %556 {offsets = [0, 0], sizes = [1, 8], strides = [1, 1]} : vector<1x32xf32> to vector<1x8xf32>
    %568 = vector.extract_strided_slice %561 {offsets = [0, 0], sizes = [8, 8], strides = [1, 1]} : vector<8x32xf32> to vector<8x8xf32>
    %569 = vector.extract_strided_slice %566 {offsets = [0, 0], sizes = [8, 8], strides = [1, 1]} : vector<8x32xf32> to vector<8x8xf32>
    %cst_202 = arith.constant dense<0.000000e+00> : vector<1x8xf32>
    %570 = tpu.matmul %567, %568, %cst_202 {dimension_numbers = #tpu.dot_dimension_numbers<[1], [1], [0], [0], [0, 0, 1, 0], [], []>} : vector<1x8xf32>, vector<8x8xf32>, vector<1x8xf32> -> vector<1x8xf32>
    %cst_203 = arith.constant 0.176776692 : f32
    %571 = vector.broadcast %cst_203 : f32 to vector<1x8xf32>
    %572 = arith.mulf %570, %571 : vector<1x8xf32>
    %cst_204 = arith.constant dense<0xFF800000> : vector<1xf32>
    %573 = vector.multi_reduction <maximumf>, %572, %cst_204 [1] : vector<1x8xf32> to vector<1xf32>
    %574 = vector.shape_cast %573 : vector<1xf32> to vector<1x1xf32>
    %575 = vector.broadcast %574 : vector<1x1xf32> to vector<1x8xf32>
    %576 = arith.subf %572, %575 : vector<1x8xf32>
    %577 = math.exp %576 : vector<1x8xf32>
    %cst_205 = arith.constant dense<0.000000e+00> : vector<1xf32>
    %578 = vector.multi_reduction <add>, %577, %cst_205 [1] : vector<1x8xf32> to vector<1xf32>
    %579 = vector.shape_cast %578 : vector<1xf32> to vector<1x1xf32>
    %580 = vector.broadcast %579 : vector<1x1xf32> to vector<1x8xf32>
    %581 = arith.divf %577, %580 : vector<1x8xf32>
    %cst_206 = arith.constant dense<0.000000e+00> : vector<1x8xf32>
    %582 = tpu.matmul %581, %569, %cst_206 {dimension_numbers = #tpu.dot_dimension_numbers<[1], [0], [0], [1], [0, 0, 1, 1], [], []>} : vector<1x8xf32>, vector<8x8xf32>, vector<1x8xf32> -> vector<1x8xf32>
    %583 = vector.extract_strided_slice %556 {offsets = [0, 8], sizes = [1, 8], strides = [1, 1]} : vector<1x32xf32> to vector<1x8xf32>
    %584 = vector.extract_strided_slice %561 {offsets = [0, 8], sizes = [8, 8], strides = [1, 1]} : vector<8x32xf32> to vector<8x8xf32>
    %585 = vector.extract_strided_slice %566 {offsets = [0, 8], sizes = [8, 8], strides = [1, 1]} : vector<8x32xf32> to vector<8x8xf32>
    %cst_207 = arith.constant dense<0.000000e+00> : vector<1x8xf32>
    %586 = tpu.matmul %583, %584, %cst_207 {dimension_numbers = #tpu.dot_dimension_numbers<[1], [1], [0], [0], [0, 0, 1, 0], [], []>} : vector<1x8xf32>, vector<8x8xf32>, vector<1x8xf32> -> vector<1x8xf32>
    %cst_208 = arith.constant 0.176776692 : f32
    %587 = vector.broadcast %cst_208 : f32 to vector<1x8xf32>
    %588 = arith.mulf %586, %587 : vector<1x8xf32>
    %cst_209 = arith.constant dense<0xFF800000> : vector<1xf32>
    %589 = vector.multi_reduction <maximumf>, %588, %cst_209 [1] : vector<1x8xf32> to vector<1xf32>
    %590 = vector.shape_cast %589 : vector<1xf32> to vector<1x1xf32>
    %591 = vector.broadcast %590 : vector<1x1xf32> to vector<1x8xf32>
    %592 = arith.subf %588, %591 : vector<1x8xf32>
    %593 = math.exp %592 : vector<1x8xf32>
    %cst_210 = arith.constant dense<0.000000e+00> : vector<1xf32>
    %594 = vector.multi_reduction <add>, %593, %cst_210 [1] : vector<1x8xf32> to vector<1xf32>
    %595 = vector.shape_cast %594 : vector<1xf32> to vector<1x1xf32>
    %596 = vector.broadcast %595 : vector<1x1xf32> to vector<1x8xf32>
    %597 = arith.divf %593, %596 : vector<1x8xf32>
    %cst_211 = arith.constant dense<0.000000e+00> : vector<1x8xf32>
    %598 = tpu.matmul %597, %585, %cst_211 {dimension_numbers = #tpu.dot_dimension_numbers<[1], [0], [0], [1], [0, 0, 1, 1], [], []>} : vector<1x8xf32>, vector<8x8xf32>, vector<1x8xf32> -> vector<1x8xf32>
    %599 = vector.extract_strided_slice %556 {offsets = [0, 16], sizes = [1, 8], strides = [1, 1]} : vector<1x32xf32> to vector<1x8xf32>
    %600 = vector.extract_strided_slice %561 {offsets = [0, 16], sizes = [8, 8], strides = [1, 1]} : vector<8x32xf32> to vector<8x8xf32>
    %601 = vector.extract_strided_slice %566 {offsets = [0, 16], sizes = [8, 8], strides = [1, 1]} : vector<8x32xf32> to vector<8x8xf32>
    %cst_212 = arith.constant dense<0.000000e+00> : vector<1x8xf32>
    %602 = tpu.matmul %599, %600, %cst_212 {dimension_numbers = #tpu.dot_dimension_numbers<[1], [1], [0], [0], [0, 0, 1, 0], [], []>} : vector<1x8xf32>, vector<8x8xf32>, vector<1x8xf32> -> vector<1x8xf32>
    %cst_213 = arith.constant 0.176776692 : f32
    %603 = vector.broadcast %cst_213 : f32 to vector<1x8xf32>
    %604 = arith.mulf %602, %603 : vector<1x8xf32>
    %cst_214 = arith.constant dense<0xFF800000> : vector<1xf32>
    %605 = vector.multi_reduction <maximumf>, %604, %cst_214 [1] : vector<1x8xf32> to vector<1xf32>
    %606 = vector.shape_cast %605 : vector<1xf32> to vector<1x1xf32>
    %607 = vector.broadcast %606 : vector<1x1xf32> to vector<1x8xf32>
    %608 = arith.subf %604, %607 : vector<1x8xf32>
    %609 = math.exp %608 : vector<1x8xf32>
    %cst_215 = arith.constant dense<0.000000e+00> : vector<1xf32>
    %610 = vector.multi_reduction <add>, %609, %cst_215 [1] : vector<1x8xf32> to vector<1xf32>
    %611 = vector.shape_cast %610 : vector<1xf32> to vector<1x1xf32>
    %612 = vector.broadcast %611 : vector<1x1xf32> to vector<1x8xf32>
    %613 = arith.divf %609, %612 : vector<1x8xf32>
    %cst_216 = arith.constant dense<0.000000e+00> : vector<1x8xf32>
    %614 = tpu.matmul %613, %601, %cst_216 {dimension_numbers = #tpu.dot_dimension_numbers<[1], [0], [0], [1], [0, 0, 1, 1], [], []>} : vector<1x8xf32>, vector<8x8xf32>, vector<1x8xf32> -> vector<1x8xf32>
    %615 = vector.extract_strided_slice %556 {offsets = [0, 24], sizes = [1, 8], strides = [1, 1]} : vector<1x32xf32> to vector<1x8xf32>
    %616 = vector.extract_strided_slice %561 {offsets = [0, 24], sizes = [8, 8], strides = [1, 1]} : vector<8x32xf32> to vector<8x8xf32>
    %617 = vector.extract_strided_slice %566 {offsets = [0, 24], sizes = [8, 8], strides = [1, 1]} : vector<8x32xf32> to vector<8x8xf32>
    %cst_217 = arith.constant dense<0.000000e+00> : vector<1x8xf32>
    %618 = tpu.matmul %615, %616, %cst_217 {dimension_numbers = #tpu.dot_dimension_numbers<[1], [1], [0], [0], [0, 0, 1, 0], [], []>} : vector<1x8xf32>, vector<8x8xf32>, vector<1x8xf32> -> vector<1x8xf32>
    %cst_218 = arith.constant 0.176776692 : f32
    %619 = vector.broadcast %cst_218 : f32 to vector<1x8xf32>
    %620 = arith.mulf %618, %619 : vector<1x8xf32>
    %cst_219 = arith.constant dense<0xFF800000> : vector<1xf32>
    %621 = vector.multi_reduction <maximumf>, %620, %cst_219 [1] : vector<1x8xf32> to vector<1xf32>
    %622 = vector.shape_cast %621 : vector<1xf32> to vector<1x1xf32>
    %623 = vector.broadcast %622 : vector<1x1xf32> to vector<1x8xf32>
    %624 = arith.subf %620, %623 : vector<1x8xf32>
    %625 = math.exp %624 : vector<1x8xf32>
    %cst_220 = arith.constant dense<0.000000e+00> : vector<1xf32>
    %626 = vector.multi_reduction <add>, %625, %cst_220 [1] : vector<1x8xf32> to vector<1xf32>
    %627 = vector.shape_cast %626 : vector<1xf32> to vector<1x1xf32>
    %628 = vector.broadcast %627 : vector<1x1xf32> to vector<1x8xf32>
    %629 = arith.divf %625, %628 : vector<1x8xf32>
    %cst_221 = arith.constant dense<0.000000e+00> : vector<1x8xf32>
    %630 = tpu.matmul %629, %617, %cst_221 {dimension_numbers = #tpu.dot_dimension_numbers<[1], [0], [0], [1], [0, 0, 1, 1], [], []>} : vector<1x8xf32>, vector<8x8xf32>, vector<1x8xf32> -> vector<1x8xf32>
    %631 = tpu.concatenate %582, %598, %614, %630 in 1 : vector<1x8xf32>, vector<1x8xf32>, vector<1x8xf32>, vector<1x8xf32> -> vector<1x32xf32>
    %632 = arith.addf %556, %631 : vector<1x32xf32>
    %c904 = arith.constant 904 : index
    %c0_222 = arith.constant 0 : index
    %633 = vector.load %arg3[%c904, %c0_222] : memref<1016x128xf32, #tpu.memory_space<vmem>>, vector<1x32xf32>
    %c912 = arith.constant 912 : index
    %c0_223 = arith.constant 0 : index
    %634 = vector.load %arg3[%c912, %c0_223] : memref<1016x128xf32, #tpu.memory_space<vmem>>, vector<1x32xf32>
    %cst_224 = arith.constant dense<0.000000e+00> : vector<1xf32>
    %635 = vector.multi_reduction <add>, %632, %cst_224 [1] : vector<1x32xf32> to vector<1xf32>
    %636 = vector.shape_cast %635 : vector<1xf32> to vector<1x1xf32>
    %cst_225 = arith.constant 3.200000e+01 : f32
    %637 = vector.broadcast %cst_225 : f32 to vector<1x1xf32>
    %638 = arith.divf %636, %637 : vector<1x1xf32>
    %639 = vector.broadcast %638 : vector<1x1xf32> to vector<1x32xf32>
    %640 = arith.subf %632, %639 : vector<1x32xf32>
    %641 = arith.mulf %640, %640 : vector<1x32xf32>
    %cst_226 = arith.constant dense<0.000000e+00> : vector<1xf32>
    %642 = vector.multi_reduction <add>, %641, %cst_226 [1] : vector<1x32xf32> to vector<1xf32>
    %643 = vector.shape_cast %642 : vector<1xf32> to vector<1x1xf32>
    %cst_227 = arith.constant 3.200000e+01 : f32
    %644 = vector.broadcast %cst_227 : f32 to vector<1x1xf32>
    %645 = arith.divf %643, %644 : vector<1x1xf32>
    %646 = vector.broadcast %638 : vector<1x1xf32> to vector<1x32xf32>
    %647 = arith.subf %632, %646 : vector<1x32xf32>
    %cst_228 = arith.constant 9.99999974E-6 : f32
    %648 = vector.broadcast %cst_228 : f32 to vector<1x1xf32>
    %649 = arith.addf %645, %648 : vector<1x1xf32>
    %650 = math.rsqrt %649 : vector<1x1xf32>
    %651 = vector.broadcast %650 : vector<1x1xf32> to vector<1x32xf32>
    %652 = arith.mulf %647, %651 : vector<1x32xf32>
    %653 = arith.mulf %652, %633 : vector<1x32xf32>
    %654 = arith.addf %653, %634 : vector<1x32xf32>
    %c864 = arith.constant 864 : index
    %c0_229 = arith.constant 0 : index
    %655 = vector.load %arg3[%c864, %c0_229] : memref<1016x128xf32, #tpu.memory_space<vmem>>, vector<32x32xf32>
    %c896 = arith.constant 896 : index
    %c0_230 = arith.constant 0 : index
    %656 = vector.load %arg3[%c896, %c0_230] : memref<1016x128xf32, #tpu.memory_space<vmem>>, vector<1x32xf32>
    %cst_231 = arith.constant dense<0.000000e+00> : vector<1x32xf32>
    %657 = tpu.matmul %654, %655, %cst_231 {dimension_numbers = #tpu.dot_dimension_numbers<[1], [0], [0], [1], [0, 0, 1, 1], [], []>} : vector<1x32xf32>, vector<32x32xf32>, vector<1x32xf32> -> vector<1x32xf32>
    %658 = arith.addf %657, %656 : vector<1x32xf32>
    %cst_232 = arith.constant 0.000000e+00 : f32
    %659 = vector.broadcast %cst_232 : f32 to vector<1x32xf32>
    %660 = arith.maximumf %658, %659 : vector<1x32xf32>
    %661 = arith.addf %654, %660 : vector<1x32xf32>
    %c920 = arith.constant 920 : index
    %c0_233 = arith.constant 0 : index
    %662 = vector.load %arg3[%c920, %c0_233] : memref<1016x128xf32, #tpu.memory_space<vmem>>, vector<1x32xf32>
    %c928 = arith.constant 928 : index
    %c0_234 = arith.constant 0 : index
    %663 = vector.load %arg3[%c928, %c0_234] : memref<1016x128xf32, #tpu.memory_space<vmem>>, vector<1x32xf32>
    %cst_235 = arith.constant dense<0.000000e+00> : vector<1xf32>
    %664 = vector.multi_reduction <add>, %661, %cst_235 [1] : vector<1x32xf32> to vector<1xf32>
    %665 = vector.shape_cast %664 : vector<1xf32> to vector<1x1xf32>
    %cst_236 = arith.constant 3.200000e+01 : f32
    %666 = vector.broadcast %cst_236 : f32 to vector<1x1xf32>
    %667 = arith.divf %665, %666 : vector<1x1xf32>
    %668 = vector.broadcast %667 : vector<1x1xf32> to vector<1x32xf32>
    %669 = arith.subf %661, %668 : vector<1x32xf32>
    %670 = arith.mulf %669, %669 : vector<1x32xf32>
    %cst_237 = arith.constant dense<0.000000e+00> : vector<1xf32>
    %671 = vector.multi_reduction <add>, %670, %cst_237 [1] : vector<1x32xf32> to vector<1xf32>
    %672 = vector.shape_cast %671 : vector<1xf32> to vector<1x1xf32>
    %cst_238 = arith.constant 3.200000e+01 : f32
    %673 = vector.broadcast %cst_238 : f32 to vector<1x1xf32>
    %674 = arith.divf %672, %673 : vector<1x1xf32>
    %675 = vector.broadcast %667 : vector<1x1xf32> to vector<1x32xf32>
    %676 = arith.subf %661, %675 : vector<1x32xf32>
    %cst_239 = arith.constant 9.99999974E-6 : f32
    %677 = vector.broadcast %cst_239 : f32 to vector<1x1xf32>
    %678 = arith.addf %674, %677 : vector<1x1xf32>
    %679 = math.rsqrt %678 : vector<1x1xf32>
    %680 = vector.broadcast %679 : vector<1x1xf32> to vector<1x32xf32>
    %681 = arith.mulf %676, %680 : vector<1x32xf32>
    %682 = arith.mulf %681, %662 : vector<1x32xf32>
    %683 = arith.addf %682, %663 : vector<1x32xf32>
    %c936 = arith.constant 936 : index
    %c0_240 = arith.constant 0 : index
    %684 = vector.load %arg3[%c936, %c0_240] : memref<1016x128xf32, #tpu.memory_space<vmem>>, vector<32x32xf32>
    %c968 = arith.constant 968 : index
    %c0_241 = arith.constant 0 : index
    %685 = vector.load %arg3[%c968, %c0_241] : memref<1016x128xf32, #tpu.memory_space<vmem>>, vector<1x32xf32>
    %cst_242 = arith.constant dense<0.000000e+00> : vector<1x32xf32>
    %686 = tpu.matmul %683, %684, %cst_242 {dimension_numbers = #tpu.dot_dimension_numbers<[1], [0], [0], [1], [0, 0, 1, 1], [], []>} : vector<1x32xf32>, vector<32x32xf32>, vector<1x32xf32> -> vector<1x32xf32>
    %687 = arith.addf %686, %685 : vector<1x32xf32>
    %cst_243 = arith.constant 0.000000e+00 : f32
    %688 = vector.broadcast %cst_243 : f32 to vector<1x32xf32>
    %689 = arith.maximumf %687, %688 : vector<1x32xf32>
    %c976 = arith.constant 976 : index
    %c0_244 = arith.constant 0 : index
    %690 = vector.load %arg3[%c976, %c0_244] : memref<1016x128xf32, #tpu.memory_space<vmem>>, vector<32x8xf32>
    %c1008 = arith.constant 1008 : index
    %c0_245 = arith.constant 0 : index
    %691 = vector.load %arg3[%c1008, %c0_245] : memref<1016x128xf32, #tpu.memory_space<vmem>>, vector<1x8xf32>
    %cst_246 = arith.constant dense<0.000000e+00> : vector<1x8xf32>
    %692 = tpu.matmul %689, %690, %cst_246 {dimension_numbers = #tpu.dot_dimension_numbers<[1], [0], [0], [1], [0, 0, 1, 1], [], []>} : vector<1x32xf32>, vector<32x8xf32>, vector<1x8xf32> -> vector<1x8xf32>
    %693 = arith.addf %692, %691 : vector<1x8xf32>
    %c0_247 = arith.constant 0 : index
    %c0_248 = arith.constant 0 : index
    %c0_249 = arith.constant 0 : index
    %694 = vector.load %arg2[%c0_247, %c0_248, %c0_249] : memref<1x1x8xf32, #tpu.memory_space<vmem>>, vector<1x1x8xf32>
    %695 = vector.shape_cast %694 : vector<1x1x8xf32> to vector<1x8xf32>
    %cst_250 = arith.constant 5.000000e-01 : f32
    %696 = vector.broadcast %cst_250 : f32 to vector<1x8xf32>
    %697 = arith.cmpf ogt, %695, %696 : vector<1x8xf32>
    %cst_251 = arith.constant -9.99999995E+11 : f32
    %698 = vector.broadcast %cst_251 : f32 to vector<1x8xf32>
    %699 = arith.select %697, %693, %698 : vector<1x8xi1>, vector<1x8xf32>
    %cst_252 = arith.constant dense<0xFF800000> : vector<1xf32>
    %700 = vector.multi_reduction <maximumf>, %699, %cst_252 [1] : vector<1x8xf32> to vector<1xf32>
    %701 = vector.shape_cast %700 : vector<1xf32> to vector<1x1xf32>
    %702 = vector.broadcast %701 : vector<1x1xf32> to vector<1x8xf32>
    %703 = arith.subf %699, %702 : vector<1x8xf32>
    %704 = math.exp %703 : vector<1x8xf32>
    %cst_253 = arith.constant dense<0.000000e+00> : vector<1xf32>
    %705 = vector.multi_reduction <add>, %704, %cst_253 [1] : vector<1x8xf32> to vector<1xf32>
    %706 = vector.shape_cast %705 : vector<1xf32> to vector<1x1xf32>
    %707 = math.log %706 : vector<1x1xf32>
    %708 = arith.addf %701, %707 : vector<1x1xf32>
    %709 = vector.broadcast %708 : vector<1x1xf32> to vector<1x8xf32>
    %710 = arith.subf %699, %709 : vector<1x8xf32>
    %711 = tpu.concatenate %699, %710 in 1 : vector<1x8xf32>, vector<1x8xf32> -> vector<1x16xf32>
    %c0_254 = arith.constant 0 : index
    %c0_255 = arith.constant 0 : index
    %c0_256 = arith.constant 0 : index
    %712 = vector.load %arg4[%c0_254, %c0_255, %c0_256] : memref<1x1x16xf32, #tpu.memory_space<vmem>>, vector<1x1x16xf32>
    %713 = vector.shape_cast %712 : vector<1x1x16xf32> to vector<1x16xf32>
    %714 = vector.shape_cast %711 : vector<1x16xf32> to vector<1x1x16xf32>
    tpu.vector_store %arg4[%c0_254, %c0_255, %c0_256], %714 {strides = array<i32>} : memref<1x1x16xf32, #tpu.memory_space<vmem>>, vector<1x1x16xf32>,
    return
  }
  func.func @transform_0(%arg0: i32) -> (i32, i32, i32) {
    %c0_i32 = arith.constant 0 : i32
    %c0_i32_0 = arith.constant 0 : i32
    %c0_i32_1 = arith.constant 0 : i32
    return %arg0, %c0_i32, %c0_i32_0 : i32, i32, i32
  }
  func.func @transform_1(%arg0: i32) -> (i32, i32, i32) {
    %c0_i32 = arith.constant 0 : i32
    %c0_i32_0 = arith.constant 0 : i32
    %c0_i32_1 = arith.constant 0 : i32
    return %arg0, %c0_i32, %c0_i32_0 : i32, i32, i32
  }
  func.func @transform_2(%arg0: i32) -> (i32, i32) {
    %c0_i32 = arith.constant 0 : i32
    %c0_i32_0 = arith.constant 0 : i32
    %c0_i32_1 = arith.constant 0 : i32
    return %c0_i32, %c0_i32_0 : i32, i32
  }
  func.func @transform_3(%arg0: i32) -> (i32, i32, i32) {
    %c0_i32 = arith.constant 0 : i32
    %c0_i32_0 = arith.constant 0 : i32
    %c0_i32_1 = arith.constant 0 : i32
    return %arg0, %c0_i32, %c0_i32_0 : i32, i32, i32
  }
}

</mosaic_0001>

<llo_original>
// kernel: tpu_custom_call.1
$region0: #{tpu_custom_call.1}
  #allocation0 [shape = 'u32[]', space=smem, size = 0x4, offset = 0x4, fixed_abs, tag = 'smem constant byte address 0x4 - core index']
  #allocation1 [shape = 'u32[144,128]{1,0:T(1,128)}', space=vmem, size = 0x12000, scoped, tag = 'internal scratch']
  %s0 = inlined_call_operand.hbm [shape: f32[2,8,16], index: 0, kind: input, shape index: {}]
  %s1 = inlined_call_operand.vmem [shape: f32[2,1,8], index: 1, kind: input, shape index: {}]
  %s2 = inlined_call_operand.hbm [shape: f32[1016,128], index: 2, kind: input, shape index: {}]
  %s3 = inlined_call_operand.hbm [shape: f32[2,1,16], index: 3, kind: output, shape index: {}]
  %s4 = sld [smem:[#allocation0]]
  $region53: #{tpu_custom_call.1} parent=0
    _
  %s6 = ssub.s32 1, %s4
  %s7 = scalar_select 0, %s6, %s4
  $region1: #{tpu_custom_call.1} parent=0
    #allocation2 [shape = 'u8[8192]{0}', space=vmem, size = 0x2000, scoped, tag = 'input window, operand 0']
    #allocation3 [shape = 's32[2]{0}', space=sflag, size = 0x8, scoped, tag = 'scoped memory for tpu_custom_call.1']
    #allocation4 [shape = 's32[2]{0}', space=sflag, size = 0x8, scoped, tag = 'scoped memory for tpu_custom_call.1']
    #allocation5 [shape = 'u8[520192]{0}', space=vmem, size = 0x7f000, scoped, tag = 'input window, operand 2, single buffered']
    #allocation6 [shape = 's32[1]{0}', space=sflag, size = 0x4, scoped, tag = 'scoped memory for tpu_custom_call.1']
    #allocation7 [shape = 'u8[1024]{0}', space=vmem, size = 0x400, scoped, tag = 'output window, operand 0']
    %8 = vsyncpa [#allocation3], 0
    %s9 = scalar_lea.sflag [#allocation3], 1
    %10 = vsyncpa %s9, 0
    %11 = vsyncpa [#allocation6], 0
    %12 = vsyncpa [#allocation4], 0
    %s13 = scalar_lea.sflag [#allocation4], 1
    %14 = vsyncpa %s13, 0
    loop: start=0, step=1, limit=4
    $region2: #{tpu_custom_call.1} parent=1 // loop_pre_header
      _
    $region3: #{tpu_custom_call.1} parent=1 // loop_header
      %s16 = sphi 0, %s20
      %p17 = scmp.ge.s32.totalorder %s16, 4
      %s26 = sphi 0, %s28
      %s29 = sphi 0, %s26
      %s30 = sphi 0, %s29
      %s46 = sphi 0, %s30
      %s52 = sphi 0, %s54
      %s55 = sphi 0, %s52
      %s56 = sphi 0, %s55
      %s72 = sphi 0, %s56
      %s76 = sphi 0, %s76
      %s78 = sphi 0, %s76
      %s79 = sphi 0, %s78
      %s93 = sphi 0, %s79
      %s99 = sphi 0, %s101
      %s102 = sphi 0, %s99
      %s103 = sphi 0, %s102
      %s119 = sphi 0, %s103
    $region4: #{tpu_custom_call.1} parent=1 // loop_header_branch
      %19 = sbr.rel (%p17) target = $region8
    $region5: #{tpu_custom_call.1} parent=1 // loop_body
      %s21 = ssub.s32 %s16, 1
      %s22 = ssub.s32 %s16, 2
      %s23 = sadd.s32 %s16, 1
      %s24 = ssub.s32 %s16, %s23
      %p25 = scmp.eq.s32.totalorder %s24, 0
      %s27 = sadd.s32 %s26, 1
      %s28 = scalar_select %p25, %s26, %s27
      %p31 = pneg %p25
      %p32 = scmp.eq.s32.totalorder %s16, 1
      %p33 = por %p31, %p32
      %p34 = scmp.ne.s32.totalorder %s26, %s29
      %p35 = scmp.eq.s32.totalorder %s16, 0
      %p36 = por %p34, %p35
      %p37 = scmp.ne.s32.totalorder %s26, %s29
      %p38 = scmp.eq.s32.totalorder %s21, 1
      %p39 = por %p37, %p38
      %p40 = scmp.ne.s32.totalorder %s29, %s30
      %p41 = scmp.eq.s32.totalorder %s21, 0
      %p42 = por %p40, %p41
      %p43 = scmp.ne.s32.totalorder %s29, %s30
      %p44 = scmp.eq.s32.totalorder %s22, 1
      %p45 = por %p43, %p44
      %p47 = scmp.ne.s32.totalorder %s30, %s46
      %p48 = scmp.eq.s32.totalorder %s22, 0
      %p49 = por %p47, %p48
      %s50 = ssub.s32 %s16, %s23
      %p51 = scmp.eq.s32.totalorder %s50, 0
      %s53 = sadd.s32 %s52, 1
      %s54 = scalar_select %p51, %s52, %s53
      %p57 = pneg %p51
      %p58 = scmp.eq.s32.totalorder %s16, 1
      %p59 = por %p57, %p58
      %p60 = scmp.ne.s32.totalorder %s52, %s55
      %p61 = scmp.eq.s32.totalorder %s16, 0
      %p62 = por %p60, %p61
      %p63 = scmp.ne.s32.totalorder %s52, %s55
      %p64 = scmp.eq.s32.totalorder %s21, 1
      %p65 = por %p63, %p64
      %p66 = scmp.ne.s32.totalorder %s55, %s56
      %p67 = scmp.eq.s32.totalorder %s21, 0
      %p68 = por %p66, %p67
      %p69 = scmp.ne.s32.totalorder %s55, %s56
      %p70 = scmp.eq.s32.totalorder %s22, 1
      %p71 = por %p69, %p70
      %p73 = scmp.ne.s32.totalorder %s56, %s72
      %p74 = scmp.eq.s32.totalorder %s22, 0
      %p75 = por %p73, %p74
      %s77 = sadd.s32 %s76, 1
      %p80 = scmp.eq.s32.totalorder %s16, 1
      %p81 = scmp.ne.s32.totalorder %s76, %s78
      %p82 = scmp.eq.s32.totalorder %s16, 0
      %p83 = por %p81, %p82
      %p84 = scmp.ne.s32.totalorder %s76, %s78
      %p85 = scmp.eq.s32.totalorder %s21, 1
      %p86 = por %p84, %p85
      %p87 = scmp.ne.s32.totalorder %s78, %s79
      %p88 = scmp.eq.s32.totalorder %s21, 0
      %p89 = por %p87, %p88
      %p90 = scmp.ne.s32.totalorder %s78, %s79
      %p91 = scmp.eq.s32.totalorder %s22, 1
      %p92 = por %p90, %p91
      %p94 = scmp.ne.s32.totalorder %s79, %s93
      %p95 = scmp.eq.s32.totalorder %s22, 0
      %p96 = por %p94, %p95
      %s97 = ssub.s32 %s16, %s23
      %p98 = scmp.eq.s32.totalorder %s97, 0
      %s100 = sadd.s32 %s99, 1
      %s101 = scalar_select %p98, %s99, %s100
      %p104 = pneg %p98
      %p105 = scmp.eq.s32.totalorder %s16, 1
      %p106 = por %p104, %p105
      %p107 = scmp.ne.s32.totalorder %s99, %s102
      %p108 = scmp.eq.s32.totalorder %s16, 0
      %p109 = por %p107, %p108
      %p110 = scmp.ne.s32.totalorder %s99, %s102
      %p111 = scmp.eq.s32.totalorder %s21, 1
      %p112 = por %p110, %p111
      %p113 = scmp.ne.s32.totalorder %s102, %s103
      %p114 = scmp.eq.s32.totalorder %s21, 0
      %p115 = por %p113, %p114
      %p116 = scmp.ne.s32.totalorder %s102, %s103
      %p117 = scmp.eq.s32.totalorder %s22, 1
      %p118 = por %p116, %p117
      %p120 = scmp.ne.s32.totalorder %s103, %s119
      %p121 = scmp.eq.s32.totalorder %s22, 0
      %p122 = por %p120, %p121
      %p123 = scmp.le.s32.totalorder 1, %s16
      %p124 = scmp.lt.s32.totalorder %s16, 3
      %p125 = pnand %p123, %p124
      %p126 = pneg %p125
      // Predicated region
      $region9: #{tpu_custom_call.1} parent=5 // pred_check
        _
      $region10: #{tpu_custom_call.1} parent=5 // pred_check_branch
        %128 = sbr.rel (%p125) target = $region12
      $region11: #{tpu_custom_call.1} parent=5 // pred_region
        %s129 = ssub.s32 %s16, 1
        // Predicated region
        $region13: #{tpu_custom_call.1} parent=11 // pred_check
          %p130 = pneg %p89
        $region14: #{tpu_custom_call.1} parent=11 // pred_check_branch
          %132 = sbr.rel (%p130) target = $region16
        $region15: #{tpu_custom_call.1} parent=11 // pred_region
          %s134 = ssub.s32 16256, 16256
          %135 = vsyncadd [#allocation6], %s134
          %s136 = sshll.u32 [#allocation5], 4
          %s137 = int_to_ptr.vmem [resolvable:$true] %s136
          %142 = dma.hbm_to_vmem [thread:$0]  %s2, 16256, %s137, [#allocation6], 128, 128, 8
        $region16: #{tpu_custom_call.1} parent=11 // pred_fallthru
          _
      $region12: #{tpu_custom_call.1} parent=5 // pred_fallthru
        _
      %p143 = scmp.lt.s32.totalorder %s16, 2
      // Predicated region
      $region17: #{tpu_custom_call.1} parent=5 // pred_check
        %p144 = pneg %p143
      $region18: #{tpu_custom_call.1} parent=5 // pred_check_branch
        %146 = sbr.rel (%p144) target = $region20
      $region19: #{tpu_custom_call.1} parent=5 // pred_region
        // Predicated region
        $region21: #{tpu_custom_call.1} parent=19 // pred_check
          %p147 = pneg %p36
        $region22: #{tpu_custom_call.1} parent=19 // pred_check_branch
          %149 = sbr.rel (%p147) target = $region24
        $region23: #{tpu_custom_call.1} parent=19 // pred_region
          %s150 = sand.u32 %s26, 1
          %s151 = scalar_lea.sflag [#allocation3], %s150
          %s152 = sand.u32 %s26, 1
          %s153 = smul.addr %s152, 8
          %s154 = scalar_lea.vmem [#allocation2], %s153
          %s156 = ssub.s32 128, 128
          %157 = vsyncadd %s151, %s156
          %s158 = smul.addr %s16, 128
          %s159 = scalar_lea.hbm %s0, %s158
          %s161 = sshll.u32 %s154, 4
          %s162 = int_to_ptr.vmem [resolvable:$true] %s161
          %164 = dma.hbm_to_vmem [thread:$0]  %s159, 128, %s162, %s151
        $region24: #{tpu_custom_call.1} parent=19 // pred_fallthru
          _
        // Predicated region
        $region25: #{tpu_custom_call.1} parent=19 // pred_check
          %p165 = pneg %p62
        $region26: #{tpu_custom_call.1} parent=19 // pred_check_branch
          %167 = sbr.rel (%p165) target = $region28
        $region27: #{tpu_custom_call.1} parent=19 // pred_region
          %p168 = scmp.lt.s32.totalorder %s16, 1
          %s169 = scalar_select %p168, %s16, 1
          %s170 = scalar_lea.vmem %s1, %s169
        $region28: #{tpu_custom_call.1} parent=19 // pred_fallthru
          _
      $region20: #{tpu_custom_call.1} parent=5 // pred_fallthru
        _
      %p171 = scmp.le.s32.totalorder 1, %s16
      %p172 = scmp.lt.s32.totalorder %s16, 3
      %p173 = pnand %p171, %p172
      %p174 = pneg %p173
      // Predicated region
      $region29: #{tpu_custom_call.1} parent=5 // pred_check
        _
      $region30: #{tpu_custom_call.1} parent=5 // pred_check_branch
        %176 = sbr.rel (%p173) target = $region32
      $region31: #{tpu_custom_call.1} parent=5 // pred_region
        %s177 = ssub.s32 %s16, 1
        %s178 = sand.u32 %s29, 1
        %s179 = scalar_lea.sflag [#allocation3], %s178
        %s180 = sand.u32 %s29, 1
        %s181 = smul.addr %s180, 8
        %s182 = scalar_lea.vmem [#allocation2], %s181
        // Predicated region
        $region33: #{tpu_custom_call.1} parent=31 // pred_check
          %p183 = pneg %p42
        $region34: #{tpu_custom_call.1} parent=31 // pred_check_branch
          %185 = sbr.rel (%p183) target = $region36
        $region35: #{tpu_custom_call.1} parent=31 // pred_region
          %186 = dma.done %s179, 128
        $region36: #{tpu_custom_call.1} parent=31 // pred_fallthru
          _
        // Predicated region
        $region37: #{tpu_custom_call.1} parent=31 // pred_check
          %p187 = pneg %p89
        $region38: #{tpu_custom_call.1} parent=31 // pred_check_branch
          %189 = sbr.rel (%p187) target = $region40
        $region39: #{tpu_custom_call.1} parent=31 // pred_region
          %190 = dma.done [#allocation6], 16256
        $region40: #{tpu_custom_call.1} parent=31 // pred_fallthru
          _
        %s191 = sand.u32 %s29, 1
        %s192 = scalar_lea.sflag [#allocation3], %s191
        %s193 = sand.u32 %s29, 1
        %s194 = smul.addr %s193, 8
        %s195 = scalar_lea.vmem [#allocation2], %s194
        %p196 = pneg %p42
        %p197 = pneg %p39
        %p198 = scmp.lt.s32.totalorder %s21, 1
        %s199 = scalar_select %p198, %s21, 1
        %s200 = scalar_lea.vmem %s1, %s199
        %p201 = pneg %p68
        %p202 = pneg %p65
        %p203 = pneg %p89
        %p204 = pneg %p86
        %p205 = pneg %p115
        %p206 = pneg %p112
        %s207 = sand.u32 %s102, 1
        %s208 = scalar_lea.sflag [#allocation4], %s207
        %s209 = sand.u32 %s102, 1
        %s210 = scalar_lea.vmem [#allocation7], %s209
        %p211 = scmp.lt.s32.totalorder %s21, 1
        %s212 = scalar_select %p211, %s21, 1
        %s213 = scalar_lea.vmem %s1, %s212
        %v214 = vld [vmem:[%s182] sm:$0xff]
        %v215 = vld [vmem:[#allocation5] sm:$0xff]
        %v216 = vld [vmem:[#allocation5 + $0x8] sm:$0xff]
        %v217 = vld [vmem:[#allocation5 + $0x10] sm:$0xff]
        %v218 = vld [vmem:[#allocation5 + $0x18] sm:$0xff]
        %v219 = vld [vmem:[#allocation5 + $0x20] sm:$0xff]
        %v220 = vld [vmem:[#allocation5 + $0x28] sm:$0x1]
        %v221 = vlaneseq
        %v222 = vshrl.u32 %v221, 7
        %v223 = vsub.s32 0, %v222
        %v224 = vrot.slane %v220, %v223
        %vm225 = vcmask 261120
        %v227 = vsel %vm225, %v215, 0
        %229 = vmatprep.subr.mxu0 0.0
        %230 = vmatpush1.msra.mxu0 %v216
        %231 = vmatprep.subr.mxu0 0.0
        %232 = vmatpush1.msra.mxu0 %v217
        %233 = vmatprep.subr.mxu0 0.0
        %234 = vmatpush1.msra.mxu0 %v218
        %235 = vmatprep.subr.mxu0 0.0
        %236 = vmatpush1.msra.mxu0 %v219
        %237 = vmatprep.subr.mxu0 0.0
        %238 = vmatpush1.msra.mxu0 0.0
        %239 = vmatprep.subr.mxu0 0.0
        %240 = vmatpush1.msra.mxu0 0.0
        %241 = vmatprep.subr.mxu0 0.0
        %242 = vmatpush1.msra.mxu0 0.0
        %243 = vmatprep.subr.mxu0 0.0
        %244 = vmatpush1.msra.mxu0 0.0
        %245 = vmatprep.subr.mxu0 0.0
        %246 = vmatpush1.msra.mxu0 0.0
        %247 = vmatprep.subr.mxu0 0.0
        %248 = vmatpush1.msra.mxu0 0.0
        %249 = vmatprep.subr.mxu0 0.0
        %250 = vmatpush1.msra.mxu0 0.0
        %251 = vmatprep.subr.mxu0 0.0
        %252 = vmatpush1.msra.mxu0 0.0
        %253 = vmatprep.subr.mxu0 0.0
        %254 = vmatpush1.msra.mxu0 0.0
        %255 = vmatprep.subr.mxu0 0.0
        %256 = vmatpush1.msra.mxu0 0.0
        %257 = vmatprep.subr.mxu0 0.0
        %258 = vmatpush1.msra.mxu0 0.0
        %259 = vmatprep.subr.mxu0 0.0
        %260 = vmatpush1.msra.mxu0 0.0
        %261 = vmatprep.subr.mxu0 0.0
        %262 = vmatpush1.msra.mxu0 0.0
        %263 = vmatprep.subr.mxu0 0.0
        %264 = vmatpush1.msra.mxu0 0.0
        %265 = vmatprep.subr.mxu0 0.0
        %266 = vmatpush1.msra.mxu0 0.0
        %267 = vmatprep.subr.mxu0 0.0
        %268 = vmatpush1.msra.mxu0 0.0
        %269 = vmatprep.subr.mxu0 0.0
        %270 = vmatpush1.msra.mxu0 0.0
        %271 = vmatprep.subr.mxu0 0.0
        %272 = vmatpush1.msra.mxu0 0.0
        %273 = vmatprep.subr.mxu0 0.0
        %274 = vmatpush1.msra.mxu0 0.0
        %275 = vmatprep.subr.mxu0 0.0
        %276 = vmatpush1.msra.mxu0 0.0
        %277 = vmatprep.subr.mxu0 0.0
        %278 = vmatpush1.msra.mxu0 0.0
        %279 = vmatprep.subr.mxu0 0.0
        %280 = vmatpush1.msra.mxu0 0.0
        %281 = vmatprep.subr.mxu0 0.0
        %282 = vmatpush1.msra.mxu0 0.0
        %283 = vmatprep.subr.mxu0 0.0
        %284 = vmatpush1.msra.mxu0 0.0
        %285 = vmatprep.subr.mxu0 0.0
        %286 = vmatpush1.msra.mxu0 0.0
        %287 = vmatprep.subr.mxu0 0.0
        %288 = vmatpush1.msra.mxu0 0.0
        %289 = vmatprep.subr.mxu0 0.0
        %290 = vmatpush1.msra.mxu0 0.0
        %291 = vmatprep.subr.mxu0 0.0
        %292 = vmatpush1.msra.mxu0 0.0
        %293 = vmatprep.mubr.f32.mxu0 0.0
        %294 = vmatmul.mubr.f32.gmra.mrb[0].mxu0 %v227
        %v295 = vpop.f32.mrb[0].mxu0
        %v296 = vadd.f32 %v224, %v295
        %v297 = vpop.f32.mrb[0].mxu0
        %298 = vdwg.mxu0
        %v299 = vld [vmem:[#allocation5 + $0x30] sm:$0xff]
        %v300 = vld [vmem:[#allocation5 + $0x38] sm:$0xff]
        %v301 = vld [vmem:[#allocation5 + $0x40] sm:$0x1]
        %v302 = vlaneseq
        %v303 = vshrl.u32 %v302, 7
        %v304 = vsub.s32 0, %v303
        %v305 = vrot.slane %v301, %v304
        %vm306 = vcmask 130048
        %v308 = vsel %vm306, %v214, 0
        %310 = vmatprep.subr.mxu0 0.0
        %311 = vmatpush1.msra.mxu0 %v299
        %312 = vmatprep.subr.mxu0 0.0
        %313 = vmatpush1.msra.mxu0 %v300
        %314 = vmatprep.subr.mxu0 0.0
        %315 = vmatpush1.msra.mxu0 0.0
        %316 = vmatprep.subr.mxu0 0.0
        %317 = vmatpush1.msra.mxu0 0.0
        %318 = vmatprep.subr.mxu0 0.0
        %319 = vmatpush1.msra.mxu0 0.0
        %320 = vmatprep.subr.mxu0 0.0
        %321 = vmatpush1.msra.mxu0 0.0
        %322 = vmatprep.subr.mxu0 0.0
        %323 = vmatpush1.msra.mxu0 0.0
        %324 = vmatprep.subr.mxu0 0.0
        %325 = vmatpush1.msra.mxu0 0.0
        %326 = vmatprep.subr.mxu0 0.0
        %327 = vmatpush1.msra.mxu0 0.0
        %328 = vmatprep.subr.mxu0 0.0
        %329 = vmatpush1.msra.mxu0 0.0
        %330 = vmatprep.subr.mxu0 0.0
        %331 = vmatpush1.msra.mxu0 0.0
        %332 = vmatprep.subr.mxu0 0.0
        %333 = vmatpush1.msra.mxu0 0.0
        %334 = vmatprep.subr.mxu0 0.0
        %335 = vmatpush1.msra.mxu0 0.0
        %336 = vmatprep.subr.mxu0 0.0
        %337 = vmatpush1.msra.mxu0 0.0
        %338 = vmatprep.subr.mxu0 0.0
        %339 = vmatpush1.msra.mxu0 0.0
        %340 = vmatprep.subr.mxu0 0.0
        %341 = vmatpush1.msra.mxu0 0.0
        %342 = vmatprep.subr.mxu0 0.0
        %343 = vmatpush1.msra.mxu0 0.0
        %344 = vmatprep.subr.mxu0 0.0
        %345 = vmatpush1.msra.mxu0 0.0
        %346 = vmatprep.subr.mxu0 0.0
        %347 = vmatpush1.msra.mxu0 0.0
        %348 = vmatprep.subr.mxu0 0.0
        %349 = vmatpush1.msra.mxu0 0.0
        %350 = vmatprep.subr.mxu0 0.0
        %351 = vmatpush1.msra.mxu0 0.0
        %352 = vmatprep.subr.mxu0 0.0
        %353 = vmatpush1.msra.mxu0 0.0
        %354 = vmatprep.subr.mxu0 0.0
        %355 = vmatpush1.msra.mxu0 0.0
        %356 = vmatprep.subr.mxu0 0.0
        %357 = vmatpush1.msra.mxu0 0.0
        %358 = vmatprep.subr.mxu0 0.0
        %359 = vmatpush1.msra.mxu0 0.0
        %360 = vmatprep.subr.mxu0 0.0
        %361 = vmatpush1.msra.mxu0 0.0
        %362 = vmatprep.subr.mxu0 0.0
        %363 = vmatpush1.msra.mxu0 0.0
        %364 = vmatprep.subr.mxu0 0.0
        %365 = vmatpush1.msra.mxu0 0.0
        %366 = vmatprep.subr.mxu0 0.0
        %367 = vmatpush1.msra.mxu0 0.0
        %368 = vmatprep.subr.mxu0 0.0
        %369 = vmatpush1.msra.mxu0 0.0
        %370 = vmatprep.subr.mxu0 0.0
        %371 = vmatpush1.msra.mxu0 0.0
        %372 = vmatprep.subr.mxu0 0.0
        %373 = vmatpush1.msra.mxu0 0.0
        %374 = vmatprep.mubr.f32.mxu0 0.0
        %375 = vmatmul.mubr.f32.gmra.mrb[0].mxu0 %v308
        %v376 = vpop.f32.mrb[0].mxu0
        %v377 = vadd.f32 %v305, %v376
        %v378 = vpop.f32.mrb[0].mxu0
        %379 = vdwg.mxu0
        %v380 = vld [vmem:[#allocation5 + $0x48] sm:$0xff]
        %v381 = vld [vmem:[#allocation5 + $0x50] sm:$0xff]
        %v382 = vld [vmem:[#allocation5 + $0x58] sm:$0x1]
        %v383 = vlaneseq
        %v384 = vshrl.u32 %v383, 7
        %v385 = vsub.s32 0, %v384
        %v386 = vrot.slane %v382, %v385
        %387 = vmatprep.subr.mxu0 0.0
        %388 = vmatpush1.msra.mxu0 %v380
        %389 = vmatprep.subr.mxu0 0.0
        %390 = vmatpush1.msra.mxu0 %v381
        %391 = vmatprep.subr.mxu0 0.0
        %392 = vmatpush1.msra.mxu0 0.0
        %393 = vmatprep.subr.mxu0 0.0
        %394 = vmatpush1.msra.mxu0 0.0
        %395 = vmatprep.subr.mxu0 0.0
        %396 = vmatpush1.msra.mxu0 0.0
        %397 = vmatprep.subr.mxu0 0.0
        %398 = vmatpush1.msra.mxu0 0.0
        %399 = vmatprep.subr.mxu0 0.0
        %400 = vmatpush1.msra.mxu0 0.0
        %401 = vmatprep.subr.mxu0 0.0
        %402 = vmatpush1.msra.mxu0 0.0
        %403 = vmatprep.subr.mxu0 0.0
        %404 = vmatpush1.msra.mxu0 0.0
        %405 = vmatprep.subr.mxu0 0.0
        %406 = vmatpush1.msra.mxu0 0.0
        %407 = vmatprep.subr.mxu0 0.0
        %408 = vmatpush1.msra.mxu0 0.0
        %409 = vmatprep.subr.mxu0 0.0
        %410 = vmatpush1.msra.mxu0 0.0
        %411 = vmatprep.subr.mxu0 0.0
        %412 = vmatpush1.msra.mxu0 0.0
        %413 = vmatprep.subr.mxu0 0.0
        %414 = vmatpush1.msra.mxu0 0.0
        %415 = vmatprep.subr.mxu0 0.0
        %416 = vmatpush1.msra.mxu0 0.0
        %417 = vmatprep.subr.mxu0 0.0
        %418 = vmatpush1.msra.mxu0 0.0
        %419 = vmatprep.subr.mxu0 0.0
        %420 = vmatpush1.msra.mxu0 0.0
        %421 = vmatprep.subr.mxu0 0.0
        %422 = vmatpush1.msra.mxu0 0.0
        %423 = vmatprep.subr.mxu0 0.0
        %424 = vmatpush1.msra.mxu0 0.0
        %425 = vmatprep.subr.mxu0 0.0
        %426 = vmatpush1.msra.mxu0 0.0
        %427 = vmatprep.subr.mxu0 0.0
        %428 = vmatpush1.msra.mxu0 0.0
        %429 = vmatprep.subr.mxu0 0.0
        %430 = vmatpush1.msra.mxu0 0.0
        %431 = vmatprep.subr.mxu0 0.0
        %432 = vmatpush1.msra.mxu0 0.0
        %433 = vmatprep.subr.mxu0 0.0
        %434 = vmatpush1.msra.mxu0 0.0
        %435 = vmatprep.subr.mxu0 0.0
        %436 = vmatpush1.msra.mxu0 0.0
        %437 = vmatprep.subr.mxu0 0.0
        %438 = vmatpush1.msra.mxu0 0.0
        %439 = vmatprep.subr.mxu0 0.0
        %440 = vmatpush1.msra.mxu0 0.0
        %441 = vmatprep.subr.mxu0 0.0
        %442 = vmatpush1.msra.mxu0 0.0
        %443 = vmatprep.subr.mxu0 0.0
        %444 = vmatpush1.msra.mxu0 0.0
        %445 = vmatprep.subr.mxu0 0.0
        %446 = vmatpush1.msra.mxu0 0.0
        %447 = vmatprep.subr.mxu0 0.0
        %448 = vmatpush1.msra.mxu0 0.0
        %449 = vmatprep.subr.mxu0 0.0
        %450 = vmatpush1.msra.mxu0 0.0
        %451 = vmatprep.mubr.f32.mxu0 0.0
        %452 = vmatmul.mubr.f32.gmra.mrb[0].mxu0 %v308
        %v453 = vpop.f32.mrb[0].mxu0
        %v454 = vadd.f32 %v386, %v453
        %v455 = vpop.f32.mrb[0].mxu0
        %456 = vdwg.mxu0
        %vm457 = vcmask 64512
        %v459 = vsel %vm457, %v296, 0
        %v462 = vsel %vm457, %v377, 0
        %464 = vmatprep.subr.mxu0 0.0
        %465 = vmatpush1.xpose.msra.mxu0 %v462
        %466 = vmatprep.subr.mxu0 0.0
        %467 = vmatpush1.xpose.msra.mxu0 0.0
        %468 = vmatprep.subr.mxu0 0.0
        %469 = vmatpush1.xpose.msra.mxu0 0.0
        %470 = vmatprep.subr.mxu0 0.0
        %471 = vmatpush1.xpose.msra.mxu0 0.0
        %472 = vmatprep.subr.mxu0 0.0
        %473 = vmatpush1.xpose.msra.mxu0 0.0
        %474 = vmatprep.subr.mxu0 0.0
        %475 = vmatpush1.xpose.msra.mxu0 0.0
        %476 = vmatprep.subr.mxu0 0.0
        %477 = vmatpush1.xpose.msra.mxu0 0.0
        %478 = vmatprep.subr.mxu0 0.0
        %479 = vmatpush1.xpose.msra.mxu0 0.0
        %480 = vmatprep.subr.mxu0 0.0
        %481 = vmatpush1.xpose.msra.mxu0 0.0
        %482 = vmatprep.subr.mxu0 0.0
        %483 = vmatpush1.xpose.msra.mxu0 0.0
        %484 = vmatprep.subr.mxu0 0.0
        %485 = vmatpush1.xpose.msra.mxu0 0.0
        %486 = vmatprep.subr.mxu0 0.0
        %487 = vmatpush1.xpose.msra.mxu0 0.0
        %488 = vmatprep.subr.mxu0 0.0
        %489 = vmatpush1.xpose.msra.mxu0 0.0
        %490 = vmatprep.subr.mxu0 0.0
        %491 = vmatpush1.xpose.msra.mxu0 0.0
        %492 = vmatprep.subr.mxu0 0.0
        %493 = vmatpush1.xpose.msra.mxu0 0.0
        %494 = vmatprep.subr.mxu0 0.0
        %495 = vmatpush1.xpose.msra.mxu0 0.0
        %496 = vmatprep.subr.mxu0 0.0
        %497 = vmatpush1.xpose.msra.mxu0 0.0
        %498 = vmatprep.subr.mxu0 0.0
        %499 = vmatpush1.xpose.msra.mxu0 0.0
        %500 = vmatprep.subr.mxu0 0.0
        %501 = vmatpush1.xpose.msra.mxu0 0.0
        %502 = vmatprep.subr.mxu0 0.0
        %503 = vmatpush1.xpose.msra.mxu0 0.0
        %504 = vmatprep.subr.mxu0 0.0
        %505 = vmatpush1.xpose.msra.mxu0 0.0
        %506 = vmatprep.subr.mxu0 0.0
        %507 = vmatpush1.xpose.msra.mxu0 0.0
        %508 = vmatprep.subr.mxu0 0.0
        %509 = vmatpush1.xpose.msra.mxu0 0.0
        %510 = vmatprep.subr.mxu0 0.0
        %511 = vmatpush1.xpose.msra.mxu0 0.0
        %512 = vmatprep.subr.mxu0 0.0
        %513 = vmatpush1.xpose.msra.mxu0 0.0
        %514 = vmatprep.subr.mxu0 0.0
        %515 = vmatpush1.xpose.msra.mxu0 0.0
        %516 = vmatprep.subr.mxu0 0.0
        %517 = vmatpush1.xpose.msra.mxu0 0.0
        %518 = vmatprep.subr.mxu0 0.0
        %519 = vmatpush1.xpose.msra.mxu0 0.0
        %520 = vmatprep.subr.mxu0 0.0
        %521 = vmatpush1.xpose.msra.mxu0 0.0
        %522 = vmatprep.subr.mxu0 0.0
        %523 = vmatpush1.xpose.msra.mxu0 0.0
        %524 = vmatprep.subr.mxu0 0.0
        %525 = vmatpush1.xpose.msra.mxu0 0.0
        %526 = vmatprep.subr.mxu0 0.0
        %527 = vmatpush1.xpose.msra.mxu0 0.0
        %528 = vmatprep.mubr.f32.mxu0 0.0
        %529 = vmatmul.mubr.f32.gmra.mrb[0].mxu0 %v459
        %v530 = vpop.f32.mrb[0].mxu0
        %v531 = vadd.f32 0.0, %v530
        %v532 = vpop.f32.mrb[0].mxu0
        %533 = vdwg.mxu0
        %v534 = vmul.f32 %v531, 0.17677669
        %v535 = vsel %vm457, %v534, -inf
        %536 = vmax.xlane.f32.xlu0 %v535
        %v537 = vpop.xlane.xlu0 %536
        %v538 = vsub.f32 %v534, %v537
        %v539 = vmul.f32 %v538, 1.442695
        %v540 = vpow.pop %v539
        %v541 = vsel %vm457, %v540, 0.0
        %542 = vadd.xlane.f32.xlu0 %v541
        %v543 = vpop.xlane.xlu0 %542
        %v544 = vrcp.pop %v543
        %v545 = vmul.f32 %v540, %v544
        %v547 = vsel %vm457, %v545, 0
        %549 = vmatprep.subr.mxu0 0.0
        %550 = vmatpush1.msra.mxu0 %v454
        %551 = vmatprep.subr.mxu0 0.0
        %552 = vmatpush1.msra.mxu0 0.0
        %553 = vmatprep.subr.mxu0 0.0
        %554 = vmatpush1.msra.mxu0 0.0
        %555 = vmatprep.subr.mxu0 0.0
        %556 = vmatpush1.msra.mxu0 0.0
        %557 = vmatprep.subr.mxu0 0.0
        %558 = vmatpush1.msra.mxu0 0.0
        %559 = vmatprep.subr.mxu0 0.0
        %560 = vmatpush1.msra.mxu0 0.0
        %561 = vmatprep.subr.mxu0 0.0
        %562 = vmatpush1.msra.mxu0 0.0
        %563 = vmatprep.subr.mxu0 0.0
        %564 = vmatpush1.msra.mxu0 0.0
        %565 = vmatprep.subr.mxu0 0.0
        %566 = vmatpush1.msra.mxu0 0.0
        %567 = vmatprep.subr.mxu0 0.0
        %568 = vmatpush1.msra.mxu0 0.0
        %569 = vmatprep.subr.mxu0 0.0
        %570 = vmatpush1.msra.mxu0 0.0
        %571 = vmatprep.subr.mxu0 0.0
        %572 = vmatpush1.msra.mxu0 0.0
        %573 = vmatprep.subr.mxu0 0.0
        %574 = vmatpush1.msra.mxu0 0.0
        %575 = vmatprep.subr.mxu0 0.0
        %576 = vmatpush1.msra.mxu0 0.0
        %577 = vmatprep.subr.mxu0 0.0
        %578 = vmatpush1.msra.mxu0 0.0
        %579 = vmatprep.subr.mxu0 0.0
        %580 = vmatpush1.msra.mxu0 0.0
        %581 = vmatprep.subr.mxu0 0.0
        %582 = vmatpush1.msra.mxu0 0.0
        %583 = vmatprep.subr.mxu0 0.0
        %584 = vmatpush1.msra.mxu0 0.0
        %585 = vmatprep.subr.mxu0 0.0
        %586 = vmatpush1.msra.mxu0 0.0
        %587 = vmatprep.subr.mxu0 0.0
        %588 = vmatpush1.msra.mxu0 0.0
        %589 = vmatprep.subr.mxu0 0.0
        %590 = vmatpush1.msra.mxu0 0.0
        %591 = vmatprep.subr.mxu0 0.0
        %592 = vmatpush1.msra.mxu0 0.0
        %593 = vmatprep.subr.mxu0 0.0
        %594 = vmatpush1.msra.mxu0 0.0
        %595 = vmatprep.subr.mxu0 0.0
        %596 = vmatpush1.msra.mxu0 0.0
        %597 = vmatprep.subr.mxu0 0.0
        %598 = vmatpush1.msra.mxu0 0.0
        %599 = vmatprep.subr.mxu0 0.0
        %600 = vmatpush1.msra.mxu0 0.0
        %601 = vmatprep.subr.mxu0 0.0
        %602 = vmatpush1.msra.mxu0 0.0
        %603 = vmatprep.subr.mxu0 0.0
        %604 = vmatpush1.msra.mxu0 0.0
        %605 = vmatprep.subr.mxu0 0.0
        %606 = vmatpush1.msra.mxu0 0.0
        %607 = vmatprep.subr.mxu0 0.0
        %608 = vmatpush1.msra.mxu0 0.0
        %609 = vmatprep.subr.mxu0 0.0
        %610 = vmatpush1.msra.mxu0 0.0
        %611 = vmatprep.subr.mxu0 0.0
        %612 = vmatpush1.msra.mxu0 0.0
        %613 = vmatprep.mubr.f32.mxu0 0.0
        %614 = vmatmul.mubr.f32.gmra.mrb[0].mxu0 %v547
        %v615 = vpop.f32.mrb[0].mxu0
        %v616 = vadd.f32 0.0, %v615
        %v617 = vpop.f32.mrb[0].mxu0
        %618 = vdwg.mxu0
        %619 = vrot.lane.b32.xlu0 %v296, 120
        %v620 = vpop.permute.xlu0 %619
        %621 = vrot.lane.b32.xlu0 %v377, 120
        %v622 = vpop.permute.xlu0 %621
        %v623 = vsel %vm457, %v620, 0
        %v625 = vsel %vm457, %v622, 0
        %627 = vmatprep.subr.mxu0 0.0
        %628 = vmatpush1.xpose.msra.mxu0 %v625
        %629 = vmatprep.subr.mxu0 0.0
        %630 = vmatpush1.xpose.msra.mxu0 0.0
        %631 = vmatprep.subr.mxu0 0.0
        %632 = vmatpush1.xpose.msra.mxu0 0.0
        %633 = vmatprep.subr.mxu0 0.0
        %634 = vmatpush1.xpose.msra.mxu0 0.0
        %635 = vmatprep.subr.mxu0 0.0
        %636 = vmatpush1.xpose.msra.mxu0 0.0
        %637 = vmatprep.subr.mxu0 0.0
        %638 = vmatpush1.xpose.msra.mxu0 0.0
        %639 = vmatprep.subr.mxu0 0.0
        %640 = vmatpush1.xpose.msra.mxu0 0.0
        %641 = vmatprep.subr.mxu0 0.0
        %642 = vmatpush1.xpose.msra.mxu0 0.0
        %643 = vmatprep.subr.mxu0 0.0
        %644 = vmatpush1.xpose.msra.mxu0 0.0
        %645 = vmatprep.subr.mxu0 0.0
        %646 = vmatpush1.xpose.msra.mxu0 0.0
        %647 = vmatprep.subr.mxu0 0.0
        %648 = vmatpush1.xpose.msra.mxu0 0.0
        %649 = vmatprep.subr.mxu0 0.0
        %650 = vmatpush1.xpose.msra.mxu0 0.0
        %651 = vmatprep.subr.mxu0 0.0
        %652 = vmatpush1.xpose.msra.mxu0 0.0
        %653 = vmatprep.subr.mxu0 0.0
        %654 = vmatpush1.xpose.msra.mxu0 0.0
        %655 = vmatprep.subr.mxu0 0.0
        %656 = vmatpush1.xpose.msra.mxu0 0.0
        %657 = vmatprep.subr.mxu0 0.0
        %658 = vmatpush1.xpose.msra.mxu0 0.0
        %659 = vmatprep.subr.mxu0 0.0
        %660 = vmatpush1.xpose.msra.mxu0 0.0
        %661 = vmatprep.subr.mxu0 0.0
        %662 = vmatpush1.xpose.msra.mxu0 0.0
        %663 = vmatprep.subr.mxu0 0.0
        %664 = vmatpush1.xpose.msra.mxu0 0.0
        %665 = vmatprep.subr.mxu0 0.0
        %666 = vmatpush1.xpose.msra.mxu0 0.0
        %667 = vmatprep.subr.mxu0 0.0
        %668 = vmatpush1.xpose.msra.mxu0 0.0
        %669 = vmatprep.subr.mxu0 0.0
        %670 = vmatpush1.xpose.msra.mxu0 0.0
        %671 = vmatprep.subr.mxu0 0.0
        %672 = vmatpush1.xpose.msra.mxu0 0.0
        %673 = vmatprep.subr.mxu0 0.0
        %674 = vmatpush1.xpose.msra.mxu0 0.0
        %675 = vmatprep.subr.mxu0 0.0
        %676 = vmatpush1.xpose.msra.mxu0 0.0
        %677 = vmatprep.subr.mxu0 0.0
        %678 = vmatpush1.xpose.msra.mxu0 0.0
        %679 = vmatprep.subr.mxu0 0.0
        %680 = vmatpush1.xpose.msra.mxu0 0.0
        %681 = vmatprep.subr.mxu0 0.0
        %682 = vmatpush1.xpose.msra.mxu0 0.0
        %683 = vmatprep.subr.mxu0 0.0
        %684 = vmatpush1.xpose.msra.mxu0 0.0
        %685 = vmatprep.subr.mxu0 0.0
        %686 = vmatpush1.xpose.msra.mxu0 0.0
        %687 = vmatprep.subr.mxu0 0.0
        %688 = vmatpush1.xpose.msra.mxu0 0.0
        %689 = vmatprep.subr.mxu0 0.0
        %690 = vmatpush1.xpose.msra.mxu0 0.0
        %691 = vmatprep.mubr.f32.mxu0 0.0
        %692 = vmatmul.mubr.f32.gmra.mrb[0].mxu0 %v623
        %v693 = vpop.f32.mrb[0].mxu0
        %v694 = vadd.f32 0.0, %v693
        %v695 = vpop.f32.mrb[0].mxu0
        %696 = vdwg.mxu0
        %v697 = vmul.f32 %v694, 0.17677669
        %v698 = vsel %vm457, %v697, -inf
        %699 = vmax.xlane.f32.xlu0 %v698
        %v700 = vpop.xlane.xlu0 %699
        %v701 = vsub.f32 %v697, %v700
        %v702 = vmul.f32 %v701, 1.442695
        %v703 = vpow.pop %v702
        %v704 = vsel %vm457, %v703, 0.0
        %705 = vadd.xlane.f32.xlu0 %v704
        %v706 = vpop.xlane.xlu0 %705
        %v707 = vrcp.pop %v706
        %v708 = vmul.f32 %v703, %v707
        %710 = vrot.lane.b32.xlu0 %v454, 120
        %v711 = vpop.permute.xlu0 %710
        %v714 = vsel %vm457, %v708, 0
        %716 = vmatprep.subr.mxu0 0.0
        %717 = vmatpush1.msra.mxu0 %v711
        %718 = vmatprep.subr.mxu0 0.0
        %719 = vmatpush1.msra.mxu0 0.0
        %720 = vmatprep.subr.mxu0 0.0
        %721 = vmatpush1.msra.mxu0 0.0
        %722 = vmatprep.subr.mxu0 0.0
        %723 = vmatpush1.msra.mxu0 0.0
        %724 = vmatprep.subr.mxu0 0.0
        %725 = vmatpush1.msra.mxu0 0.0
        %726 = vmatprep.subr.mxu0 0.0
        %727 = vmatpush1.msra.mxu0 0.0
        %728 = vmatprep.subr.mxu0 0.0
        %729 = vmatpush1.msra.mxu0 0.0
        %730 = vmatprep.subr.mxu0 0.0
        %731 = vmatpush1.msra.mxu0 0.0
        %732 = vmatprep.subr.mxu0 0.0
        %733 = vmatpush1.msra.mxu0 0.0
        %734 = vmatprep.subr.mxu0 0.0
        %735 = vmatpush1.msra.mxu0 0.0
        %736 = vmatprep.subr.mxu0 0.0
        %737 = vmatpush1.msra.mxu0 0.0
        %738 = vmatprep.subr.mxu0 0.0
        %739 = vmatpush1.msra.mxu0 0.0
        %740 = vmatprep.subr.mxu0 0.0
        %741 = vmatpush1.msra.mxu0 0.0
        %742 = vmatprep.subr.mxu0 0.0
        %743 = vmatpush1.msra.mxu0 0.0
        %744 = vmatprep.subr.mxu0 0.0
        %745 = vmatpush1.msra.mxu0 0.0
        %746 = vmatprep.subr.mxu0 0.0
        %747 = vmatpush1.msra.mxu0 0.0
        %748 = vmatprep.subr.mxu0 0.0
        %749 = vmatpush1.msra.mxu0 0.0
        %750 = vmatprep.subr.mxu0 0.0
        %751 = vmatpush1.msra.mxu0 0.0
        %752 = vmatprep.subr.mxu0 0.0
        %753 = vmatpush1.msra.mxu0 0.0
        %754 = vmatprep.subr.mxu0 0.0
        %755 = vmatpush1.msra.mxu0 0.0
        %756 = vmatprep.subr.mxu0 0.0
        %757 = vmatpush1.msra.mxu0 0.0
        %758 = vmatprep.subr.mxu0 0.0
        %759 = vmatpush1.msra.mxu0 0.0
        %760 = vmatprep.subr.mxu0 0.0
        %761 = vmatpush1.msra.mxu0 0.0
        %762 = vmatprep.subr.mxu0 0.0
        %763 = vmatpush1.msra.mxu0 0.0
        %764 = vmatprep.subr.mxu0 0.0
        %765 = vmatpush1.msra.mxu0 0.0
        %766 = vmatprep.subr.mxu0 0.0
        %767 = vmatpush1.msra.mxu0 0.0
        %768 = vmatprep.subr.mxu0 0.0
        %769 = vmatpush1.msra.mxu0 0.0
        %770 = vmatprep.subr.mxu0 0.0
        %771 = vmatpush1.msra.mxu0 0.0
        %772 = vmatprep.subr.mxu0 0.0
        %773 = vmatpush1.msra.mxu0 0.0
        %774 = vmatprep.subr.mxu0 0.0
        %775 = vmatpush1.msra.mxu0 0.0
        %776 = vmatprep.subr.mxu0 0.0
        %777 = vmatpush1.msra.mxu0 0.0
        %778 = vmatprep.subr.mxu0 0.0
        %779 = vmatpush1.msra.mxu0 0.0
        %780 = vmatprep.mubr.f32.mxu0 0.0
        %781 = vmatmul.mubr.f32.gmra.mrb[0].mxu0 %v714
        %v782 = vpop.f32.mrb[0].mxu0
        %v783 = vadd.f32 0.0, %v782
        %v784 = vpop.f32.mrb[0].mxu0
        %785 = vdwg.mxu0
        %786 = vrot.lane.b32.xlu0 %v296, 112
        %v787 = vpop.permute.xlu0 %786
        %788 = vrot.lane.b32.xlu0 %v377, 112
        %v789 = vpop.permute.xlu0 %788
        %v790 = vsel %vm457, %v787, 0
        %v792 = vsel %vm457, %v789, 0
        %794 = vmatprep.subr.mxu0 0.0
        %795 = vmatpush1.xpose.msra.mxu0 %v792
        %796 = vmatprep.subr.mxu0 0.0
        %797 = vmatpush1.xpose.msra.mxu0 0.0
        %798 = vmatprep.subr.mxu0 0.0
        %799 = vmatpush1.xpose.msra.mxu0 0.0
        %800 = vmatprep.subr.mxu0 0.0
        %801 = vmatpush1.xpose.msra.mxu0 0.0
        %802 = vmatprep.subr.mxu0 0.0
        %803 = vmatpush1.xpose.msra.mxu0 0.0
        %804 = vmatprep.subr.mxu0 0.0
        %805 = vmatpush1.xpose.msra.mxu0 0.0
        %806 = vmatprep.subr.mxu0 0.0
        %807 = vmatpush1.xpose.msra.mxu0 0.0
        %808 = vmatprep.subr.mxu0 0.0
        %809 = vmatpush1.xpose.msra.mxu0 0.0
        %810 = vmatprep.subr.mxu0 0.0
        %811 = vmatpush1.xpose.msra.mxu0 0.0
        %812 = vmatprep.subr.mxu0 0.0
        %813 = vmatpush1.xpose.msra.mxu0 0.0
        %814 = vmatprep.subr.mxu0 0.0
        %815 = vmatpush1.xpose.msra.mxu0 0.0
        %816 = vmatprep.subr.mxu0 0.0
        %817 = vmatpush1.xpose.msra.mxu0 0.0
        %818 = vmatprep.subr.mxu0 0.0
        %819 = vmatpush1.xpose.msra.mxu0 0.0
        %820 = vmatprep.subr.mxu0 0.0
        %821 = vmatpush1.xpose.msra.mxu0 0.0
        %822 = vmatprep.subr.mxu0 0.0
        %823 = vmatpush1.xpose.msra.mxu0 0.0
        %824 = vmatprep.subr.mxu0 0.0
        %825 = vmatpush1.xpose.msra.mxu0 0.0
        %826 = vmatprep.subr.mxu0 0.0
        %827 = vmatpush1.xpose.msra.mxu0 0.0
        %828 = vmatprep.subr.mxu0 0.0
        %829 = vmatpush1.xpose.msra.mxu0 0.0
        %830 = vmatprep.subr.mxu0 0.0
        %831 = vmatpush1.xpose.msra.mxu0 0.0
        %832 = vmatprep.subr.mxu0 0.0
        %833 = vmatpush1.xpose.msra.mxu0 0.0
        %834 = vmatprep.subr.mxu0 0.0
        %835 = vmatpush1.xpose.msra.mxu0 0.0
        %836 = vmatprep.subr.mxu0 0.0
        %837 = vmatpush1.xpose.msra.mxu0 0.0
        %838 = vmatprep.subr.mxu0 0.0
        %839 = vmatpush1.xpose.msra.mxu0 0.0
        %840 = vmatprep.subr.mxu0 0.0
        %841 = vmatpush1.xpose.msra.mxu0 0.0
        %842 = vmatprep.subr.mxu0 0.0
        %843 = vmatpush1.xpose.msra.mxu0 0.0
        %844 = vmatprep.subr.mxu0 0.0
        %845 = vmatpush1.xpose.msra.mxu0 0.0
        %846 = vmatprep.subr.mxu0 0.0
        %847 = vmatpush1.xpose.msra.mxu0 0.0
        %848 = vmatprep.subr.mxu0 0.0
        %849 = vmatpush1.xpose.msra.mxu0 0.0
        %850 = vmatprep.subr.mxu0 0.0
        %851 = vmatpush1.xpose.msra.mxu0 0.0
        %852 = vmatprep.subr.mxu0 0.0
        %853 = vmatpush1.xpose.msra.mxu0 0.0
        %854 = vmatprep.subr.mxu0 0.0
        %855 = vmatpush1.xpose.msra.mxu0 0.0
        %856 = vmatprep.subr.mxu0 0.0
        %857 = vmatpush1.xpose.msra.mxu0 0.0
        %858 = vmatprep.mubr.f32.mxu0 0.0
        %859 = vmatmul.mubr.f32.gmra.mrb[0].mxu0 %v790
        %v860 = vpop.f32.mrb[0].mxu0
        %v861 = vadd.f32 0.0, %v860
        %v862 = vpop.f32.mrb[0].mxu0
        %863 = vdwg.mxu0
        %v864 = vmul.f32 %v861, 0.17677669
        %v865 = vsel %vm457, %v864, -inf
        %866 = vmax.xlane.f32.xlu0 %v865
        %v867 = vpop.xlane.xlu0 %866
        %v868 = vsub.f32 %v864, %v867
        %v869 = vmul.f32 %v868, 1.442695
        %v870 = vpow.pop %v869
        %v871 = vsel %vm457, %v870, 0.0
        %872 = vadd.xlane.f32.xlu0 %v871
        %v873 = vpop.xlane.xlu0 %872
        %v874 = vrcp.pop %v873
        %v875 = vmul.f32 %v870, %v874
        %876 = vrot.lane.b32.xlu0 %v454, 112
        %v877 = vpop.permute.xlu0 %876
        %v880 = vsel %vm457, %v875, 0
        %882 = vmatprep.subr.mxu0 0.0
        %883 = vmatpush1.msra.mxu0 %v877
        %884 = vmatprep.subr.mxu0 0.0
        %885 = vmatpush1.msra.mxu0 0.0
        %886 = vmatprep.subr.mxu0 0.0
        %887 = vmatpush1.msra.mxu0 0.0
        %888 = vmatprep.subr.mxu0 0.0
        %889 = vmatpush1.msra.mxu0 0.0
        %890 = vmatprep.subr.mxu0 0.0
        %891 = vmatpush1.msra.mxu0 0.0
        %892 = vmatprep.subr.mxu0 0.0
        %893 = vmatpush1.msra.mxu0 0.0
        %894 = vmatprep.subr.mxu0 0.0
        %895 = vmatpush1.msra.mxu0 0.0
        %896 = vmatprep.subr.mxu0 0.0
        %897 = vmatpush1.msra.mxu0 0.0
        %898 = vmatprep.subr.mxu0 0.0
        %899 = vmatpush1.msra.mxu0 0.0
        %900 = vmatprep.subr.mxu0 0.0
        %901 = vmatpush1.msra.mxu0 0.0
        %902 = vmatprep.subr.mxu0 0.0
        %903 = vmatpush1.msra.mxu0 0.0
        %904 = vmatprep.subr.mxu0 0.0
        %905 = vmatpush1.msra.mxu0 0.0
        %906 = vmatprep.subr.mxu0 0.0
        %907 = vmatpush1.msra.mxu0 0.0
        %908 = vmatprep.subr.mxu0 0.0
        %909 = vmatpush1.msra.mxu0 0.0
        %910 = vmatprep.subr.mxu0 0.0
        %911 = vmatpush1.msra.mxu0 0.0
        %912 = vmatprep.subr.mxu0 0.0
        %913 = vmatpush1.msra.mxu0 0.0
        %914 = vmatprep.subr.mxu0 0.0
        %915 = vmatpush1.msra.mxu0 0.0
        %916 = vmatprep.subr.mxu0 0.0
        %917 = vmatpush1.msra.mxu0 0.0
        %918 = vmatprep.subr.mxu0 0.0
        %919 = vmatpush1.msra.mxu0 0.0
        %920 = vmatprep.subr.mxu0 0.0
        %921 = vmatpush1.msra.mxu0 0.0
        %922 = vmatprep.subr.mxu0 0.0
        %923 = vmatpush1.msra.mxu0 0.0
        %924 = vmatprep.subr.mxu0 0.0
        %925 = vmatpush1.msra.mxu0 0.0
        %926 = vmatprep.subr.mxu0 0.0
        %927 = vmatpush1.msra.mxu0 0.0
        %928 = vmatprep.subr.mxu0 0.0
        %929 = vmatpush1.msra.mxu0 0.0
        %930 = vmatprep.subr.mxu0 0.0
        %931 = vmatpush1.msra.mxu0 0.0
        %932 = vmatprep.subr.mxu0 0.0
        %933 = vmatpush1.msra.mxu0 0.0
        %934 = vmatprep.subr.mxu0 0.0
        %935 = vmatpush1.msra.mxu0 0.0
        %936 = vmatprep.subr.mxu0 0.0
        %937 = vmatpush1.msra.mxu0 0.0
        %938 = vmatprep.subr.mxu0 0.0
        %939 = vmatpush1.msra.mxu0 0.0
        %940 = vmatprep.subr.mxu0 0.0
        %941 = vmatpush1.msra.mxu0 0.0
        %942 = vmatprep.subr.mxu0 0.0
        %943 = vmatpush1.msra.mxu0 0.0
        %944 = vmatprep.subr.mxu0 0.0
        %945 = vmatpush1.msra.mxu0 0.0
        %946 = vmatprep.mubr.f32.mxu0 0.0
        %947 = vmatmul.mubr.f32.gmra.mrb[0].mxu0 %v880
        %v948 = vpop.f32.mrb[0].mxu0
        %v949 = vadd.f32 0.0, %v948
        %v950 = vpop.f32.mrb[0].mxu0
        %951 = vdwg.mxu0
        %952 = vrot.lane.b32.xlu0 %v296, 104
        %v953 = vpop.permute.xlu0 %952
        %954 = vrot.lane.b32.xlu0 %v377, 104
        %v955 = vpop.permute.xlu0 %954
        %v956 = vsel %vm457, %v953, 0
        %v958 = vsel %vm457, %v955, 0
        %960 = vmatprep.subr.mxu0 0.0
        %961 = vmatpush1.xpose.msra.mxu0 %v958
        %962 = vmatprep.subr.mxu0 0.0
        %963 = vmatpush1.xpose.msra.mxu0 0.0
        %964 = vmatprep.subr.mxu0 0.0
        %965 = vmatpush1.xpose.msra.mxu0 0.0
        %966 = vmatprep.subr.mxu0 0.0
        %967 = vmatpush1.xpose.msra.mxu0 0.0
        %968 = vmatprep.subr.mxu0 0.0
        %969 = vmatpush1.xpose.msra.mxu0 0.0
        %970 = vmatprep.subr.mxu0 0.0
        %971 = vmatpush1.xpose.msra.mxu0 0.0
        %972 = vmatprep.subr.mxu0 0.0
        %973 = vmatpush1.xpose.msra.mxu0 0.0
        %974 = vmatprep.subr.mxu0 0.0
        %975 = vmatpush1.xpose.msra.mxu0 0.0
        %976 = vmatprep.subr.mxu0 0.0
        %977 = vmatpush1.xpose.msra.mxu0 0.0
        %978 = vmatprep.subr.mxu0 0.0
        %979 = vmatpush1.xpose.msra.mxu0 0.0
        %980 = vmatprep.subr.mxu0 0.0
        %981 = vmatpush1.xpose.msra.mxu0 0.0
        %982 = vmatprep.subr.mxu0 0.0
        %983 = vmatpush1.xpose.msra.mxu0 0.0
        %984 = vmatprep.subr.mxu0 0.0
        %985 = vmatpush1.xpose.msra.mxu0 0.0
        %986 = vmatprep.subr.mxu0 0.0
        %987 = vmatpush1.xpose.msra.mxu0 0.0
        %988 = vmatprep.subr.mxu0 0.0
        %989 = vmatpush1.xpose.msra.mxu0 0.0
        %990 = vmatprep.subr.mxu0 0.0
        %991 = vmatpush1.xpose.msra.mxu0 0.0
        %992 = vmatprep.subr.mxu0 0.0
        %993 = vmatpush1.xpose.msra.mxu0 0.0
        %994 = vmatprep.subr.mxu0 0.0
        %995 = vmatpush1.xpose.msra.mxu0 0.0
        %996 = vmatprep.subr.mxu0 0.0
        %997 = vmatpush1.xpose.msra.mxu0 0.0
        %998 = vmatprep.subr.mxu0 0.0
        %999 = vmatpush1.xpose.msra.mxu0 0.0
        %1000 = vmatprep.subr.mxu0 0.0
        %1001 = vmatpush1.xpose.msra.mxu0 0.0
        %1002 = vmatprep.subr.mxu0 0.0
        %1003 = vmatpush1.xpose.msra.mxu0 0.0
        %1004 = vmatprep.subr.mxu0 0.0
        %1005 = vmatpush1.xpose.msra.mxu0 0.0
        %1006 = vmatprep.subr.mxu0 0.0
        %1007 = vmatpush1.xpose.msra.mxu0 0.0
        %1008 = vmatprep.subr.mxu0 0.0
        %1009 = vmatpush1.xpose.msra.mxu0 0.0
        %1010 = vmatprep.subr.mxu0 0.0
        %1011 = vmatpush1.xpose.msra.mxu0 0.0
        %1012 = vmatprep.subr.mxu0 0.0
        %1013 = vmatpush1.xpose.msra.mxu0 0.0
        %1014 = vmatprep.subr.mxu0 0.0
        %1015 = vmatpush1.xpose.msra.mxu0 0.0
        %1016 = vmatprep.subr.mxu0 0.0
        %1017 = vmatpush1.xpose.msra.mxu0 0.0
        %1018 = vmatprep.subr.mxu0 0.0
        %1019 = vmatpush1.xpose.msra.mxu0 0.0
        %1020 = vmatprep.subr.mxu0 0.0
        %1021 = vmatpush1.xpose.msra.mxu0 0.0
        %1022 = vmatprep.subr.mxu0 0.0
        %1023 = vmatpush1.xpose.msra.mxu0 0.0
        %1024 = vmatprep.mubr.f32.mxu0 0.0
        %1025 = vmatmul.mubr.f32.gmra.mrb[0].mxu0 %v956
        %v1026 = vpop.f32.mrb[0].mxu0
        %v1027 = vadd.f32 0.0, %v1026
        %v1028 = vpop.f32.mrb[0].mxu0
        %1029 = vdwg.mxu0
        %v1030 = vmul.f32 %v1027, 0.17677669
        %v1031 = vsel %vm457, %v1030, -inf
        %1032 = vmax.xlane.f32.xlu0 %v1031
        %v1033 = vpop.xlane.xlu0 %1032
        %v1034 = vsub.f32 %v1030, %v1033
        %v1035 = vmul.f32 %v1034, 1.442695
        %v1036 = vpow.pop %v1035
        %v1037 = vsel %vm457, %v1036, 0.0
        %1038 = vadd.xlane.f32.xlu0 %v1037
        %v1039 = vpop.xlane.xlu0 %1038
        %v1040 = vrcp.pop %v1039
        %v1041 = vmul.f32 %v1036, %v1040
        %1042 = vrot.lane.b32.xlu0 %v454, 104
        %v1043 = vpop.permute.xlu0 %1042
        %v1046 = vsel %vm457, %v1041, 0
        %1048 = vmatprep.subr.mxu0 0.0
        %1049 = vmatpush1.msra.mxu0 %v1043
        %1050 = vmatprep.subr.mxu0 0.0
        %1051 = vmatpush1.msra.mxu0 0.0
        %1052 = vmatprep.subr.mxu0 0.0
        %1053 = vmatpush1.msra.mxu0 0.0
        %1054 = vmatprep.subr.mxu0 0.0
        %1055 = vmatpush1.msra.mxu0 0.0
        %1056 = vmatprep.subr.mxu0 0.0
        %1057 = vmatpush1.msra.mxu0 0.0
        %1058 = vmatprep.subr.mxu0 0.0
        %1059 = vmatpush1.msra.mxu0 0.0
        %1060 = vmatprep.subr.mxu0 0.0
        %1061 = vmatpush1.msra.mxu0 0.0
        %1062 = vmatprep.subr.mxu0 0.0
        %1063 = vmatpush1.msra.mxu0 0.0
        %1064 = vmatprep.subr.mxu0 0.0
        %1065 = vmatpush1.msra.mxu0 0.0
        %1066 = vmatprep.subr.mxu0 0.0
        %1067 = vmatpush1.msra.mxu0 0.0
        %1068 = vmatprep.subr.mxu0 0.0
        %1069 = vmatpush1.msra.mxu0 0.0
        %1070 = vmatprep.subr.mxu0 0.0
        %1071 = vmatpush1.msra.mxu0 0.0
        %1072 = vmatprep.subr.mxu0 0.0
        %1073 = vmatpush1.msra.mxu0 0.0
        %1074 = vmatprep.subr.mxu0 0.0
        %1075 = vmatpush1.msra.mxu0 0.0
        %1076 = vmatprep.subr.mxu0 0.0
        %1077 = vmatpush1.msra.mxu0 0.0
        %1078 = vmatprep.subr.mxu0 0.0
        %1079 = vmatpush1.msra.mxu0 0.0
        %1080 = vmatprep.subr.mxu0 0.0
        %1081 = vmatpush1.msra.mxu0 0.0
        %1082 = vmatprep.subr.mxu0 0.0
        %1083 = vmatpush1.msra.mxu0 0.0
        %1084 = vmatprep.subr.mxu0 0.0
        %1085 = vmatpush1.msra.mxu0 0.0
        %1086 = vmatprep.subr.mxu0 0.0
        %1087 = vmatpush1.msra.mxu0 0.0
        %1088 = vmatprep.subr.mxu0 0.0
        %1089 = vmatpush1.msra.mxu0 0.0
        %1090 = vmatprep.subr.mxu0 0.0
        %1091 = vmatpush1.msra.mxu0 0.0
        %1092 = vmatprep.subr.mxu0 0.0
        %1093 = vmatpush1.msra.mxu0 0.0
        %1094 = vmatprep.subr.mxu0 0.0
        %1095 = vmatpush1.msra.mxu0 0.0
        %1096 = vmatprep.subr.mxu0 0.0
        %1097 = vmatpush1.msra.mxu0 0.0
        %1098 = vmatprep.subr.mxu0 0.0
        %1099 = vmatpush1.msra.mxu0 0.0
        %1100 = vmatprep.subr.mxu0 0.0
        %1101 = vmatpush1.msra.mxu0 0.0
        %1102 = vmatprep.subr.mxu0 0.0
        %1103 = vmatpush1.msra.mxu0 0.0
        %1104 = vmatprep.subr.mxu0 0.0
        %1105 = vmatpush1.msra.mxu0 0.0
        %1106 = vmatprep.subr.mxu0 0.0
        %1107 = vmatpush1.msra.mxu0 0.0
        %1108 = vmatprep.subr.mxu0 0.0
        %1109 = vmatpush1.msra.mxu0 0.0
        %1110 = vmatprep.subr.mxu0 0.0
        %1111 = vmatpush1.msra.mxu0 0.0
        %1112 = vmatprep.mubr.f32.mxu0 0.0
        %1113 = vmatmul.mubr.f32.gmra.mrb[0].mxu0 %v1046
        %v1114 = vpop.f32.mrb[0].mxu0
        %v1115 = vadd.f32 0.0, %v1114
        %v1116 = vpop.f32.mrb[0].mxu0
        %1117 = vdwg.mxu0
        %1119 = vrot.lane.b32.xlu0 %v783, 8
        %v1120 = vpop.permute.xlu0 %1119
        %1123 = vrot.lane.b32.xlu0 %v949, 16
        %v1124 = vpop.permute.xlu0 %1123
        %1127 = vrot.lane.b32.xlu0 %v1115, 24
        %v1128 = vpop.permute.xlu0 %1127
        %v1130 = vsel %vm457, %v616, %v1120
        %v1131 = vsel %vm306, %v1130, %v1124
        %vm1132 = vcmask 195584
        %v1133 = vsel %vm1132, %v1131, %v1128
        %v1134 = vadd.f32 %v296, %v1133
        %v1135 = vld [vmem:[#allocation5 + $0x88] sm:$0x1]
        %v1136 = vld [vmem:[#allocation5 + $0x90] sm:$0x1]
        %v1137 = vsel %vm225, %v1134, 0.0
        %1138 = vadd.xlane.f32.xlu0 %v1137
        %v1139 = vpop.xlane.xlu0 %1138
        %v1140 = vrcp.pop 32.0
        %v1141 = vmul.f32 %v1139, %v1140
        %v1142 = vsub.f32 %v1134, %v1141
        %v1143 = vmul.f32 %v1142, %v1142
        %v1144 = vsel %vm225, %v1143, 0.0
        %1145 = vadd.xlane.f32.xlu0 %v1144
        %v1146 = vpop.xlane.xlu0 %1145
        %v1147 = vmul.f32 %v1146, %v1140
        %v1148 = vadd.f32 %v1147, 1e-05
        %v1149 = vrsqrt.pop %v1148
        %v1150 = vmul.f32 %v1142, %v1149
        %v1151 = vlaneseq
        %v1152 = vshrl.u32 %v1151, 7
        %v1153 = vsub.s32 0, %v1152
        %v1154 = vrot.slane %v1135, %v1153
        %v1155 = vmul.f32 %v1150, %v1154
        %v1156 = vlaneseq
        %v1157 = vshrl.u32 %v1156, 7
        %v1158 = vsub.s32 0, %v1157
        %v1159 = vrot.slane %v1136, %v1158
        %v1160 = vadd.f32 %v1155, %v1159
        %v1161 = vld [vmem:[#allocation5 + $0x60] sm:$0xff]
        %v1162 = vld [vmem:[#allocation5 + $0x68] sm:$0xff]
        %v1163 = vld [vmem:[#allocation5 + $0x70] sm:$0xff]
        %v1164 = vld [vmem:[#allocation5 + $0x78] sm:$0xff]
        %v1165 = vld [vmem:[#allocation5 + $0x80] sm:$0x1]
        %v1166 = vlaneseq
        %v1167 = vshrl.u32 %v1166, 7
        %v1168 = vsub.s32 0, %v1167
        %v1169 = vrot.slane %v1165, %v1168
        %v1171 = vsel %vm225, %v1160, 0
        %1173 = vmatprep.subr.mxu0 0.0
        %1174 = vmatpush1.msra.mxu0 %v1161
        %1175 = vmatprep.subr.mxu0 0.0
        %1176 = vmatpush1.msra.mxu0 %v1162
        %1177 = vmatprep.subr.mxu0 0.0
        %1178 = vmatpush1.msra.mxu0 %v1163
        %1179 = vmatprep.subr.mxu0 0.0
        %1180 = vmatpush1.msra.mxu0 %v1164
        %1181 = vmatprep.subr.mxu0 0.0
        %1182 = vmatpush1.msra.mxu0 0.0
        %1183 = vmatprep.subr.mxu0 0.0
        %1184 = vmatpush1.msra.mxu0 0.0
        %1185 = vmatprep.subr.mxu0 0.0
        %1186 = vmatpush1.msra.mxu0 0.0
        %1187 = vmatprep.subr.mxu0 0.0
        %1188 = vmatpush1.msra.mxu0 0.0
        %1189 = vmatprep.subr.mxu0 0.0
        %1190 = vmatpush1.msra.mxu0 0.0
        %1191 = vmatprep.subr.mxu0 0.0
        %1192 = vmatpush1.msra.mxu0 0.0
        %1193 = vmatprep.subr.mxu0 0.0
        %1194 = vmatpush1.msra.mxu0 0.0
        %1195 = vmatprep.subr.mxu0 0.0
        %1196 = vmatpush1.msra.mxu0 0.0
        %1197 = vmatprep.subr.mxu0 0.0
        %1198 = vmatpush1.msra.mxu0 0.0
        %1199 = vmatprep.subr.mxu0 0.0
        %1200 = vmatpush1.msra.mxu0 0.0
        %1201 = vmatprep.subr.mxu0 0.0
        %1202 = vmatpush1.msra.mxu0 0.0
        %1203 = vmatprep.subr.mxu0 0.0
        %1204 = vmatpush1.msra.mxu0 0.0
        %1205 = vmatprep.subr.mxu0 0.0
        %1206 = vmatpush1.msra.mxu0 0.0
        %1207 = vmatprep.subr.mxu0 0.0
        %1208 = vmatpush1.msra.mxu0 0.0
        %1209 = vmatprep.subr.mxu0 0.0
        %1210 = vmatpush1.msra.mxu0 0.0
        %1211 = vmatprep.subr.mxu0 0.0
        %1212 = vmatpush1.msra.mxu0 0.0
        %1213 = vmatprep.subr.mxu0 0.0
        %1214 = vmatpush1.msra.mxu0 0.0
        %1215 = vmatprep.subr.mxu0 0.0
        %1216 = vmatpush1.msra.mxu0 0.0
        %1217 = vmatprep.subr.mxu0 0.0
        %1218 = vmatpush1.msra.mxu0 0.0
        %1219 = vmatprep.subr.mxu0 0.0
        %1220 = vmatpush1.msra.mxu0 0.0
        %1221 = vmatprep.subr.mxu0 0.0
        %1222 = vmatpush1.msra.mxu0 0.0
        %1223 = vmatprep.subr.mxu0 0.0
        %1224 = vmatpush1.msra.mxu0 0.0
        %1225 = vmatprep.subr.mxu0 0.0
        %1226 = vmatpush1.msra.mxu0 0.0
        %1227 = vmatprep.subr.mxu0 0.0
        %1228 = vmatpush1.msra.mxu0 0.0
        %1229 = vmatprep.subr.mxu0 0.0
        %1230 = vmatpush1.msra.mxu0 0.0
        %1231 = vmatprep.subr.mxu0 0.0
        %1232 = vmatpush1.msra.mxu0 0.0
        %1233 = vmatprep.subr.mxu0 0.0
        %1234 = vmatpush1.msra.mxu0 0.0
        %1235 = vmatprep.subr.mxu0 0.0
        %1236 = vmatpush1.msra.mxu0 0.0
        %1237 = vmatprep.mubr.f32.mxu0 0.0
        %1238 = vmatmul.mubr.f32.gmra.mrb[0].mxu0 %v1171
        %v1239 = vpop.f32.mrb[0].mxu0
        %v1240 = vadd.f32 %v1169, %v1239
        %v1241 = vpop.f32.mrb[0].mxu0
        %1242 = vdwg.mxu0
        %v1243 = vmax.f32 %v1240, 0.0
        %v1244 = vadd.f32 %v1160, %v1243
        %v1245 = vld [vmem:[#allocation5 + $0x98] sm:$0x1]
        %v1246 = vld [vmem:[#allocation5 + $0xa0] sm:$0x1]
        %v1247 = vsel %vm225, %v1244, 0.0
        %1248 = vadd.xlane.f32.xlu0 %v1247
        %v1249 = vpop.xlane.xlu0 %1248
        %v1250 = vmul.f32 %v1249, %v1140
        %v1251 = vsub.f32 %v1244, %v1250
        %v1252 = vmul.f32 %v1251, %v1251
        %v1253 = vsel %vm225, %v1252, 0.0
        %1254 = vadd.xlane.f32.xlu0 %v1253
        %v1255 = vpop.xlane.xlu0 %1254
        %v1256 = vmul.f32 %v1255, %v1140
        %v1257 = vadd.f32 %v1256, 1e-05
        %v1258 = vrsqrt.pop %v1257
        %v1259 = vmul.f32 %v1251, %v1258
        %v1260 = vlaneseq
        %v1261 = vshrl.u32 %v1260, 7
        %v1262 = vsub.s32 0, %v1261
        %v1263 = vrot.slane %v1245, %v1262
        %v1264 = vmul.f32 %v1259, %v1263
        %v1265 = vlaneseq
        %v1266 = vshrl.u32 %v1265, 7
        %v1267 = vsub.s32 0, %v1266
        %v1268 = vrot.slane %v1246, %v1267
        %v1269 = vadd.f32 %v1264, %v1268
        %v1270 = vld [vmem:[#allocation5 + $0xa8] sm:$0xff]
        %v1271 = vld [vmem:[#allocation5 + $0xb0] sm:$0xff]
        %v1272 = vld [vmem:[#allocation5 + $0xb8] sm:$0x1]
        %v1273 = vlaneseq
        %v1274 = vshrl.u32 %v1273, 7
        %v1275 = vsub.s32 0, %v1274
        %v1276 = vrot.slane %v1272, %v1275
        %1277 = vmatprep.subr.mxu0 0.0
        %1278 = vmatpush1.msra.mxu0 %v1270
        %1279 = vmatprep.subr.mxu0 0.0
        %1280 = vmatpush1.msra.mxu0 %v1271
        %1281 = vmatprep.subr.mxu0 0.0
        %1282 = vmatpush1.msra.mxu0 0.0
        %1283 = vmatprep.subr.mxu0 0.0
        %1284 = vmatpush1.msra.mxu0 0.0
        %1285 = vmatprep.subr.mxu0 0.0
        %1286 = vmatpush1.msra.mxu0 0.0
        %1287 = vmatprep.subr.mxu0 0.0
        %1288 = vmatpush1.msra.mxu0 0.0
        %1289 = vmatprep.subr.mxu0 0.0
        %1290 = vmatpush1.msra.mxu0 0.0
        %1291 = vmatprep.subr.mxu0 0.0
        %1292 = vmatpush1.msra.mxu0 0.0
        %1293 = vmatprep.subr.mxu0 0.0
        %1294 = vmatpush1.msra.mxu0 0.0
        %1295 = vmatprep.subr.mxu0 0.0
        %1296 = vmatpush1.msra.mxu0 0.0
        %1297 = vmatprep.subr.mxu0 0.0
        %1298 = vmatpush1.msra.mxu0 0.0
        %1299 = vmatprep.subr.mxu0 0.0
        %1300 = vmatpush1.msra.mxu0 0.0
        %1301 = vmatprep.subr.mxu0 0.0
        %1302 = vmatpush1.msra.mxu0 0.0
        %1303 = vmatprep.subr.mxu0 0.0
        %1304 = vmatpush1.msra.mxu0 0.0
        %1305 = vmatprep.subr.mxu0 0.0
        %1306 = vmatpush1.msra.mxu0 0.0
        %1307 = vmatprep.subr.mxu0 0.0
        %1308 = vmatpush1.msra.mxu0 0.0
        %1309 = vmatprep.subr.mxu0 0.0
        %1310 = vmatpush1.msra.mxu0 0.0
        %1311 = vmatprep.subr.mxu0 0.0
        %1312 = vmatpush1.msra.mxu0 0.0
        %1313 = vmatprep.subr.mxu0 0.0
        %1314 = vmatpush1.msra.mxu0 0.0
        %1315 = vmatprep.subr.mxu0 0.0
        %1316 = vmatpush1.msra.mxu0 0.0
        %1317 = vmatprep.subr.mxu0 0.0
        %1318 = vmatpush1.msra.mxu0 0.0
        %1319 = vmatprep.subr.mxu0 0.0
        %1320 = vmatpush1.msra.mxu0 0.0
        %1321 = vmatprep.subr.mxu0 0.0
        %1322 = vmatpush1.msra.mxu0 0.0
        %1323 = vmatprep.subr.mxu0 0.0
        %1324 = vmatpush1.msra.mxu0 0.0
        %1325 = vmatprep.subr.mxu0 0.0
        %1326 = vmatpush1.msra.mxu0 0.0
        %1327 = vmatprep.subr.mxu0 0.0
        %1328 = vmatpush1.msra.mxu0 0.0
        %1329 = vmatprep.subr.mxu0 0.0
        %1330 = vmatpush1.msra.mxu0 0.0
        %1331 = vmatprep.subr.mxu0 0.0
        %1332 = vmatpush1.msra.mxu0 0.0
        %1333 = vmatprep.subr.mxu0 0.0
        %1334 = vmatpush1.msra.mxu0 0.0
        %1335 = vmatprep.subr.mxu0 0.0
        %1336 = vmatpush1.msra.mxu0 0.0
        %1337 = vmatprep.subr.mxu0 0.0
        %1338 = vmatpush1.msra.mxu0 0.0
        %1339 = vmatprep.subr.mxu0 0.0
        %1340 = vmatpush1.msra.mxu0 0.0
        %1341 = vmatprep.mubr.f32.mxu0 0.0
        %1342 = vmatmul.mubr.f32.gmra.mrb[0].mxu0 %v308
        %v1343 = vpop.f32.mrb[0].mxu0
        %v1344 = vadd.f32 %v1276, %v1343
        %v1345 = vpop.f32.mrb[0].mxu0
        %1346 = vdwg.mxu0
        %v1347 = vld [vmem:[#allocation5 + $0xc0] sm:$0xff]
        %v1348 = vld [vmem:[#allocation5 + $0xc8] sm:$0xff]
        %v1349 = vld [vmem:[#allocation5 + $0xd0] sm:$0xff]
        %v1350 = vld [vmem:[#allocation5 + $0xd8] sm:$0xff]
        %v1351 = vld [vmem:[#allocation5 + $0xe0] sm:$0x1]
        %v1352 = vlaneseq
        %v1353 = vshrl.u32 %v1352, 7
        %v1354 = vsub.s32 0, %v1353
        %v1355 = vrot.slane %v1351, %v1354
        %v1357 = vsel %vm225, %v1269, 0
        %1359 = vmatprep.subr.mxu0 0.0
        %1360 = vmatpush1.msra.mxu0 %v1347
        %1361 = vmatprep.subr.mxu0 0.0
        %1362 = vmatpush1.msra.mxu0 %v1348
        %1363 = vmatprep.subr.mxu0 0.0
        %1364 = vmatpush1.msra.mxu0 %v1349
        %1365 = vmatprep.subr.mxu0 0.0
        %1366 = vmatpush1.msra.mxu0 %v1350
        %1367 = vmatprep.subr.mxu0 0.0
        %1368 = vmatpush1.msra.mxu0 0.0
        %1369 = vmatprep.subr.mxu0 0.0
        %1370 = vmatpush1.msra.mxu0 0.0
        %1371 = vmatprep.subr.mxu0 0.0
        %1372 = vmatpush1.msra.mxu0 0.0
        %1373 = vmatprep.subr.mxu0 0.0
        %1374 = vmatpush1.msra.mxu0 0.0
        %1375 = vmatprep.subr.mxu0 0.0
        %1376 = vmatpush1.msra.mxu0 0.0
        %1377 = vmatprep.subr.mxu0 0.0
        %1378 = vmatpush1.msra.mxu0 0.0
        %1379 = vmatprep.subr.mxu0 0.0
        %1380 = vmatpush1.msra.mxu0 0.0
        %1381 = vmatprep.subr.mxu0 0.0
        %1382 = vmatpush1.msra.mxu0 0.0
        %1383 = vmatprep.subr.mxu0 0.0
        %1384 = vmatpush1.msra.mxu0 0.0
        %1385 = vmatprep.subr.mxu0 0.0
        %1386 = vmatpush1.msra.mxu0 0.0
        %1387 = vmatprep.subr.mxu0 0.0
        %1388 = vmatpush1.msra.mxu0 0.0
        %1389 = vmatprep.subr.mxu0 0.0
        %1390 = vmatpush1.msra.mxu0 0.0
        %1391 = vmatprep.subr.mxu0 0.0
        %1392 = vmatpush1.msra.mxu0 0.0
        %1393 = vmatprep.subr.mxu0 0.0
        %1394 = vmatpush1.msra.mxu0 0.0
        %1395 = vmatprep.subr.mxu0 0.0
        %1396 = vmatpush1.msra.mxu0 0.0
        %1397 = vmatprep.subr.mxu0 0.0
        %1398 = vmatpush1.msra.mxu0 0.0
        %1399 = vmatprep.subr.mxu0 0.0
        %1400 = vmatpush1.msra.mxu0 0.0
        %1401 = vmatprep.subr.mxu0 0.0
        %1402 = vmatpush1.msra.mxu0 0.0
        %1403 = vmatprep.subr.mxu0 0.0
        %1404 = vmatpush1.msra.mxu0 0.0
        %1405 = vmatprep.subr.mxu0 0.0
        %1406 = vmatpush1.msra.mxu0 0.0
        %1407 = vmatprep.subr.mxu0 0.0
        %1408 = vmatpush1.msra.mxu0 0.0
        %1409 = vmatprep.subr.mxu0 0.0
        %1410 = vmatpush1.msra.mxu0 0.0
        %1411 = vmatprep.subr.mxu0 0.0
        %1412 = vmatpush1.msra.mxu0 0.0
        %1413 = vmatprep.subr.mxu0 0.0
        %1414 = vmatpush1.msra.mxu0 0.0
        %1415 = vmatprep.subr.mxu0 0.0
        %1416 = vmatpush1.msra.mxu0 0.0
        %1417 = vmatprep.subr.mxu0 0.0
        %1418 = vmatpush1.msra.mxu0 0.0
        %1419 = vmatprep.subr.mxu0 0.0
        %1420 = vmatpush1.msra.mxu0 0.0
        %1421 = vmatprep.subr.mxu0 0.0
        %1422 = vmatpush1.msra.mxu0 0.0
        %1423 = vmatprep.mubr.f32.mxu0 0.0
        %1424 = vmatmul.mubr.f32.gmra.mrb[0].mxu0 %v1357
        %v1425 = vpop.f32.mrb[0].mxu0
        %v1426 = vadd.f32 %v1355, %v1425
        %v1427 = vpop.f32.mrb[0].mxu0
        %1428 = vdwg.mxu0
        %v1429 = vld [vmem:[#allocation5 + $0xe8] sm:$0xff]
        %v1430 = vld [vmem:[#allocation5 + $0xf0] sm:$0xff]
        %v1431 = vld [vmem:[#allocation5 + $0xf8] sm:$0xff]
        %v1432 = vld [vmem:[#allocation5 + $0x100] sm:$0xff]
        %v1433 = vld [vmem:[#allocation5 + $0x108] sm:$0x1]
        %v1434 = vlaneseq
        %v1435 = vshrl.u32 %v1434, 7
        %v1436 = vsub.s32 0, %v1435
        %v1437 = vrot.slane %v1433, %v1436
        %1438 = vmatprep.subr.mxu0 0.0
        %1439 = vmatpush1.msra.mxu0 %v1429
        %1440 = vmatprep.subr.mxu0 0.0
        %1441 = vmatpush1.msra.mxu0 %v1430
        %1442 = vmatprep.subr.mxu0 0.0
        %1443 = vmatpush1.msra.mxu0 %v1431
        %1444 = vmatprep.subr.mxu0 0.0
        %1445 = vmatpush1.msra.mxu0 %v1432
        %1446 = vmatprep.subr.mxu0 0.0
        %1447 = vmatpush1.msra.mxu0 0.0
        %1448 = vmatprep.subr.mxu0 0.0
        %1449 = vmatpush1.msra.mxu0 0.0
        %1450 = vmatprep.subr.mxu0 0.0
        %1451 = vmatpush1.msra.mxu0 0.0
        %1452 = vmatprep.subr.mxu0 0.0
        %1453 = vmatpush1.msra.mxu0 0.0
        %1454 = vmatprep.subr.mxu0 0.0
        %1455 = vmatpush1.msra.mxu0 0.0
        %1456 = vmatprep.subr.mxu0 0.0
        %1457 = vmatpush1.msra.mxu0 0.0
        %1458 = vmatprep.subr.mxu0 0.0
        %1459 = vmatpush1.msra.mxu0 0.0
        %1460 = vmatprep.subr.mxu0 0.0
        %1461 = vmatpush1.msra.mxu0 0.0
        %1462 = vmatprep.subr.mxu0 0.0
        %1463 = vmatpush1.msra.mxu0 0.0
        %1464 = vmatprep.subr.mxu0 0.0
        %1465 = vmatpush1.msra.mxu0 0.0
        %1466 = vmatprep.subr.mxu0 0.0
        %1467 = vmatpush1.msra.mxu0 0.0
        %1468 = vmatprep.subr.mxu0 0.0
        %1469 = vmatpush1.msra.mxu0 0.0
        %1470 = vmatprep.subr.mxu0 0.0
        %1471 = vmatpush1.msra.mxu0 0.0
        %1472 = vmatprep.subr.mxu0 0.0
        %1473 = vmatpush1.msra.mxu0 0.0
        %1474 = vmatprep.subr.mxu0 0.0
        %1475 = vmatpush1.msra.mxu0 0.0
        %1476 = vmatprep.subr.mxu0 0.0
        %1477 = vmatpush1.msra.mxu0 0.0
        %1478 = vmatprep.subr.mxu0 0.0
        %1479 = vmatpush1.msra.mxu0 0.0
        %1480 = vmatprep.subr.mxu0 0.0
        %1481 = vmatpush1.msra.mxu0 0.0
        %1482 = vmatprep.subr.mxu0 0.0
        %1483 = vmatpush1.msra.mxu0 0.0
        %1484 = vmatprep.subr.mxu0 0.0
        %1485 = vmatpush1.msra.mxu0 0.0
        %1486 = vmatprep.subr.mxu0 0.0
        %1487 = vmatpush1.msra.mxu0 0.0
        %1488 = vmatprep.subr.mxu0 0.0
        %1489 = vmatpush1.msra.mxu0 0.0
        %1490 = vmatprep.subr.mxu0 0.0
        %1491 = vmatpush1.msra.mxu0 0.0
        %1492 = vmatprep.subr.mxu0 0.0
        %1493 = vmatpush1.msra.mxu0 0.0
        %1494 = vmatprep.subr.mxu0 0.0
        %1495 = vmatpush1.msra.mxu0 0.0
        %1496 = vmatprep.subr.mxu0 0.0
        %1497 = vmatpush1.msra.mxu0 0.0
        %1498 = vmatprep.subr.mxu0 0.0
        %1499 = vmatpush1.msra.mxu0 0.0
        %1500 = vmatprep.subr.mxu0 0.0
        %1501 = vmatpush1.msra.mxu0 0.0
        %1502 = vmatprep.mubr.f32.mxu0 0.0
        %1503 = vmatmul.mubr.f32.gmra.mrb[0].mxu0 %v1357
        %v1504 = vpop.f32.mrb[0].mxu0
        %v1505 = vadd.f32 %v1437, %v1504
        %v1506 = vpop.f32.mrb[0].mxu0
        %1507 = vdwg.mxu0
        %v1509 = vsel %vm457, %v1344, 0
        %v1512 = vsel %vm457, %v1426, 0
        %1514 = vmatprep.subr.mxu0 0.0
        %1515 = vmatpush1.xpose.msra.mxu0 %v1512
        %1516 = vmatprep.subr.mxu0 0.0
        %1517 = vmatpush1.xpose.msra.mxu0 0.0
        %1518 = vmatprep.subr.mxu0 0.0
        %1519 = vmatpush1.xpose.msra.mxu0 0.0
        %1520 = vmatprep.subr.mxu0 0.0
        %1521 = vmatpush1.xpose.msra.mxu0 0.0
        %1522 = vmatprep.subr.mxu0 0.0
        %1523 = vmatpush1.xpose.msra.mxu0 0.0
        %1524 = vmatprep.subr.mxu0 0.0
        %1525 = vmatpush1.xpose.msra.mxu0 0.0
        %1526 = vmatprep.subr.mxu0 0.0
        %1527 = vmatpush1.xpose.msra.mxu0 0.0
        %1528 = vmatprep.subr.mxu0 0.0
        %1529 = vmatpush1.xpose.msra.mxu0 0.0
        %1530 = vmatprep.subr.mxu0 0.0
        %1531 = vmatpush1.xpose.msra.mxu0 0.0
        %1532 = vmatprep.subr.mxu0 0.0
        %1533 = vmatpush1.xpose.msra.mxu0 0.0
        %1534 = vmatprep.subr.mxu0 0.0
        %1535 = vmatpush1.xpose.msra.mxu0 0.0
        %1536 = vmatprep.subr.mxu0 0.0
        %1537 = vmatpush1.xpose.msra.mxu0 0.0
        %1538 = vmatprep.subr.mxu0 0.0
        %1539 = vmatpush1.xpose.msra.mxu0 0.0
        %1540 = vmatprep.subr.mxu0 0.0
        %1541 = vmatpush1.xpose.msra.mxu0 0.0
        %1542 = vmatprep.subr.mxu0 0.0
        %1543 = vmatpush1.xpose.msra.mxu0 0.0
        %1544 = vmatprep.subr.mxu0 0.0
        %1545 = vmatpush1.xpose.msra.mxu0 0.0
        %1546 = vmatprep.subr.mxu0 0.0
        %1547 = vmatpush1.xpose.msra.mxu0 0.0
        %1548 = vmatprep.subr.mxu0 0.0
        %1549 = vmatpush1.xpose.msra.mxu0 0.0
        %1550 = vmatprep.subr.mxu0 0.0
        %1551 = vmatpush1.xpose.msra.mxu0 0.0
        %1552 = vmatprep.subr.mxu0 0.0
        %1553 = vmatpush1.xpose.msra.mxu0 0.0
        %1554 = vmatprep.subr.mxu0 0.0
        %1555 = vmatpush1.xpose.msra.mxu0 0.0
        %1556 = vmatprep.subr.mxu0 0.0
        %1557 = vmatpush1.xpose.msra.mxu0 0.0
        %1558 = vmatprep.subr.mxu0 0.0
        %1559 = vmatpush1.xpose.msra.mxu0 0.0
        %1560 = vmatprep.subr.mxu0 0.0
        %1561 = vmatpush1.xpose.msra.mxu0 0.0
        %1562 = vmatprep.subr.mxu0 0.0
        %1563 = vmatpush1.xpose.msra.mxu0 0.0
        %1564 = vmatprep.subr.mxu0 0.0
        %1565 = vmatpush1.xpose.msra.mxu0 0.0
        %1566 = vmatprep.subr.mxu0 0.0
        %1567 = vmatpush1.xpose.msra.mxu0 0.0
        %1568 = vmatprep.subr.mxu0 0.0
        %1569 = vmatpush1.xpose.msra.mxu0 0.0
        %1570 = vmatprep.subr.mxu0 0.0
        %1571 = vmatpush1.xpose.msra.mxu0 0.0
        %1572 = vmatprep.subr.mxu0 0.0
        %1573 = vmatpush1.xpose.msra.mxu0 0.0
        %1574 = vmatprep.subr.mxu0 0.0
        %1575 = vmatpush1.xpose.msra.mxu0 0.0
        %1576 = vmatprep.subr.mxu0 0.0
        %1577 = vmatpush1.xpose.msra.mxu0 0.0
        %1578 = vmatprep.mubr.f32.mxu0 0.0
        %1579 = vmatmul.mubr.f32.gmra.mrb[0].mxu0 %v1509
        %v1580 = vpop.f32.mrb[0].mxu0
        %v1581 = vadd.f32 0.0, %v1580
        %v1582 = vpop.f32.mrb[0].mxu0
        %1583 = vdwg.mxu0
        %v1584 = vmul.f32 %v1581, 0.17677669
        %v1585 = vsel %vm457, %v1584, -inf
        %1586 = vmax.xlane.f32.xlu0 %v1585
        %v1587 = vpop.xlane.xlu0 %1586
        %v1588 = vsub.f32 %v1584, %v1587
        %v1589 = vmul.f32 %v1588, 1.442695
        %v1590 = vpow.pop %v1589
        %v1591 = vsel %vm457, %v1590, 0.0
        %1592 = vadd.xlane.f32.xlu0 %v1591
        %v1593 = vpop.xlane.xlu0 %1592
        %v1594 = vrcp.pop %v1593
        %v1595 = vmul.f32 %v1590, %v1594
        %v1597 = vsel %vm457, %v1595, 0
        %1599 = vmatprep.subr.mxu0 0.0
        %1600 = vmatpush1.msra.mxu0 %v1505
        %1601 = vmatprep.subr.mxu0 0.0
        %1602 = vmatpush1.msra.mxu0 0.0
        %1603 = vmatprep.subr.mxu0 0.0
        %1604 = vmatpush1.msra.mxu0 0.0
        %1605 = vmatprep.subr.mxu0 0.0
        %1606 = vmatpush1.msra.mxu0 0.0
        %1607 = vmatprep.subr.mxu0 0.0
        %1608 = vmatpush1.msra.mxu0 0.0
        %1609 = vmatprep.subr.mxu0 0.0
        %1610 = vmatpush1.msra.mxu0 0.0
        %1611 = vmatprep.subr.mxu0 0.0
        %1612 = vmatpush1.msra.mxu0 0.0
        %1613 = vmatprep.subr.mxu0 0.0
        %1614 = vmatpush1.msra.mxu0 0.0
        %1615 = vmatprep.subr.mxu0 0.0
        %1616 = vmatpush1.msra.mxu0 0.0
        %1617 = vmatprep.subr.mxu0 0.0
        %1618 = vmatpush1.msra.mxu0 0.0
        %1619 = vmatprep.subr.mxu0 0.0
        %1620 = vmatpush1.msra.mxu0 0.0
        %1621 = vmatprep.subr.mxu0 0.0
        %1622 = vmatpush1.msra.mxu0 0.0
        %1623 = vmatprep.subr.mxu0 0.0
        %1624 = vmatpush1.msra.mxu0 0.0
        %1625 = vmatprep.subr.mxu0 0.0
        %1626 = vmatpush1.msra.mxu0 0.0
        %1627 = vmatprep.subr.mxu0 0.0
        %1628 = vmatpush1.msra.mxu0 0.0
        %1629 = vmatprep.subr.mxu0 0.0
        %1630 = vmatpush1.msra.mxu0 0.0
        %1631 = vmatprep.subr.mxu0 0.0
        %1632 = vmatpush1.msra.mxu0 0.0
        %1633 = vmatprep.subr.mxu0 0.0
        %1634 = vmatpush1.msra.mxu0 0.0
        %1635 = vmatprep.subr.mxu0 0.0
        %1636 = vmatpush1.msra.mxu0 0.0
        %1637 = vmatprep.subr.mxu0 0.0
        %1638 = vmatpush1.msra.mxu0 0.0
        %1639 = vmatprep.subr.mxu0 0.0
        %1640 = vmatpush1.msra.mxu0 0.0
        %1641 = vmatprep.subr.mxu0 0.0
        %1642 = vmatpush1.msra.mxu0 0.0
        %1643 = vmatprep.subr.mxu0 0.0
        %1644 = vmatpush1.msra.mxu0 0.0
        %1645 = vmatprep.subr.mxu0 0.0
        %1646 = vmatpush1.msra.mxu0 0.0
        %1647 = vmatprep.subr.mxu0 0.0
        %1648 = vmatpush1.msra.mxu0 0.0
        %1649 = vmatprep.subr.mxu0 0.0
        %1650 = vmatpush1.msra.mxu0 0.0
        %1651 = vmatprep.subr.mxu0 0.0
        %1652 = vmatpush1.msra.mxu0 0.0
        %1653 = vmatprep.subr.mxu0 0.0
        %1654 = vmatpush1.msra.mxu0 0.0
        %1655 = vmatprep.subr.mxu0 0.0
        %1656 = vmatpush1.msra.mxu0 0.0
        %1657 = vmatprep.subr.mxu0 0.0
        %1658 = vmatpush1.msra.mxu0 0.0
        %1659 = vmatprep.subr.mxu0 0.0
        %1660 = vmatpush1.msra.mxu0 0.0
        %1661 = vmatprep.subr.mxu0 0.0
        %1662 = vmatpush1.msra.mxu0 0.0
        %1663 = vmatprep.mubr.f32.mxu0 0.0
        %1664 = vmatmul.mubr.f32.gmra.mrb[0].mxu0 %v1597
        %v1665 = vpop.f32.mrb[0].mxu0
        %v1666 = vadd.f32 0.0, %v1665
        %v1667 = vpop.f32.mrb[0].mxu0
        %1668 = vdwg.mxu0
        %1669 = vrot.lane.b32.xlu0 %v1344, 120
        %v1670 = vpop.permute.xlu0 %1669
        %1671 = vrot.lane.b32.xlu0 %v1426, 120
        %v1672 = vpop.permute.xlu0 %1671
        %v1673 = vsel %vm457, %v1670, 0
        %v1675 = vsel %vm457, %v1672, 0
        %1677 = vmatprep.subr.mxu0 0.0
        %1678 = vmatpush1.xpose.msra.mxu0 %v1675
        %1679 = vmatprep.subr.mxu0 0.0
        %1680 = vmatpush1.xpose.msra.mxu0 0.0
        %1681 = vmatprep.subr.mxu0 0.0
        %1682 = vmatpush1.xpose.msra.mxu0 0.0
        %1683 = vmatprep.subr.mxu0 0.0
        %1684 = vmatpush1.xpose.msra.mxu0 0.0
        %1685 = vmatprep.subr.mxu0 0.0
        %1686 = vmatpush1.xpose.msra.mxu0 0.0
        %1687 = vmatprep.subr.mxu0 0.0
        %1688 = vmatpush1.xpose.msra.mxu0 0.0
        %1689 = vmatprep.subr.mxu0 0.0
        %1690 = vmatpush1.xpose.msra.mxu0 0.0
        %1691 = vmatprep.subr.mxu0 0.0
        %1692 = vmatpush1.xpose.msra.mxu0 0.0
        %1693 = vmatprep.subr.mxu0 0.0
        %1694 = vmatpush1.xpose.msra.mxu0 0.0
        %1695 = vmatprep.subr.mxu0 0.0
        %1696 = vmatpush1.xpose.msra.mxu0 0.0
        %1697 = vmatprep.subr.mxu0 0.0
        %1698 = vmatpush1.xpose.msra.mxu0 0.0
        %1699 = vmatprep.subr.mxu0 0.0
        %1700 = vmatpush1.xpose.msra.mxu0 0.0
        %1701 = vmatprep.subr.mxu0 0.0
        %1702 = vmatpush1.xpose.msra.mxu0 0.0
        %1703 = vmatprep.subr.mxu0 0.0
        %1704 = vmatpush1.xpose.msra.mxu0 0.0
        %1705 = vmatprep.subr.mxu0 0.0
        %1706 = vmatpush1.xpose.msra.mxu0 0.0
        %1707 = vmatprep.subr.mxu0 0.0
        %1708 = vmatpush1.xpose.msra.mxu0 0.0
        %1709 = vmatprep.subr.mxu0 0.0
        %1710 = vmatpush1.xpose.msra.mxu0 0.0
        %1711 = vmatprep.subr.mxu0 0.0
        %1712 = vmatpush1.xpose.msra.mxu0 0.0
        %1713 = vmatprep.subr.mxu0 0.0
        %1714 = vmatpush1.xpose.msra.mxu0 0.0
        %1715 = vmatprep.subr.mxu0 0.0
        %1716 = vmatpush1.xpose.msra.mxu0 0.0
        %1717 = vmatprep.subr.mxu0 0.0
        %1718 = vmatpush1.xpose.msra.mxu0 0.0
        %1719 = vmatprep.subr.mxu0 0.0
        %1720 = vmatpush1.xpose.msra.mxu0 0.0
        %1721 = vmatprep.subr.mxu0 0.0
        %1722 = vmatpush1.xpose.msra.mxu0 0.0
        %1723 = vmatprep.subr.mxu0 0.0
        %1724 = vmatpush1.xpose.msra.mxu0 0.0
        %1725 = vmatprep.subr.mxu0 0.0
        %1726 = vmatpush1.xpose.msra.mxu0 0.0
        %1727 = vmatprep.subr.mxu0 0.0
        %1728 = vmatpush1.xpose.msra.mxu0 0.0
        %1729 = vmatprep.subr.mxu0 0.0
        %1730 = vmatpush1.xpose.msra.mxu0 0.0
        %1731 = vmatprep.subr.mxu0 0.0
        %1732 = vmatpush1.xpose.msra.mxu0 0.0
        %1733 = vmatprep.subr.mxu0 0.0
        %1734 = vmatpush1.xpose.msra.mxu0 0.0
        %1735 = vmatprep.subr.mxu0 0.0
        %1736 = vmatpush1.xpose.msra.mxu0 0.0
        %1737 = vmatprep.subr.mxu0 0.0
        %1738 = vmatpush1.xpose.msra.mxu0 0.0
        %1739 = vmatprep.subr.mxu0 0.0
        %1740 = vmatpush1.xpose.msra.mxu0 0.0
        %1741 = vmatprep.mubr.f32.mxu0 0.0
        %1742 = vmatmul.mubr.f32.gmra.mrb[0].mxu0 %v1673
        %v1743 = vpop.f32.mrb[0].mxu0
        %v1744 = vadd.f32 0.0, %v1743
        %v1745 = vpop.f32.mrb[0].mxu0
        %1746 = vdwg.mxu0
        %v1747 = vmul.f32 %v1744, 0.17677669
        %v1748 = vsel %vm457, %v1747, -inf
        %1749 = vmax.xlane.f32.xlu0 %v1748
        %v1750 = vpop.xlane.xlu0 %1749
        %v1751 = vsub.f32 %v1747, %v1750
        %v1752 = vmul.f32 %v1751, 1.442695
        %v1753 = vpow.pop %v1752
        %v1754 = vsel %vm457, %v1753, 0.0
        %1755 = vadd.xlane.f32.xlu0 %v1754
        %v1756 = vpop.xlane.xlu0 %1755
        %v1757 = vrcp.pop %v1756
        %v1758 = vmul.f32 %v1753, %v1757
        %1760 = vrot.lane.b32.xlu0 %v1505, 120
        %v1761 = vpop.permute.xlu0 %1760
        %v1764 = vsel %vm457, %v1758, 0
        %1766 = vmatprep.subr.mxu0 0.0
        %1767 = vmatpush1.msra.mxu0 %v1761
        %1768 = vmatprep.subr.mxu0 0.0
        %1769 = vmatpush1.msra.mxu0 0.0
        %1770 = vmatprep.subr.mxu0 0.0
        %1771 = vmatpush1.msra.mxu0 0.0
        %1772 = vmatprep.subr.mxu0 0.0
        %1773 = vmatpush1.msra.mxu0 0.0
        %1774 = vmatprep.subr.mxu0 0.0
        %1775 = vmatpush1.msra.mxu0 0.0
        %1776 = vmatprep.subr.mxu0 0.0
        %1777 = vmatpush1.msra.mxu0 0.0
        %1778 = vmatprep.subr.mxu0 0.0
        %1779 = vmatpush1.msra.mxu0 0.0
        %1780 = vmatprep.subr.mxu0 0.0
        %1781 = vmatpush1.msra.mxu0 0.0
        %1782 = vmatprep.subr.mxu0 0.0
        %1783 = vmatpush1.msra.mxu0 0.0
        %1784 = vmatprep.subr.mxu0 0.0
        %1785 = vmatpush1.msra.mxu0 0.0
        %1786 = vmatprep.subr.mxu0 0.0
        %1787 = vmatpush1.msra.mxu0 0.0
        %1788 = vmatprep.subr.mxu0 0.0
        %1789 = vmatpush1.msra.mxu0 0.0
        %1790 = vmatprep.subr.mxu0 0.0
        %1791 = vmatpush1.msra.mxu0 0.0
        %1792 = vmatprep.subr.mxu0 0.0
        %1793 = vmatpush1.msra.mxu0 0.0
        %1794 = vmatprep.subr.mxu0 0.0
        %1795 = vmatpush1.msra.mxu0 0.0
        %1796 = vmatprep.subr.mxu0 0.0
        %1797 = vmatpush1.msra.mxu0 0.0
        %1798 = vmatprep.subr.mxu0 0.0
        %1799 = vmatpush1.msra.mxu0 0.0
        %1800 = vmatprep.subr.mxu0 0.0
        %1801 = vmatpush1.msra.mxu0 0.0
        %1802 = vmatprep.subr.mxu0 0.0
        %1803 = vmatpush1.msra.mxu0 0.0
        %1804 = vmatprep.subr.mxu0 0.0
        %1805 = vmatpush1.msra.mxu0 0.0
        %1806 = vmatprep.subr.mxu0 0.0
        %1807 = vmatpush1.msra.mxu0 0.0
        %1808 = vmatprep.subr.mxu0 0.0
        %1809 = vmatpush1.msra.mxu0 0.0
        %1810 = vmatprep.subr.mxu0 0.0
        %1811 = vmatpush1.msra.mxu0 0.0
        %1812 = vmatprep.subr.mxu0 0.0
        %1813 = vmatpush1.msra.mxu0 0.0
        %1814 = vmatprep.subr.mxu0 0.0
        %1815 = vmatpush1.msra.mxu0 0.0
        %1816 = vmatprep.subr.mxu0 0.0
        %1817 = vmatpush1.msra.mxu0 0.0
        %1818 = vmatprep.subr.mxu0 0.0
        %1819 = vmatpush1.msra.mxu0 0.0
        %1820 = vmatprep.subr.mxu0 0.0
        %1821 = vmatpush1.msra.mxu0 0.0
        %1822 = vmatprep.subr.mxu0 0.0
        %1823 = vmatpush1.msra.mxu0 0.0
        %1824 = vmatprep.subr.mxu0 0.0
        %1825 = vmatpush1.msra.mxu0 0.0
        %1826 = vmatprep.subr.mxu0 0.0
        %1827 = vmatpush1.msra.mxu0 0.0
        %1828 = vmatprep.subr.mxu0 0.0
        %1829 = vmatpush1.msra.mxu0 0.0
        %1830 = vmatprep.mubr.f32.mxu0 0.0
        %1831 = vmatmul.mubr.f32.gmra.mrb[0].mxu0 %v1764
        %v1832 = vpop.f32.mrb[0].mxu0
        %v1833 = vadd.f32 0.0, %v1832
        %v1834 = vpop.f32.mrb[0].mxu0
        %1835 = vdwg.mxu0
        %1836 = vrot.lane.b32.xlu0 %v1344, 112
        %v1837 = vpop.permute.xlu0 %1836
        %1838 = vrot.lane.b32.xlu0 %v1426, 112
        %v1839 = vpop.permute.xlu0 %1838
        %v1840 = vsel %vm457, %v1837, 0
        %v1842 = vsel %vm457, %v1839, 0
        %1844 = vmatprep.subr.mxu0 0.0
        %1845 = vmatpush1.xpose.msra.mxu0 %v1842
        %1846 = vmatprep.subr.mxu0 0.0
        %1847 = vmatpush1.xpose.msra.mxu0 0.0
        %1848 = vmatprep.subr.mxu0 0.0
        %1849 = vmatpush1.xpose.msra.mxu0 0.0
        %1850 = vmatprep.subr.mxu0 0.0
        %1851 = vmatpush1.xpose.msra.mxu0 0.0
        %1852 = vmatprep.subr.mxu0 0.0
        %1853 = vmatpush1.xpose.msra.mxu0 0.0
        %1854 = vmatprep.subr.mxu0 0.0
        %1855 = vmatpush1.xpose.msra.mxu0 0.0
        %1856 = vmatprep.subr.mxu0 0.0
        %1857 = vmatpush1.xpose.msra.mxu0 0.0
        %1858 = vmatprep.subr.mxu0 0.0
        %1859 = vmatpush1.xpose.msra.mxu0 0.0
        %1860 = vmatprep.subr.mxu0 0.0
        %1861 = vmatpush1.xpose.msra.mxu0 0.0
        %1862 = vmatprep.subr.mxu0 0.0
        %1863 = vmatpush1.xpose.msra.mxu0 0.0
        %1864 = vmatprep.subr.mxu0 0.0
        %1865 = vmatpush1.xpose.msra.mxu0 0.0
        %1866 = vmatprep.subr.mxu0 0.0
        %1867 = vmatpush1.xpose.msra.mxu0 0.0
        %1868 = vmatprep.subr.mxu0 0.0
        %1869 = vmatpush1.xpose.msra.mxu0 0.0
        %1870 = vmatprep.subr.mxu0 0.0
        %1871 = vmatpush1.xpose.msra.mxu0 0.0
        %1872 = vmatprep.subr.mxu0 0.0
        %1873 = vmatpush1.xpose.msra.mxu0 0.0
        %1874 = vmatprep.subr.mxu0 0.0
        %1875 = vmatpush1.xpose.msra.mxu0 0.0
        %1876 = vmatprep.subr.mxu0 0.0
        %1877 = vmatpush1.xpose.msra.mxu0 0.0
        %1878 = vmatprep.subr.mxu0 0.0
        %1879 = vmatpush1.xpose.msra.mxu0 0.0
        %1880 = vmatprep.subr.mxu0 0.0
        %1881 = vmatpush1.xpose.msra.mxu0 0.0
        %1882 = vmatprep.subr.mxu0 0.0
        %1883 = vmatpush1.xpose.msra.mxu0 0.0
        %1884 = vmatprep.subr.mxu0 0.0
        %1885 = vmatpush1.xpose.msra.mxu0 0.0
        %1886 = vmatprep.subr.mxu0 0.0
        %1887 = vmatpush1.xpose.msra.mxu0 0.0
        %1888 = vmatprep.subr.mxu0 0.0
        %1889 = vmatpush1.xpose.msra.mxu0 0.0
        %1890 = vmatprep.subr.mxu0 0.0
        %1891 = vmatpush1.xpose.msra.mxu0 0.0
        %1892 = vmatprep.subr.mxu0 0.0
        %1893 = vmatpush1.xpose.msra.mxu0 0.0
        %1894 = vmatprep.subr.mxu0 0.0
        %1895 = vmatpush1.xpose.msra.mxu0 0.0
        %1896 = vmatprep.subr.mxu0 0.0
        %1897 = vmatpush1.xpose.msra.mxu0 0.0
        %1898 = vmatprep.subr.mxu0 0.0
        %1899 = vmatpush1.xpose.msra.mxu0 0.0
        %1900 = vmatprep.subr.mxu0 0.0
        %1901 = vmatpush1.xpose.msra.mxu0 0.0
        %1902 = vmatprep.subr.mxu0 0.0
        %1903 = vmatpush1.xpose.msra.mxu0 0.0
        %1904 = vmatprep.subr.mxu0 0.0
        %1905 = vmatpush1.xpose.msra.mxu0 0.0
        %1906 = vmatprep.subr.mxu0 0.0
        %1907 = vmatpush1.xpose.msra.mxu0 0.0
        %1908 = vmatprep.mubr.f32.mxu0 0.0
        %1909 = vmatmul.mubr.f32.gmra.mrb[0].mxu0 %v1840
        %v1910 = vpop.f32.mrb[0].mxu0
        %v1911 = vadd.f32 0.0, %v1910
        %v1912 = vpop.f32.mrb[0].mxu0
        %1913 = vdwg.mxu0
        %v1914 = vmul.f32 %v1911, 0.17677669
        %v1915 = vsel %vm457, %v1914, -inf
        %1916 = vmax.xlane.f32.xlu0 %v1915
        %v1917 = vpop.xlane.xlu0 %1916
        %v1918 = vsub.f32 %v1914, %v1917
        %v1919 = vmul.f32 %v1918, 1.442695
        %v1920 = vpow.pop %v1919
        %v1921 = vsel %vm457, %v1920, 0.0
        %1922 = vadd.xlane.f32.xlu0 %v1921
        %v1923 = vpop.xlane.xlu0 %1922
        %v1924 = vrcp.pop %v1923
        %v1925 = vmul.f32 %v1920, %v1924
        %1926 = vrot.lane.b32.xlu0 %v1505, 112
        %v1927 = vpop.permute.xlu0 %1926
        %v1930 = vsel %vm457, %v1925, 0
        %1932 = vmatprep.subr.mxu0 0.0
        %1933 = vmatpush1.msra.mxu0 %v1927
        %1934 = vmatprep.subr.mxu0 0.0
        %1935 = vmatpush1.msra.mxu0 0.0
        %1936 = vmatprep.subr.mxu0 0.0
        %1937 = vmatpush1.msra.mxu0 0.0
        %1938 = vmatprep.subr.mxu0 0.0
        %1939 = vmatpush1.msra.mxu0 0.0
        %1940 = vmatprep.subr.mxu0 0.0
        %1941 = vmatpush1.msra.mxu0 0.0
        %1942 = vmatprep.subr.mxu0 0.0
        %1943 = vmatpush1.msra.mxu0 0.0
        %1944 = vmatprep.subr.mxu0 0.0
        %1945 = vmatpush1.msra.mxu0 0.0
        %1946 = vmatprep.subr.mxu0 0.0
        %1947 = vmatpush1.msra.mxu0 0.0
        %1948 = vmatprep.subr.mxu0 0.0
        %1949 = vmatpush1.msra.mxu0 0.0
        %1950 = vmatprep.subr.mxu0 0.0
        %1951 = vmatpush1.msra.mxu0 0.0
        %1952 = vmatprep.subr.mxu0 0.0
        %1953 = vmatpush1.msra.mxu0 0.0
        %1954 = vmatprep.subr.mxu0 0.0
        %1955 = vmatpush1.msra.mxu0 0.0
        %1956 = vmatprep.subr.mxu0 0.0
        %1957 = vmatpush1.msra.mxu0 0.0
        %1958 = vmatprep.subr.mxu0 0.0
        %1959 = vmatpush1.msra.mxu0 0.0
        %1960 = vmatprep.subr.mxu0 0.0
        %1961 = vmatpush1.msra.mxu0 0.0
        %1962 = vmatprep.subr.mxu0 0.0
        %1963 = vmatpush1.msra.mxu0 0.0
        %1964 = vmatprep.subr.mxu0 0.0
        %1965 = vmatpush1.msra.mxu0 0.0
        %1966 = vmatprep.subr.mxu0 0.0
        %1967 = vmatpush1.msra.mxu0 0.0
        %1968 = vmatprep.subr.mxu0 0.0
        %1969 = vmatpush1.msra.mxu0 0.0
        %1970 = vmatprep.subr.mxu0 0.0
        %1971 = vmatpush1.msra.mxu0 0.0
        %1972 = vmatprep.subr.mxu0 0.0
        %1973 = vmatpush1.msra.mxu0 0.0
        %1974 = vmatprep.subr.mxu0 0.0
        %1975 = vmatpush1.msra.mxu0 0.0
        %1976 = vmatprep.subr.mxu0 0.0
        %1977 = vmatpush1.msra.mxu0 0.0
        %1978 = vmatprep.subr.mxu0 0.0
        %1979 = vmatpush1.msra.mxu0 0.0
        %1980 = vmatprep.subr.mxu0 0.0
        %1981 = vmatpush1.msra.mxu0 0.0
        %1982 = vmatprep.subr.mxu0 0.0
        %1983 = vmatpush1.msra.mxu0 0.0
        %1984 = vmatprep.subr.mxu0 0.0
        %1985 = vmatpush1.msra.mxu0 0.0
        %1986 = vmatprep.subr.mxu0 0.0
        %1987 = vmatpush1.msra.mxu0 0.0
        %1988 = vmatprep.subr.mxu0 0.0
        %1989 = vmatpush1.msra.mxu0 0.0
        %1990 = vmatprep.subr.mxu0 0.0
        %1991 = vmatpush1.msra.mxu0 0.0
        %1992 = vmatprep.subr.mxu0 0.0
        %1993 = vmatpush1.msra.mxu0 0.0
        %1994 = vmatprep.subr.mxu0 0.0
        %1995 = vmatpush1.msra.mxu0 0.0
        %1996 = vmatprep.mubr.f32.mxu0 0.0
        %1997 = vmatmul.mubr.f32.gmra.mrb[0].mxu0 %v1930
        %v1998 = vpop.f32.mrb[0].mxu0
        %v1999 = vadd.f32 0.0, %v1998
        %v2000 = vpop.f32.mrb[0].mxu0
        %2001 = vdwg.mxu0
        %2002 = vrot.lane.b32.xlu0 %v1344, 104
        %v2003 = vpop.permute.xlu0 %2002
        %2004 = vrot.lane.b32.xlu0 %v1426, 104
        %v2005 = vpop.permute.xlu0 %2004
        %v2006 = vsel %vm457, %v2003, 0
        %v2008 = vsel %vm457, %v2005, 0
        %2010 = vmatprep.subr.mxu0 0.0
        %2011 = vmatpush1.xpose.msra.mxu0 %v2008
        %2012 = vmatprep.subr.mxu0 0.0
        %2013 = vmatpush1.xpose.msra.mxu0 0.0
        %2014 = vmatprep.subr.mxu0 0.0
        %2015 = vmatpush1.xpose.msra.mxu0 0.0
        %2016 = vmatprep.subr.mxu0 0.0
        %2017 = vmatpush1.xpose.msra.mxu0 0.0
        %2018 = vmatprep.subr.mxu0 0.0
        %2019 = vmatpush1.xpose.msra.mxu0 0.0
        %2020 = vmatprep.subr.mxu0 0.0
        %2021 = vmatpush1.xpose.msra.mxu0 0.0
        %2022 = vmatprep.subr.mxu0 0.0
        %2023 = vmatpush1.xpose.msra.mxu0 0.0
        %2024 = vmatprep.subr.mxu0 0.0
        %2025 = vmatpush1.xpose.msra.mxu0 0.0
        %2026 = vmatprep.subr.mxu0 0.0
        %2027 = vmatpush1.xpose.msra.mxu0 0.0
        %2028 = vmatprep.subr.mxu0 0.0
        %2029 = vmatpush1.xpose.msra.mxu0 0.0
        %2030 = vmatprep.subr.mxu0 0.0
        %2031 = vmatpush1.xpose.msra.mxu0 0.0
        %2032 = vmatprep.subr.mxu0 0.0
        %2033 = vmatpush1.xpose.msra.mxu0 0.0
        %2034 = vmatprep.subr.mxu0 0.0
        %2035 = vmatpush1.xpose.msra.mxu0 0.0
        %2036 = vmatprep.subr.mxu0 0.0
        %2037 = vmatpush1.xpose.msra.mxu0 0.0
        %2038 = vmatprep.subr.mxu0 0.0
        %2039 = vmatpush1.xpose.msra.mxu0 0.0
        %2040 = vmatprep.subr.mxu0 0.0
        %2041 = vmatpush1.xpose.msra.mxu0 0.0
        %2042 = vmatprep.subr.mxu0 0.0
        %2043 = vmatpush1.xpose.msra.mxu0 0.0
        %2044 = vmatprep.subr.mxu0 0.0
        %2045 = vmatpush1.xpose.msra.mxu0 0.0
        %2046 = vmatprep.subr.mxu0 0.0
        %2047 = vmatpush1.xpose.msra.mxu0 0.0
        %2048 = vmatprep.subr.mxu0 0.0
        %2049 = vmatpush1.xpose.msra.mxu0 0.0
        %2050 = vmatprep.subr.mxu0 0.0
        %2051 = vmatpush1.xpose.msra.mxu0 0.0
        %2052 = vmatprep.subr.mxu0 0.0
        %2053 = vmatpush1.xpose.msra.mxu0 0.0
        %2054 = vmatprep.subr.mxu0 0.0
        %2055 = vmatpush1.xpose.msra.mxu0 0.0
        %2056 = vmatprep.subr.mxu0 0.0
        %2057 = vmatpush1.xpose.msra.mxu0 0.0
        %2058 = vmatprep.subr.mxu0 0.0
        %2059 = vmatpush1.xpose.msra.mxu0 0.0
        %2060 = vmatprep.subr.mxu0 0.0
        %2061 = vmatpush1.xpose.msra.mxu0 0.0
        %2062 = vmatprep.subr.mxu0 0.0
        %2063 = vmatpush1.xpose.msra.mxu0 0.0
        %2064 = vmatprep.subr.mxu0 0.0
        %2065 = vmatpush1.xpose.msra.mxu0 0.0
        %2066 = vmatprep.subr.mxu0 0.0
        %2067 = vmatpush1.xpose.msra.mxu0 0.0
        %2068 = vmatprep.subr.mxu0 0.0
        %2069 = vmatpush1.xpose.msra.mxu0 0.0
        %2070 = vmatprep.subr.mxu0 0.0
        %2071 = vmatpush1.xpose.msra.mxu0 0.0
        %2072 = vmatprep.subr.mxu0 0.0
        %2073 = vmatpush1.xpose.msra.mxu0 0.0
        %2074 = vmatprep.mubr.f32.mxu0 0.0
        %2075 = vmatmul.mubr.f32.gmra.mrb[0].mxu0 %v2006
        %v2076 = vpop.f32.mrb[0].mxu0
        %v2077 = vadd.f32 0.0, %v2076
        %v2078 = vpop.f32.mrb[0].mxu0
        %2079 = vdwg.mxu0
        %v2080 = vmul.f32 %v2077, 0.17677669
        %v2081 = vsel %vm457, %v2080, -inf
        %2082 = vmax.xlane.f32.xlu0 %v2081
        %v2083 = vpop.xlane.xlu0 %2082
        %v2084 = vsub.f32 %v2080, %v2083
        %v2085 = vmul.f32 %v2084, 1.442695
        %v2086 = vpow.pop %v2085
        %v2087 = vsel %vm457, %v2086, 0.0
        %2088 = vadd.xlane.f32.xlu0 %v2087
        %v2089 = vpop.xlane.xlu0 %2088
        %v2090 = vrcp.pop %v2089
        %v2091 = vmul.f32 %v2086, %v2090
        %2092 = vrot.lane.b32.xlu0 %v1505, 104
        %v2093 = vpop.permute.xlu0 %2092
        %v2096 = vsel %vm457, %v2091, 0
        %2098 = vmatprep.subr.mxu0 0.0
        %2099 = vmatpush1.msra.mxu0 %v2093
        %2100 = vmatprep.subr.mxu0 0.0
        %2101 = vmatpush1.msra.mxu0 0.0
        %2102 = vmatprep.subr.mxu0 0.0
        %2103 = vmatpush1.msra.mxu0 0.0
        %2104 = vmatprep.subr.mxu0 0.0
        %2105 = vmatpush1.msra.mxu0 0.0
        %2106 = vmatprep.subr.mxu0 0.0
        %2107 = vmatpush1.msra.mxu0 0.0
        %2108 = vmatprep.subr.mxu0 0.0
        %2109 = vmatpush1.msra.mxu0 0.0
        %2110 = vmatprep.subr.mxu0 0.0
        %2111 = vmatpush1.msra.mxu0 0.0
        %2112 = vmatprep.subr.mxu0 0.0
        %2113 = vmatpush1.msra.mxu0 0.0
        %2114 = vmatprep.subr.mxu0 0.0
        %2115 = vmatpush1.msra.mxu0 0.0
        %2116 = vmatprep.subr.mxu0 0.0
        %2117 = vmatpush1.msra.mxu0 0.0
        %2118 = vmatprep.subr.mxu0 0.0
        %2119 = vmatpush1.msra.mxu0 0.0
        %2120 = vmatprep.subr.mxu0 0.0
        %2121 = vmatpush1.msra.mxu0 0.0
        %2122 = vmatprep.subr.mxu0 0.0
        %2123 = vmatpush1.msra.mxu0 0.0
        %2124 = vmatprep.subr.mxu0 0.0
        %2125 = vmatpush1.msra.mxu0 0.0
        %2126 = vmatprep.subr.mxu0 0.0
        %2127 = vmatpush1.msra.mxu0 0.0
        %2128 = vmatprep.subr.mxu0 0.0
        %2129 = vmatpush1.msra.mxu0 0.0
        %2130 = vmatprep.subr.mxu0 0.0
        %2131 = vmatpush1.msra.mxu0 0.0
        %2132 = vmatprep.subr.mxu0 0.0
        %2133 = vmatpush1.msra.mxu0 0.0
        %2134 = vmatprep.subr.mxu0 0.0
        %2135 = vmatpush1.msra.mxu0 0.0
        %2136 = vmatprep.subr.mxu0 0.0
        %2137 = vmatpush1.msra.mxu0 0.0
        %2138 = vmatprep.subr.mxu0 0.0
        %2139 = vmatpush1.msra.mxu0 0.0
        %2140 = vmatprep.subr.mxu0 0.0
        %2141 = vmatpush1.msra.mxu0 0.0
        %2142 = vmatprep.subr.mxu0 0.0
        %2143 = vmatpush1.msra.mxu0 0.0
        %2144 = vmatprep.subr.mxu0 0.0
        %2145 = vmatpush1.msra.mxu0 0.0
        %2146 = vmatprep.subr.mxu0 0.0
        %2147 = vmatpush1.msra.mxu0 0.0
        %2148 = vmatprep.subr.mxu0 0.0
        %2149 = vmatpush1.msra.mxu0 0.0
        %2150 = vmatprep.subr.mxu0 0.0
        %2151 = vmatpush1.msra.mxu0 0.0
        %2152 = vmatprep.subr.mxu0 0.0
        %2153 = vmatpush1.msra.mxu0 0.0
        %2154 = vmatprep.subr.mxu0 0.0
        %2155 = vmatpush1.msra.mxu0 0.0
        %2156 = vmatprep.subr.mxu0 0.0
        %2157 = vmatpush1.msra.mxu0 0.0
        %2158 = vmatprep.subr.mxu0 0.0
        %2159 = vmatpush1.msra.mxu0 0.0
        %2160 = vmatprep.subr.mxu0 0.0
        %2161 = vmatpush1.msra.mxu0 0.0
        %2162 = vmatprep.mubr.f32.mxu0 0.0
        %2163 = vmatmul.mubr.f32.gmra.mrb[0].mxu0 %v2096
        %v2164 = vpop.f32.mrb[0].mxu0
        %v2165 = vadd.f32 0.0, %v2164
        %v2166 = vpop.f32.mrb[0].mxu0
        %2167 = vdwg.mxu0
        %2169 = vrot.lane.b32.xlu0 %v1833, 8
        %v2170 = vpop.permute.xlu0 %2169
        %2173 = vrot.lane.b32.xlu0 %v1999, 16
        %v2174 = vpop.permute.xlu0 %2173
        %2177 = vrot.lane.b32.xlu0 %v2165, 24
        %v2178 = vpop.permute.xlu0 %2177
        %v2180 = vsel %vm457, %v1666, %v2170
        %v2181 = vsel %vm306, %v2180, %v2174
        %v2182 = vsel %vm1132, %v2181, %v2178
        %v2183 = vadd.f32 %v1344, %v2182
        %v2184 = vld [vmem:[#allocation5 + $0x138] sm:$0x1]
        %v2185 = vld [vmem:[#allocation5 + $0x140] sm:$0x1]
        %v2186 = vsel %vm225, %v2183, 0.0
        %2187 = vadd.xlane.f32.xlu0 %v2186
        %v2188 = vpop.xlane.xlu0 %2187
        %v2189 = vmul.f32 %v2188, %v1140
        %v2190 = vsub.f32 %v2183, %v2189
        %v2191 = vmul.f32 %v2190, %v2190
        %v2192 = vsel %vm225, %v2191, 0.0
        %2193 = vadd.xlane.f32.xlu0 %v2192
        %v2194 = vpop.xlane.xlu0 %2193
        %v2195 = vmul.f32 %v2194, %v1140
        %v2196 = vadd.f32 %v2195, 1e-05
        %v2197 = vrsqrt.pop %v2196
        %v2198 = vmul.f32 %v2190, %v2197
        %v2199 = vlaneseq
        %v2200 = vshrl.u32 %v2199, 7
        %v2201 = vsub.s32 0, %v2200
        %v2202 = vrot.slane %v2184, %v2201
        %v2203 = vmul.f32 %v2198, %v2202
        %v2204 = vlaneseq
        %v2205 = vshrl.u32 %v2204, 7
        %v2206 = vsub.s32 0, %v2205
        %v2207 = vrot.slane %v2185, %v2206
        %v2208 = vadd.f32 %v2203, %v2207
        %v2209 = vld [vmem:[#allocation5 + $0x110] sm:$0xff]
        %v2210 = vld [vmem:[#allocation5 + $0x118] sm:$0xff]
        %v2211 = vld [vmem:[#allocation5 + $0x120] sm:$0xff]
        %v2212 = vld [vmem:[#allocation5 + $0x128] sm:$0xff]
        %v2213 = vld [vmem:[#allocation5 + $0x130] sm:$0x1]
        %v2214 = vlaneseq
        %v2215 = vshrl.u32 %v2214, 7
        %v2216 = vsub.s32 0, %v2215
        %v2217 = vrot.slane %v2213, %v2216
        %v2219 = vsel %vm225, %v2208, 0
        %2221 = vmatprep.subr.mxu0 0.0
        %2222 = vmatpush1.msra.mxu0 %v2209
        %2223 = vmatprep.subr.mxu0 0.0
        %2224 = vmatpush1.msra.mxu0 %v2210
        %2225 = vmatprep.subr.mxu0 0.0
        %2226 = vmatpush1.msra.mxu0 %v2211
        %2227 = vmatprep.subr.mxu0 0.0
        %2228 = vmatpush1.msra.mxu0 %v2212
        %2229 = vmatprep.subr.mxu0 0.0
        %2230 = vmatpush1.msra.mxu0 0.0
        %2231 = vmatprep.subr.mxu0 0.0
        %2232 = vmatpush1.msra.mxu0 0.0
        %2233 = vmatprep.subr.mxu0 0.0
        %2234 = vmatpush1.msra.mxu0 0.0
        %2235 = vmatprep.subr.mxu0 0.0
        %2236 = vmatpush1.msra.mxu0 0.0
        %2237 = vmatprep.subr.mxu0 0.0
        %2238 = vmatpush1.msra.mxu0 0.0
        %2239 = vmatprep.subr.mxu0 0.0
        %2240 = vmatpush1.msra.mxu0 0.0
        %2241 = vmatprep.subr.mxu0 0.0
        %2242 = vmatpush1.msra.mxu0 0.0
        %2243 = vmatprep.subr.mxu0 0.0
        %2244 = vmatpush1.msra.mxu0 0.0
        %2245 = vmatprep.subr.mxu0 0.0
        %2246 = vmatpush1.msra.mxu0 0.0
        %2247 = vmatprep.subr.mxu0 0.0
        %2248 = vmatpush1.msra.mxu0 0.0
        %2249 = vmatprep.subr.mxu0 0.0
        %2250 = vmatpush1.msra.mxu0 0.0
        %2251 = vmatprep.subr.mxu0 0.0
        %2252 = vmatpush1.msra.mxu0 0.0
        %2253 = vmatprep.subr.mxu0 0.0
        %2254 = vmatpush1.msra.mxu0 0.0
        %2255 = vmatprep.subr.mxu0 0.0
        %2256 = vmatpush1.msra.mxu0 0.0
        %2257 = vmatprep.subr.mxu0 0.0
        %2258 = vmatpush1.msra.mxu0 0.0
        %2259 = vmatprep.subr.mxu0 0.0
        %2260 = vmatpush1.msra.mxu0 0.0
        %2261 = vmatprep.subr.mxu0 0.0
        %2262 = vmatpush1.msra.mxu0 0.0
        %2263 = vmatprep.subr.mxu0 0.0
        %2264 = vmatpush1.msra.mxu0 0.0
        %2265 = vmatprep.subr.mxu0 0.0
        %2266 = vmatpush1.msra.mxu0 0.0
        %2267 = vmatprep.subr.mxu0 0.0
        %2268 = vmatpush1.msra.mxu0 0.0
        %2269 = vmatprep.subr.mxu0 0.0
        %2270 = vmatpush1.msra.mxu0 0.0
        %2271 = vmatprep.subr.mxu0 0.0
        %2272 = vmatpush1.msra.mxu0 0.0
        %2273 = vmatprep.subr.mxu0 0.0
        %2274 = vmatpush1.msra.mxu0 0.0
        %2275 = vmatprep.subr.mxu0 0.0
        %2276 = vmatpush1.msra.mxu0 0.0
        %2277 = vmatprep.subr.mxu0 0.0
        %2278 = vmatpush1.msra.mxu0 0.0
        %2279 = vmatprep.subr.mxu0 0.0
        %2280 = vmatpush1.msra.mxu0 0.0
        %2281 = vmatprep.subr.mxu0 0.0
        %2282 = vmatpush1.msra.mxu0 0.0
        %2283 = vmatprep.subr.mxu0 0.0
        %2284 = vmatpush1.msra.mxu0 0.0
        %2285 = vmatprep.mubr.f32.mxu0 0.0
        %2286 = vmatmul.mubr.f32.gmra.mrb[0].mxu0 %v2219
        %v2287 = vpop.f32.mrb[0].mxu0
        %v2288 = vadd.f32 %v2217, %v2287
        %v2289 = vpop.f32.mrb[0].mxu0
        %2290 = vdwg.mxu0
        %v2291 = vmax.f32 %v2288, 0.0
        %v2292 = vadd.f32 %v2208, %v2291
        %v2293 = vld [vmem:[#allocation5 + $0x148] sm:$0x1]
        %v2294 = vld [vmem:[#allocation5 + $0x150] sm:$0x1]
        %v2295 = vsel %vm225, %v2292, 0.0
        %2296 = vadd.xlane.f32.xlu0 %v2295
        %v2297 = vpop.xlane.xlu0 %2296
        %v2298 = vmul.f32 %v2297, %v1140
        %v2299 = vsub.f32 %v2292, %v2298
        %v2300 = vmul.f32 %v2299, %v2299
        %v2301 = vsel %vm225, %v2300, 0.0
        %2302 = vadd.xlane.f32.xlu0 %v2301
        %v2303 = vpop.xlane.xlu0 %2302
        %v2304 = vmul.f32 %v2303, %v1140
        %v2305 = vadd.f32 %v2304, 1e-05
        %v2306 = vrsqrt.pop %v2305
        %v2307 = vmul.f32 %v2299, %v2306
        %v2308 = vlaneseq
        %v2309 = vshrl.u32 %v2308, 7
        %v2310 = vsub.s32 0, %v2309
        %v2311 = vrot.slane %v2293, %v2310
        %v2312 = vmul.f32 %v2307, %v2311
        %v2313 = vlaneseq
        %v2314 = vshrl.u32 %v2313, 7
        %v2315 = vsub.s32 0, %v2314
        %v2316 = vrot.slane %v2294, %v2315
        %v2317 = vadd.f32 %v2312, %v2316
        %v2318 = vld [vmem:[#allocation5 + $0x158] sm:$0xff]
        %v2319 = vld [vmem:[#allocation5 + $0x160] sm:$0xff]
        %v2320 = vld [vmem:[#allocation5 + $0x168] sm:$0xff]
        %v2321 = vld [vmem:[#allocation5 + $0x170] sm:$0xff]
        %v2322 = vld [vmem:[#allocation5 + $0x178] sm:$0xff]
        %v2323 = vld [vmem:[#allocation5 + $0x180] sm:$0x1]
        %v2324 = vlaneseq
        %v2325 = vshrl.u32 %v2324, 7
        %v2326 = vsub.s32 0, %v2325
        %v2327 = vrot.slane %v2323, %v2326
        %v2329 = vsel %vm225, %v2318, 0
        %2331 = vmatprep.subr.mxu0 0.0
        %2332 = vmatpush1.msra.mxu0 %v2319
        %2333 = vmatprep.subr.mxu0 0.0
        %2334 = vmatpush1.msra.mxu0 %v2320
        %2335 = vmatprep.subr.mxu0 0.0
        %2336 = vmatpush1.msra.mxu0 %v2321
        %2337 = vmatprep.subr.mxu0 0.0
        %2338 = vmatpush1.msra.mxu0 %v2322
        %2339 = vmatprep.subr.mxu0 0.0
        %2340 = vmatpush1.msra.mxu0 0.0
        %2341 = vmatprep.subr.mxu0 0.0
        %2342 = vmatpush1.msra.mxu0 0.0
        %2343 = vmatprep.subr.mxu0 0.0
        %2344 = vmatpush1.msra.mxu0 0.0
        %2345 = vmatprep.subr.mxu0 0.0
        %2346 = vmatpush1.msra.mxu0 0.0
        %2347 = vmatprep.subr.mxu0 0.0
        %2348 = vmatpush1.msra.mxu0 0.0
        %2349 = vmatprep.subr.mxu0 0.0
        %2350 = vmatpush1.msra.mxu0 0.0
        %2351 = vmatprep.subr.mxu0 0.0
        %2352 = vmatpush1.msra.mxu0 0.0
        %2353 = vmatprep.subr.mxu0 0.0
        %2354 = vmatpush1.msra.mxu0 0.0
        %2355 = vmatprep.subr.mxu0 0.0
        %2356 = vmatpush1.msra.mxu0 0.0
        %2357 = vmatprep.subr.mxu0 0.0
        %2358 = vmatpush1.msra.mxu0 0.0
        %2359 = vmatprep.subr.mxu0 0.0
        %2360 = vmatpush1.msra.mxu0 0.0
        %2361 = vmatprep.subr.mxu0 0.0
        %2362 = vmatpush1.msra.mxu0 0.0
        %2363 = vmatprep.subr.mxu0 0.0
        %2364 = vmatpush1.msra.mxu0 0.0
        %2365 = vmatprep.subr.mxu0 0.0
        %2366 = vmatpush1.msra.mxu0 0.0
        %2367 = vmatprep.subr.mxu0 0.0
        %2368 = vmatpush1.msra.mxu0 0.0
        %2369 = vmatprep.subr.mxu0 0.0
        %2370 = vmatpush1.msra.mxu0 0.0
        %2371 = vmatprep.subr.mxu0 0.0
        %2372 = vmatpush1.msra.mxu0 0.0
        %2373 = vmatprep.subr.mxu0 0.0
        %2374 = vmatpush1.msra.mxu0 0.0
        %2375 = vmatprep.subr.mxu0 0.0
        %2376 = vmatpush1.msra.mxu0 0.0
        %2377 = vmatprep.subr.mxu0 0.0
        %2378 = vmatpush1.msra.mxu0 0.0
        %2379 = vmatprep.subr.mxu0 0.0
        %2380 = vmatpush1.msra.mxu0 0.0
        %2381 = vmatprep.subr.mxu0 0.0
        %2382 = vmatpush1.msra.mxu0 0.0
        %2383 = vmatprep.subr.mxu0 0.0
        %2384 = vmatpush1.msra.mxu0 0.0
        %2385 = vmatprep.subr.mxu0 0.0
        %2386 = vmatpush1.msra.mxu0 0.0
        %2387 = vmatprep.subr.mxu0 0.0
        %2388 = vmatpush1.msra.mxu0 0.0
        %2389 = vmatprep.subr.mxu0 0.0
        %2390 = vmatpush1.msra.mxu0 0.0
        %2391 = vmatprep.subr.mxu0 0.0
        %2392 = vmatpush1.msra.mxu0 0.0
        %2393 = vmatprep.subr.mxu0 0.0
        %2394 = vmatpush1.msra.mxu0 0.0
        %2395 = vmatprep.mubr.f32.mxu0 0.0
        %2396 = vmatmul.mubr.f32.gmra.mrb[0].mxu0 %v2329
        %v2397 = vpop.f32.mrb[0].mxu0
        %v2398 = vadd.f32 %v2327, %v2397
        %v2399 = vpop.f32.mrb[0].mxu0
        %2400 = vdwg.mxu0
        %v2401 = vld [vmem:[#allocation5 + $0x188] sm:$0xff]
        %v2402 = vld [vmem:[#allocation5 + $0x190] sm:$0xff]
        %v2403 = vld [vmem:[#allocation5 + $0x198] sm:$0xff]
        %v2404 = vld [vmem:[#allocation5 + $0x1a0] sm:$0xff]
        %v2405 = vld [vmem:[#allocation5 + $0x1a8] sm:$0x1]
        %v2406 = vlaneseq
        %v2407 = vshrl.u32 %v2406, 7
        %v2408 = vsub.s32 0, %v2407
        %v2409 = vrot.slane %v2405, %v2408
        %v2411 = vsel %vm225, %v2317, 0
        %2413 = vmatprep.subr.mxu0 0.0
        %2414 = vmatpush1.msra.mxu0 %v2401
        %2415 = vmatprep.subr.mxu0 0.0
        %2416 = vmatpush1.msra.mxu0 %v2402
        %2417 = vmatprep.subr.mxu0 0.0
        %2418 = vmatpush1.msra.mxu0 %v2403
        %2419 = vmatprep.subr.mxu0 0.0
        %2420 = vmatpush1.msra.mxu0 %v2404
        %2421 = vmatprep.subr.mxu0 0.0
        %2422 = vmatpush1.msra.mxu0 0.0
        %2423 = vmatprep.subr.mxu0 0.0
        %2424 = vmatpush1.msra.mxu0 0.0
        %2425 = vmatprep.subr.mxu0 0.0
        %2426 = vmatpush1.msra.mxu0 0.0
        %2427 = vmatprep.subr.mxu0 0.0
        %2428 = vmatpush1.msra.mxu0 0.0
        %2429 = vmatprep.subr.mxu0 0.0
        %2430 = vmatpush1.msra.mxu0 0.0
        %2431 = vmatprep.subr.mxu0 0.0
        %2432 = vmatpush1.msra.mxu0 0.0
        %2433 = vmatprep.subr.mxu0 0.0
        %2434 = vmatpush1.msra.mxu0 0.0
        %2435 = vmatprep.subr.mxu0 0.0
        %2436 = vmatpush1.msra.mxu0 0.0
        %2437 = vmatprep.subr.mxu0 0.0
        %2438 = vmatpush1.msra.mxu0 0.0
        %2439 = vmatprep.subr.mxu0 0.0
        %2440 = vmatpush1.msra.mxu0 0.0
        %2441 = vmatprep.subr.mxu0 0.0
        %2442 = vmatpush1.msra.mxu0 0.0
        %2443 = vmatprep.subr.mxu0 0.0
        %2444 = vmatpush1.msra.mxu0 0.0
        %2445 = vmatprep.subr.mxu0 0.0
        %2446 = vmatpush1.msra.mxu0 0.0
        %2447 = vmatprep.subr.mxu0 0.0
        %2448 = vmatpush1.msra.mxu0 0.0
        %2449 = vmatprep.subr.mxu0 0.0
        %2450 = vmatpush1.msra.mxu0 0.0
        %2451 = vmatprep.subr.mxu0 0.0
        %2452 = vmatpush1.msra.mxu0 0.0
        %2453 = vmatprep.subr.mxu0 0.0
        %2454 = vmatpush1.msra.mxu0 0.0
        %2455 = vmatprep.subr.mxu0 0.0
        %2456 = vmatpush1.msra.mxu0 0.0
        %2457 = vmatprep.subr.mxu0 0.0
        %2458 = vmatpush1.msra.mxu0 0.0
        %2459 = vmatprep.subr.mxu0 0.0
        %2460 = vmatpush1.msra.mxu0 0.0
        %2461 = vmatprep.subr.mxu0 0.0
        %2462 = vmatpush1.msra.mxu0 0.0
        %2463 = vmatprep.subr.mxu0 0.0
        %2464 = vmatpush1.msra.mxu0 0.0
        %2465 = vmatprep.subr.mxu0 0.0
        %2466 = vmatpush1.msra.mxu0 0.0
        %2467 = vmatprep.subr.mxu0 0.0
        %2468 = vmatpush1.msra.mxu0 0.0
        %2469 = vmatprep.subr.mxu0 0.0
        %2470 = vmatpush1.msra.mxu0 0.0
        %2471 = vmatprep.subr.mxu0 0.0
        %2472 = vmatpush1.msra.mxu0 0.0
        %2473 = vmatprep.subr.mxu0 0.0
        %2474 = vmatpush1.msra.mxu0 0.0
        %2475 = vmatprep.subr.mxu0 0.0
        %2476 = vmatpush1.msra.mxu0 0.0
        %2477 = vmatprep.mubr.f32.mxu0 0.0
        %2478 = vmatmul.mubr.f32.gmra.mrb[0].mxu0 %v2411
        %v2479 = vpop.f32.mrb[0].mxu0
        %v2480 = vadd.f32 %v2409, %v2479
        %v2481 = vpop.f32.mrb[0].mxu0
        %2482 = vdwg.mxu0
        %v2483 = vld [vmem:[#allocation5 + $0x1b0] sm:$0xff]
        %v2484 = vld [vmem:[#allocation5 + $0x1b8] sm:$0xff]
        %v2485 = vld [vmem:[#allocation5 + $0x1c0] sm:$0xff]
        %v2486 = vld [vmem:[#allocation5 + $0x1c8] sm:$0xff]
        %v2487 = vld [vmem:[#allocation5 + $0x1d0] sm:$0x1]
        %v2488 = vlaneseq
        %v2489 = vshrl.u32 %v2488, 7
        %v2490 = vsub.s32 0, %v2489
        %v2491 = vrot.slane %v2487, %v2490
        %2492 = vmatprep.subr.mxu0 0.0
        %2493 = vmatpush1.msra.mxu0 %v2483
        %2494 = vmatprep.subr.mxu0 0.0
        %2495 = vmatpush1.msra.mxu0 %v2484
        %2496 = vmatprep.subr.mxu0 0.0
        %2497 = vmatpush1.msra.mxu0 %v2485
        %2498 = vmatprep.subr.mxu0 0.0
        %2499 = vmatpush1.msra.mxu0 %v2486
        %2500 = vmatprep.subr.mxu0 0.0
        %2501 = vmatpush1.msra.mxu0 0.0
        %2502 = vmatprep.subr.mxu0 0.0
        %2503 = vmatpush1.msra.mxu0 0.0
        %2504 = vmatprep.subr.mxu0 0.0
        %2505 = vmatpush1.msra.mxu0 0.0
        %2506 = vmatprep.subr.mxu0 0.0
        %2507 = vmatpush1.msra.mxu0 0.0
        %2508 = vmatprep.subr.mxu0 0.0
        %2509 = vmatpush1.msra.mxu0 0.0
        %2510 = vmatprep.subr.mxu0 0.0
        %2511 = vmatpush1.msra.mxu0 0.0
        %2512 = vmatprep.subr.mxu0 0.0
        %2513 = vmatpush1.msra.mxu0 0.0
        %2514 = vmatprep.subr.mxu0 0.0
        %2515 = vmatpush1.msra.mxu0 0.0
        %2516 = vmatprep.subr.mxu0 0.0
        %2517 = vmatpush1.msra.mxu0 0.0
        %2518 = vmatprep.subr.mxu0 0.0
        %2519 = vmatpush1.msra.mxu0 0.0
        %2520 = vmatprep.subr.mxu0 0.0
        %2521 = vmatpush1.msra.mxu0 0.0
        %2522 = vmatprep.subr.mxu0 0.0
        %2523 = vmatpush1.msra.mxu0 0.0
        %2524 = vmatprep.subr.mxu0 0.0
        %2525 = vmatpush1.msra.mxu0 0.0
        %2526 = vmatprep.subr.mxu0 0.0
        %2527 = vmatpush1.msra.mxu0 0.0
        %2528 = vmatprep.subr.mxu0 0.0
        %2529 = vmatpush1.msra.mxu0 0.0
        %2530 = vmatprep.subr.mxu0 0.0
        %2531 = vmatpush1.msra.mxu0 0.0
        %2532 = vmatprep.subr.mxu0 0.0
        %2533 = vmatpush1.msra.mxu0 0.0
        %2534 = vmatprep.subr.mxu0 0.0
        %2535 = vmatpush1.msra.mxu0 0.0
        %2536 = vmatprep.subr.mxu0 0.0
        %2537 = vmatpush1.msra.mxu0 0.0
        %2538 = vmatprep.subr.mxu0 0.0
        %2539 = vmatpush1.msra.mxu0 0.0
        %2540 = vmatprep.subr.mxu0 0.0
        %2541 = vmatpush1.msra.mxu0 0.0
        %2542 = vmatprep.subr.mxu0 0.0
        %2543 = vmatpush1.msra.mxu0 0.0
        %2544 = vmatprep.subr.mxu0 0.0
        %2545 = vmatpush1.msra.mxu0 0.0
        %2546 = vmatprep.subr.mxu0 0.0
        %2547 = vmatpush1.msra.mxu0 0.0
        %2548 = vmatprep.subr.mxu0 0.0
        %2549 = vmatpush1.msra.mxu0 0.0
        %2550 = vmatprep.subr.mxu0 0.0
        %2551 = vmatpush1.msra.mxu0 0.0
        %2552 = vmatprep.subr.mxu0 0.0
        %2553 = vmatpush1.msra.mxu0 0.0
        %2554 = vmatprep.subr.mxu0 0.0
        %2555 = vmatpush1.msra.mxu0 0.0
        %2556 = vmatprep.mubr.f32.mxu0 0.0
        %2557 = vmatmul.mubr.f32.gmra.mrb[0].mxu0 %v2411
        %v2558 = vpop.f32.mrb[0].mxu0
        %v2559 = vadd.f32 %v2491, %v2558
        %v2560 = vpop.f32.mrb[0].mxu0
        %2561 = vdwg.mxu0
        %v2563 = vsel %vm457, %v2398, 0
        %v2566 = vsel %vm457, %v2480, 0
        %2568 = vmatprep.subr.mxu0 0.0
        %2569 = vmatpush1.xpose.msra.mxu0 %v2566
        %2570 = vmatprep.subr.mxu0 0.0
        %2571 = vmatpush1.xpose.msra.mxu0 0.0
        %2572 = vmatprep.subr.mxu0 0.0
        %2573 = vmatpush1.xpose.msra.mxu0 0.0
        %2574 = vmatprep.subr.mxu0 0.0
        %2575 = vmatpush1.xpose.msra.mxu0 0.0
        %2576 = vmatprep.subr.mxu0 0.0
        %2577 = vmatpush1.xpose.msra.mxu0 0.0
        %2578 = vmatprep.subr.mxu0 0.0
        %2579 = vmatpush1.xpose.msra.mxu0 0.0
        %2580 = vmatprep.subr.mxu0 0.0
        %2581 = vmatpush1.xpose.msra.mxu0 0.0
        %2582 = vmatprep.subr.mxu0 0.0
        %2583 = vmatpush1.xpose.msra.mxu0 0.0
        %2584 = vmatprep.subr.mxu0 0.0
        %2585 = vmatpush1.xpose.msra.mxu0 0.0
        %2586 = vmatprep.subr.mxu0 0.0
        %2587 = vmatpush1.xpose.msra.mxu0 0.0
        %2588 = vmatprep.subr.mxu0 0.0
        %2589 = vmatpush1.xpose.msra.mxu0 0.0
        %2590 = vmatprep.subr.mxu0 0.0
        %2591 = vmatpush1.xpose.msra.mxu0 0.0
        %2592 = vmatprep.subr.mxu0 0.0
        %2593 = vmatpush1.xpose.msra.mxu0 0.0
        %2594 = vmatprep.subr.mxu0 0.0
        %2595 = vmatpush1.xpose.msra.mxu0 0.0
        %2596 = vmatprep.subr.mxu0 0.0
        %2597 = vmatpush1.xpose.msra.mxu0 0.0
        %2598 = vmatprep.subr.mxu0 0.0
        %2599 = vmatpush1.xpose.msra.mxu0 0.0
        %2600 = vmatprep.subr.mxu0 0.0
        %2601 = vmatpush1.xpose.msra.mxu0 0.0
        %2602 = vmatprep.subr.mxu0 0.0
        %2603 = vmatpush1.xpose.msra.mxu0 0.0
        %2604 = vmatprep.subr.mxu0 0.0
        %2605 = vmatpush1.xpose.msra.mxu0 0.0
        %2606 = vmatprep.subr.mxu0 0.0
        %2607 = vmatpush1.xpose.msra.mxu0 0.0
        %2608 = vmatprep.subr.mxu0 0.0
        %2609 = vmatpush1.xpose.msra.mxu0 0.0
        %2610 = vmatprep.subr.mxu0 0.0
        %2611 = vmatpush1.xpose.msra.mxu0 0.0
        %2612 = vmatprep.subr.mxu0 0.0
        %2613 = vmatpush1.xpose.msra.mxu0 0.0
        %2614 = vmatprep.subr.mxu0 0.0
        %2615 = vmatpush1.xpose.msra.mxu0 0.0
        %2616 = vmatprep.subr.mxu0 0.0
        %2617 = vmatpush1.xpose.msra.mxu0 0.0
        %2618 = vmatprep.subr.mxu0 0.0
        %2619 = vmatpush1.xpose.msra.mxu0 0.0
        %2620 = vmatprep.subr.mxu0 0.0
        %2621 = vmatpush1.xpose.msra.mxu0 0.0
        %2622 = vmatprep.subr.mxu0 0.0
        %2623 = vmatpush1.xpose.msra.mxu0 0.0
        %2624 = vmatprep.subr.mxu0 0.0
        %2625 = vmatpush1.xpose.msra.mxu0 0.0
        %2626 = vmatprep.subr.mxu0 0.0
        %2627 = vmatpush1.xpose.msra.mxu0 0.0
        %2628 = vmatprep.subr.mxu0 0.0
        %2629 = vmatpush1.xpose.msra.mxu0 0.0
        %2630 = vmatprep.subr.mxu0 0.0
        %2631 = vmatpush1.xpose.msra.mxu0 0.0
        %2632 = vmatprep.mubr.f32.mxu0 0.0
        %2633 = vmatmul.mubr.f32.gmra.mrb[0].mxu0 %v2563
        %v2634 = vpop.f32.mrb[0].mxu0
        %v2635 = vadd.f32 0.0, %v2634
        %v2636 = vpop.f32.mrb[0].mxu0
        %2637 = vdwg.mxu0
        %v2638 = vmul.f32 %v2635, 0.17677669
        %v2639 = vsel %vm457, %v2638, -inf
        %2640 = vmax.xlane.f32.xlu0 %v2639
        %v2641 = vpop.xlane.xlu0 %2640
        %v2642 = vsub.f32 %v2638, %v2641
        %v2643 = vmul.f32 %v2642, 1.442695
        %v2644 = vpow.pop %v2643
        %v2645 = vsel %vm457, %v2644, 0.0
        %2646 = vadd.xlane.f32.xlu0 %v2645
        %v2647 = vpop.xlane.xlu0 %2646
        %v2648 = vrcp.pop %v2647
        %v2649 = vmul.f32 %v2644, %v2648
        %v2651 = vsel %vm457, %v2649, 0
        %2653 = vmatprep.subr.mxu0 0.0
        %2654 = vmatpush1.msra.mxu0 %v2559
        %2655 = vmatprep.subr.mxu0 0.0
        %2656 = vmatpush1.msra.mxu0 0.0
        %2657 = vmatprep.subr.mxu0 0.0
        %2658 = vmatpush1.msra.mxu0 0.0
        %2659 = vmatprep.subr.mxu0 0.0
        %2660 = vmatpush1.msra.mxu0 0.0
        %2661 = vmatprep.subr.mxu0 0.0
        %2662 = vmatpush1.msra.mxu0 0.0
        %2663 = vmatprep.subr.mxu0 0.0
        %2664 = vmatpush1.msra.mxu0 0.0
        %2665 = vmatprep.subr.mxu0 0.0
        %2666 = vmatpush1.msra.mxu0 0.0
        %2667 = vmatprep.subr.mxu0 0.0
        %2668 = vmatpush1.msra.mxu0 0.0
        %2669 = vmatprep.subr.mxu0 0.0
        %2670 = vmatpush1.msra.mxu0 0.0
        %2671 = vmatprep.subr.mxu0 0.0
        %2672 = vmatpush1.msra.mxu0 0.0
        %2673 = vmatprep.subr.mxu0 0.0
        %2674 = vmatpush1.msra.mxu0 0.0
        %2675 = vmatprep.subr.mxu0 0.0
        %2676 = vmatpush1.msra.mxu0 0.0
        %2677 = vmatprep.subr.mxu0 0.0
        %2678 = vmatpush1.msra.mxu0 0.0
        %2679 = vmatprep.subr.mxu0 0.0
        %2680 = vmatpush1.msra.mxu0 0.0
        %2681 = vmatprep.subr.mxu0 0.0
        %2682 = vmatpush1.msra.mxu0 0.0
        %2683 = vmatprep.subr.mxu0 0.0
        %2684 = vmatpush1.msra.mxu0 0.0
        %2685 = vmatprep.subr.mxu0 0.0
        %2686 = vmatpush1.msra.mxu0 0.0
        %2687 = vmatprep.subr.mxu0 0.0
        %2688 = vmatpush1.msra.mxu0 0.0
        %2689 = vmatprep.subr.mxu0 0.0
        %2690 = vmatpush1.msra.mxu0 0.0
        %2691 = vmatprep.subr.mxu0 0.0
        %2692 = vmatpush1.msra.mxu0 0.0
        %2693 = vmatprep.subr.mxu0 0.0
        %2694 = vmatpush1.msra.mxu0 0.0
        %2695 = vmatprep.subr.mxu0 0.0
        %2696 = vmatpush1.msra.mxu0 0.0
        %2697 = vmatprep.subr.mxu0 0.0
        %2698 = vmatpush1.msra.mxu0 0.0
        %2699 = vmatprep.subr.mxu0 0.0
        %2700 = vmatpush1.msra.mxu0 0.0
        %2701 = vmatprep.subr.mxu0 0.0
        %2702 = vmatpush1.msra.mxu0 0.0
        %2703 = vmatprep.subr.mxu0 0.0
        %2704 = vmatpush1.msra.mxu0 0.0
        %2705 = vmatprep.subr.mxu0 0.0
        %2706 = vmatpush1.msra.mxu0 0.0
        %2707 = vmatprep.subr.mxu0 0.0
        %2708 = vmatpush1.msra.mxu0 0.0
        %2709 = vmatprep.subr.mxu0 0.0
        %2710 = vmatpush1.msra.mxu0 0.0
        %2711 = vmatprep.subr.mxu0 0.0
        %2712 = vmatpush1.msra.mxu0 0.0
        %2713 = vmatprep.subr.mxu0 0.0
        %2714 = vmatpush1.msra.mxu0 0.0
        %2715 = vmatprep.subr.mxu0 0.0
        %2716 = vmatpush1.msra.mxu0 0.0
        %2717 = vmatprep.mubr.f32.mxu0 0.0
        %2718 = vmatmul.mubr.f32.gmra.mrb[0].mxu0 %v2651
        %v2719 = vpop.f32.mrb[0].mxu0
        %v2720 = vadd.f32 0.0, %v2719
        %v2721 = vpop.f32.mrb[0].mxu0
        %2722 = vdwg.mxu0
        %2723 = vrot.lane.b32.xlu0 %v2398, 120
        %v2724 = vpop.permute.xlu0 %2723
        %2725 = vrot.lane.b32.xlu0 %v2480, 120
        %v2726 = vpop.permute.xlu0 %2725
        %v2727 = vsel %vm457, %v2724, 0
        %v2729 = vsel %vm457, %v2726, 0
        %2731 = vmatprep.subr.mxu0 0.0
        %2732 = vmatpush1.xpose.msra.mxu0 %v2729
        %2733 = vmatprep.subr.mxu0 0.0
        %2734 = vmatpush1.xpose.msra.mxu0 0.0
        %2735 = vmatprep.subr.mxu0 0.0
        %2736 = vmatpush1.xpose.msra.mxu0 0.0
        %2737 = vmatprep.subr.mxu0 0.0
        %2738 = vmatpush1.xpose.msra.mxu0 0.0
        %2739 = vmatprep.subr.mxu0 0.0
        %2740 = vmatpush1.xpose.msra.mxu0 0.0
        %2741 = vmatprep.subr.mxu0 0.0
        %2742 = vmatpush1.xpose.msra.mxu0 0.0
        %2743 = vmatprep.subr.mxu0 0.0
        %2744 = vmatpush1.xpose.msra.mxu0 0.0
        %2745 = vmatprep.subr.mxu0 0.0
        %2746 = vmatpush1.xpose.msra.mxu0 0.0
        %2747 = vmatprep.subr.mxu0 0.0
        %2748 = vmatpush1.xpose.msra.mxu0 0.0
        %2749 = vmatprep.subr.mxu0 0.0
        %2750 = vmatpush1.xpose.msra.mxu0 0.0
        %2751 = vmatprep.subr.mxu0 0.0
        %2752 = vmatpush1.xpose.msra.mxu0 0.0
        %2753 = vmatprep.subr.mxu0 0.0
        %2754 = vmatpush1.xpose.msra.mxu0 0.0
        %2755 = vmatprep.subr.mxu0 0.0
        %2756 = vmatpush1.xpose.msra.mxu0 0.0
        %2757 = vmatprep.subr.mxu0 0.0
        %2758 = vmatpush1.xpose.msra.mxu0 0.0
        %2759 = vmatprep.subr.mxu0 0.0
        %2760 = vmatpush1.xpose.msra.mxu0 0.0
        %2761 = vmatprep.subr.mxu0 0.0
        %2762 = vmatpush1.xpose.msra.mxu0 0.0
        %2763 = vmatprep.subr.mxu0 0.0
        %2764 = vmatpush1.xpose.msra.mxu0 0.0
        %2765 = vmatprep.subr.mxu0 0.0
        %2766 = vmatpush1.xpose.msra.mxu0 0.0
        %2767 = vmatprep.subr.mxu0 0.0
        %2768 = vmatpush1.xpose.msra.mxu0 0.0
        %2769 = vmatprep.subr.mxu0 0.0
        %2770 = vmatpush1.xpose.msra.mxu0 0.0
        %2771 = vmatprep.subr.mxu0 0.0
        %2772 = vmatpush1.xpose.msra.mxu0 0.0
        %2773 = vmatprep.subr.mxu0 0.0
        %2774 = vmatpush1.xpose.msra.mxu0 0.0
        %2775 = vmatprep.subr.mxu0 0.0
        %2776 = vmatpush1.xpose.msra.mxu0 0.0
        %2777 = vmatprep.subr.mxu0 0.0
        %2778 = vmatpush1.xpose.msra.mxu0 0.0
        %2779 = vmatprep.subr.mxu0 0.0
        %2780 = vmatpush1.xpose.msra.mxu0 0.0
        %2781 = vmatprep.subr.mxu0 0.0
        %2782 = vmatpush1.xpose.msra.mxu0 0.0
        %2783 = vmatprep.subr.mxu0 0.0
        %2784 = vmatpush1.xpose.msra.mxu0 0.0
        %2785 = vmatprep.subr.mxu0 0.0
        %2786 = vmatpush1.xpose.msra.mxu0 0.0
        %2787 = vmatprep.subr.mxu0 0.0
        %2788 = vmatpush1.xpose.msra.mxu0 0.0
        %2789 = vmatprep.subr.mxu0 0.0
        %2790 = vmatpush1.xpose.msra.mxu0 0.0
        %2791 = vmatprep.subr.mxu0 0.0
        %2792 = vmatpush1.xpose.msra.mxu0 0.0
        %2793 = vmatprep.subr.mxu0 0.0
        %2794 = vmatpush1.xpose.msra.mxu0 0.0
        %2795 = vmatprep.mubr.f32.mxu0 0.0
        %2796 = vmatmul.mubr.f32.gmra.mrb[0].mxu0 %v2727
        %v2797 = vpop.f32.mrb[0].mxu0
        %v2798 = vadd.f32 0.0, %v2797
        %v2799 = vpop.f32.mrb[0].mxu0
        %2800 = vdwg.mxu0
        %v2801 = vmul.f32 %v2798, 0.17677669
        %v2802 = vsel %vm457, %v2801, -inf
        %2803 = vmax.xlane.f32.xlu0 %v2802
        %v2804 = vpop.xlane.xlu0 %2803
        %v2805 = vsub.f32 %v2801, %v2804
        %v2806 = vmul.f32 %v2805, 1.442695
        %v2807 = vpow.pop %v2806
        %v2808 = vsel %vm457, %v2807, 0.0
        %2809 = vadd.xlane.f32.xlu0 %v2808
        %v2810 = vpop.xlane.xlu0 %2809
        %v2811 = vrcp.pop %v2810
        %v2812 = vmul.f32 %v2807, %v2811
        %2814 = vrot.lane.b32.xlu0 %v2559, 120
        %v2815 = vpop.permute.xlu0 %2814
        %v2818 = vsel %vm457, %v2812, 0
        %2820 = vmatprep.subr.mxu0 0.0
        %2821 = vmatpush1.msra.mxu0 %v2815
        %2822 = vmatprep.subr.mxu0 0.0
        %2823 = vmatpush1.msra.mxu0 0.0
        %2824 = vmatprep.subr.mxu0 0.0
        %2825 = vmatpush1.msra.mxu0 0.0
        %2826 = vmatprep.subr.mxu0 0.0
        %2827 = vmatpush1.msra.mxu0 0.0
        %2828 = vmatprep.subr.mxu0 0.0
        %2829 = vmatpush1.msra.mxu0 0.0
        %2830 = vmatprep.subr.mxu0 0.0
        %2831 = vmatpush1.msra.mxu0 0.0
        %2832 = vmatprep.subr.mxu0 0.0
        %2833 = vmatpush1.msra.mxu0 0.0
        %2834 = vmatprep.subr.mxu0 0.0
        %2835 = vmatpush1.msra.mxu0 0.0
        %2836 = vmatprep.subr.mxu0 0.0
        %2837 = vmatpush1.msra.mxu0 0.0
        %2838 = vmatprep.subr.mxu0 0.0
        %2839 = vmatpush1.msra.mxu0 0.0
        %2840 = vmatprep.subr.mxu0 0.0
        %2841 = vmatpush1.msra.mxu0 0.0
        %2842 = vmatprep.subr.mxu0 0.0
        %2843 = vmatpush1.msra.mxu0 0.0
        %2844 = vmatprep.subr.mxu0 0.0
        %2845 = vmatpush1.msra.mxu0 0.0
        %2846 = vmatprep.subr.mxu0 0.0
        %2847 = vmatpush1.msra.mxu0 0.0
        %2848 = vmatprep.subr.mxu0 0.0
        %2849 = vmatpush1.msra.mxu0 0.0
        %2850 = vmatprep.subr.mxu0 0.0
        %2851 = vmatpush1.msra.mxu0 0.0
        %2852 = vmatprep.subr.mxu0 0.0
        %2853 = vmatpush1.msra.mxu0 0.0
        %2854 = vmatprep.subr.mxu0 0.0
        %2855 = vmatpush1.msra.mxu0 0.0
        %2856 = vmatprep.subr.mxu0 0.0
        %2857 = vmatpush1.msra.mxu0 0.0
        %2858 = vmatprep.subr.mxu0 0.0
        %2859 = vmatpush1.msra.mxu0 0.0
        %2860 = vmatprep.subr.mxu0 0.0
        %2861 = vmatpush1.msra.mxu0 0.0
        %2862 = vmatprep.subr.mxu0 0.0
        %2863 = vmatpush1.msra.mxu0 0.0
        %2864 = vmatprep.subr.mxu0 0.0
        %2865 = vmatpush1.msra.mxu0 0.0
        %2866 = vmatprep.subr.mxu0 0.0
        %2867 = vmatpush1.msra.mxu0 0.0
        %2868 = vmatprep.subr.mxu0 0.0
        %2869 = vmatpush1.msra.mxu0 0.0
        %2870 = vmatprep.subr.mxu0 0.0
        %2871 = vmatpush1.msra.mxu0 0.0
        %2872 = vmatprep.subr.mxu0 0.0
        %2873 = vmatpush1.msra.mxu0 0.0
        %2874 = vmatprep.subr.mxu0 0.0
        %2875 = vmatpush1.msra.mxu0 0.0
        %2876 = vmatprep.subr.mxu0 0.0
        %2877 = vmatpush1.msra.mxu0 0.0
        %2878 = vmatprep.subr.mxu0 0.0
        %2879 = vmatpush1.msra.mxu0 0.0
        %2880 = vmatprep.subr.mxu0 0.0
        %2881 = vmatpush1.msra.mxu0 0.0
        %2882 = vmatprep.subr.mxu0 0.0
        %2883 = vmatpush1.msra.mxu0 0.0
        %2884 = vmatprep.mubr.f32.mxu0 0.0
        %2885 = vmatmul.mubr.f32.gmra.mrb[0].mxu0 %v2818
        %v2886 = vpop.f32.mrb[0].mxu0
        %v2887 = vadd.f32 0.0, %v2886
        %v2888 = vpop.f32.mrb[0].mxu0
        %2889 = vdwg.mxu0
        %2890 = vrot.lane.b32.xlu0 %v2398, 112
        %v2891 = vpop.permute.xlu0 %2890
        %2892 = vrot.lane.b32.xlu0 %v2480, 112
        %v2893 = vpop.permute.xlu0 %2892
        %v2894 = vsel %vm457, %v2891, 0
        %v2896 = vsel %vm457, %v2893, 0
        %2898 = vmatprep.subr.mxu0 0.0
        %2899 = vmatpush1.xpose.msra.mxu0 %v2896
        %2900 = vmatprep.subr.mxu0 0.0
        %2901 = vmatpush1.xpose.msra.mxu0 0.0
        %2902 = vmatprep.subr.mxu0 0.0
        %2903 = vmatpush1.xpose.msra.mxu0 0.0
        %2904 = vmatprep.subr.mxu0 0.0
        %2905 = vmatpush1.xpose.msra.mxu0 0.0
        %2906 = vmatprep.subr.mxu0 0.0
        %2907 = vmatpush1.xpose.msra.mxu0 0.0
        %2908 = vmatprep.subr.mxu0 0.0
        %2909 = vmatpush1.xpose.msra.mxu0 0.0
        %2910 = vmatprep.subr.mxu0 0.0
        %2911 = vmatpush1.xpose.msra.mxu0 0.0
        %2912 = vmatprep.subr.mxu0 0.0
        %2913 = vmatpush1.xpose.msra.mxu0 0.0
        %2914 = vmatprep.subr.mxu0 0.0
        %2915 = vmatpush1.xpose.msra.mxu0 0.0
        %2916 = vmatprep.subr.mxu0 0.0
        %2917 = vmatpush1.xpose.msra.mxu0 0.0
        %2918 = vmatprep.subr.mxu0 0.0
        %2919 = vmatpush1.xpose.msra.mxu0 0.0
        %2920 = vmatprep.subr.mxu0 0.0
        %2921 = vmatpush1.xpose.msra.mxu0 0.0
        %2922 = vmatprep.subr.mxu0 0.0
        %2923 = vmatpush1.xpose.msra.mxu0 0.0
        %2924 = vmatprep.subr.mxu0 0.0
        %2925 = vmatpush1.xpose.msra.mxu0 0.0
        %2926 = vmatprep.subr.mxu0 0.0
        %2927 = vmatpush1.xpose.msra.mxu0 0.0
        %2928 = vmatprep.subr.mxu0 0.0
        %2929 = vmatpush1.xpose.msra.mxu0 0.0
        %2930 = vmatprep.subr.mxu0 0.0
        %2931 = vmatpush1.xpose.msra.mxu0 0.0
        %2932 = vmatprep.subr.mxu0 0.0
        %2933 = vmatpush1.xpose.msra.mxu0 0.0
        %2934 = vmatprep.subr.mxu0 0.0
        %2935 = vmatpush1.xpose.msra.mxu0 0.0
        %2936 = vmatprep.subr.mxu0 0.0
        %2937 = vmatpush1.xpose.msra.mxu0 0.0
        %2938 = vmatprep.subr.mxu0 0.0
        %2939 = vmatpush1.xpose.msra.mxu0 0.0
        %2940 = vmatprep.subr.mxu0 0.0
        %2941 = vmatpush1.xpose.msra.mxu0 0.0
        %2942 = vmatprep.subr.mxu0 0.0
        %2943 = vmatpush1.xpose.msra.mxu0 0.0
        %2944 = vmatprep.subr.mxu0 0.0
        %2945 = vmatpush1.xpose.msra.mxu0 0.0
        %2946 = vmatprep.subr.mxu0 0.0
        %2947 = vmatpush1.xpose.msra.mxu0 0.0
        %2948 = vmatprep.subr.mxu0 0.0
        %2949 = vmatpush1.xpose.msra.mxu0 0.0
        %2950 = vmatprep.subr.mxu0 0.0
        %2951 = vmatpush1.xpose.msra.mxu0 0.0
        %2952 = vmatprep.subr.mxu0 0.0
        %2953 = vmatpush1.xpose.msra.mxu0 0.0
        %2954 = vmatprep.subr.mxu0 0.0
        %2955 = vmatpush1.xpose.msra.mxu0 0.0
        %2956 = vmatprep.subr.mxu0 0.0
        %2957 = vmatpush1.xpose.msra.mxu0 0.0
        %2958 = vmatprep.subr.mxu0 0.0
        %2959 = vmatpush1.xpose.msra.mxu0 0.0
        %2960 = vmatprep.subr.mxu0 0.0
        %2961 = vmatpush1.xpose.msra.mxu0 0.0
        %2962 = vmatprep.mubr.f32.mxu0 0.0
        %2963 = vmatmul.mubr.f32.gmra.mrb[0].mxu0 %v2894
        %v2964 = vpop.f32.mrb[0].mxu0
        %v2965 = vadd.f32 0.0, %v2964
        %v2966 = vpop.f32.mrb[0].mxu0
        %2967 = vdwg.mxu0
        %v2968 = vmul.f32 %v2965, 0.17677669
        %v2969 = vsel %vm457, %v2968, -inf
        %2970 = vmax.xlane.f32.xlu0 %v2969
        %v2971 = vpop.xlane.xlu0 %2970
        %v2972 = vsub.f32 %v2968, %v2971
        %v2973 = vmul.f32 %v2972, 1.442695
        %v2974 = vpow.pop %v2973
        %v2975 = vsel %vm457, %v2974, 0.0
        %2976 = vadd.xlane.f32.xlu0 %v2975
        %v2977 = vpop.xlane.xlu0 %2976
        %v2978 = vrcp.pop %v2977
        %v2979 = vmul.f32 %v2974, %v2978
        %2980 = vrot.lane.b32.xlu0 %v2559, 112
        %v2981 = vpop.permute.xlu0 %2980
        %v2984 = vsel %vm457, %v2979, 0
        %2986 = vmatprep.subr.mxu0 0.0
        %2987 = vmatpush1.msra.mxu0 %v2981
        %2988 = vmatprep.subr.mxu0 0.0
        %2989 = vmatpush1.msra.mxu0 0.0
        %2990 = vmatprep.subr.mxu0 0.0
        %2991 = vmatpush1.msra.mxu0 0.0
        %2992 = vmatprep.subr.mxu0 0.0
        %2993 = vmatpush1.msra.mxu0 0.0
        %2994 = vmatprep.subr.mxu0 0.0
        %2995 = vmatpush1.msra.mxu0 0.0
        %2996 = vmatprep.subr.mxu0 0.0
        %2997 = vmatpush1.msra.mxu0 0.0
        %2998 = vmatprep.subr.mxu0 0.0
        %2999 = vmatpush1.msra.mxu0 0.0
        %3000 = vmatprep.subr.mxu0 0.0
        %3001 = vmatpush1.msra.mxu0 0.0
        %3002 = vmatprep.subr.mxu0 0.0
        %3003 = vmatpush1.msra.mxu0 0.0
        %3004 = vmatprep.subr.mxu0 0.0
        %3005 = vmatpush1.msra.mxu0 0.0
        %3006 = vmatprep.subr.mxu0 0.0
        %3007 = vmatpush1.msra.mxu0 0.0
        %3008 = vmatprep.subr.mxu0 0.0
        %3009 = vmatpush1.msra.mxu0 0.0
        %3010 = vmatprep.subr.mxu0 0.0
        %3011 = vmatpush1.msra.mxu0 0.0
        %3012 = vmatprep.subr.mxu0 0.0
        %3013 = vmatpush1.msra.mxu0 0.0
        %3014 = vmatprep.subr.mxu0 0.0
        %3015 = vmatpush1.msra.mxu0 0.0
        %3016 = vmatprep.subr.mxu0 0.0
        %3017 = vmatpush1.msra.mxu0 0.0
        %3018 = vmatprep.subr.mxu0 0.0
        %3019 = vmatpush1.msra.mxu0 0.0
        %3020 = vmatprep.subr.mxu0 0.0
        %3021 = vmatpush1.msra.mxu0 0.0
        %3022 = vmatprep.subr.mxu0 0.0
        %3023 = vmatpush1.msra.mxu0 0.0
        %3024 = vmatprep.subr.mxu0 0.0
        %3025 = vmatpush1.msra.mxu0 0.0
        %3026 = vmatprep.subr.mxu0 0.0
        %3027 = vmatpush1.msra.mxu0 0.0
        %3028 = vmatprep.subr.mxu0 0.0
        %3029 = vmatpush1.msra.mxu0 0.0
        %3030 = vmatprep.subr.mxu0 0.0
        %3031 = vmatpush1.msra.mxu0 0.0
        %3032 = vmatprep.subr.mxu0 0.0
        %3033 = vmatpush1.msra.mxu0 0.0
        %3034 = vmatprep.subr.mxu0 0.0
        %3035 = vmatpush1.msra.mxu0 0.0
        %3036 = vmatprep.subr.mxu0 0.0
        %3037 = vmatpush1.msra.mxu0 0.0
        %3038 = vmatprep.subr.mxu0 0.0
        %3039 = vmatpush1.msra.mxu0 0.0
        %3040 = vmatprep.subr.mxu0 0.0
        %3041 = vmatpush1.msra.mxu0 0.0
        %3042 = vmatprep.subr.mxu0 0.0
        %3043 = vmatpush1.msra.mxu0 0.0
        %3044 = vmatprep.subr.mxu0 0.0
        %3045 = vmatpush1.msra.mxu0 0.0
        %3046 = vmatprep.subr.mxu0 0.0
        %3047 = vmatpush1.msra.mxu0 0.0
        %3048 = vmatprep.subr.mxu0 0.0
        %3049 = vmatpush1.msra.mxu0 0.0
        %3050 = vmatprep.mubr.f32.mxu0 0.0
        %3051 = vmatmul.mubr.f32.gmra.mrb[0].mxu0 %v2984
        %v3052 = vpop.f32.mrb[0].mxu0
        %v3053 = vadd.f32 0.0, %v3052
        %v3054 = vpop.f32.mrb[0].mxu0
        %3055 = vdwg.mxu0
        %3056 = vrot.lane.b32.xlu0 %v2398, 104
        %v3057 = vpop.permute.xlu0 %3056
        %3058 = vrot.lane.b32.xlu0 %v2480, 104
        %v3059 = vpop.permute.xlu0 %3058
        %v3060 = vsel %vm457, %v3057, 0
        %v3062 = vsel %vm457, %v3059, 0
        %3064 = vmatprep.subr.mxu0 0.0
        %3065 = vmatpush1.xpose.msra.mxu0 %v3062
        %3066 = vmatprep.subr.mxu0 0.0
        %3067 = vmatpush1.xpose.msra.mxu0 0.0
        %3068 = vmatprep.subr.mxu0 0.0
        %3069 = vmatpush1.xpose.msra.mxu0 0.0
        %3070 = vmatprep.subr.mxu0 0.0
        %3071 = vmatpush1.xpose.msra.mxu0 0.0
        %3072 = vmatprep.subr.mxu0 0.0
        %3073 = vmatpush1.xpose.msra.mxu0 0.0
        %3074 = vmatprep.subr.mxu0 0.0
        %3075 = vmatpush1.xpose.msra.mxu0 0.0
        %3076 = vmatprep.subr.mxu0 0.0
        %3077 = vmatpush1.xpose.msra.mxu0 0.0
        %3078 = vmatprep.subr.mxu0 0.0
        %3079 = vmatpush1.xpose.msra.mxu0 0.0
        %3080 = vmatprep.subr.mxu0 0.0
        %3081 = vmatpush1.xpose.msra.mxu0 0.0
        %3082 = vmatprep.subr.mxu0 0.0
        %3083 = vmatpush1.xpose.msra.mxu0 0.0
        %3084 = vmatprep.subr.mxu0 0.0
        %3085 = vmatpush1.xpose.msra.mxu0 0.0
        %3086 = vmatprep.subr.mxu0 0.0
        %3087 = vmatpush1.xpose.msra.mxu0 0.0
        %3088 = vmatprep.subr.mxu0 0.0
        %3089 = vmatpush1.xpose.msra.mxu0 0.0
        %3090 = vmatprep.subr.mxu0 0.0
        %3091 = vmatpush1.xpose.msra.mxu0 0.0
        %3092 = vmatprep.subr.mxu0 0.0
        %3093 = vmatpush1.xpose.msra.mxu0 0.0
        %3094 = vmatprep.subr.mxu0 0.0
        %3095 = vmatpush1.xpose.msra.mxu0 0.0
        %3096 = vmatprep.subr.mxu0 0.0
        %3097 = vmatpush1.xpose.msra.mxu0 0.0
        %3098 = vmatprep.subr.mxu0 0.0
        %3099 = vmatpush1.xpose.msra.mxu0 0.0
        %3100 = vmatprep.subr.mxu0 0.0
        %3101 = vmatpush1.xpose.msra.mxu0 0.0
        %3102 = vmatprep.subr.mxu0 0.0
        %3103 = vmatpush1.xpose.msra.mxu0 0.0
        %3104 = vmatprep.subr.mxu0 0.0
        %3105 = vmatpush1.xpose.msra.mxu0 0.0
        %3106 = vmatprep.subr.mxu0 0.0
        %3107 = vmatpush1.xpose.msra.mxu0 0.0
        %3108 = vmatprep.subr.mxu0 0.0
        %3109 = vmatpush1.xpose.msra.mxu0 0.0
        %3110 = vmatprep.subr.mxu0 0.0
        %3111 = vmatpush1.xpose.msra.mxu0 0.0
        %3112 = vmatprep.subr.mxu0 0.0
        %3113 = vmatpush1.xpose.msra.mxu0 0.0
        %3114 = vmatprep.subr.mxu0 0.0
        %3115 = vmatpush1.xpose.msra.mxu0 0.0
        %3116 = vmatprep.subr.mxu0 0.0
        %3117 = vmatpush1.xpose.msra.mxu0 0.0
        %3118 = vmatprep.subr.mxu0 0.0
        %3119 = vmatpush1.xpose.msra.mxu0 0.0
        %3120 = vmatprep.subr.mxu0 0.0
        %3121 = vmatpush1.xpose.msra.mxu0 0.0
        %3122 = vmatprep.subr.mxu0 0.0
        %3123 = vmatpush1.xpose.msra.mxu0 0.0
        %3124 = vmatprep.subr.mxu0 0.0
        %3125 = vmatpush1.xpose.msra.mxu0 0.0
        %3126 = vmatprep.subr.mxu0 0.0
        %3127 = vmatpush1.xpose.msra.mxu0 0.0
        %3128 = vmatprep.mubr.f32.mxu0 0.0
        %3129 = vmatmul.mubr.f32.gmra.mrb[0].mxu0 %v3060
        %v3130 = vpop.f32.mrb[0].mxu0
        %v3131 = vadd.f32 0.0, %v3130
        %v3132 = vpop.f32.mrb[0].mxu0
        %3133 = vdwg.mxu0
        %v3134 = vmul.f32 %v3131, 0.17677669
        %v3135 = vsel %vm457, %v3134, -inf
        %3136 = vmax.xlane.f32.xlu0 %v3135
        %v3137 = vpop.xlane.xlu0 %3136
        %v3138 = vsub.f32 %v3134, %v3137
        %v3139 = vmul.f32 %v3138, 1.442695
        %v3140 = vpow.pop %v3139
        %v3141 = vsel %vm457, %v3140, 0.0
        %3142 = vadd.xlane.f32.xlu0 %v3141
        %v3143 = vpop.xlane.xlu0 %3142
        %v3144 = vrcp.pop %v3143
        %v3145 = vmul.f32 %v3140, %v3144
        %3146 = vrot.lane.b32.xlu0 %v2559, 104
        %v3147 = vpop.permute.xlu0 %3146
        %v3150 = vsel %vm457, %v3145, 0
        %3152 = vmatprep.subr.mxu0 0.0
        %3153 = vmatpush1.msra.mxu0 %v3147
        %3154 = vmatprep.subr.mxu0 0.0
        %3155 = vmatpush1.msra.mxu0 0.0
        %3156 = vmatprep.subr.mxu0 0.0
        %3157 = vmatpush1.msra.mxu0 0.0
        %3158 = vmatprep.subr.mxu0 0.0
        %3159 = vmatpush1.msra.mxu0 0.0
        %3160 = vmatprep.subr.mxu0 0.0
        %3161 = vmatpush1.msra.mxu0 0.0
        %3162 = vmatprep.subr.mxu0 0.0
        %3163 = vmatpush1.msra.mxu0 0.0
        %3164 = vmatprep.subr.mxu0 0.0
        %3165 = vmatpush1.msra.mxu0 0.0
        %3166 = vmatprep.subr.mxu0 0.0
        %3167 = vmatpush1.msra.mxu0 0.0
        %3168 = vmatprep.subr.mxu0 0.0
        %3169 = vmatpush1.msra.mxu0 0.0
        %3170 = vmatprep.subr.mxu0 0.0
        %3171 = vmatpush1.msra.mxu0 0.0
        %3172 = vmatprep.subr.mxu0 0.0
        %3173 = vmatpush1.msra.mxu0 0.0
        %3174 = vmatprep.subr.mxu0 0.0
        %3175 = vmatpush1.msra.mxu0 0.0
        %3176 = vmatprep.subr.mxu0 0.0
        %3177 = vmatpush1.msra.mxu0 0.0
        %3178 = vmatprep.subr.mxu0 0.0
        %3179 = vmatpush1.msra.mxu0 0.0
        %3180 = vmatprep.subr.mxu0 0.0
        %3181 = vmatpush1.msra.mxu0 0.0
        %3182 = vmatprep.subr.mxu0 0.0
        %3183 = vmatpush1.msra.mxu0 0.0
        %3184 = vmatprep.subr.mxu0 0.0
        %3185 = vmatpush1.msra.mxu0 0.0
        %3186 = vmatprep.subr.mxu0 0.0
        %3187 = vmatpush1.msra.mxu0 0.0
        %3188 = vmatprep.subr.mxu0 0.0
        %3189 = vmatpush1.msra.mxu0 0.0
        %3190 = vmatprep.subr.mxu0 0.0
        %3191 = vmatpush1.msra.mxu0 0.0
        %3192 = vmatprep.subr.mxu0 0.0
        %3193 = vmatpush1.msra.mxu0 0.0
        %3194 = vmatprep.subr.mxu0 0.0
        %3195 = vmatpush1.msra.mxu0 0.0
        %3196 = vmatprep.subr.mxu0 0.0
        %3197 = vmatpush1.msra.mxu0 0.0
        %3198 = vmatprep.subr.mxu0 0.0
        %3199 = vmatpush1.msra.mxu0 0.0
        %3200 = vmatprep.subr.mxu0 0.0
        %3201 = vmatpush1.msra.mxu0 0.0
        %3202 = vmatprep.subr.mxu0 0.0
        %3203 = vmatpush1.msra.mxu0 0.0
        %3204 = vmatprep.subr.mxu0 0.0
        %3205 = vmatpush1.msra.mxu0 0.0
        %3206 = vmatprep.subr.mxu0 0.0
        %3207 = vmatpush1.msra.mxu0 0.0
        %3208 = vmatprep.subr.mxu0 0.0
        %3209 = vmatpush1.msra.mxu0 0.0
        %3210 = vmatprep.subr.mxu0 0.0
        %3211 = vmatpush1.msra.mxu0 0.0
        %3212 = vmatprep.subr.mxu0 0.0
        %3213 = vmatpush1.msra.mxu0 0.0
        %3214 = vmatprep.subr.mxu0 0.0
        %3215 = vmatpush1.msra.mxu0 0.0
        %3216 = vmatprep.mubr.f32.mxu0 0.0
        %3217 = vmatmul.mubr.f32.gmra.mrb[0].mxu0 %v3150
        %v3218 = vpop.f32.mrb[0].mxu0
        %v3219 = vadd.f32 0.0, %v3218
        %v3220 = vpop.f32.mrb[0].mxu0
        %3221 = vdwg.mxu0
        %3223 = vrot.lane.b32.xlu0 %v2887, 8
        %v3224 = vpop.permute.xlu0 %3223
        %3227 = vrot.lane.b32.xlu0 %v3053, 16
        %v3228 = vpop.permute.xlu0 %3227
        %3231 = vrot.lane.b32.xlu0 %v3219, 24
        %v3232 = vpop.permute.xlu0 %3231
        %v3234 = vsel %vm457, %v2720, %v3224
        %v3235 = vsel %vm306, %v3234, %v3228
        %v3236 = vsel %vm1132, %v3235, %v3232
        %v3237 = vadd.f32 %v2398, %v3236
        %v3238 = vld [vmem:[#allocation5 + $0x200] sm:$0x1]
        %v3239 = vld [vmem:[#allocation5 + $0x208] sm:$0x1]
        %v3240 = vsel %vm225, %v3237, 0.0
        %3241 = vadd.xlane.f32.xlu0 %v3240
        %v3242 = vpop.xlane.xlu0 %3241
        %v3243 = vmul.f32 %v3242, %v1140
        %v3244 = vsub.f32 %v3237, %v3243
        %v3245 = vmul.f32 %v3244, %v3244
        %v3246 = vsel %vm225, %v3245, 0.0
        %3247 = vadd.xlane.f32.xlu0 %v3246
        %v3248 = vpop.xlane.xlu0 %3247
        %v3249 = vmul.f32 %v3248, %v1140
        %v3250 = vadd.f32 %v3249, 1e-05
        %v3251 = vrsqrt.pop %v3250
        %v3252 = vmul.f32 %v3244, %v3251
        %v3253 = vlaneseq
        %v3254 = vshrl.u32 %v3253, 7
        %v3255 = vsub.s32 0, %v3254
        %v3256 = vrot.slane %v3238, %v3255
        %v3257 = vmul.f32 %v3252, %v3256
        %v3258 = vlaneseq
        %v3259 = vshrl.u32 %v3258, 7
        %v3260 = vsub.s32 0, %v3259
        %v3261 = vrot.slane %v3239, %v3260
        %v3262 = vadd.f32 %v3257, %v3261
        %v3263 = vld [vmem:[#allocation5 + $0x1d8] sm:$0xff]
        %v3264 = vld [vmem:[#allocation5 + $0x1e0] sm:$0xff]
        %v3265 = vld [vmem:[#allocation5 + $0x1e8] sm:$0xff]
        %v3266 = vld [vmem:[#allocation5 + $0x1f0] sm:$0xff]
        %v3267 = vld [vmem:[#allocation5 + $0x1f8] sm:$0x1]
        %v3268 = vlaneseq
        %v3269 = vshrl.u32 %v3268, 7
        %v3270 = vsub.s32 0, %v3269
        %v3271 = vrot.slane %v3267, %v3270
        %v3273 = vsel %vm225, %v3262, 0
        %3275 = vmatprep.subr.mxu0 0.0
        %3276 = vmatpush1.msra.mxu0 %v3263
        %3277 = vmatprep.subr.mxu0 0.0
        %3278 = vmatpush1.msra.mxu0 %v3264
        %3279 = vmatprep.subr.mxu0 0.0
        %3280 = vmatpush1.msra.mxu0 %v3265
        %3281 = vmatprep.subr.mxu0 0.0
        %3282 = vmatpush1.msra.mxu0 %v3266
        %3283 = vmatprep.subr.mxu0 0.0
        %3284 = vmatpush1.msra.mxu0 0.0
        %3285 = vmatprep.subr.mxu0 0.0
        %3286 = vmatpush1.msra.mxu0 0.0
        %3287 = vmatprep.subr.mxu0 0.0
        %3288 = vmatpush1.msra.mxu0 0.0
        %3289 = vmatprep.subr.mxu0 0.0
        %3290 = vmatpush1.msra.mxu0 0.0
        %3291 = vmatprep.subr.mxu0 0.0
        %3292 = vmatpush1.msra.mxu0 0.0
        %3293 = vmatprep.subr.mxu0 0.0
        %3294 = vmatpush1.msra.mxu0 0.0
        %3295 = vmatprep.subr.mxu0 0.0
        %3296 = vmatpush1.msra.mxu0 0.0
        %3297 = vmatprep.subr.mxu0 0.0
        %3298 = vmatpush1.msra.mxu0 0.0
        %3299 = vmatprep.subr.mxu0 0.0
        %3300 = vmatpush1.msra.mxu0 0.0
        %3301 = vmatprep.subr.mxu0 0.0
        %3302 = vmatpush1.msra.mxu0 0.0
        %3303 = vmatprep.subr.mxu0 0.0
        %3304 = vmatpush1.msra.mxu0 0.0
        %3305 = vmatprep.subr.mxu0 0.0
        %3306 = vmatpush1.msra.mxu0 0.0
        %3307 = vmatprep.subr.mxu0 0.0
        %3308 = vmatpush1.msra.mxu0 0.0
        %3309 = vmatprep.subr.mxu0 0.0
        %3310 = vmatpush1.msra.mxu0 0.0
        %3311 = vmatprep.subr.mxu0 0.0
        %3312 = vmatpush1.msra.mxu0 0.0
        %3313 = vmatprep.subr.mxu0 0.0
        %3314 = vmatpush1.msra.mxu0 0.0
        %3315 = vmatprep.subr.mxu0 0.0
        %3316 = vmatpush1.msra.mxu0 0.0
        %3317 = vmatprep.subr.mxu0 0.0
        %3318 = vmatpush1.msra.mxu0 0.0
        %3319 = vmatprep.subr.mxu0 0.0
        %3320 = vmatpush1.msra.mxu0 0.0
        %3321 = vmatprep.subr.mxu0 0.0
        %3322 = vmatpush1.msra.mxu0 0.0
        %3323 = vmatprep.subr.mxu0 0.0
        %3324 = vmatpush1.msra.mxu0 0.0
        %3325 = vmatprep.subr.mxu0 0.0
        %3326 = vmatpush1.msra.mxu0 0.0
        %3327 = vmatprep.subr.mxu0 0.0
        %3328 = vmatpush1.msra.mxu0 0.0
        %3329 = vmatprep.subr.mxu0 0.0
        %3330 = vmatpush1.msra.mxu0 0.0
        %3331 = vmatprep.subr.mxu0 0.0
        %3332 = vmatpush1.msra.mxu0 0.0
        %3333 = vmatprep.subr.mxu0 0.0
        %3334 = vmatpush1.msra.mxu0 0.0
        %3335 = vmatprep.subr.mxu0 0.0
        %3336 = vmatpush1.msra.mxu0 0.0
        %3337 = vmatprep.subr.mxu0 0.0
        %3338 = vmatpush1.msra.mxu0 0.0
        %3339 = vmatprep.mubr.f32.mxu0 0.0
        %3340 = vmatmul.mubr.f32.gmra.mrb[0].mxu0 %v3273
        %v3341 = vpop.f32.mrb[0].mxu0
        %v3342 = vadd.f32 %v3271, %v3341
        %v3343 = vpop.f32.mrb[0].mxu0
        %3344 = vdwg.mxu0
        %v3345 = vmax.f32 %v3342, 0.0
        %v3346 = vadd.f32 %v3262, %v3345
        %v3347 = vld [vmem:[#allocation5 + $0x210] sm:$0x1]
        %v3348 = vld [vmem:[#allocation5 + $0x218] sm:$0x1]
        %v3349 = vsel %vm225, %v3346, 0.0
        %3350 = vadd.xlane.f32.xlu0 %v3349
        %v3351 = vpop.xlane.xlu0 %3350
        %v3352 = vmul.f32 %v3351, %v1140
        %v3353 = vsub.f32 %v3346, %v3352
        %v3354 = vmul.f32 %v3353, %v3353
        %v3355 = vsel %vm225, %v3354, 0.0
        %3356 = vadd.xlane.f32.xlu0 %v3355
        %v3357 = vpop.xlane.xlu0 %3356
        %v3358 = vmul.f32 %v3357, %v1140
        %v3359 = vadd.f32 %v3358, 1e-05
        %v3360 = vrsqrt.pop %v3359
        %v3361 = vmul.f32 %v3353, %v3360
        %v3362 = vlaneseq
        %v3363 = vshrl.u32 %v3362, 7
        %v3364 = vsub.s32 0, %v3363
        %v3365 = vrot.slane %v3347, %v3364
        %v3366 = vmul.f32 %v3361, %v3365
        %v3367 = vlaneseq
        %v3368 = vshrl.u32 %v3367, 7
        %v3369 = vsub.s32 0, %v3368
        %v3370 = vrot.slane %v3348, %v3369
        %v3371 = vadd.f32 %v3366, %v3370
        %v3372 = vld [vmem:[#allocation5 + $0x220] sm:$0xff]
        %v3373 = vld [vmem:[#allocation5 + $0x228] sm:$0xff]
        %v3374 = vld [vmem:[#allocation5 + $0x230] sm:$0xff]
        %v3375 = vld [vmem:[#allocation5 + $0x238] sm:$0xff]
        %v3376 = vld [vmem:[#allocation5 + $0x240] sm:$0x1]
        %v3377 = vlaneseq
        %v3378 = vshrl.u32 %v3377, 7
        %v3379 = vsub.s32 0, %v3378
        %v3380 = vrot.slane %v3376, %v3379
        %3381 = vmatprep.subr.mxu0 0.0
        %3382 = vmatpush1.msra.mxu0 %v3372
        %3383 = vmatprep.subr.mxu0 0.0
        %3384 = vmatpush1.msra.mxu0 %v3373
        %3385 = vmatprep.subr.mxu0 0.0
        %3386 = vmatpush1.msra.mxu0 %v3374
        %3387 = vmatprep.subr.mxu0 0.0
        %3388 = vmatpush1.msra.mxu0 %v3375
        %3389 = vmatprep.subr.mxu0 0.0
        %3390 = vmatpush1.msra.mxu0 0.0
        %3391 = vmatprep.subr.mxu0 0.0
        %3392 = vmatpush1.msra.mxu0 0.0
        %3393 = vmatprep.subr.mxu0 0.0
        %3394 = vmatpush1.msra.mxu0 0.0
        %3395 = vmatprep.subr.mxu0 0.0
        %3396 = vmatpush1.msra.mxu0 0.0
        %3397 = vmatprep.subr.mxu0 0.0
        %3398 = vmatpush1.msra.mxu0 0.0
        %3399 = vmatprep.subr.mxu0 0.0
        %3400 = vmatpush1.msra.mxu0 0.0
        %3401 = vmatprep.subr.mxu0 0.0
        %3402 = vmatpush1.msra.mxu0 0.0
        %3403 = vmatprep.subr.mxu0 0.0
        %3404 = vmatpush1.msra.mxu0 0.0
        %3405 = vmatprep.subr.mxu0 0.0
        %3406 = vmatpush1.msra.mxu0 0.0
        %3407 = vmatprep.subr.mxu0 0.0
        %3408 = vmatpush1.msra.mxu0 0.0
        %3409 = vmatprep.subr.mxu0 0.0
        %3410 = vmatpush1.msra.mxu0 0.0
        %3411 = vmatprep.subr.mxu0 0.0
        %3412 = vmatpush1.msra.mxu0 0.0
        %3413 = vmatprep.subr.mxu0 0.0
        %3414 = vmatpush1.msra.mxu0 0.0
        %3415 = vmatprep.subr.mxu0 0.0
        %3416 = vmatpush1.msra.mxu0 0.0
        %3417 = vmatprep.subr.mxu0 0.0
        %3418 = vmatpush1.msra.mxu0 0.0
        %3419 = vmatprep.subr.mxu0 0.0
        %3420 = vmatpush1.msra.mxu0 0.0
        %3421 = vmatprep.subr.mxu0 0.0
        %3422 = vmatpush1.msra.mxu0 0.0
        %3423 = vmatprep.subr.mxu0 0.0
        %3424 = vmatpush1.msra.mxu0 0.0
        %3425 = vmatprep.subr.mxu0 0.0
        %3426 = vmatpush1.msra.mxu0 0.0
        %3427 = vmatprep.subr.mxu0 0.0
        %3428 = vmatpush1.msra.mxu0 0.0
        %3429 = vmatprep.subr.mxu0 0.0
        %3430 = vmatpush1.msra.mxu0 0.0
        %3431 = vmatprep.subr.mxu0 0.0
        %3432 = vmatpush1.msra.mxu0 0.0
        %3433 = vmatprep.subr.mxu0 0.0
        %3434 = vmatpush1.msra.mxu0 0.0
        %3435 = vmatprep.subr.mxu0 0.0
        %3436 = vmatpush1.msra.mxu0 0.0
        %3437 = vmatprep.subr.mxu0 0.0
        %3438 = vmatpush1.msra.mxu0 0.0
        %3439 = vmatprep.subr.mxu0 0.0
        %3440 = vmatpush1.msra.mxu0 0.0
        %3441 = vmatprep.subr.mxu0 0.0
        %3442 = vmatpush1.msra.mxu0 0.0
        %3443 = vmatprep.subr.mxu0 0.0
        %3444 = vmatpush1.msra.mxu0 0.0
        %3445 = vmatprep.mubr.f32.mxu0 0.0
        %3446 = vmatmul.mubr.f32.gmra.mrb[0].mxu0 %v2411
        %v3447 = vpop.f32.mrb[0].mxu0
        %v3448 = vadd.f32 %v3380, %v3447
        %v3449 = vpop.f32.mrb[0].mxu0
        %3450 = vdwg.mxu0
        %v3451 = vld [vmem:[#allocation5 + $0x248] sm:$0xff]
        %v3452 = vld [vmem:[#allocation5 + $0x250] sm:$0xff]
        %v3453 = vld [vmem:[#allocation5 + $0x258] sm:$0xff]
        %v3454 = vld [vmem:[#allocation5 + $0x260] sm:$0xff]
        %v3455 = vld [vmem:[#allocation5 + $0x268] sm:$0x1]
        %v3456 = vlaneseq
        %v3457 = vshrl.u32 %v3456, 7
        %v3458 = vsub.s32 0, %v3457
        %v3459 = vrot.slane %v3455, %v3458
        %v3461 = vsel %vm225, %v3371, 0
        %3463 = vmatprep.subr.mxu0 0.0
        %3464 = vmatpush1.msra.mxu0 %v3451
        %3465 = vmatprep.subr.mxu0 0.0
        %3466 = vmatpush1.msra.mxu0 %v3452
        %3467 = vmatprep.subr.mxu0 0.0
        %3468 = vmatpush1.msra.mxu0 %v3453
        %3469 = vmatprep.subr.mxu0 0.0
        %3470 = vmatpush1.msra.mxu0 %v3454
        %3471 = vmatprep.subr.mxu0 0.0
        %3472 = vmatpush1.msra.mxu0 0.0
        %3473 = vmatprep.subr.mxu0 0.0
        %3474 = vmatpush1.msra.mxu0 0.0
        %3475 = vmatprep.subr.mxu0 0.0
        %3476 = vmatpush1.msra.mxu0 0.0
        %3477 = vmatprep.subr.mxu0 0.0
        %3478 = vmatpush1.msra.mxu0 0.0
        %3479 = vmatprep.subr.mxu0 0.0
        %3480 = vmatpush1.msra.mxu0 0.0
        %3481 = vmatprep.subr.mxu0 0.0
        %3482 = vmatpush1.msra.mxu0 0.0
        %3483 = vmatprep.subr.mxu0 0.0
        %3484 = vmatpush1.msra.mxu0 0.0
        %3485 = vmatprep.subr.mxu0 0.0
        %3486 = vmatpush1.msra.mxu0 0.0
        %3487 = vmatprep.subr.mxu0 0.0
        %3488 = vmatpush1.msra.mxu0 0.0
        %3489 = vmatprep.subr.mxu0 0.0
        %3490 = vmatpush1.msra.mxu0 0.0
        %3491 = vmatprep.subr.mxu0 0.0
        %3492 = vmatpush1.msra.mxu0 0.0
        %3493 = vmatprep.subr.mxu0 0.0
        %3494 = vmatpush1.msra.mxu0 0.0
        %3495 = vmatprep.subr.mxu0 0.0
        %3496 = vmatpush1.msra.mxu0 0.0
        %3497 = vmatprep.subr.mxu0 0.0
        %3498 = vmatpush1.msra.mxu0 0.0
        %3499 = vmatprep.subr.mxu0 0.0
        %3500 = vmatpush1.msra.mxu0 0.0
        %3501 = vmatprep.subr.mxu0 0.0
        %3502 = vmatpush1.msra.mxu0 0.0
        %3503 = vmatprep.subr.mxu0 0.0
        %3504 = vmatpush1.msra.mxu0 0.0
        %3505 = vmatprep.subr.mxu0 0.0
        %3506 = vmatpush1.msra.mxu0 0.0
        %3507 = vmatprep.subr.mxu0 0.0
        %3508 = vmatpush1.msra.mxu0 0.0
        %3509 = vmatprep.subr.mxu0 0.0
        %3510 = vmatpush1.msra.mxu0 0.0
        %3511 = vmatprep.subr.mxu0 0.0
        %3512 = vmatpush1.msra.mxu0 0.0
        %3513 = vmatprep.subr.mxu0 0.0
        %3514 = vmatpush1.msra.mxu0 0.0
        %3515 = vmatprep.subr.mxu0 0.0
        %3516 = vmatpush1.msra.mxu0 0.0
        %3517 = vmatprep.subr.mxu0 0.0
        %3518 = vmatpush1.msra.mxu0 0.0
        %3519 = vmatprep.subr.mxu0 0.0
        %3520 = vmatpush1.msra.mxu0 0.0
        %3521 = vmatprep.subr.mxu0 0.0
        %3522 = vmatpush1.msra.mxu0 0.0
        %3523 = vmatprep.subr.mxu0 0.0
        %3524 = vmatpush1.msra.mxu0 0.0
        %3525 = vmatprep.subr.mxu0 0.0
        %3526 = vmatpush1.msra.mxu0 0.0
        %3527 = vmatprep.mubr.f32.mxu0 0.0
        %3528 = vmatmul.mubr.f32.gmra.mrb[0].mxu0 %v3461
        %v3529 = vpop.f32.mrb[0].mxu0
        %v3530 = vadd.f32 %v3459, %v3529
        %v3531 = vpop.f32.mrb[0].mxu0
        %3532 = vdwg.mxu0
        %v3533 = vld [vmem:[#allocation5 + $0x270] sm:$0xff]
        %v3534 = vld [vmem:[#allocation5 + $0x278] sm:$0xff]
        %v3535 = vld [vmem:[#allocation5 + $0x280] sm:$0xff]
        %v3536 = vld [vmem:[#allocation5 + $0x288] sm:$0xff]
        %v3537 = vld [vmem:[#allocation5 + $0x290] sm:$0x1]
        %v3538 = vlaneseq
        %v3539 = vshrl.u32 %v3538, 7
        %v3540 = vsub.s32 0, %v3539
        %v3541 = vrot.slane %v3537, %v3540
        %3542 = vmatprep.subr.mxu0 0.0
        %3543 = vmatpush1.msra.mxu0 %v3533
        %3544 = vmatprep.subr.mxu0 0.0
        %3545 = vmatpush1.msra.mxu0 %v3534
        %3546 = vmatprep.subr.mxu0 0.0
        %3547 = vmatpush1.msra.mxu0 %v3535
        %3548 = vmatprep.subr.mxu0 0.0
        %3549 = vmatpush1.msra.mxu0 %v3536
        %3550 = vmatprep.subr.mxu0 0.0
        %3551 = vmatpush1.msra.mxu0 0.0
        %3552 = vmatprep.subr.mxu0 0.0
        %3553 = vmatpush1.msra.mxu0 0.0
        %3554 = vmatprep.subr.mxu0 0.0
        %3555 = vmatpush1.msra.mxu0 0.0
        %3556 = vmatprep.subr.mxu0 0.0
        %3557 = vmatpush1.msra.mxu0 0.0
        %3558 = vmatprep.subr.mxu0 0.0
        %3559 = vmatpush1.msra.mxu0 0.0
        %3560 = vmatprep.subr.mxu0 0.0
        %3561 = vmatpush1.msra.mxu0 0.0
        %3562 = vmatprep.subr.mxu0 0.0
        %3563 = vmatpush1.msra.mxu0 0.0
        %3564 = vmatprep.subr.mxu0 0.0
        %3565 = vmatpush1.msra.mxu0 0.0
        %3566 = vmatprep.subr.mxu0 0.0
        %3567 = vmatpush1.msra.mxu0 0.0
        %3568 = vmatprep.subr.mxu0 0.0
        %3569 = vmatpush1.msra.mxu0 0.0
        %3570 = vmatprep.subr.mxu0 0.0
        %3571 = vmatpush1.msra.mxu0 0.0
        %3572 = vmatprep.subr.mxu0 0.0
        %3573 = vmatpush1.msra.mxu0 0.0
        %3574 = vmatprep.subr.mxu0 0.0
        %3575 = vmatpush1.msra.mxu0 0.0
        %3576 = vmatprep.subr.mxu0 0.0
        %3577 = vmatpush1.msra.mxu0 0.0
        %3578 = vmatprep.subr.mxu0 0.0
        %3579 = vmatpush1.msra.mxu0 0.0
        %3580 = vmatprep.subr.mxu0 0.0
        %3581 = vmatpush1.msra.mxu0 0.0
        %3582 = vmatprep.subr.mxu0 0.0
        %3583 = vmatpush1.msra.mxu0 0.0
        %3584 = vmatprep.subr.mxu0 0.0
        %3585 = vmatpush1.msra.mxu0 0.0
        %3586 = vmatprep.subr.mxu0 0.0
        %3587 = vmatpush1.msra.mxu0 0.0
        %3588 = vmatprep.subr.mxu0 0.0
        %3589 = vmatpush1.msra.mxu0 0.0
        %3590 = vmatprep.subr.mxu0 0.0
        %3591 = vmatpush1.msra.mxu0 0.0
        %3592 = vmatprep.subr.mxu0 0.0
        %3593 = vmatpush1.msra.mxu0 0.0
        %3594 = vmatprep.subr.mxu0 0.0
        %3595 = vmatpush1.msra.mxu0 0.0
        %3596 = vmatprep.subr.mxu0 0.0
        %3597 = vmatpush1.msra.mxu0 0.0
        %3598 = vmatprep.subr.mxu0 0.0
        %3599 = vmatpush1.msra.mxu0 0.0
        %3600 = vmatprep.subr.mxu0 0.0
        %3601 = vmatpush1.msra.mxu0 0.0
        %3602 = vmatprep.subr.mxu0 0.0
        %3603 = vmatpush1.msra.mxu0 0.0
        %3604 = vmatprep.subr.mxu0 0.0
        %3605 = vmatpush1.msra.mxu0 0.0
        %3606 = vmatprep.mubr.f32.mxu0 0.0
        %3607 = vmatmul.mubr.f32.gmra.mrb[0].mxu0 %v3461
        %v3608 = vpop.f32.mrb[0].mxu0
        %v3609 = vadd.f32 %v3541, %v3608
        %v3610 = vpop.f32.mrb[0].mxu0
        %3611 = vdwg.mxu0
        %v3613 = vsel %vm457, %v3448, 0
        %v3616 = vsel %vm457, %v3530, 0
        %3618 = vmatprep.subr.mxu0 0.0
        %3619 = vmatpush1.xpose.msra.mxu0 %v3616
        %3620 = vmatprep.subr.mxu0 0.0
        %3621 = vmatpush1.xpose.msra.mxu0 0.0
        %3622 = vmatprep.subr.mxu0 0.0
        %3623 = vmatpush1.xpose.msra.mxu0 0.0
        %3624 = vmatprep.subr.mxu0 0.0
        %3625 = vmatpush1.xpose.msra.mxu0 0.0
        %3626 = vmatprep.subr.mxu0 0.0
        %3627 = vmatpush1.xpose.msra.mxu0 0.0
        %3628 = vmatprep.subr.mxu0 0.0
        %3629 = vmatpush1.xpose.msra.mxu0 0.0
        %3630 = vmatprep.subr.mxu0 0.0
        %3631 = vmatpush1.xpose.msra.mxu0 0.0
        %3632 = vmatprep.subr.mxu0 0.0
        %3633 = vmatpush1.xpose.msra.mxu0 0.0
        %3634 = vmatprep.subr.mxu0 0.0
        %3635 = vmatpush1.xpose.msra.mxu0 0.0
        %3636 = vmatprep.subr.mxu0 0.0
        %3637 = vmatpush1.xpose.msra.mxu0 0.0
        %3638 = vmatprep.subr.mxu0 0.0
        %3639 = vmatpush1.xpose.msra.mxu0 0.0
        %3640 = vmatprep.subr.mxu0 0.0
        %3641 = vmatpush1.xpose.msra.mxu0 0.0
        %3642 = vmatprep.subr.mxu0 0.0
        %3643 = vmatpush1.xpose.msra.mxu0 0.0
        %3644 = vmatprep.subr.mxu0 0.0
        %3645 = vmatpush1.xpose.msra.mxu0 0.0
        %3646 = vmatprep.subr.mxu0 0.0
        %3647 = vmatpush1.xpose.msra.mxu0 0.0
        %3648 = vmatprep.subr.mxu0 0.0
        %3649 = vmatpush1.xpose.msra.mxu0 0.0
        %3650 = vmatprep.subr.mxu0 0.0
        %3651 = vmatpush1.xpose.msra.mxu0 0.0
        %3652 = vmatprep.subr.mxu0 0.0
        %3653 = vmatpush1.xpose.msra.mxu0 0.0
        %3654 = vmatprep.subr.mxu0 0.0
        %3655 = vmatpush1.xpose.msra.mxu0 0.0
        %3656 = vmatprep.subr.mxu0 0.0
        %3657 = vmatpush1.xpose.msra.mxu0 0.0
        %3658 = vmatprep.subr.mxu0 0.0
        %3659 = vmatpush1.xpose.msra.mxu0 0.0
        %3660 = vmatprep.subr.mxu0 0.0
        %3661 = vmatpush1.xpose.msra.mxu0 0.0
        %3662 = vmatprep.subr.mxu0 0.0
        %3663 = vmatpush1.xpose.msra.mxu0 0.0
        %3664 = vmatprep.subr.mxu0 0.0
        %3665 = vmatpush1.xpose.msra.mxu0 0.0
        %3666 = vmatprep.subr.mxu0 0.0
        %3667 = vmatpush1.xpose.msra.mxu0 0.0
        %3668 = vmatprep.subr.mxu0 0.0
        %3669 = vmatpush1.xpose.msra.mxu0 0.0
        %3670 = vmatprep.subr.mxu0 0.0
        %3671 = vmatpush1.xpose.msra.mxu0 0.0
        %3672 = vmatprep.subr.mxu0 0.0
        %3673 = vmatpush1.xpose.msra.mxu0 0.0
        %3674 = vmatprep.subr.mxu0 0.0
        %3675 = vmatpush1.xpose.msra.mxu0 0.0
        %3676 = vmatprep.subr.mxu0 0.0
        %3677 = vmatpush1.xpose.msra.mxu0 0.0
        %3678 = vmatprep.subr.mxu0 0.0
        %3679 = vmatpush1.xpose.msra.mxu0 0.0
        %3680 = vmatprep.subr.mxu0 0.0
        %3681 = vmatpush1.xpose.msra.mxu0 0.0
        %3682 = vmatprep.mubr.f32.mxu0 0.0
        %3683 = vmatmul.mubr.f32.gmra.mrb[0].mxu0 %v3613
        %v3684 = vpop.f32.mrb[0].mxu0
        %v3685 = vadd.f32 0.0, %v3684
        %v3686 = vpop.f32.mrb[0].mxu0
        %3687 = vdwg.mxu0
        %v3688 = vmul.f32 %v3685, 0.17677669
        %v3689 = vsel %vm457, %v3688, -inf
        %3690 = vmax.xlane.f32.xlu0 %v3689
        %v3691 = vpop.xlane.xlu0 %3690
        %v3692 = vsub.f32 %v3688, %v3691
        %v3693 = vmul.f32 %v3692, 1.442695
        %v3694 = vpow.pop %v3693
        %v3695 = vsel %vm457, %v3694, 0.0
        %3696 = vadd.xlane.f32.xlu0 %v3695
        %v3697 = vpop.xlane.xlu0 %3696
        %v3698 = vrcp.pop %v3697
        %v3699 = vmul.f32 %v3694, %v3698
        %v3701 = vsel %vm457, %v3699, 0
        %3703 = vmatprep.subr.mxu0 0.0
        %3704 = vmatpush1.msra.mxu0 %v3609
        %3705 = vmatprep.subr.mxu0 0.0
        %3706 = vmatpush1.msra.mxu0 0.0
        %3707 = vmatprep.subr.mxu0 0.0
        %3708 = vmatpush1.msra.mxu0 0.0
        %3709 = vmatprep.subr.mxu0 0.0
        %3710 = vmatpush1.msra.mxu0 0.0
        %3711 = vmatprep.subr.mxu0 0.0
        %3712 = vmatpush1.msra.mxu0 0.0
        %3713 = vmatprep.subr.mxu0 0.0
        %3714 = vmatpush1.msra.mxu0 0.0
        %3715 = vmatprep.subr.mxu0 0.0
        %3716 = vmatpush1.msra.mxu0 0.0
        %3717 = vmatprep.subr.mxu0 0.0
        %3718 = vmatpush1.msra.mxu0 0.0
        %3719 = vmatprep.subr.mxu0 0.0
        %3720 = vmatpush1.msra.mxu0 0.0
        %3721 = vmatprep.subr.mxu0 0.0
        %3722 = vmatpush1.msra.mxu0 0.0
        %3723 = vmatprep.subr.mxu0 0.0
        %3724 = vmatpush1.msra.mxu0 0.0
        %3725 = vmatprep.subr.mxu0 0.0
        %3726 = vmatpush1.msra.mxu0 0.0
        %3727 = vmatprep.subr.mxu0 0.0
        %3728 = vmatpush1.msra.mxu0 0.0
        %3729 = vmatprep.subr.mxu0 0.0
        %3730 = vmatpush1.msra.mxu0 0.0
        %3731 = vmatprep.subr.mxu0 0.0
        %3732 = vmatpush1.msra.mxu0 0.0
        %3733 = vmatprep.subr.mxu0 0.0
        %3734 = vmatpush1.msra.mxu0 0.0
        %3735 = vmatprep.subr.mxu0 0.0
        %3736 = vmatpush1.msra.mxu0 0.0
        %3737 = vmatprep.subr.mxu0 0.0
        %3738 = vmatpush1.msra.mxu0 0.0
        %3739 = vmatprep.subr.mxu0 0.0
        %3740 = vmatpush1.msra.mxu0 0.0
        %3741 = vmatprep.subr.mxu0 0.0
        %3742 = vmatpush1.msra.mxu0 0.0
        %3743 = vmatprep.subr.mxu0 0.0
        %3744 = vmatpush1.msra.mxu0 0.0
        %3745 = vmatprep.subr.mxu0 0.0
        %3746 = vmatpush1.msra.mxu0 0.0
        %3747 = vmatprep.subr.mxu0 0.0
        %3748 = vmatpush1.msra.mxu0 0.0
        %3749 = vmatprep.subr.mxu0 0.0
        %3750 = vmatpush1.msra.mxu0 0.0
        %3751 = vmatprep.subr.mxu0 0.0
        %3752 = vmatpush1.msra.mxu0 0.0
        %3753 = vmatprep.subr.mxu0 0.0
        %3754 = vmatpush1.msra.mxu0 0.0
        %3755 = vmatprep.subr.mxu0 0.0
        %3756 = vmatpush1.msra.mxu0 0.0
        %3757 = vmatprep.subr.mxu0 0.0
        %3758 = vmatpush1.msra.mxu0 0.0
        %3759 = vmatprep.subr.mxu0 0.0
        %3760 = vmatpush1.msra.mxu0 0.0
        %3761 = vmatprep.subr.mxu0 0.0
        %3762 = vmatpush1.msra.mxu0 0.0
        %3763 = vmatprep.subr.mxu0 0.0
        %3764 = vmatpush1.msra.mxu0 0.0
        %3765 = vmatprep.subr.mxu0 0.0
        %3766 = vmatpush1.msra.mxu0 0.0
        %3767 = vmatprep.mubr.f32.mxu0 0.0
        %3768 = vmatmul.mubr.f32.gmra.mrb[0].mxu0 %v3701
        %v3769 = vpop.f32.mrb[0].mxu0
        %v3770 = vadd.f32 0.0, %v3769
        %v3771 = vpop.f32.mrb[0].mxu0
        %3772 = vdwg.mxu0
        %3773 = vrot.lane.b32.xlu0 %v3448, 120
        %v3774 = vpop.permute.xlu0 %3773
        %3775 = vrot.lane.b32.xlu0 %v3530, 120
        %v3776 = vpop.permute.xlu0 %3775
        %v3777 = vsel %vm457, %v3774, 0
        %v3779 = vsel %vm457, %v3776, 0
        %3781 = vmatprep.subr.mxu0 0.0
        %3782 = vmatpush1.xpose.msra.mxu0 %v3779
        %3783 = vmatprep.subr.mxu0 0.0
        %3784 = vmatpush1.xpose.msra.mxu0 0.0
        %3785 = vmatprep.subr.mxu0 0.0
        %3786 = vmatpush1.xpose.msra.mxu0 0.0
        %3787 = vmatprep.subr.mxu0 0.0
        %3788 = vmatpush1.xpose.msra.mxu0 0.0
        %3789 = vmatprep.subr.mxu0 0.0
        %3790 = vmatpush1.xpose.msra.mxu0 0.0
        %3791 = vmatprep.subr.mxu0 0.0
        %3792 = vmatpush1.xpose.msra.mxu0 0.0
        %3793 = vmatprep.subr.mxu0 0.0
        %3794 = vmatpush1.xpose.msra.mxu0 0.0
        %3795 = vmatprep.subr.mxu0 0.0
        %3796 = vmatpush1.xpose.msra.mxu0 0.0
        %3797 = vmatprep.subr.mxu0 0.0
        %3798 = vmatpush1.xpose.msra.mxu0 0.0
        %3799 = vmatprep.subr.mxu0 0.0
        %3800 = vmatpush1.xpose.msra.mxu0 0.0
        %3801 = vmatprep.subr.mxu0 0.0
        %3802 = vmatpush1.xpose.msra.mxu0 0.0
        %3803 = vmatprep.subr.mxu0 0.0
        %3804 = vmatpush1.xpose.msra.mxu0 0.0
        %3805 = vmatprep.subr.mxu0 0.0
        %3806 = vmatpush1.xpose.msra.mxu0 0.0
        %3807 = vmatprep.subr.mxu0 0.0
        %3808 = vmatpush1.xpose.msra.mxu0 0.0
        %3809 = vmatprep.subr.mxu0 0.0
        %3810 = vmatpush1.xpose.msra.mxu0 0.0
        %3811 = vmatprep.subr.mxu0 0.0
        %3812 = vmatpush1.xpose.msra.mxu0 0.0
        %3813 = vmatprep.subr.mxu0 0.0
        %3814 = vmatpush1.xpose.msra.mxu0 0.0
        %3815 = vmatprep.subr.mxu0 0.0
        %3816 = vmatpush1.xpose.msra.mxu0 0.0
        %3817 = vmatprep.subr.mxu0 0.0
        %3818 = vmatpush1.xpose.msra.mxu0 0.0
        %3819 = vmatprep.subr.mxu0 0.0
        %3820 = vmatpush1.xpose.msra.mxu0 0.0
        %3821 = vmatprep.subr.mxu0 0.0
        %3822 = vmatpush1.xpose.msra.mxu0 0.0
        %3823 = vmatprep.subr.mxu0 0.0
        %3824 = vmatpush1.xpose.msra.mxu0 0.0
        %3825 = vmatprep.subr.mxu0 0.0
        %3826 = vmatpush1.xpose.msra.mxu0 0.0
        %3827 = vmatprep.subr.mxu0 0.0
        %3828 = vmatpush1.xpose.msra.mxu0 0.0
        %3829 = vmatprep.subr.mxu0 0.0
        %3830 = vmatpush1.xpose.msra.mxu0 0.0
        %3831 = vmatprep.subr.mxu0 0.0
        %3832 = vmatpush1.xpose.msra.mxu0 0.0
        %3833 = vmatprep.subr.mxu0 0.0
        %3834 = vmatpush1.xpose.msra.mxu0 0.0
        %3835 = vmatprep.subr.mxu0 0.0
        %3836 = vmatpush1.xpose.msra.mxu0 0.0
        %3837 = vmatprep.subr.mxu0 0.0
        %3838 = vmatpush1.xpose.msra.mxu0 0.0
        %3839 = vmatprep.subr.mxu0 0.0
        %3840 = vmatpush1.xpose.msra.mxu0 0.0
        %3841 = vmatprep.subr.mxu0 0.0
        %3842 = vmatpush1.xpose.msra.mxu0 0.0
        %3843 = vmatprep.subr.mxu0 0.0
        %3844 = vmatpush1.xpose.msra.mxu0 0.0
        %3845 = vmatprep.mubr.f32.mxu0 0.0
        %3846 = vmatmul.mubr.f32.gmra.mrb[0].mxu0 %v3777
        %v3847 = vpop.f32.mrb[0].mxu0
        %v3848 = vadd.f32 0.0, %v3847
        %v3849 = vpop.f32.mrb[0].mxu0
        %3850 = vdwg.mxu0
        %v3851 = vmul.f32 %v3848, 0.17677669
        %v3852 = vsel %vm457, %v3851, -inf
        %3853 = vmax.xlane.f32.xlu0 %v3852
        %v3854 = vpop.xlane.xlu0 %3853
        %v3855 = vsub.f32 %v3851, %v3854
        %v3856 = vmul.f32 %v3855, 1.442695
        %v3857 = vpow.pop %v3856
        %v3858 = vsel %vm457, %v3857, 0.0
        %3859 = vadd.xlane.f32.xlu0 %v3858
        %v3860 = vpop.xlane.xlu0 %3859
        %v3861 = vrcp.pop %v3860
        %v3862 = vmul.f32 %v3857, %v3861
        %3864 = vrot.lane.b32.xlu0 %v3609, 120
        %v3865 = vpop.permute.xlu0 %3864
        %v3868 = vsel %vm457, %v3862, 0
        %3870 = vmatprep.subr.mxu0 0.0
        %3871 = vmatpush1.msra.mxu0 %v3865
        %3872 = vmatprep.subr.mxu0 0.0
        %3873 = vmatpush1.msra.mxu0 0.0
        %3874 = vmatprep.subr.mxu0 0.0
        %3875 = vmatpush1.msra.mxu0 0.0
        %3876 = vmatprep.subr.mxu0 0.0
        %3877 = vmatpush1.msra.mxu0 0.0
        %3878 = vmatprep.subr.mxu0 0.0
        %3879 = vmatpush1.msra.mxu0 0.0
        %3880 = vmatprep.subr.mxu0 0.0
        %3881 = vmatpush1.msra.mxu0 0.0
        %3882 = vmatprep.subr.mxu0 0.0
        %3883 = vmatpush1.msra.mxu0 0.0
        %3884 = vmatprep.subr.mxu0 0.0
        %3885 = vmatpush1.msra.mxu0 0.0
        %3886 = vmatprep.subr.mxu0 0.0
        %3887 = vmatpush1.msra.mxu0 0.0
        %3888 = vmatprep.subr.mxu0 0.0
        %3889 = vmatpush1.msra.mxu0 0.0
        %3890 = vmatprep.subr.mxu0 0.0
        %3891 = vmatpush1.msra.mxu0 0.0
        %3892 = vmatprep.subr.mxu0 0.0
        %3893 = vmatpush1.msra.mxu0 0.0
        %3894 = vmatprep.subr.mxu0 0.0
        %3895 = vmatpush1.msra.mxu0 0.0
        %3896 = vmatprep.subr.mxu0 0.0
        %3897 = vmatpush1.msra.mxu0 0.0
        %3898 = vmatprep.subr.mxu0 0.0
        %3899 = vmatpush1.msra.mxu0 0.0
        %3900 = vmatprep.subr.mxu0 0.0
        %3901 = vmatpush1.msra.mxu0 0.0
        %3902 = vmatprep.subr.mxu0 0.0
        %3903 = vmatpush1.msra.mxu0 0.0
        %3904 = vmatprep.subr.mxu0 0.0
        %3905 = vmatpush1.msra.mxu0 0.0
        %3906 = vmatprep.subr.mxu0 0.0
        %3907 = vmatpush1.msra.mxu0 0.0
        %3908 = vmatprep.subr.mxu0 0.0
        %3909 = vmatpush1.msra.mxu0 0.0
        %3910 = vmatprep.subr.mxu0 0.0
        %3911 = vmatpush1.msra.mxu0 0.0
        %3912 = vmatprep.subr.mxu0 0.0
        %3913 = vmatpush1.msra.mxu0 0.0
        %3914 = vmatprep.subr.mxu0 0.0
        %3915 = vmatpush1.msra.mxu0 0.0
        %3916 = vmatprep.subr.mxu0 0.0
        %3917 = vmatpush1.msra.mxu0 0.0
        %3918 = vmatprep.subr.mxu0 0.0
        %3919 = vmatpush1.msra.mxu0 0.0
        %3920 = vmatprep.subr.mxu0 0.0
        %3921 = vmatpush1.msra.mxu0 0.0
        %3922 = vmatprep.subr.mxu0 0.0
        %3923 = vmatpush1.msra.mxu0 0.0
        %3924 = vmatprep.subr.mxu0 0.0
        %3925 = vmatpush1.msra.mxu0 0.0
        %3926 = vmatprep.subr.mxu0 0.0
        %3927 = vmatpush1.msra.mxu0 0.0
        %3928 = vmatprep.subr.mxu0 0.0
        %3929 = vmatpush1.msra.mxu0 0.0
        %3930 = vmatprep.subr.mxu0 0.0
        %3931 = vmatpush1.msra.mxu0 0.0
        %3932 = vmatprep.subr.mxu0 0.0
        %3933 = vmatpush1.msra.mxu0 0.0
        %3934 = vmatprep.mubr.f32.mxu0 0.0
        %3935 = vmatmul.mubr.f32.gmra.mrb[0].mxu0 %v3868
        %v3936 = vpop.f32.mrb[0].mxu0
        %v3937 = vadd.f32 0.0, %v3936
        %v3938 = vpop.f32.mrb[0].mxu0
        %3939 = vdwg.mxu0
        %3940 = vrot.lane.b32.xlu0 %v3448, 112
        %v3941 = vpop.permute.xlu0 %3940
        %3942 = vrot.lane.b32.xlu0 %v3530, 112
        %v3943 = vpop.permute.xlu0 %3942
        %v3944 = vsel %vm457, %v3941, 0
        %v3946 = vsel %vm457, %v3943, 0
        %3948 = vmatprep.subr.mxu0 0.0
        %3949 = vmatpush1.xpose.msra.mxu0 %v3946
        %3950 = vmatprep.subr.mxu0 0.0
        %3951 = vmatpush1.xpose.msra.mxu0 0.0
        %3952 = vmatprep.subr.mxu0 0.0
        %3953 = vmatpush1.xpose.msra.mxu0 0.0
        %3954 = vmatprep.subr.mxu0 0.0
        %3955 = vmatpush1.xpose.msra.mxu0 0.0
        %3956 = vmatprep.subr.mxu0 0.0
        %3957 = vmatpush1.xpose.msra.mxu0 0.0
        %3958 = vmatprep.subr.mxu0 0.0
        %3959 = vmatpush1.xpose.msra.mxu0 0.0
        %3960 = vmatprep.subr.mxu0 0.0
        %3961 = vmatpush1.xpose.msra.mxu0 0.0
        %3962 = vmatprep.subr.mxu0 0.0
        %3963 = vmatpush1.xpose.msra.mxu0 0.0
        %3964 = vmatprep.subr.mxu0 0.0
        %3965 = vmatpush1.xpose.msra.mxu0 0.0
        %3966 = vmatprep.subr.mxu0 0.0
        %3967 = vmatpush1.xpose.msra.mxu0 0.0
        %3968 = vmatprep.subr.mxu0 0.0
        %3969 = vmatpush1.xpose.msra.mxu0 0.0
        %3970 = vmatprep.subr.mxu0 0.0
        %3971 = vmatpush1.xpose.msra.mxu0 0.0
        %3972 = vmatprep.subr.mxu0 0.0
        %3973 = vmatpush1.xpose.msra.mxu0 0.0
        %3974 = vmatprep.subr.mxu0 0.0
        %3975 = vmatpush1.xpose.msra.mxu0 0.0
        %3976 = vmatprep.subr.mxu0 0.0
        %3977 = vmatpush1.xpose.msra.mxu0 0.0
        %3978 = vmatprep.subr.mxu0 0.0
        %3979 = vmatpush1.xpose.msra.mxu0 0.0
        %3980 = vmatprep.subr.mxu0 0.0
        %3981 = vmatpush1.xpose.msra.mxu0 0.0
        %3982 = vmatprep.subr.mxu0 0.0
        %3983 = vmatpush1.xpose.msra.mxu0 0.0
        %3984 = vmatprep.subr.mxu0 0.0
        %3985 = vmatpush1.xpose.msra.mxu0 0.0
        %3986 = vmatprep.subr.mxu0 0.0
        %3987 = vmatpush1.xpose.msra.mxu0 0.0
        %3988 = vmatprep.subr.mxu0 0.0
        %3989 = vmatpush1.xpose.msra.mxu0 0.0
        %3990 = vmatprep.subr.mxu0 0.0
        %3991 = vmatpush1.xpose.msra.mxu0 0.0
        %3992 = vmatprep.subr.mxu0 0.0
        %3993 = vmatpush1.xpose.msra.mxu0 0.0
        %3994 = vmatprep.subr.mxu0 0.0
        %3995 = vmatpush1.xpose.msra.mxu0 0.0
        %3996 = vmatprep.subr.mxu0 0.0
        %3997 = vmatpush1.xpose.msra.mxu0 0.0
        %3998 = vmatprep.subr.mxu0 0.0
        %3999 = vmatpush1.xpose.msra.mxu0 0.0
        %4000 = vmatprep.subr.mxu0 0.0
        %4001 = vmatpush1.xpose.msra.mxu0 0.0
        %4002 = vmatprep.subr.mxu0 0.0
        %4003 = vmatpush1.xpose.msra.mxu0 0.0
        %4004 = vmatprep.subr.mxu0 0.0
        %4005 = vmatpush1.xpose.msra.mxu0 0.0
        %4006 = vmatprep.subr.mxu0 0.0
        %4007 = vmatpush1.xpose.msra.mxu0 0.0
        %4008 = vmatprep.subr.mxu0 0.0
        %4009 = vmatpush1.xpose.msra.mxu0 0.0
        %4010 = vmatprep.subr.mxu0 0.0
        %4011 = vmatpush1.xpose.msra.mxu0 0.0
        %4012 = vmatprep.mubr.f32.mxu0 0.0
        %4013 = vmatmul.mubr.f32.gmra.mrb[0].mxu0 %v3944
        %v4014 = vpop.f32.mrb[0].mxu0
        %v4015 = vadd.f32 0.0, %v4014
        %v4016 = vpop.f32.mrb[0].mxu0
        %4017 = vdwg.mxu0
        %v4018 = vmul.f32 %v4015, 0.17677669
        %v4019 = vsel %vm457, %v4018, -inf
        %4020 = vmax.xlane.f32.xlu0 %v4019
        %v4021 = vpop.xlane.xlu0 %4020
        %v4022 = vsub.f32 %v4018, %v4021
        %v4023 = vmul.f32 %v4022, 1.442695
        %v4024 = vpow.pop %v4023
        %v4025 = vsel %vm457, %v4024, 0.0
        %4026 = vadd.xlane.f32.xlu0 %v4025
        %v4027 = vpop.xlane.xlu0 %4026
        %v4028 = vrcp.pop %v4027
        %v4029 = vmul.f32 %v4024, %v4028
        %4030 = vrot.lane.b32.xlu0 %v3609, 112
        %v4031 = vpop.permute.xlu0 %4030
        %v4034 = vsel %vm457, %v4029, 0
        %4036 = vmatprep.subr.mxu0 0.0
        %4037 = vmatpush1.msra.mxu0 %v4031
        %4038 = vmatprep.subr.mxu0 0.0
        %4039 = vmatpush1.msra.mxu0 0.0
        %4040 = vmatprep.subr.mxu0 0.0
        %4041 = vmatpush1.msra.mxu0 0.0
        %4042 = vmatprep.subr.mxu0 0.0
        %4043 = vmatpush1.msra.mxu0 0.0
        %4044 = vmatprep.subr.mxu0 0.0
        %4045 = vmatpush1.msra.mxu0 0.0
        %4046 = vmatprep.subr.mxu0 0.0
        %4047 = vmatpush1.msra.mxu0 0.0
        %4048 = vmatprep.subr.mxu0 0.0
        %4049 = vmatpush1.msra.mxu0 0.0
        %4050 = vmatprep.subr.mxu0 0.0
        %4051 = vmatpush1.msra.mxu0 0.0
        %4052 = vmatprep.subr.mxu0 0.0
        %4053 = vmatpush1.msra.mxu0 0.0
        %4054 = vmatprep.subr.mxu0 0.0
        %4055 = vmatpush1.msra.mxu0 0.0
        %4056 = vmatprep.subr.mxu0 0.0
        %4057 = vmatpush1.msra.mxu0 0.0
        %4058 = vmatprep.subr.mxu0 0.0
        %4059 = vmatpush1.msra.mxu0 0.0
        %4060 = vmatprep.subr.mxu0 0.0
        %4061 = vmatpush1.msra.mxu0 0.0
        %4062 = vmatprep.subr.mxu0 0.0
        %4063 = vmatpush1.msra.mxu0 0.0
        %4064 = vmatprep.subr.mxu0 0.0
        %4065 = vmatpush1.msra.mxu0 0.0
        %4066 = vmatprep.subr.mxu0 0.0
        %4067 = vmatpush1.msra.mxu0 0.0
        %4068 = vmatprep.subr.mxu0 0.0
        %4069 = vmatpush1.msra.mxu0 0.0
        %4070 = vmatprep.subr.mxu0 0.0
        %4071 = vmatpush1.msra.mxu0 0.0
        %4072 = vmatprep.subr.mxu0 0.0
        %4073 = vmatpush1.msra.mxu0 0.0
        %4074 = vmatprep.subr.mxu0 0.0
        %4075 = vmatpush1.msra.mxu0 0.0
        %4076 = vmatprep.subr.mxu0 0.0
        %4077 = vmatpush1.msra.mxu0 0.0
        %4078 = vmatprep.subr.mxu0 0.0
        %4079 = vmatpush1.msra.mxu0 0.0
        %4080 = vmatprep.subr.mxu0 0.0
        %4081 = vmatpush1.msra.mxu0 0.0
        %4082 = vmatprep.subr.mxu0 0.0
        %4083 = vmatpush1.msra.mxu0 0.0
        %4084 = vmatprep.subr.mxu0 0.0
        %4085 = vmatpush1.msra.mxu0 0.0
        %4086 = vmatprep.subr.mxu0 0.0
        %4087 = vmatpush1.msra.mxu0 0.0
        %4088 = vmatprep.subr.mxu0 0.0
        %4089 = vmatpush1.msra.mxu0 0.0
        %4090 = vmatprep.subr.mxu0 0.0
        %4091 = vmatpush1.msra.mxu0 0.0
        %4092 = vmatprep.subr.mxu0 0.0
        %4093 = vmatpush1.msra.mxu0 0.0
        %4094 = vmatprep.subr.mxu0 0.0
        %4095 = vmatpush1.msra.mxu0 0.0
        %4096 = vmatprep.subr.mxu0 0.0
        %4097 = vmatpush1.msra.mxu0 0.0
        %4098 = vmatprep.subr.mxu0 0.0
        %4099 = vmatpush1.msra.mxu0 0.0
        %4100 = vmatprep.mubr.f32.mxu0 0.0
        %4101 = vmatmul.mubr.f32.gmra.mrb[0].mxu0 %v4034
        %v4102 = vpop.f32.mrb[0].mxu0
        %v4103 = vadd.f32 0.0, %v4102
        %v4104 = vpop.f32.mrb[0].mxu0
        %4105 = vdwg.mxu0
        %4106 = vrot.lane.b32.xlu0 %v3448, 104
        %v4107 = vpop.permute.xlu0 %4106
        %4108 = vrot.lane.b32.xlu0 %v3530, 104
        %v4109 = vpop.permute.xlu0 %4108
        %v4110 = vsel %vm457, %v4107, 0
        %v4112 = vsel %vm457, %v4109, 0
        %4114 = vmatprep.subr.mxu0 0.0
        %4115 = vmatpush1.xpose.msra.mxu0 %v4112
        %4116 = vmatprep.subr.mxu0 0.0
        %4117 = vmatpush1.xpose.msra.mxu0 0.0
        %4118 = vmatprep.subr.mxu0 0.0
        %4119 = vmatpush1.xpose.msra.mxu0 0.0
        %4120 = vmatprep.subr.mxu0 0.0
        %4121 = vmatpush1.xpose.msra.mxu0 0.0
        %4122 = vmatprep.subr.mxu0 0.0
        %4123 = vmatpush1.xpose.msra.mxu0 0.0
        %4124 = vmatprep.subr.mxu0 0.0
        %4125 = vmatpush1.xpose.msra.mxu0 0.0
        %4126 = vmatprep.subr.mxu0 0.0
        %4127 = vmatpush1.xpose.msra.mxu0 0.0
        %4128 = vmatprep.subr.mxu0 0.0
        %4129 = vmatpush1.xpose.msra.mxu0 0.0
        %4130 = vmatprep.subr.mxu0 0.0
        %4131 = vmatpush1.xpose.msra.mxu0 0.0
        %4132 = vmatprep.subr.mxu0 0.0
        %4133 = vmatpush1.xpose.msra.mxu0 0.0
        %4134 = vmatprep.subr.mxu0 0.0
        %4135 = vmatpush1.xpose.msra.mxu0 0.0
        %4136 = vmatprep.subr.mxu0 0.0
        %4137 = vmatpush1.xpose.msra.mxu0 0.0
        %4138 = vmatprep.subr.mxu0 0.0
        %4139 = vmatpush1.xpose.msra.mxu0 0.0
        %4140 = vmatprep.subr.mxu0 0.0
        %4141 = vmatpush1.xpose.msra.mxu0 0.0
        %4142 = vmatprep.subr.mxu0 0.0
        %4143 = vmatpush1.xpose.msra.mxu0 0.0
        %4144 = vmatprep.subr.mxu0 0.0
        %4145 = vmatpush1.xpose.msra.mxu0 0.0
        %4146 = vmatprep.subr.mxu0 0.0
        %4147 = vmatpush1.xpose.msra.mxu0 0.0
        %4148 = vmatprep.subr.mxu0 0.0
        %4149 = vmatpush1.xpose.msra.mxu0 0.0
        %4150 = vmatprep.subr.mxu0 0.0
        %4151 = vmatpush1.xpose.msra.mxu0 0.0
        %4152 = vmatprep.subr.mxu0 0.0
        %4153 = vmatpush1.xpose.msra.mxu0 0.0
        %4154 = vmatprep.subr.mxu0 0.0
        %4155 = vmatpush1.xpose.msra.mxu0 0.0
        %4156 = vmatprep.subr.mxu0 0.0
        %4157 = vmatpush1.xpose.msra.mxu0 0.0
        %4158 = vmatprep.subr.mxu0 0.0
        %4159 = vmatpush1.xpose.msra.mxu0 0.0
        %4160 = vmatprep.subr.mxu0 0.0
        %4161 = vmatpush1.xpose.msra.mxu0 0.0
        %4162 = vmatprep.subr.mxu0 0.0
        %4163 = vmatpush1.xpose.msra.mxu0 0.0
        %4164 = vmatprep.subr.mxu0 0.0
        %4165 = vmatpush1.xpose.msra.mxu0 0.0
        %4166 = vmatprep.subr.mxu0 0.0
        %4167 = vmatpush1.xpose.msra.mxu0 0.0
        %4168 = vmatprep.subr.mxu0 0.0
        %4169 = vmatpush1.xpose.msra.mxu0 0.0
        %4170 = vmatprep.subr.mxu0 0.0
        %4171 = vmatpush1.xpose.msra.mxu0 0.0
        %4172 = vmatprep.subr.mxu0 0.0
        %4173 = vmatpush1.xpose.msra.mxu0 0.0
        %4174 = vmatprep.subr.mxu0 0.0
        %4175 = vmatpush1.xpose.msra.mxu0 0.0
        %4176 = vmatprep.subr.mxu0 0.0
        %4177 = vmatpush1.xpose.msra.mxu0 0.0
        %4178 = vmatprep.mubr.f32.mxu0 0.0
        %4179 = vmatmul.mubr.f32.gmra.mrb[0].mxu0 %v4110
        %v4180 = vpop.f32.mrb[0].mxu0
        %v4181 = vadd.f32 0.0, %v4180
        %v4182 = vpop.f32.mrb[0].mxu0
        %4183 = vdwg.mxu0
        %v4184 = vmul.f32 %v4181, 0.17677669
        %v4185 = vsel %vm457, %v4184, -inf
        %4186 = vmax.xlane.f32.xlu0 %v4185
        %v4187 = vpop.xlane.xlu0 %4186
        %v4188 = vsub.f32 %v4184, %v4187
        %v4189 = vmul.f32 %v4188, 1.442695
        %v4190 = vpow.pop %v4189
        %v4191 = vsel %vm457, %v4190, 0.0
        %4192 = vadd.xlane.f32.xlu0 %v4191
        %v4193 = vpop.xlane.xlu0 %4192
        %v4194 = vrcp.pop %v4193
        %v4195 = vmul.f32 %v4190, %v4194
        %4196 = vrot.lane.b32.xlu0 %v3609, 104
        %v4197 = vpop.permute.xlu0 %4196
        %v4200 = vsel %vm457, %v4195, 0
        %4202 = vmatprep.subr.mxu0 0.0
        %4203 = vmatpush1.msra.mxu0 %v4197
        %4204 = vmatprep.subr.mxu0 0.0
        %4205 = vmatpush1.msra.mxu0 0.0
        %4206 = vmatprep.subr.mxu0 0.0
        %4207 = vmatpush1.msra.mxu0 0.0
        %4208 = vmatprep.subr.mxu0 0.0
        %4209 = vmatpush1.msra.mxu0 0.0
        %4210 = vmatprep.subr.mxu0 0.0
        %4211 = vmatpush1.msra.mxu0 0.0
        %4212 = vmatprep.subr.mxu0 0.0
        %4213 = vmatpush1.msra.mxu0 0.0
        %4214 = vmatprep.subr.mxu0 0.0
        %4215 = vmatpush1.msra.mxu0 0.0
        %4216 = vmatprep.subr.mxu0 0.0
        %4217 = vmatpush1.msra.mxu0 0.0
        %4218 = vmatprep.subr.mxu0 0.0
        %4219 = vmatpush1.msra.mxu0 0.0
        %4220 = vmatprep.subr.mxu0 0.0
        %4221 = vmatpush1.msra.mxu0 0.0
        %4222 = vmatprep.subr.mxu0 0.0
        %4223 = vmatpush1.msra.mxu0 0.0
        %4224 = vmatprep.subr.mxu0 0.0
        %4225 = vmatpush1.msra.mxu0 0.0
        %4226 = vmatprep.subr.mxu0 0.0
        %4227 = vmatpush1.msra.mxu0 0.0
        %4228 = vmatprep.subr.mxu0 0.0
        %4229 = vmatpush1.msra.mxu0 0.0
        %4230 = vmatprep.subr.mxu0 0.0
        %4231 = vmatpush1.msra.mxu0 0.0
        %4232 = vmatprep.subr.mxu0 0.0
        %4233 = vmatpush1.msra.mxu0 0.0
        %4234 = vmatprep.subr.mxu0 0.0
        %4235 = vmatpush1.msra.mxu0 0.0
        %4236 = vmatprep.subr.mxu0 0.0
        %4237 = vmatpush1.msra.mxu0 0.0
        %4238 = vmatprep.subr.mxu0 0.0
        %4239 = vmatpush1.msra.mxu0 0.0
        %4240 = vmatprep.subr.mxu0 0.0
        %4241 = vmatpush1.msra.mxu0 0.0
        %4242 = vmatprep.subr.mxu0 0.0
        %4243 = vmatpush1.msra.mxu0 0.0
        %4244 = vmatprep.subr.mxu0 0.0
        %4245 = vmatpush1.msra.mxu0 0.0
        %4246 = vmatprep.subr.mxu0 0.0
        %4247 = vmatpush1.msra.mxu0 0.0
        %4248 = vmatprep.subr.mxu0 0.0
        %4249 = vmatpush1.msra.mxu0 0.0
        %4250 = vmatprep.subr.mxu0 0.0
        %4251 = vmatpush1.msra.mxu0 0.0
        %4252 = vmatprep.subr.mxu0 0.0
        %4253 = vmatpush1.msra.mxu0 0.0
        %4254 = vmatprep.subr.mxu0 0.0
        %4255 = vmatpush1.msra.mxu0 0.0
        %4256 = vmatprep.subr.mxu0 0.0
        %4257 = vmatpush1.msra.mxu0 0.0
        %4258 = vmatprep.subr.mxu0 0.0
        %4259 = vmatpush1.msra.mxu0 0.0
        %4260 = vmatprep.subr.mxu0 0.0
        %4261 = vmatpush1.msra.mxu0 0.0
        %4262 = vmatprep.subr.mxu0 0.0
        %4263 = vmatpush1.msra.mxu0 0.0
        %4264 = vmatprep.subr.mxu0 0.0
        %4265 = vmatpush1.msra.mxu0 0.0
        %4266 = vmatprep.mubr.f32.mxu0 0.0
        %4267 = vmatmul.mubr.f32.gmra.mrb[0].mxu0 %v4200
        %v4268 = vpop.f32.mrb[0].mxu0
        %v4269 = vadd.f32 0.0, %v4268
        %v4270 = vpop.f32.mrb[0].mxu0
        %4271 = vdwg.mxu0
        %4273 = vrot.lane.b32.xlu0 %v3937, 8
        %v4274 = vpop.permute.xlu0 %4273
        %4277 = vrot.lane.b32.xlu0 %v4103, 16
        %v4278 = vpop.permute.xlu0 %4277
        %4281 = vrot.lane.b32.xlu0 %v4269, 24
        %v4282 = vpop.permute.xlu0 %4281
        %v4284 = vsel %vm457, %v3770, %v4274
        %v4285 = vsel %vm306, %v4284, %v4278
        %v4286 = vsel %vm1132, %v4285, %v4282
        %v4287 = vadd.f32 %v3448, %v4286
        %v4288 = vld [vmem:[#allocation5 + $0x2c0] sm:$0x1]
        %v4289 = vld [vmem:[#allocation5 + $0x2c8] sm:$0x1]
        %v4290 = vsel %vm225, %v4287, 0.0
        %4291 = vadd.xlane.f32.xlu0 %v4290
        %v4292 = vpop.xlane.xlu0 %4291
        %v4293 = vmul.f32 %v4292, %v1140
        %v4294 = vsub.f32 %v4287, %v4293
        %v4295 = vmul.f32 %v4294, %v4294
        %v4296 = vsel %vm225, %v4295, 0.0
        %4297 = vadd.xlane.f32.xlu0 %v4296
        %v4298 = vpop.xlane.xlu0 %4297
        %v4299 = vmul.f32 %v4298, %v1140
        %v4300 = vadd.f32 %v4299, 1e-05
        %v4301 = vrsqrt.pop %v4300
        %v4302 = vmul.f32 %v4294, %v4301
        %v4303 = vlaneseq
        %v4304 = vshrl.u32 %v4303, 7
        %v4305 = vsub.s32 0, %v4304
        %v4306 = vrot.slane %v4288, %v4305
        %v4307 = vmul.f32 %v4302, %v4306
        %v4308 = vlaneseq
        %v4309 = vshrl.u32 %v4308, 7
        %v4310 = vsub.s32 0, %v4309
        %v4311 = vrot.slane %v4289, %v4310
        %v4312 = vadd.f32 %v4307, %v4311
        %v4313 = vld [vmem:[#allocation5 + $0x298] sm:$0xff]
        %v4314 = vld [vmem:[#allocation5 + $0x2a0] sm:$0xff]
        %v4315 = vld [vmem:[#allocation5 + $0x2a8] sm:$0xff]
        %v4316 = vld [vmem:[#allocation5 + $0x2b0] sm:$0xff]
        %v4317 = vld [vmem:[#allocation5 + $0x2b8] sm:$0x1]
        %v4318 = vlaneseq
        %v4319 = vshrl.u32 %v4318, 7
        %v4320 = vsub.s32 0, %v4319
        %v4321 = vrot.slane %v4317, %v4320
        %v4323 = vsel %vm225, %v4312, 0
        %4325 = vmatprep.subr.mxu0 0.0
        %4326 = vmatpush1.msra.mxu0 %v4313
        %4327 = vmatprep.subr.mxu0 0.0
        %4328 = vmatpush1.msra.mxu0 %v4314
        %4329 = vmatprep.subr.mxu0 0.0
        %4330 = vmatpush1.msra.mxu0 %v4315
        %4331 = vmatprep.subr.mxu0 0.0
        %4332 = vmatpush1.msra.mxu0 %v4316
        %4333 = vmatprep.subr.mxu0 0.0
        %4334 = vmatpush1.msra.mxu0 0.0
        %4335 = vmatprep.subr.mxu0 0.0
        %4336 = vmatpush1.msra.mxu0 0.0
        %4337 = vmatprep.subr.mxu0 0.0
        %4338 = vmatpush1.msra.mxu0 0.0
        %4339 = vmatprep.subr.mxu0 0.0
        %4340 = vmatpush1.msra.mxu0 0.0
        %4341 = vmatprep.subr.mxu0 0.0
        %4342 = vmatpush1.msra.mxu0 0.0
        %4343 = vmatprep.subr.mxu0 0.0
        %4344 = vmatpush1.msra.mxu0 0.0
        %4345 = vmatprep.subr.mxu0 0.0
        %4346 = vmatpush1.msra.mxu0 0.0
        %4347 = vmatprep.subr.mxu0 0.0
        %4348 = vmatpush1.msra.mxu0 0.0
        %4349 = vmatprep.subr.mxu0 0.0
        %4350 = vmatpush1.msra.mxu0 0.0
        %4351 = vmatprep.subr.mxu0 0.0
        %4352 = vmatpush1.msra.mxu0 0.0
        %4353 = vmatprep.subr.mxu0 0.0
        %4354 = vmatpush1.msra.mxu0 0.0
        %4355 = vmatprep.subr.mxu0 0.0
        %4356 = vmatpush1.msra.mxu0 0.0
        %4357 = vmatprep.subr.mxu0 0.0
        %4358 = vmatpush1.msra.mxu0 0.0
        %4359 = vmatprep.subr.mxu0 0.0
        %4360 = vmatpush1.msra.mxu0 0.0
        %4361 = vmatprep.subr.mxu0 0.0
        %4362 = vmatpush1.msra.mxu0 0.0
        %4363 = vmatprep.subr.mxu0 0.0
        %4364 = vmatpush1.msra.mxu0 0.0
        %4365 = vmatprep.subr.mxu0 0.0
        %4366 = vmatpush1.msra.mxu0 0.0
        %4367 = vmatprep.subr.mxu0 0.0
        %4368 = vmatpush1.msra.mxu0 0.0
        %4369 = vmatprep.subr.mxu0 0.0
        %4370 = vmatpush1.msra.mxu0 0.0
        %4371 = vmatprep.subr.mxu0 0.0
        %4372 = vmatpush1.msra.mxu0 0.0
        %4373 = vmatprep.subr.mxu0 0.0
        %4374 = vmatpush1.msra.mxu0 0.0
        %4375 = vmatprep.subr.mxu0 0.0
        %4376 = vmatpush1.msra.mxu0 0.0
        %4377 = vmatprep.subr.mxu0 0.0
        %4378 = vmatpush1.msra.mxu0 0.0
        %4379 = vmatprep.subr.mxu0 0.0
        %4380 = vmatpush1.msra.mxu0 0.0
        %4381 = vmatprep.subr.mxu0 0.0
        %4382 = vmatpush1.msra.mxu0 0.0
        %4383 = vmatprep.subr.mxu0 0.0
        %4384 = vmatpush1.msra.mxu0 0.0
        %4385 = vmatprep.subr.mxu0 0.0
        %4386 = vmatpush1.msra.mxu0 0.0
        %4387 = vmatprep.subr.mxu0 0.0
        %4388 = vmatpush1.msra.mxu0 0.0
        %4389 = vmatprep.mubr.f32.mxu0 0.0
        %4390 = vmatmul.mubr.f32.gmra.mrb[0].mxu0 %v4323
        %v4391 = vpop.f32.mrb[0].mxu0
        %v4392 = vadd.f32 %v4321, %v4391
        %v4393 = vpop.f32.mrb[0].mxu0
        %4394 = vdwg.mxu0
        %v4395 = vmax.f32 %v4392, 0.0
        %v4396 = vadd.f32 %v4312, %v4395
        %v4397 = vld [vmem:[#allocation5 + $0x2d0] sm:$0x1]
        %v4398 = vld [vmem:[#allocation5 + $0x2d8] sm:$0x1]
        %v4399 = vsel %vm225, %v4396, 0.0
        %4400 = vadd.xlane.f32.xlu0 %v4399
        %v4401 = vpop.xlane.xlu0 %4400
        %v4402 = vmul.f32 %v4401, %v1140
        %v4403 = vsub.f32 %v4396, %v4402
        %v4404 = vmul.f32 %v4403, %v4403
        %v4405 = vsel %vm225, %v4404, 0.0
        %4406 = vadd.xlane.f32.xlu0 %v4405
        %v4407 = vpop.xlane.xlu0 %4406
        %v4408 = vmul.f32 %v4407, %v1140
        %v4409 = vadd.f32 %v4408, 1e-05
        %v4410 = vrsqrt.pop %v4409
        %v4411 = vmul.f32 %v4403, %v4410
        %v4412 = vlaneseq
        %v4413 = vshrl.u32 %v4412, 7
        %v4414 = vsub.s32 0, %v4413
        %v4415 = vrot.slane %v4397, %v4414
        %v4416 = vmul.f32 %v4411, %v4415
        %v4417 = vlaneseq
        %v4418 = vshrl.u32 %v4417, 7
        %v4419 = vsub.s32 0, %v4418
        %v4420 = vrot.slane %v4398, %v4419
        %v4421 = vadd.f32 %v4416, %v4420
        %v4422 = vld [vmem:[#allocation5 + $0x2e0] sm:$0x1]
        %v4423 = vld [vmem:[#allocation5 + $0x2e8] sm:$0xff]
        %v4424 = vld [vmem:[#allocation5 + $0x2f0] sm:$0xff]
        %v4425 = vld [vmem:[#allocation5 + $0x2f8] sm:$0xff]
        %v4426 = vld [vmem:[#allocation5 + $0x300] sm:$0xff]
        %v4427 = vld [vmem:[#allocation5 + $0x308] sm:$0x1]
        %v4429 = vsel %vm225, %v4422, 0
        %4431 = vmatprep.subr.mxu0 0.0
        %4432 = vmatpush1.msra.mxu0 %v4423
        %4433 = vmatprep.subr.mxu0 0.0
        %4434 = vmatpush1.msra.mxu0 %v4424
        %4435 = vmatprep.subr.mxu0 0.0
        %4436 = vmatpush1.msra.mxu0 %v4425
        %4437 = vmatprep.subr.mxu0 0.0
        %4438 = vmatpush1.msra.mxu0 %v4426
        %4439 = vmatprep.subr.mxu0 0.0
        %4440 = vmatpush1.msra.mxu0 0.0
        %4441 = vmatprep.subr.mxu0 0.0
        %4442 = vmatpush1.msra.mxu0 0.0
        %4443 = vmatprep.subr.mxu0 0.0
        %4444 = vmatpush1.msra.mxu0 0.0
        %4445 = vmatprep.subr.mxu0 0.0
        %4446 = vmatpush1.msra.mxu0 0.0
        %4447 = vmatprep.subr.mxu0 0.0
        %4448 = vmatpush1.msra.mxu0 0.0
        %4449 = vmatprep.subr.mxu0 0.0
        %4450 = vmatpush1.msra.mxu0 0.0
        %4451 = vmatprep.subr.mxu0 0.0
        %4452 = vmatpush1.msra.mxu0 0.0
        %4453 = vmatprep.subr.mxu0 0.0
        %4454 = vmatpush1.msra.mxu0 0.0
        %4455 = vmatprep.subr.mxu0 0.0
        %4456 = vmatpush1.msra.mxu0 0.0
        %4457 = vmatprep.subr.mxu0 0.0
        %4458 = vmatpush1.msra.mxu0 0.0
        %4459 = vmatprep.subr.mxu0 0.0
        %4460 = vmatpush1.msra.mxu0 0.0
        %4461 = vmatprep.subr.mxu0 0.0
        %4462 = vmatpush1.msra.mxu0 0.0
        %4463 = vmatprep.subr.mxu0 0.0
        %4464 = vmatpush1.msra.mxu0 0.0
        %4465 = vmatprep.subr.mxu0 0.0
        %4466 = vmatpush1.msra.mxu0 0.0
        %4467 = vmatprep.subr.mxu0 0.0
        %4468 = vmatpush1.msra.mxu0 0.0
        %4469 = vmatprep.subr.mxu0 0.0
        %4470 = vmatpush1.msra.mxu0 0.0
        %4471 = vmatprep.subr.mxu0 0.0
        %4472 = vmatpush1.msra.mxu0 0.0
        %4473 = vmatprep.subr.mxu0 0.0
        %4474 = vmatpush1.msra.mxu0 0.0
        %4475 = vmatprep.subr.mxu0 0.0
        %4476 = vmatpush1.msra.mxu0 0.0
        %4477 = vmatprep.subr.mxu0 0.0
        %4478 = vmatpush1.msra.mxu0 0.0
        %4479 = vmatprep.subr.mxu0 0.0
        %4480 = vmatpush1.msra.mxu0 0.0
        %4481 = vmatprep.subr.mxu0 0.0
        %4482 = vmatpush1.msra.mxu0 0.0
        %4483 = vmatprep.subr.mxu0 0.0
        %4484 = vmatpush1.msra.mxu0 0.0
        %4485 = vmatprep.subr.mxu0 0.0
        %4486 = vmatpush1.msra.mxu0 0.0
        %4487 = vmatprep.subr.mxu0 0.0
        %4488 = vmatpush1.msra.mxu0 0.0
        %4489 = vmatprep.subr.mxu0 0.0
        %4490 = vmatpush1.msra.mxu0 0.0
        %4491 = vmatprep.subr.mxu0 0.0
        %4492 = vmatpush1.msra.mxu0 0.0
        %4493 = vmatprep.subr.mxu0 0.0
        %4494 = vmatpush1.msra.mxu0 0.0
        %4495 = vmatprep.mubr.f32.mxu0 0.0
        %4496 = vmatmul.mubr.f32.gmra.mrb[0].mxu0 %v4429
        %v4497 = vpop.f32.mrb[0].mxu0
        %v4498 = vadd.f32 %v4427, %v4497
        %v4499 = vpop.f32.mrb[0].mxu0
        %4500 = vdwg.mxu0
        %v4501 = vld [vmem:[#allocation5 + $0x310] sm:$0xff]
        %v4502 = vld [vmem:[#allocation5 + $0x318] sm:$0xff]
        %v4503 = vld [vmem:[#allocation5 + $0x320] sm:$0xff]
        %v4504 = vld [vmem:[#allocation5 + $0x328] sm:$0xff]
        %v4505 = vld [vmem:[#allocation5 + $0x330] sm:$0x1]
        %v4506 = vlaneseq
        %v4507 = vshrl.u32 %v4506, 7
        %v4508 = vsub.s32 0, %v4507
        %v4509 = vrot.slane %v4505, %v4508
        %v4511 = vsel %vm225, %v4421, 0
        %4513 = vmatprep.subr.mxu0 0.0
        %4514 = vmatpush1.msra.mxu0 %v4501
        %4515 = vmatprep.subr.mxu0 0.0
        %4516 = vmatpush1.msra.mxu0 %v4502
        %4517 = vmatprep.subr.mxu0 0.0
        %4518 = vmatpush1.msra.mxu0 %v4503
        %4519 = vmatprep.subr.mxu0 0.0
        %4520 = vmatpush1.msra.mxu0 %v4504
        %4521 = vmatprep.subr.mxu0 0.0
        %4522 = vmatpush1.msra.mxu0 0.0
        %4523 = vmatprep.subr.mxu0 0.0
        %4524 = vmatpush1.msra.mxu0 0.0
        %4525 = vmatprep.subr.mxu0 0.0
        %4526 = vmatpush1.msra.mxu0 0.0
        %4527 = vmatprep.subr.mxu0 0.0
        %4528 = vmatpush1.msra.mxu0 0.0
        %4529 = vmatprep.subr.mxu0 0.0
        %4530 = vmatpush1.msra.mxu0 0.0
        %4531 = vmatprep.subr.mxu0 0.0
        %4532 = vmatpush1.msra.mxu0 0.0
        %4533 = vmatprep.subr.mxu0 0.0
        %4534 = vmatpush1.msra.mxu0 0.0
        %4535 = vmatprep.subr.mxu0 0.0
        %4536 = vmatpush1.msra.mxu0 0.0
        %4537 = vmatprep.subr.mxu0 0.0
        %4538 = vmatpush1.msra.mxu0 0.0
        %4539 = vmatprep.subr.mxu0 0.0
        %4540 = vmatpush1.msra.mxu0 0.0
        %4541 = vmatprep.subr.mxu0 0.0
        %4542 = vmatpush1.msra.mxu0 0.0
        %4543 = vmatprep.subr.mxu0 0.0
        %4544 = vmatpush1.msra.mxu0 0.0
        %4545 = vmatprep.subr.mxu0 0.0
        %4546 = vmatpush1.msra.mxu0 0.0
        %4547 = vmatprep.subr.mxu0 0.0
        %4548 = vmatpush1.msra.mxu0 0.0
        %4549 = vmatprep.subr.mxu0 0.0
        %4550 = vmatpush1.msra.mxu0 0.0
        %4551 = vmatprep.subr.mxu0 0.0
        %4552 = vmatpush1.msra.mxu0 0.0
        %4553 = vmatprep.subr.mxu0 0.0
        %4554 = vmatpush1.msra.mxu0 0.0
        %4555 = vmatprep.subr.mxu0 0.0
        %4556 = vmatpush1.msra.mxu0 0.0
        %4557 = vmatprep.subr.mxu0 0.0
        %4558 = vmatpush1.msra.mxu0 0.0
        %4559 = vmatprep.subr.mxu0 0.0
        %4560 = vmatpush1.msra.mxu0 0.0
        %4561 = vmatprep.subr.mxu0 0.0
        %4562 = vmatpush1.msra.mxu0 0.0
        %4563 = vmatprep.subr.mxu0 0.0
        %4564 = vmatpush1.msra.mxu0 0.0
        %4565 = vmatprep.subr.mxu0 0.0
        %4566 = vmatpush1.msra.mxu0 0.0
        %4567 = vmatprep.subr.mxu0 0.0
        %4568 = vmatpush1.msra.mxu0 0.0
        %4569 = vmatprep.subr.mxu0 0.0
        %4570 = vmatpush1.msra.mxu0 0.0
        %4571 = vmatprep.subr.mxu0 0.0
        %4572 = vmatpush1.msra.mxu0 0.0
        %4573 = vmatprep.subr.mxu0 0.0
        %4574 = vmatpush1.msra.mxu0 0.0
        %4575 = vmatprep.subr.mxu0 0.0
        %4576 = vmatpush1.msra.mxu0 0.0
        %4577 = vmatprep.mubr.f32.mxu0 0.0
        %4578 = vmatmul.mubr.f32.gmra.mrb[0].mxu0 %v4511
        %v4579 = vpop.f32.mrb[0].mxu0
        %v4580 = vadd.f32 %v4509, %v4579
        %v4581 = vpop.f32.mrb[0].mxu0
        %4582 = vdwg.mxu0
        %v4583 = vld [vmem:[#allocation5 + $0x338] sm:$0xff]
        %v4584 = vld [vmem:[#allocation5 + $0x340] sm:$0xff]
        %v4585 = vld [vmem:[#allocation5 + $0x348] sm:$0xff]
        %v4586 = vld [vmem:[#allocation5 + $0x350] sm:$0xff]
        %v4587 = vld [vmem:[#allocation5 + $0x358] sm:$0x1]
        %v4588 = vlaneseq
        %v4589 = vshrl.u32 %v4588, 7
        %v4590 = vsub.s32 0, %v4589
        %v4591 = vrot.slane %v4587, %v4590
        %4592 = vmatprep.subr.mxu0 0.0
        %4593 = vmatpush1.msra.mxu0 %v4583
        %4594 = vmatprep.subr.mxu0 0.0
        %4595 = vmatpush1.msra.mxu0 %v4584
        %4596 = vmatprep.subr.mxu0 0.0
        %4597 = vmatpush1.msra.mxu0 %v4585
        %4598 = vmatprep.subr.mxu0 0.0
        %4599 = vmatpush1.msra.mxu0 %v4586
        %4600 = vmatprep.subr.mxu0 0.0
        %4601 = vmatpush1.msra.mxu0 0.0
        %4602 = vmatprep.subr.mxu0 0.0
        %4603 = vmatpush1.msra.mxu0 0.0
        %4604 = vmatprep.subr.mxu0 0.0
        %4605 = vmatpush1.msra.mxu0 0.0
        %4606 = vmatprep.subr.mxu0 0.0
        %4607 = vmatpush1.msra.mxu0 0.0
        %4608 = vmatprep.subr.mxu0 0.0
        %4609 = vmatpush1.msra.mxu0 0.0
        %4610 = vmatprep.subr.mxu0 0.0
        %4611 = vmatpush1.msra.mxu0 0.0
        %4612 = vmatprep.subr.mxu0 0.0
        %4613 = vmatpush1.msra.mxu0 0.0
        %4614 = vmatprep.subr.mxu0 0.0
        %4615 = vmatpush1.msra.mxu0 0.0
        %4616 = vmatprep.subr.mxu0 0.0
        %4617 = vmatpush1.msra.mxu0 0.0
        %4618 = vmatprep.subr.mxu0 0.0
        %4619 = vmatpush1.msra.mxu0 0.0
        %4620 = vmatprep.subr.mxu0 0.0
        %4621 = vmatpush1.msra.mxu0 0.0
        %4622 = vmatprep.subr.mxu0 0.0
        %4623 = vmatpush1.msra.mxu0 0.0
        %4624 = vmatprep.subr.mxu0 0.0
        %4625 = vmatpush1.msra.mxu0 0.0
        %4626 = vmatprep.subr.mxu0 0.0
        %4627 = vmatpush1.msra.mxu0 0.0
        %4628 = vmatprep.subr.mxu0 0.0
        %4629 = vmatpush1.msra.mxu0 0.0
        %4630 = vmatprep.subr.mxu0 0.0
        %4631 = vmatpush1.msra.mxu0 0.0
        %4632 = vmatprep.subr.mxu0 0.0
        %4633 = vmatpush1.msra.mxu0 0.0
        %4634 = vmatprep.subr.mxu0 0.0
        %4635 = vmatpush1.msra.mxu0 0.0
        %4636 = vmatprep.subr.mxu0 0.0
        %4637 = vmatpush1.msra.mxu0 0.0
        %4638 = vmatprep.subr.mxu0 0.0
        %4639 = vmatpush1.msra.mxu0 0.0
        %4640 = vmatprep.subr.mxu0 0.0
        %4641 = vmatpush1.msra.mxu0 0.0
        %4642 = vmatprep.subr.mxu0 0.0
        %4643 = vmatpush1.msra.mxu0 0.0
        %4644 = vmatprep.subr.mxu0 0.0
        %4645 = vmatpush1.msra.mxu0 0.0
        %4646 = vmatprep.subr.mxu0 0.0
        %4647 = vmatpush1.msra.mxu0 0.0
        %4648 = vmatprep.subr.mxu0 0.0
        %4649 = vmatpush1.msra.mxu0 0.0
        %4650 = vmatprep.subr.mxu0 0.0
        %4651 = vmatpush1.msra.mxu0 0.0
        %4652 = vmatprep.subr.mxu0 0.0
        %4653 = vmatpush1.msra.mxu0 0.0
        %4654 = vmatprep.subr.mxu0 0.0
        %4655 = vmatpush1.msra.mxu0 0.0
        %4656 = vmatprep.mubr.f32.mxu0 0.0
        %4657 = vmatmul.mubr.f32.gmra.mrb[0].mxu0 %v4511
        %v4658 = vpop.f32.mrb[0].mxu0
        %v4659 = vadd.f32 %v4591, %v4658
        %v4660 = vpop.f32.mrb[0].mxu0
        %4661 = vdwg.mxu0
        %v4663 = vsel %vm457, %v4498, 0
        %v4666 = vsel %vm457, %v4580, 0
        %4668 = vmatprep.subr.mxu0 0.0
        %4669 = vmatpush1.xpose.msra.mxu0 %v4666
        %4670 = vmatprep.subr.mxu0 0.0
        %4671 = vmatpush1.xpose.msra.mxu0 0.0
        %4672 = vmatprep.subr.mxu0 0.0
        %4673 = vmatpush1.xpose.msra.mxu0 0.0
        %4674 = vmatprep.subr.mxu0 0.0
        %4675 = vmatpush1.xpose.msra.mxu0 0.0
        %4676 = vmatprep.subr.mxu0 0.0
        %4677 = vmatpush1.xpose.msra.mxu0 0.0
        %4678 = vmatprep.subr.mxu0 0.0
        %4679 = vmatpush1.xpose.msra.mxu0 0.0
        %4680 = vmatprep.subr.mxu0 0.0
        %4681 = vmatpush1.xpose.msra.mxu0 0.0
        %4682 = vmatprep.subr.mxu0 0.0
        %4683 = vmatpush1.xpose.msra.mxu0 0.0
        %4684 = vmatprep.subr.mxu0 0.0
        %4685 = vmatpush1.xpose.msra.mxu0 0.0
        %4686 = vmatprep.subr.mxu0 0.0
        %4687 = vmatpush1.xpose.msra.mxu0 0.0
        %4688 = vmatprep.subr.mxu0 0.0
        %4689 = vmatpush1.xpose.msra.mxu0 0.0
        %4690 = vmatprep.subr.mxu0 0.0
        %4691 = vmatpush1.xpose.msra.mxu0 0.0
        %4692 = vmatprep.subr.mxu0 0.0
        %4693 = vmatpush1.xpose.msra.mxu0 0.0
        %4694 = vmatprep.subr.mxu0 0.0
        %4695 = vmatpush1.xpose.msra.mxu0 0.0
        %4696 = vmatprep.subr.mxu0 0.0
        %4697 = vmatpush1.xpose.msra.mxu0 0.0
        %4698 = vmatprep.subr.mxu0 0.0
        %4699 = vmatpush1.xpose.msra.mxu0 0.0
        %4700 = vmatprep.subr.mxu0 0.0
        %4701 = vmatpush1.xpose.msra.mxu0 0.0
        %4702 = vmatprep.subr.mxu0 0.0
        %4703 = vmatpush1.xpose.msra.mxu0 0.0
        %4704 = vmatprep.subr.mxu0 0.0
        %4705 = vmatpush1.xpose.msra.mxu0 0.0
        %4706 = vmatprep.subr.mxu0 0.0
        %4707 = vmatpush1.xpose.msra.mxu0 0.0
        %4708 = vmatprep.subr.mxu0 0.0
        %4709 = vmatpush1.xpose.msra.mxu0 0.0
        %4710 = vmatprep.subr.mxu0 0.0
        %4711 = vmatpush1.xpose.msra.mxu0 0.0
        %4712 = vmatprep.subr.mxu0 0.0
        %4713 = vmatpush1.xpose.msra.mxu0 0.0
        %4714 = vmatprep.subr.mxu0 0.0
        %4715 = vmatpush1.xpose.msra.mxu0 0.0
        %4716 = vmatprep.subr.mxu0 0.0
        %4717 = vmatpush1.xpose.msra.mxu0 0.0
        %4718 = vmatprep.subr.mxu0 0.0
        %4719 = vmatpush1.xpose.msra.mxu0 0.0
        %4720 = vmatprep.subr.mxu0 0.0
        %4721 = vmatpush1.xpose.msra.mxu0 0.0
        %4722 = vmatprep.subr.mxu0 0.0
        %4723 = vmatpush1.xpose.msra.mxu0 0.0
        %4724 = vmatprep.subr.mxu0 0.0
        %4725 = vmatpush1.xpose.msra.mxu0 0.0
        %4726 = vmatprep.subr.mxu0 0.0
        %4727 = vmatpush1.xpose.msra.mxu0 0.0
        %4728 = vmatprep.subr.mxu0 0.0
        %4729 = vmatpush1.xpose.msra.mxu0 0.0
        %4730 = vmatprep.subr.mxu0 0.0
        %4731 = vmatpush1.xpose.msra.mxu0 0.0
        %4732 = vmatprep.mubr.f32.mxu0 0.0
        %4733 = vmatmul.mubr.f32.gmra.mrb[0].mxu0 %v4663
        %v4734 = vpop.f32.mrb[0].mxu0
        %v4735 = vadd.f32 0.0, %v4734
        %v4736 = vpop.f32.mrb[0].mxu0
        %4737 = vdwg.mxu0
        %v4738 = vmul.f32 %v4735, 0.17677669
        %vm4739 = vcmask 57344
        %v4740 = vsel %vm4739, %v4738, -inf
        %4741 = vmax.xlane.f32.xlu0 %v4740
        %v4742 = vpop.xlane.xlu0 %4741
        %v4743 = vsub.f32 %v4738, %v4742
        %v4744 = vmul.f32 %v4743, 1.442695
        %v4745 = vpow.pop %v4744
        %v4746 = vsel %vm4739, %v4745, 0.0
        %4747 = vadd.xlane.f32.xlu0 %v4746
        %v4748 = vpop.xlane.xlu0 %4747
        %v4749 = vrcp.pop %v4748
        %v4750 = vmul.f32 %v4745, %v4749
        %v4752 = vsel %vm457, %v4750, 0
        %4754 = vmatprep.subr.mxu0 0.0
        %4755 = vmatpush1.msra.mxu0 %v4659
        %4756 = vmatprep.subr.mxu0 0.0
        %4757 = vmatpush1.msra.mxu0 0.0
        %4758 = vmatprep.subr.mxu0 0.0
        %4759 = vmatpush1.msra.mxu0 0.0
        %4760 = vmatprep.subr.mxu0 0.0
        %4761 = vmatpush1.msra.mxu0 0.0
        %4762 = vmatprep.subr.mxu0 0.0
        %4763 = vmatpush1.msra.mxu0 0.0
        %4764 = vmatprep.subr.mxu0 0.0
        %4765 = vmatpush1.msra.mxu0 0.0
        %4766 = vmatprep.subr.mxu0 0.0
        %4767 = vmatpush1.msra.mxu0 0.0
        %4768 = vmatprep.subr.mxu0 0.0
        %4769 = vmatpush1.msra.mxu0 0.0
        %4770 = vmatprep.subr.mxu0 0.0
        %4771 = vmatpush1.msra.mxu0 0.0
        %4772 = vmatprep.subr.mxu0 0.0
        %4773 = vmatpush1.msra.mxu0 0.0
        %4774 = vmatprep.subr.mxu0 0.0
        %4775 = vmatpush1.msra.mxu0 0.0
        %4776 = vmatprep.subr.mxu0 0.0
        %4777 = vmatpush1.msra.mxu0 0.0
        %4778 = vmatprep.subr.mxu0 0.0
        %4779 = vmatpush1.msra.mxu0 0.0
        %4780 = vmatprep.subr.mxu0 0.0
        %4781 = vmatpush1.msra.mxu0 0.0
        %4782 = vmatprep.subr.mxu0 0.0
        %4783 = vmatpush1.msra.mxu0 0.0
        %4784 = vmatprep.subr.mxu0 0.0
        %4785 = vmatpush1.msra.mxu0 0.0
        %4786 = vmatprep.subr.mxu0 0.0
        %4787 = vmatpush1.msra.mxu0 0.0
        %4788 = vmatprep.subr.mxu0 0.0
        %4789 = vmatpush1.msra.mxu0 0.0
        %4790 = vmatprep.subr.mxu0 0.0
        %4791 = vmatpush1.msra.mxu0 0.0
        %4792 = vmatprep.subr.mxu0 0.0
        %4793 = vmatpush1.msra.mxu0 0.0
        %4794 = vmatprep.subr.mxu0 0.0
        %4795 = vmatpush1.msra.mxu0 0.0
        %4796 = vmatprep.subr.mxu0 0.0
        %4797 = vmatpush1.msra.mxu0 0.0
        %4798 = vmatprep.subr.mxu0 0.0
        %4799 = vmatpush1.msra.mxu0 0.0
        %4800 = vmatprep.subr.mxu0 0.0
        %4801 = vmatpush1.msra.mxu0 0.0
        %4802 = vmatprep.subr.mxu0 0.0
        %4803 = vmatpush1.msra.mxu0 0.0
        %4804 = vmatprep.subr.mxu0 0.0
        %4805 = vmatpush1.msra.mxu0 0.0
        %4806 = vmatprep.subr.mxu0 0.0
        %4807 = vmatpush1.msra.mxu0 0.0
        %4808 = vmatprep.subr.mxu0 0.0
        %4809 = vmatpush1.msra.mxu0 0.0
        %4810 = vmatprep.subr.mxu0 0.0
        %4811 = vmatpush1.msra.mxu0 0.0
        %4812 = vmatprep.subr.mxu0 0.0
        %4813 = vmatpush1.msra.mxu0 0.0
        %4814 = vmatprep.subr.mxu0 0.0
        %4815 = vmatpush1.msra.mxu0 0.0
        %4816 = vmatprep.subr.mxu0 0.0
        %4817 = vmatpush1.msra.mxu0 0.0
        %4818 = vmatprep.mubr.f32.mxu0 0.0
        %4819 = vmatmul.mubr.f32.gmra.mrb[0].mxu0 %v4752
        %v4820 = vpop.f32.mrb[0].mxu0
        %v4821 = vadd.f32 0.0, %v4820
        %v4822 = vpop.f32.mrb[0].mxu0
        %4823 = vdwg.mxu0
        %4824 = vrot.lane.b32.xlu0 %v4498, 120
        %v4825 = vpop.permute.xlu0 %4824
        %4826 = vrot.lane.b32.xlu0 %v4580, 120
        %v4827 = vpop.permute.xlu0 %4826
        %v4828 = vsel %vm457, %v4825, 0
        %v4830 = vsel %vm457, %v4827, 0
        %4832 = vmatprep.subr.mxu0 0.0
        %4833 = vmatpush1.xpose.msra.mxu0 %v4830
        %4834 = vmatprep.subr.mxu0 0.0
        %4835 = vmatpush1.xpose.msra.mxu0 0.0
        %4836 = vmatprep.subr.mxu0 0.0
        %4837 = vmatpush1.xpose.msra.mxu0 0.0
        %4838 = vmatprep.subr.mxu0 0.0
        %4839 = vmatpush1.xpose.msra.mxu0 0.0
        %4840 = vmatprep.subr.mxu0 0.0
        %4841 = vmatpush1.xpose.msra.mxu0 0.0
        %4842 = vmatprep.subr.mxu0 0.0
        %4843 = vmatpush1.xpose.msra.mxu0 0.0
        %4844 = vmatprep.subr.mxu0 0.0
        %4845 = vmatpush1.xpose.msra.mxu0 0.0
        %4846 = vmatprep.subr.mxu0 0.0
        %4847 = vmatpush1.xpose.msra.mxu0 0.0
        %4848 = vmatprep.subr.mxu0 0.0
        %4849 = vmatpush1.xpose.msra.mxu0 0.0
        %4850 = vmatprep.subr.mxu0 0.0
        %4851 = vmatpush1.xpose.msra.mxu0 0.0
        %4852 = vmatprep.subr.mxu0 0.0
        %4853 = vmatpush1.xpose.msra.mxu0 0.0
        %4854 = vmatprep.subr.mxu0 0.0
        %4855 = vmatpush1.xpose.msra.mxu0 0.0
        %4856 = vmatprep.subr.mxu0 0.0
        %4857 = vmatpush1.xpose.msra.mxu0 0.0
        %4858 = vmatprep.subr.mxu0 0.0
        %4859 = vmatpush1.xpose.msra.mxu0 0.0
        %4860 = vmatprep.subr.mxu0 0.0
        %4861 = vmatpush1.xpose.msra.mxu0 0.0
        %4862 = vmatprep.subr.mxu0 0.0
        %4863 = vmatpush1.xpose.msra.mxu0 0.0
        %4864 = vmatprep.subr.mxu0 0.0
        %4865 = vmatpush1.xpose.msra.mxu0 0.0
        %4866 = vmatprep.subr.mxu0 0.0
        %4867 = vmatpush1.xpose.msra.mxu0 0.0
        %4868 = vmatprep.subr.mxu0 0.0
        %4869 = vmatpush1.xpose.msra.mxu0 0.0
        %4870 = vmatprep.subr.mxu0 0.0
        %4871 = vmatpush1.xpose.msra.mxu0 0.0
        %4872 = vmatprep.subr.mxu0 0.0
        %4873 = vmatpush1.xpose.msra.mxu0 0.0
        %4874 = vmatprep.subr.mxu0 0.0
        %4875 = vmatpush1.xpose.msra.mxu0 0.0
        %4876 = vmatprep.subr.mxu0 0.0
        %4877 = vmatpush1.xpose.msra.mxu0 0.0
        %4878 = vmatprep.subr.mxu0 0.0
        %4879 = vmatpush1.xpose.msra.mxu0 0.0
        %4880 = vmatprep.subr.mxu0 0.0
        %4881 = vmatpush1.xpose.msra.mxu0 0.0
        %4882 = vmatprep.subr.mxu0 0.0
        %4883 = vmatpush1.xpose.msra.mxu0 0.0
        %4884 = vmatprep.subr.mxu0 0.0
        %4885 = vmatpush1.xpose.msra.mxu0 0.0
        %4886 = vmatprep.subr.mxu0 0.0
        %4887 = vmatpush1.xpose.msra.mxu0 0.0
        %4888 = vmatprep.subr.mxu0 0.0
        %4889 = vmatpush1.xpose.msra.mxu0 0.0
        %4890 = vmatprep.subr.mxu0 0.0
        %4891 = vmatpush1.xpose.msra.mxu0 0.0
        %4892 = vmatprep.subr.mxu0 0.0
        %4893 = vmatpush1.xpose.msra.mxu0 0.0
        %4894 = vmatprep.subr.mxu0 0.0
        %4895 = vmatpush1.xpose.msra.mxu0 0.0
        %4896 = vmatprep.mubr.f32.mxu0 0.0
        %4897 = vmatmul.mubr.f32.gmra.mrb[0].mxu0 %v4828
        %v4898 = vpop.f32.mrb[0].mxu0
        %v4899 = vadd.f32 0.0, %v4898
        %v4900 = vpop.f32.mrb[0].mxu0
        %4901 = vdwg.mxu0
        %v4902 = vmul.f32 %v4899, 0.17677669
        %v4903 = vsel %vm4739, %v4902, -inf
        %4904 = vmax.xlane.f32.xlu0 %v4903
        %v4905 = vpop.xlane.xlu0 %4904
        %v4906 = vsub.f32 %v4902, %v4905
        %v4907 = vmul.f32 %v4906, 1.442695
        %v4908 = vpow.pop %v4907
        %v4909 = vsel %vm4739, %v4908, 0.0
        %4910 = vadd.xlane.f32.xlu0 %v4909
        %v4911 = vpop.xlane.xlu0 %4910
        %v4912 = vrcp.pop %v4911
        %v4913 = vmul.f32 %v4908, %v4912
        %4915 = vrot.lane.b32.xlu0 %v4659, 120
        %v4916 = vpop.permute.xlu0 %4915
        %v4919 = vsel %vm457, %v4913, 0
        %4921 = vmatprep.subr.mxu0 0.0
        %4922 = vmatpush1.msra.mxu0 %v4916
        %4923 = vmatprep.subr.mxu0 0.0
        %4924 = vmatpush1.msra.mxu0 0.0
        %4925 = vmatprep.subr.mxu0 0.0
        %4926 = vmatpush1.msra.mxu0 0.0
        %4927 = vmatprep.subr.mxu0 0.0
        %4928 = vmatpush1.msra.mxu0 0.0
        %4929 = vmatprep.subr.mxu0 0.0
        %4930 = vmatpush1.msra.mxu0 0.0
        %4931 = vmatprep.subr.mxu0 0.0
        %4932 = vmatpush1.msra.mxu0 0.0
        %4933 = vmatprep.subr.mxu0 0.0
        %4934 = vmatpush1.msra.mxu0 0.0
        %4935 = vmatprep.subr.mxu0 0.0
        %4936 = vmatpush1.msra.mxu0 0.0
        %4937 = vmatprep.subr.mxu0 0.0
        %4938 = vmatpush1.msra.mxu0 0.0
        %4939 = vmatprep.subr.mxu0 0.0
        %4940 = vmatpush1.msra.mxu0 0.0
        %4941 = vmatprep.subr.mxu0 0.0
        %4942 = vmatpush1.msra.mxu0 0.0
        %4943 = vmatprep.subr.mxu0 0.0
        %4944 = vmatpush1.msra.mxu0 0.0
        %4945 = vmatprep.subr.mxu0 0.0
        %4946 = vmatpush1.msra.mxu0 0.0
        %4947 = vmatprep.subr.mxu0 0.0
        %4948 = vmatpush1.msra.mxu0 0.0
        %4949 = vmatprep.subr.mxu0 0.0
        %4950 = vmatpush1.msra.mxu0 0.0
        %4951 = vmatprep.subr.mxu0 0.0
        %4952 = vmatpush1.msra.mxu0 0.0
        %4953 = vmatprep.subr.mxu0 0.0
        %4954 = vmatpush1.msra.mxu0 0.0
        %4955 = vmatprep.subr.mxu0 0.0
        %4956 = vmatpush1.msra.mxu0 0.0
        %4957 = vmatprep.subr.mxu0 0.0
        %4958 = vmatpush1.msra.mxu0 0.0
        %4959 = vmatprep.subr.mxu0 0.0
        %4960 = vmatpush1.msra.mxu0 0.0
        %4961 = vmatprep.subr.mxu0 0.0
        %4962 = vmatpush1.msra.mxu0 0.0
        %4963 = vmatprep.subr.mxu0 0.0
        %4964 = vmatpush1.msra.mxu0 0.0
        %4965 = vmatprep.subr.mxu0 0.0
        %4966 = vmatpush1.msra.mxu0 0.0
        %4967 = vmatprep.subr.mxu0 0.0
        %4968 = vmatpush1.msra.mxu0 0.0
        %4969 = vmatprep.subr.mxu0 0.0
        %4970 = vmatpush1.msra.mxu0 0.0
        %4971 = vmatprep.subr.mxu0 0.0
        %4972 = vmatpush1.msra.mxu0 0.0
        %4973 = vmatprep.subr.mxu0 0.0
        %4974 = vmatpush1.msra.mxu0 0.0
        %4975 = vmatprep.subr.mxu0 0.0
        %4976 = vmatpush1.msra.mxu0 0.0
        %4977 = vmatprep.subr.mxu0 0.0
        %4978 = vmatpush1.msra.mxu0 0.0
        %4979 = vmatprep.subr.mxu0 0.0
        %4980 = vmatpush1.msra.mxu0 0.0
        %4981 = vmatprep.subr.mxu0 0.0
        %4982 = vmatpush1.msra.mxu0 0.0
        %4983 = vmatprep.subr.mxu0 0.0
        %4984 = vmatpush1.msra.mxu0 0.0
        %4985 = vmatprep.mubr.f32.mxu0 0.0
        %4986 = vmatmul.mubr.f32.gmra.mrb[0].mxu0 %v4919
        %v4987 = vpop.f32.mrb[0].mxu0
        %v4988 = vadd.f32 0.0, %v4987
        %v4989 = vpop.f32.mrb[0].mxu0
        %4990 = vdwg.mxu0
        %4991 = vrot.lane.b32.xlu0 %v4498, 112
        %v4992 = vpop.permute.xlu0 %4991
        %4993 = vrot.lane.b32.xlu0 %v4580, 112
        %v4994 = vpop.permute.xlu0 %4993
        %v4995 = vsel %vm457, %v4992, 0
        %v4997 = vsel %vm457, %v4994, 0
        %4999 = vmatprep.subr.mxu0 0.0
        %5000 = vmatpush1.xpose.msra.mxu0 %v4997
        %5001 = vmatprep.subr.mxu0 0.0
        %5002 = vmatpush1.xpose.msra.mxu0 0.0
        %5003 = vmatprep.subr.mxu0 0.0
        %5004 = vmatpush1.xpose.msra.mxu0 0.0
        %5005 = vmatprep.subr.mxu0 0.0
        %5006 = vmatpush1.xpose.msra.mxu0 0.0
        %5007 = vmatprep.subr.mxu0 0.0
        %5008 = vmatpush1.xpose.msra.mxu0 0.0
        %5009 = vmatprep.subr.mxu0 0.0
        %5010 = vmatpush1.xpose.msra.mxu0 0.0
        %5011 = vmatprep.subr.mxu0 0.0
        %5012 = vmatpush1.xpose.msra.mxu0 0.0
        %5013 = vmatprep.subr.mxu0 0.0
        %5014 = vmatpush1.xpose.msra.mxu0 0.0
        %5015 = vmatprep.subr.mxu0 0.0
        %5016 = vmatpush1.xpose.msra.mxu0 0.0
        %5017 = vmatprep.subr.mxu0 0.0
        %5018 = vmatpush1.xpose.msra.mxu0 0.0
        %5019 = vmatprep.subr.mxu0 0.0
        %5020 = vmatpush1.xpose.msra.mxu0 0.0
        %5021 = vmatprep.subr.mxu0 0.0
        %5022 = vmatpush1.xpose.msra.mxu0 0.0
        %5023 = vmatprep.subr.mxu0 0.0
        %5024 = vmatpush1.xpose.msra.mxu0 0.0
        %5025 = vmatprep.subr.mxu0 0.0
        %5026 = vmatpush1.xpose.msra.mxu0 0.0
        %5027 = vmatprep.subr.mxu0 0.0
        %5028 = vmatpush1.xpose.msra.mxu0 0.0
        %5029 = vmatprep.subr.mxu0 0.0
        %5030 = vmatpush1.xpose.msra.mxu0 0.0
        %5031 = vmatprep.subr.mxu0 0.0
        %5032 = vmatpush1.xpose.msra.mxu0 0.0
        %5033 = vmatprep.subr.mxu0 0.0
        %5034 = vmatpush1.xpose.msra.mxu0 0.0
        %5035 = vmatprep.subr.mxu0 0.0
        %5036 = vmatpush1.xpose.msra.mxu0 0.0
        %5037 = vmatprep.subr.mxu0 0.0
        %5038 = vmatpush1.xpose.msra.mxu0 0.0
        %5039 = vmatprep.subr.mxu0 0.0
        %5040 = vmatpush1.xpose.msra.mxu0 0.0
        %5041 = vmatprep.subr.mxu0 0.0
        %5042 = vmatpush1.xpose.msra.mxu0 0.0
        %5043 = vmatprep.subr.mxu0 0.0
        %5044 = vmatpush1.xpose.msra.mxu0 0.0
        %5045 = vmatprep.subr.mxu0 0.0
        %5046 = vmatpush1.xpose.msra.mxu0 0.0
        %5047 = vmatprep.subr.mxu0 0.0
        %5048 = vmatpush1.xpose.msra.mxu0 0.0
        %5049 = vmatprep.subr.mxu0 0.0
        %5050 = vmatpush1.xpose.msra.mxu0 0.0
        %5051 = vmatprep.subr.mxu0 0.0
        %5052 = vmatpush1.xpose.msra.mxu0 0.0
        %5053 = vmatprep.subr.mxu0 0.0
        %5054 = vmatpush1.xpose.msra.mxu0 0.0
        %5055 = vmatprep.subr.mxu0 0.0
        %5056 = vmatpush1.xpose.msra.mxu0 0.0
        %5057 = vmatprep.subr.mxu0 0.0
        %5058 = vmatpush1.xpose.msra.mxu0 0.0
        %5059 = vmatprep.subr.mxu0 0.0
        %5060 = vmatpush1.xpose.msra.mxu0 0.0
        %5061 = vmatprep.subr.mxu0 0.0
        %5062 = vmatpush1.xpose.msra.mxu0 0.0
        %5063 = vmatprep.mubr.f32.mxu0 0.0
        %5064 = vmatmul.mubr.f32.gmra.mrb[0].mxu0 %v4995
        %v5065 = vpop.f32.mrb[0].mxu0
        %v5066 = vadd.f32 0.0, %v5065
        %v5067 = vpop.f32.mrb[0].mxu0
        %5068 = vdwg.mxu0
        %v5069 = vmul.f32 %v5066, 0.17677669
        %v5070 = vsel %vm4739, %v5069, -inf
        %5071 = vmax.xlane.f32.xlu0 %v5070
        %v5072 = vpop.xlane.xlu0 %5071
        %v5073 = vsub.f32 %v5069, %v5072
        %v5074 = vmul.f32 %v5073, 1.442695
        %v5075 = vpow.pop %v5074
        %v5076 = vsel %vm4739, %v5075, 0.0
        %5077 = vadd.xlane.f32.xlu0 %v5076
        %v5078 = vpop.xlane.xlu0 %5077
        %v5079 = vrcp.pop %v5078
        %v5080 = vmul.f32 %v5075, %v5079
        %5081 = vrot.lane.b32.xlu0 %v4659, 112
        %v5082 = vpop.permute.xlu0 %5081
        %v5085 = vsel %vm457, %v5080, 0
        %5087 = vmatprep.subr.mxu0 0.0
        %5088 = vmatpush1.msra.mxu0 %v5082
        %5089 = vmatprep.subr.mxu0 0.0
        %5090 = vmatpush1.msra.mxu0 0.0
        %5091 = vmatprep.subr.mxu0 0.0
        %5092 = vmatpush1.msra.mxu0 0.0
        %5093 = vmatprep.subr.mxu0 0.0
        %5094 = vmatpush1.msra.mxu0 0.0
        %5095 = vmatprep.subr.mxu0 0.0
        %5096 = vmatpush1.msra.mxu0 0.0
        %5097 = vmatprep.subr.mxu0 0.0
        %5098 = vmatpush1.msra.mxu0 0.0
        %5099 = vmatprep.subr.mxu0 0.0
        %5100 = vmatpush1.msra.mxu0 0.0
        %5101 = vmatprep.subr.mxu0 0.0
        %5102 = vmatpush1.msra.mxu0 0.0
        %5103 = vmatprep.subr.mxu0 0.0
        %5104 = vmatpush1.msra.mxu0 0.0
        %5105 = vmatprep.subr.mxu0 0.0
        %5106 = vmatpush1.msra.mxu0 0.0
        %5107 = vmatprep.subr.mxu0 0.0
        %5108 = vmatpush1.msra.mxu0 0.0
        %5109 = vmatprep.subr.mxu0 0.0
        %5110 = vmatpush1.msra.mxu0 0.0
        %5111 = vmatprep.subr.mxu0 0.0
        %5112 = vmatpush1.msra.mxu0 0.0
        %5113 = vmatprep.subr.mxu0 0.0
        %5114 = vmatpush1.msra.mxu0 0.0
        %5115 = vmatprep.subr.mxu0 0.0
        %5116 = vmatpush1.msra.mxu0 0.0
        %5117 = vmatprep.subr.mxu0 0.0
        %5118 = vmatpush1.msra.mxu0 0.0
        %5119 = vmatprep.subr.mxu0 0.0
        %5120 = vmatpush1.msra.mxu0 0.0
        %5121 = vmatprep.subr.mxu0 0.0
        %5122 = vmatpush1.msra.mxu0 0.0
        %5123 = vmatprep.subr.mxu0 0.0
        %5124 = vmatpush1.msra.mxu0 0.0
        %5125 = vmatprep.subr.mxu0 0.0
        %5126 = vmatpush1.msra.mxu0 0.0
        %5127 = vmatprep.subr.mxu0 0.0
        %5128 = vmatpush1.msra.mxu0 0.0
        %5129 = vmatprep.subr.mxu0 0.0
        %5130 = vmatpush1.msra.mxu0 0.0
        %5131 = vmatprep.subr.mxu0 0.0
        %5132 = vmatpush1.msra.mxu0 0.0
        %5133 = vmatprep.subr.mxu0 0.0
        %5134 = vmatpush1.msra.mxu0 0.0
        %5135 = vmatprep.subr.mxu0 0.0
        %5136 = vmatpush1.msra.mxu0 0.0
        %5137 = vmatprep.subr.mxu0 0.0
        %5138 = vmatpush1.msra.mxu0 0.0
        %5139 = vmatprep.subr.mxu0 0.0
        %5140 = vmatpush1.msra.mxu0 0.0
        %5141 = vmatprep.subr.mxu0 0.0
        %5142 = vmatpush1.msra.mxu0 0.0
        %5143 = vmatprep.subr.mxu0 0.0
        %5144 = vmatpush1.msra.mxu0 0.0
        %5145 = vmatprep.subr.mxu0 0.0
        %5146 = vmatpush1.msra.mxu0 0.0
        %5147 = vmatprep.subr.mxu0 0.0
        %5148 = vmatpush1.msra.mxu0 0.0
        %5149 = vmatprep.subr.mxu0 0.0
        %5150 = vmatpush1.msra.mxu0 0.0
        %5151 = vmatprep.mubr.f32.mxu0 0.0
        %5152 = vmatmul.mubr.f32.gmra.mrb[0].mxu0 %v5085
        %v5153 = vpop.f32.mrb[0].mxu0
        %v5154 = vadd.f32 0.0, %v5153
        %v5155 = vpop.f32.mrb[0].mxu0
        %5156 = vdwg.mxu0
        %5157 = vrot.lane.b32.xlu0 %v4498, 104
        %v5158 = vpop.permute.xlu0 %5157
        %5159 = vrot.lane.b32.xlu0 %v4580, 104
        %v5160 = vpop.permute.xlu0 %5159
        %v5161 = vsel %vm457, %v5158, 0
        %v5163 = vsel %vm457, %v5160, 0
        %5165 = vmatprep.subr.mxu0 0.0
        %5166 = vmatpush1.xpose.msra.mxu0 %v5163
        %5167 = vmatprep.subr.mxu0 0.0
        %5168 = vmatpush1.xpose.msra.mxu0 0.0
        %5169 = vmatprep.subr.mxu0 0.0
        %5170 = vmatpush1.xpose.msra.mxu0 0.0
        %5171 = vmatprep.subr.mxu0 0.0
        %5172 = vmatpush1.xpose.msra.mxu0 0.0
        %5173 = vmatprep.subr.mxu0 0.0
        %5174 = vmatpush1.xpose.msra.mxu0 0.0
        %5175 = vmatprep.subr.mxu0 0.0
        %5176 = vmatpush1.xpose.msra.mxu0 0.0
        %5177 = vmatprep.subr.mxu0 0.0
        %5178 = vmatpush1.xpose.msra.mxu0 0.0
        %5179 = vmatprep.subr.mxu0 0.0
        %5180 = vmatpush1.xpose.msra.mxu0 0.0
        %5181 = vmatprep.subr.mxu0 0.0
        %5182 = vmatpush1.xpose.msra.mxu0 0.0
        %5183 = vmatprep.subr.mxu0 0.0
        %5184 = vmatpush1.xpose.msra.mxu0 0.0
        %5185 = vmatprep.subr.mxu0 0.0
        %5186 = vmatpush1.xpose.msra.mxu0 0.0
        %5187 = vmatprep.subr.mxu0 0.0
        %5188 = vmatpush1.xpose.msra.mxu0 0.0
        %5189 = vmatprep.subr.mxu0 0.0
        %5190 = vmatpush1.xpose.msra.mxu0 0.0
        %5191 = vmatprep.subr.mxu0 0.0
        %5192 = vmatpush1.xpose.msra.mxu0 0.0
        %5193 = vmatprep.subr.mxu0 0.0
        %5194 = vmatpush1.xpose.msra.mxu0 0.0
        %5195 = vmatprep.subr.mxu0 0.0
        %5196 = vmatpush1.xpose.msra.mxu0 0.0
        %5197 = vmatprep.subr.mxu0 0.0
        %5198 = vmatpush1.xpose.msra.mxu0 0.0
        %5199 = vmatprep.subr.mxu0 0.0
        %5200 = vmatpush1.xpose.msra.mxu0 0.0
        %5201 = vmatprep.subr.mxu0 0.0
        %5202 = vmatpush1.xpose.msra.mxu0 0.0
        %5203 = vmatprep.subr.mxu0 0.0
        %5204 = vmatpush1.xpose.msra.mxu0 0.0
        %5205 = vmatprep.subr.mxu0 0.0
        %5206 = vmatpush1.xpose.msra.mxu0 0.0
        %5207 = vmatprep.subr.mxu0 0.0
        %5208 = vmatpush1.xpose.msra.mxu0 0.0
        %5209 = vmatprep.subr.mxu0 0.0
        %5210 = vmatpush1.xpose.msra.mxu0 0.0
        %5211 = vmatprep.subr.mxu0 0.0
        %5212 = vmatpush1.xpose.msra.mxu0 0.0
        %5213 = vmatprep.subr.mxu0 0.0
        %5214 = vmatpush1.xpose.msra.mxu0 0.0
        %5215 = vmatprep.subr.mxu0 0.0
        %5216 = vmatpush1.xpose.msra.mxu0 0.0
        %5217 = vmatprep.subr.mxu0 0.0
        %5218 = vmatpush1.xpose.msra.mxu0 0.0
        %5219 = vmatprep.subr.mxu0 0.0
        %5220 = vmatpush1.xpose.msra.mxu0 0.0
        %5221 = vmatprep.subr.mxu0 0.0
        %5222 = vmatpush1.xpose.msra.mxu0 0.0
        %5223 = vmatprep.subr.mxu0 0.0
        %5224 = vmatpush1.xpose.msra.mxu0 0.0
        %5225 = vmatprep.subr.mxu0 0.0
        %5226 = vmatpush1.xpose.msra.mxu0 0.0
        %5227 = vmatprep.subr.mxu0 0.0
        %5228 = vmatpush1.xpose.msra.mxu0 0.0
        %5229 = vmatprep.mubr.f32.mxu0 0.0
        %5230 = vmatmul.mubr.f32.gmra.mrb[0].mxu0 %v5161
        %v5231 = vpop.f32.mrb[0].mxu0
        %v5232 = vadd.f32 0.0, %v5231
        %v5233 = vpop.f32.mrb[0].mxu0
        %5234 = vdwg.mxu0
        %v5235 = vmul.f32 %v5232, 0.17677669
        %v5236 = vsel %vm4739, %v5235, -inf
        %5237 = vmax.xlane.f32.xlu0 %v5236
        %v5238 = vpop.xlane.xlu0 %5237
        %v5239 = vsub.f32 %v5235, %v5238
        %v5240 = vmul.f32 %v5239, 1.442695
        %v5241 = vpow.pop %v5240
        %v5242 = vsel %vm4739, %v5241, 0.0
        %5243 = vadd.xlane.f32.xlu0 %v5242
        %v5244 = vpop.xlane.xlu0 %5243
        %v5245 = vrcp.pop %v5244
        %v5246 = vmul.f32 %v5241, %v5245
        %5247 = vrot.lane.b32.xlu0 %v4659, 104
        %v5248 = vpop.permute.xlu0 %5247
        %v5251 = vsel %vm457, %v5246, 0
        %5253 = vmatprep.subr.mxu0 0.0
        %5254 = vmatpush1.msra.mxu0 %v5248
        %5255 = vmatprep.subr.mxu0 0.0
        %5256 = vmatpush1.msra.mxu0 0.0
        %5257 = vmatprep.subr.mxu0 0.0
        %5258 = vmatpush1.msra.mxu0 0.0
        %5259 = vmatprep.subr.mxu0 0.0
        %5260 = vmatpush1.msra.mxu0 0.0
        %5261 = vmatprep.subr.mxu0 0.0
        %5262 = vmatpush1.msra.mxu0 0.0
        %5263 = vmatprep.subr.mxu0 0.0
        %5264 = vmatpush1.msra.mxu0 0.0
        %5265 = vmatprep.subr.mxu0 0.0
        %5266 = vmatpush1.msra.mxu0 0.0
        %5267 = vmatprep.subr.mxu0 0.0
        %5268 = vmatpush1.msra.mxu0 0.0
        %5269 = vmatprep.subr.mxu0 0.0
        %5270 = vmatpush1.msra.mxu0 0.0
        %5271 = vmatprep.subr.mxu0 0.0
        %5272 = vmatpush1.msra.mxu0 0.0
        %5273 = vmatprep.subr.mxu0 0.0
        %5274 = vmatpush1.msra.mxu0 0.0
        %5275 = vmatprep.subr.mxu0 0.0
        %5276 = vmatpush1.msra.mxu0 0.0
        %5277 = vmatprep.subr.mxu0 0.0
        %5278 = vmatpush1.msra.mxu0 0.0
        %5279 = vmatprep.subr.mxu0 0.0
        %5280 = vmatpush1.msra.mxu0 0.0
        %5281 = vmatprep.subr.mxu0 0.0
        %5282 = vmatpush1.msra.mxu0 0.0
        %5283 = vmatprep.subr.mxu0 0.0
        %5284 = vmatpush1.msra.mxu0 0.0
        %5285 = vmatprep.subr.mxu0 0.0
        %5286 = vmatpush1.msra.mxu0 0.0
        %5287 = vmatprep.subr.mxu0 0.0
        %5288 = vmatpush1.msra.mxu0 0.0
        %5289 = vmatprep.subr.mxu0 0.0
        %5290 = vmatpush1.msra.mxu0 0.0
        %5291 = vmatprep.subr.mxu0 0.0
        %5292 = vmatpush1.msra.mxu0 0.0
        %5293 = vmatprep.subr.mxu0 0.0
        %5294 = vmatpush1.msra.mxu0 0.0
        %5295 = vmatprep.subr.mxu0 0.0
        %5296 = vmatpush1.msra.mxu0 0.0
        %5297 = vmatprep.subr.mxu0 0.0
        %5298 = vmatpush1.msra.mxu0 0.0
        %5299 = vmatprep.subr.mxu0 0.0
        %5300 = vmatpush1.msra.mxu0 0.0
        %5301 = vmatprep.subr.mxu0 0.0
        %5302 = vmatpush1.msra.mxu0 0.0
        %5303 = vmatprep.subr.mxu0 0.0
        %5304 = vmatpush1.msra.mxu0 0.0
        %5305 = vmatprep.subr.mxu0 0.0
        %5306 = vmatpush1.msra.mxu0 0.0
        %5307 = vmatprep.subr.mxu0 0.0
        %5308 = vmatpush1.msra.mxu0 0.0
        %5309 = vmatprep.subr.mxu0 0.0
        %5310 = vmatpush1.msra.mxu0 0.0
        %5311 = vmatprep.subr.mxu0 0.0
        %5312 = vmatpush1.msra.mxu0 0.0
        %5313 = vmatprep.subr.mxu0 0.0
        %5314 = vmatpush1.msra.mxu0 0.0
        %5315 = vmatprep.subr.mxu0 0.0
        %5316 = vmatpush1.msra.mxu0 0.0
        %5317 = vmatprep.mubr.f32.mxu0 0.0
        %5318 = vmatmul.mubr.f32.gmra.mrb[0].mxu0 %v5251
        %v5319 = vpop.f32.mrb[0].mxu0
        %v5320 = vadd.f32 0.0, %v5319
        %v5321 = vpop.f32.mrb[0].mxu0
        %5322 = vdwg.mxu0
        %5324 = vrot.lane.b32.xlu0 %v4988, 8
        %v5325 = vpop.permute.xlu0 %5324
        %5328 = vrot.lane.b32.xlu0 %v5154, 16
        %v5329 = vpop.permute.xlu0 %5328
        %5332 = vrot.lane.b32.xlu0 %v5320, 24
        %v5333 = vpop.permute.xlu0 %5332
        %v5335 = vsel %vm457, %v4821, %v5325
        %v5336 = vsel %vm306, %v5335, %v5329
        %v5337 = vsel %vm1132, %v5336, %v5333
        %v5338 = vadd.f32 %v4498, %v5337
        %v5339 = vld [vmem:[#allocation5 + $0x388] sm:$0x1]
        %v5340 = vld [vmem:[#allocation5 + $0x390] sm:$0x1]
        %vm5341 = vcmask 253952
        %v5342 = vsel %vm5341, %v5338, 0.0
        %5343 = vadd.xlane.f32.xlu0 %v5342
        %v5344 = vpop.xlane.xlu0 %5343
        %v5345 = vmul.f32 %v5344, %v1140
        %v5346 = vsub.f32 %v5338, %v5345
        %v5347 = vmul.f32 %v5346, %v5346
        %v5348 = vsel %vm5341, %v5347, 0.0
        %5349 = vadd.xlane.f32.xlu0 %v5348
        %v5350 = vpop.xlane.xlu0 %5349
        %v5351 = vmul.f32 %v5350, %v1140
        %v5352 = vadd.f32 %v5351, 1e-05
        %v5353 = vrsqrt.pop %v5352
        %v5354 = vmul.f32 %v5346, %v5353
        %v5355 = vmul.f32 %v5354, %v5339
        %v5356 = vadd.f32 %v5355, %v5340
        %v5357 = vld [vmem:[#allocation5 + $0x360] sm:$0xff]
        %v5358 = vld [vmem:[#allocation5 + $0x368] sm:$0xff]
        %v5359 = vld [vmem:[#allocation5 + $0x370] sm:$0xff]
        %v5360 = vld [vmem:[#allocation5 + $0x378] sm:$0xff]
        %v5361 = vld [vmem:[#allocation5 + $0x380] sm:$0x1]
        %v5363 = vsel %vm225, %v5356, 0
        %5365 = vmatprep.subr.mxu0 0.0
        %5366 = vmatpush1.msra.mxu0 %v5357
        %5367 = vmatprep.subr.mxu0 0.0
        %5368 = vmatpush1.msra.mxu0 %v5358
        %5369 = vmatprep.subr.mxu0 0.0
        %5370 = vmatpush1.msra.mxu0 %v5359
        %5371 = vmatprep.subr.mxu0 0.0
        %5372 = vmatpush1.msra.mxu0 %v5360
        %5373 = vmatprep.subr.mxu0 0.0
        %5374 = vmatpush1.msra.mxu0 0.0
        %5375 = vmatprep.subr.mxu0 0.0
        %5376 = vmatpush1.msra.mxu0 0.0
        %5377 = vmatprep.subr.mxu0 0.0
        %5378 = vmatpush1.msra.mxu0 0.0
        %5379 = vmatprep.subr.mxu0 0.0
        %5380 = vmatpush1.msra.mxu0 0.0
        %5381 = vmatprep.subr.mxu0 0.0
        %5382 = vmatpush1.msra.mxu0 0.0
        %5383 = vmatprep.subr.mxu0 0.0
        %5384 = vmatpush1.msra.mxu0 0.0
        %5385 = vmatprep.subr.mxu0 0.0
        %5386 = vmatpush1.msra.mxu0 0.0
        %5387 = vmatprep.subr.mxu0 0.0
        %5388 = vmatpush1.msra.mxu0 0.0
        %5389 = vmatprep.subr.mxu0 0.0
        %5390 = vmatpush1.msra.mxu0 0.0
        %5391 = vmatprep.subr.mxu0 0.0
        %5392 = vmatpush1.msra.mxu0 0.0
        %5393 = vmatprep.subr.mxu0 0.0
        %5394 = vmatpush1.msra.mxu0 0.0
        %5395 = vmatprep.subr.mxu0 0.0
        %5396 = vmatpush1.msra.mxu0 0.0
        %5397 = vmatprep.subr.mxu0 0.0
        %5398 = vmatpush1.msra.mxu0 0.0
        %5399 = vmatprep.subr.mxu0 0.0
        %5400 = vmatpush1.msra.mxu0 0.0
        %5401 = vmatprep.subr.mxu0 0.0
        %5402 = vmatpush1.msra.mxu0 0.0
        %5403 = vmatprep.subr.mxu0 0.0
        %5404 = vmatpush1.msra.mxu0 0.0
        %5405 = vmatprep.subr.mxu0 0.0
        %5406 = vmatpush1.msra.mxu0 0.0
        %5407 = vmatprep.subr.mxu0 0.0
        %5408 = vmatpush1.msra.mxu0 0.0
        %5409 = vmatprep.subr.mxu0 0.0
        %5410 = vmatpush1.msra.mxu0 0.0
        %5411 = vmatprep.subr.mxu0 0.0
        %5412 = vmatpush1.msra.mxu0 0.0
        %5413 = vmatprep.subr.mxu0 0.0
        %5414 = vmatpush1.msra.mxu0 0.0
        %5415 = vmatprep.subr.mxu0 0.0
        %5416 = vmatpush1.msra.mxu0 0.0
        %5417 = vmatprep.subr.mxu0 0.0
        %5418 = vmatpush1.msra.mxu0 0.0
        %5419 = vmatprep.subr.mxu0 0.0
        %5420 = vmatpush1.msra.mxu0 0.0
        %5421 = vmatprep.subr.mxu0 0.0
        %5422 = vmatpush1.msra.mxu0 0.0
        %5423 = vmatprep.subr.mxu0 0.0
        %5424 = vmatpush1.msra.mxu0 0.0
        %5425 = vmatprep.subr.mxu0 0.0
        %5426 = vmatpush1.msra.mxu0 0.0
        %5427 = vmatprep.subr.mxu0 0.0
        %5428 = vmatpush1.msra.mxu0 0.0
        %5429 = vmatprep.mubr.f32.mxu0 0.0
        %5430 = vmatmul.mubr.f32.gmra.mrb[0].mxu0 %v5363
        %v5431 = vpop.f32.mrb[0].mxu0
        %v5432 = vadd.f32 %v5361, %v5431
        %v5433 = vpop.f32.mrb[0].mxu0
        %5434 = vdwg.mxu0
        %v5435 = vmax.f32 %v5432, 0.0
        %v5436 = vadd.f32 %v5356, %v5435
        %v5437 = vld [vmem:[#allocation5 + $0x398] sm:$0x1]
        %v5438 = vld [vmem:[#allocation5 + $0x3a0] sm:$0x1]
        %v5439 = vsel %vm5341, %v5436, 0.0
        %5440 = vadd.xlane.f32.xlu0 %v5439
        %v5441 = vpop.xlane.xlu0 %5440
        %v5442 = vmul.f32 %v5441, %v1140
        %v5443 = vsub.f32 %v5436, %v5442
        %v5444 = vmul.f32 %v5443, %v5443
        %v5445 = vsel %vm5341, %v5444, 0.0
        %5446 = vadd.xlane.f32.xlu0 %v5445
        %v5447 = vpop.xlane.xlu0 %5446
        %v5448 = vmul.f32 %v5447, %v1140
        %v5449 = vadd.f32 %v5448, 1e-05
        %v5450 = vrsqrt.pop %v5449
        %v5451 = vmul.f32 %v5443, %v5450
        %v5452 = vmul.f32 %v5451, %v5437
        %v5453 = vadd.f32 %v5452, %v5438
        %v5454 = vld [vmem:[#allocation5 + $0x3a8] sm:$0xff]
        %v5455 = vld [vmem:[#allocation5 + $0x3b0] sm:$0xff]
        %v5456 = vld [vmem:[#allocation5 + $0x3b8] sm:$0xff]
        %v5457 = vld [vmem:[#allocation5 + $0x3c0] sm:$0xff]
        %v5458 = vld [vmem:[#allocation5 + $0x3c8] sm:$0x1]
        %v5460 = vsel %vm225, %v5453, 0
        %5462 = vmatprep.subr.mxu0 0.0
        %5463 = vmatpush1.msra.mxu0 %v5454
        %5464 = vmatprep.subr.mxu0 0.0
        %5465 = vmatpush1.msra.mxu0 %v5455
        %5466 = vmatprep.subr.mxu0 0.0
        %5467 = vmatpush1.msra.mxu0 %v5456
        %5468 = vmatprep.subr.mxu0 0.0
        %5469 = vmatpush1.msra.mxu0 %v5457
        %5470 = vmatprep.subr.mxu0 0.0
        %5471 = vmatpush1.msra.mxu0 0.0
        %5472 = vmatprep.subr.mxu0 0.0
        %5473 = vmatpush1.msra.mxu0 0.0
        %5474 = vmatprep.subr.mxu0 0.0
        %5475 = vmatpush1.msra.mxu0 0.0
        %5476 = vmatprep.subr.mxu0 0.0
        %5477 = vmatpush1.msra.mxu0 0.0
        %5478 = vmatprep.subr.mxu0 0.0
        %5479 = vmatpush1.msra.mxu0 0.0
        %5480 = vmatprep.subr.mxu0 0.0
        %5481 = vmatpush1.msra.mxu0 0.0
        %5482 = vmatprep.subr.mxu0 0.0
        %5483 = vmatpush1.msra.mxu0 0.0
        %5484 = vmatprep.subr.mxu0 0.0
        %5485 = vmatpush1.msra.mxu0 0.0
        %5486 = vmatprep.subr.mxu0 0.0
        %5487 = vmatpush1.msra.mxu0 0.0
        %5488 = vmatprep.subr.mxu0 0.0
        %5489 = vmatpush1.msra.mxu0 0.0
        %5490 = vmatprep.subr.mxu0 0.0
        %5491 = vmatpush1.msra.mxu0 0.0
        %5492 = vmatprep.subr.mxu0 0.0
        %5493 = vmatpush1.msra.mxu0 0.0
        %5494 = vmatprep.subr.mxu0 0.0
        %5495 = vmatpush1.msra.mxu0 0.0
        %5496 = vmatprep.subr.mxu0 0.0
        %5497 = vmatpush1.msra.mxu0 0.0
        %5498 = vmatprep.subr.mxu0 0.0
        %5499 = vmatpush1.msra.mxu0 0.0
        %5500 = vmatprep.subr.mxu0 0.0
        %5501 = vmatpush1.msra.mxu0 0.0
        %5502 = vmatprep.subr.mxu0 0.0
        %5503 = vmatpush1.msra.mxu0 0.0
        %5504 = vmatprep.subr.mxu0 0.0
        %5505 = vmatpush1.msra.mxu0 0.0
        %5506 = vmatprep.subr.mxu0 0.0
        %5507 = vmatpush1.msra.mxu0 0.0
        %5508 = vmatprep.subr.mxu0 0.0
        %5509 = vmatpush1.msra.mxu0 0.0
        %5510 = vmatprep.subr.mxu0 0.0
        %5511 = vmatpush1.msra.mxu0 0.0
        %5512 = vmatprep.subr.mxu0 0.0
        %5513 = vmatpush1.msra.mxu0 0.0
        %5514 = vmatprep.subr.mxu0 0.0
        %5515 = vmatpush1.msra.mxu0 0.0
        %5516 = vmatprep.subr.mxu0 0.0
        %5517 = vmatpush1.msra.mxu0 0.0
        %5518 = vmatprep.subr.mxu0 0.0
        %5519 = vmatpush1.msra.mxu0 0.0
        %5520 = vmatprep.subr.mxu0 0.0
        %5521 = vmatpush1.msra.mxu0 0.0
        %5522 = vmatprep.subr.mxu0 0.0
        %5523 = vmatpush1.msra.mxu0 0.0
        %5524 = vmatprep.subr.mxu0 0.0
        %5525 = vmatpush1.msra.mxu0 0.0
        %5526 = vmatprep.mubr.f32.mxu0 0.0
        %5527 = vmatmul.mubr.f32.gmra.mrb[0].mxu0 %v5460
        %v5528 = vpop.f32.mrb[0].mxu0
        %v5529 = vadd.f32 %v5458, %v5528
        %v5530 = vpop.f32.mrb[0].mxu0
        %5531 = vdwg.mxu0
        %v5532 = vmax.f32 %v5529, 0.0
        %v5533 = vld [vmem:[#allocation5 + $0x3d0] sm:$0xff]
        %v5534 = vld [vmem:[#allocation5 + $0x3d8] sm:$0xff]
        %v5535 = vld [vmem:[#allocation5 + $0x3e0] sm:$0xff]
        %v5536 = vld [vmem:[#allocation5 + $0x3e8] sm:$0xff]
        %v5537 = vld [vmem:[#allocation5 + $0x3f0] sm:$0x1]
        %v5539 = vsel %vm225, %v5532, 0
        %5541 = vmatprep.subr.mxu0 0.0
        %5542 = vmatpush1.msra.mxu0 %v5533
        %5543 = vmatprep.subr.mxu0 0.0
        %5544 = vmatpush1.msra.mxu0 %v5534
        %5545 = vmatprep.subr.mxu0 0.0
        %5546 = vmatpush1.msra.mxu0 %v5535
        %5547 = vmatprep.subr.mxu0 0.0
        %5548 = vmatpush1.msra.mxu0 %v5536
        %5549 = vmatprep.subr.mxu0 0.0
        %5550 = vmatpush1.msra.mxu0 0.0
        %5551 = vmatprep.subr.mxu0 0.0
        %5552 = vmatpush1.msra.mxu0 0.0
        %5553 = vmatprep.subr.mxu0 0.0
        %5554 = vmatpush1.msra.mxu0 0.0
        %5555 = vmatprep.subr.mxu0 0.0
        %5556 = vmatpush1.msra.mxu0 0.0
        %5557 = vmatprep.subr.mxu0 0.0
        %5558 = vmatpush1.msra.mxu0 0.0
        %5559 = vmatprep.subr.mxu0 0.0
        %5560 = vmatpush1.msra.mxu0 0.0
        %5561 = vmatprep.subr.mxu0 0.0
        %5562 = vmatpush1.msra.mxu0 0.0
        %5563 = vmatprep.subr.mxu0 0.0
        %5564 = vmatpush1.msra.mxu0 0.0
        %5565 = vmatprep.subr.mxu0 0.0
        %5566 = vmatpush1.msra.mxu0 0.0
        %5567 = vmatprep.subr.mxu0 0.0
        %5568 = vmatpush1.msra.mxu0 0.0
        %5569 = vmatprep.subr.mxu0 0.0
        %5570 = vmatpush1.msra.mxu0 0.0
        %5571 = vmatprep.subr.mxu0 0.0
        %5572 = vmatpush1.msra.mxu0 0.0
        %5573 = vmatprep.subr.mxu0 0.0
        %5574 = vmatpush1.msra.mxu0 0.0
        %5575 = vmatprep.subr.mxu0 0.0
        %5576 = vmatpush1.msra.mxu0 0.0
        %5577 = vmatprep.subr.mxu0 0.0
        %5578 = vmatpush1.msra.mxu0 0.0
        %5579 = vmatprep.subr.mxu0 0.0
        %5580 = vmatpush1.msra.mxu0 0.0
        %5581 = vmatprep.subr.mxu0 0.0
        %5582 = vmatpush1.msra.mxu0 0.0
        %5583 = vmatprep.subr.mxu0 0.0
        %5584 = vmatpush1.msra.mxu0 0.0
        %5585 = vmatprep.subr.mxu0 0.0
        %5586 = vmatpush1.msra.mxu0 0.0
        %5587 = vmatprep.subr.mxu0 0.0
        %5588 = vmatpush1.msra.mxu0 0.0
        %5589 = vmatprep.subr.mxu0 0.0
        %5590 = vmatpush1.msra.mxu0 0.0
        %5591 = vmatprep.subr.mxu0 0.0
        %5592 = vmatpush1.msra.mxu0 0.0
        %5593 = vmatprep.subr.mxu0 0.0
        %5594 = vmatpush1.msra.mxu0 0.0
        %5595 = vmatprep.subr.mxu0 0.0
        %5596 = vmatpush1.msra.mxu0 0.0
        %5597 = vmatprep.subr.mxu0 0.0
        %5598 = vmatpush1.msra.mxu0 0.0
        %5599 = vmatprep.subr.mxu0 0.0
        %5600 = vmatpush1.msra.mxu0 0.0
        %5601 = vmatprep.subr.mxu0 0.0
        %5602 = vmatpush1.msra.mxu0 0.0
        %5603 = vmatprep.subr.mxu0 0.0
        %5604 = vmatpush1.msra.mxu0 0.0
        %5605 = vmatprep.mubr.f32.mxu0 0.0
        %5606 = vmatmul.mubr.f32.gmra.mrb[0].mxu0 %v5539
        %v5607 = vpop.f32.mrb[0].mxu0
        %v5608 = vadd.f32 %v5537, %v5607
        %v5609 = vpop.f32.mrb[0].mxu0
        %5610 = vdwg.mxu0
        %v5611 = vld [vmem:[%s213] sm:$0x1]
        %vm5612 = vcmp.gt.f32.partialorder %v5611, 0.5
        %v5613 = vsel %vm5612, %v5608, -1e+12
        %v5614 = vsel %vm4739, %v5613, -inf
        %5615 = vmax.xlane.f32.xlu0 %v5614
        %v5616 = vpop.xlane.xlu0 %5615
        %v5617 = vsub.f32 %v5613, %v5616
        %v5618 = vmul.f32 %v5617, 1.442695
        %v5619 = vpow.pop %v5618
        %v5620 = vsel %vm4739, %v5619, 0.0
        %5621 = vadd.xlane.f32.xlu0 %v5620
        %v5622 = vpop.xlane.xlu0 %5621
        %v5623 = vlog2.pop %v5622
        %v5624 = vmul.f32 %v5623, 0.6931472
        %v5625 = vadd.f32 %v5616, %v5624
        %v5626 = vsub.f32 %v5613, %v5625
        %v5628 = vlaneseq
        %v5629 = vshrl.u32 %v5628, 7
        %v5630 = vsub.s32 0, %v5629
        %v5631 = vrot.slane %v5626, %v5630
        %5632 = vrot.lane.b32.xlu0 %v5631, 8
        %v5633 = vpop.permute.xlu0 %5632
        %v5635 = vsel %vm457, %v5613, %v5633
        %vm5636 = vcmask 122880
        %5637 = vst.msk [vmem:[%s210] sm:$0x1] %vm5636, %v5635
        %s5638 = sand.u32 %s102, 1
        %s5639 = scalar_lea.sflag [#allocation4], %s5638
        %s5640 = sand.u32 %s102, 1
        %s5641 = scalar_lea.vmem [#allocation7], %s5640
        // Predicated region
        $region41: #{tpu_custom_call.1} parent=31 // pred_check
          %p5642 = pneg %p112
        $region42: #{tpu_custom_call.1} parent=31 // pred_check_branch
          %5644 = sbr.rel (%p5642) target = $region44
        $region43: #{tpu_custom_call.1} parent=31 // pred_region
          %s5646 = ssub.s32 16, 16
          %5647 = vsyncadd %s5639, %s5646
          %s5648 = smul.addr %s21, 16
          %s5649 = scalar_lea.hbm %s3, %s5648
          %s5651 = sshll.u32 %s5641, 4
          %s5652 = int_to_ptr.vmem [resolvable:$true] %s5651
          %5654 = dma.vmem_to_hbm [thread:$0]  %s5652, 16, %s5649, %s5639
        $region44: #{tpu_custom_call.1} parent=31 // pred_fallthru
          _
      $region32: #{tpu_custom_call.1} parent=5 // pred_fallthru
        _
      %p5655 = scmp.le.s32.totalorder 2, %s16
      // Predicated region
      $region45: #{tpu_custom_call.1} parent=5 // pred_check
        %p5656 = pneg %p5655
      $region46: #{tpu_custom_call.1} parent=5 // pred_check_branch
        %5658 = sbr.rel (%p5656) target = $region48
      $region47: #{tpu_custom_call.1} parent=5 // pred_region
        %s5659 = ssub.s32 %s16, 2
        // Predicated region
        $region49: #{tpu_custom_call.1} parent=47 // pred_check
          %p5660 = pneg %p118
        $region50: #{tpu_custom_call.1} parent=47 // pred_check_branch
          %5662 = sbr.rel (%p5660) target = $region52
        $region51: #{tpu_custom_call.1} parent=47 // pred_region
          %s5663 = sand.u32 %s103, 1
          %s5664 = scalar_lea.sflag [#allocation4], %s5663
          %s5665 = sand.u32 %s103, 1
          %s5666 = scalar_lea.vmem [#allocation7], %s5665
          %5667 = dma.done %s5664, 16
        $region52: #{tpu_custom_call.1} parent=47 // pred_fallthru
          _
      $region48: #{tpu_custom_call.1} parent=5 // pred_fallthru
        _
    $region6: #{tpu_custom_call.1} parent=1 // loop_footer
      %s20 = sadd.s32 1, %s16
    $region7: #{tpu_custom_call.1} parent=1 // loop_footer_branch
      %15 = sbr.rel target = $region3
    $region8: #{tpu_custom_call.1} parent=1 // loop_exit
      _
    %5668 = vsyncpa [#allocation3], 1
    %s5669 = scalar_lea.sflag [#allocation3], 1
    %5670 = vsyncpa %s5669, 1
    %5671 = vsyncpa [#allocation6], 1
    %5672 = vsyncpa [#allocation4], 1
    %s5673 = scalar_lea.sflag [#allocation4], 1
    %5674 = vsyncpa %s5673, 1

</llo_original>
